<compile_context>
chip_gen: v6e
topology: v6e:2x2x1
jax: 0.10.0
libtpu: 0.0.40
codegen_flags: <defaults>
</compile_context>

<pallas_src>
import functools
import math

import numpy as np

import jax
import jax.numpy as jnp
from jax.experimental import pallas as pl
from jax.experimental.pallas import tpu as pltpu

# 48 MiB: inside the v7x 64 MiB physical VMEM, plenty for v5e/v6e (128 MiB);
# per-step block footprints below stay well under it.
_VMEM_LIMIT = 48 * 1024 * 1024


def _gelu(x):
    c = 0.7978845608028654  # sqrt(2/pi)
    return 0.5 * x * (1.0 + jnp.tanh(c * (x + 0.044715 * x * x * x)))


def _round_up(n, m):
    return ((n + m - 1) // m) * m


def _pick_tile_n(n_pad, tile_n):
    """Clamp tile, and keep >=2 blocks so the v7x megacore can shard the axis."""
    tile_n = min(tile_n, n_pad)
    if tile_n >= n_pad and n_pad >= 256:
        tile_n = _round_up(n_pad // 2, 128)
    return tile_n


# ----------------------------------------------------------------------------
# Pallas kernel 1: channel-first fused linear
#   y (Cout, tile_n) = [gelu]( W (Cout,Cin) @ x (Cin,tile_n) + b (Cout,1)
#                              [+ skip (Cout,tile_n)] )
# Covers fc0 and the 1x1 Conv1d "w" branch fused with the spectral skip-add
# and the activation.  Output last dim = tile_n (multiple of 128) -> lane
# dense stores.  Matmul operands bf16, accumulation f32; skip arrives bf16.
# ----------------------------------------------------------------------------
def _make_linear_kernel(has_skip, apply_act):
    if has_skip:
        def kernel(x_ref, s_ref, w_ref, b_ref, o_ref):
            y = jnp.dot(w_ref[...], x_ref[...],
                        preferred_element_type=jnp.float32)
            y = y + b_ref[...] + s_ref[...].astype(jnp.float32)
            if apply_act:
                y = _gelu(y)
            o_ref[...] = y.astype(o_ref.dtype)
    else:
        def kernel(x_ref, w_ref, b_ref, o_ref):
            y = jnp.dot(w_ref[...], x_ref[...],
                        preferred_element_type=jnp.float32)
            y = y + b_ref[...]
            if apply_act:
                y = _gelu(y)
            o_ref[...] = y.astype(o_ref.dtype)
    return kernel


def pallas_linear_cf(x, w, b, skip=None, apply_act=False,
                     out_dtype=jnp.bfloat16, tile_n=8192):
    """Channel-first linear: x (Cin, N) -> (Cout, N), tiled over N (lanes)."""
    cin, n = x.shape
    cout = w.shape[0]
    n_pad = _round_up(n, 128)
    if n_pad != n:  # not hit for typical FNO grid sizes
        x = jnp.pad(x, ((0, 0), (0, n_pad - n)))
        if skip is not None:
            skip = jnp.pad(skip, ((0, 0), (0, n_pad - n)))
    tile_n = _pick_tile_n(n_pad, tile_n)
    grid = (pl.cdiv(n_pad, tile_n),)

    # TODO(synk): on v7x, if the x/skip DMA shows up as exposed latency, add
    #             pipeline_mode=pl.Buffered(3) on these two BlockSpecs.
    args = [x]
    in_specs = [pl.BlockSpec((cin, tile_n), lambda i: (0, i))]
    if skip is not None:
        args.append(skip)
        in_specs.append(pl.BlockSpec((cout, tile_n), lambda i: (0, i)))
    args += [w, b]
    in_specs += [pl.BlockSpec((cout, cin), lambda i: (0, 0)),
                 pl.BlockSpec((cout, 1), lambda i: (0, 0))]

    out = pl.pallas_call(
        _make_linear_kernel(skip is not None, apply_act),
        out_shape=jax.ShapeDtypeStruct((cout, n_pad), out_dtype),
        grid=grid,
        in_specs=in_specs,
        out_specs=pl.BlockSpec((cout, tile_n), lambda i: (0, i)),
        compiler_params=pltpu.CompilerParams(
            dimension_semantics=("parallel",),
            vmem_limit_bytes=_VMEM_LIMIT),
    )(*args)
    return out[:, :n] if n_pad != n else out


# ----------------------------------------------------------------------------
# Pallas kernel 2: fused head  fc2( gelu( fc1(x) ) )
# The (fc_dim, tile_n) intermediate stays on-chip; the gelu runs in bf16
# (halves the VMEM temp and EUP cost on v6e/v7x; legalized on v5e).
# ----------------------------------------------------------------------------
def _head_kernel(x_ref, w1_ref, b1_ref, w2_ref, b2_ref, o_ref):
    t = jnp.dot(w1_ref[...], x_ref[...], preferred_element_type=jnp.float32)
    t = _gelu((t + b1_ref[...]).astype(jnp.bfloat16))
    y = jnp.dot(w2_ref[...], t.astype(w2_ref.dtype),
                preferred_element_type=jnp.float32)
    o_ref[...] = (y + b2_ref[...]).astype(o_ref.dtype)


def pallas_head_cf(x, w1, b1, w2, b2, tile_n=4096):
    width, n = x.shape
    fc_dim = w1.shape[0]
    out_dim = w2.shape[0]
    n_pad = _round_up(n, 128)
    if n_pad != n:
        x = jnp.pad(x, ((0, 0), (0, n_pad - n)))
    tile_n = _pick_tile_n(n_pad, tile_n)
    grid = (pl.cdiv(n_pad, tile_n),)
    out = pl.pallas_call(
        _head_kernel,
        out_shape=jax.ShapeDtypeStruct((out_dim, n_pad), jnp.float32),
        grid=grid,
        in_specs=[pl.BlockSpec((width, tile_n), lambda i: (0, i)),
                  pl.BlockSpec((fc_dim, width), lambda i: (0, 0)),
                  pl.BlockSpec((fc_dim, 1), lambda i: (0, 0)),
                  pl.BlockSpec((out_dim, fc_dim), lambda i: (0, 0)),
                  pl.BlockSpec((out_dim, 1), lambda i: (0, 0))],
        out_specs=pl.BlockSpec((out_dim, tile_n), lambda i: (0, i)),
        compiler_params=pltpu.CompilerParams(
            dimension_semantics=("parallel",),
            vmem_limit_bytes=_VMEM_LIMIT),
    )(x, w1, b1, w2, b2)
    return out[:, :n] if n_pad != n else out


# ----------------------------------------------------------------------------
# Pallas kernel 3: per-Fourier-mode complex channel mixing, lane-dense.
#   out[co, b, m] = sum_ci x[ci, b, m] * w[ci, co, m]     (complex, per mode m)
# Modes m are on the 128-lane axis; the ci contraction is unrolled on the VPU
# (weights are broadcast over b, activations over co), so no tiny MXU pushes
# and no block-complex weight duplication.  Weights stream as bf16.
# ----------------------------------------------------------------------------
def _cmix_kernel(xr_ref, xi_ref, wr_ref, wi_ref, or_ref, oi_ref):
    ci = xr_ref.shape[0]
    acc_r = jnp.zeros(or_ref.shape, jnp.float32)
    acc_i = jnp.zeros(oi_ref.shape, jnp.float32)
    for i in range(ci):  # static unroll over input channels
        xr = xr_ref[i][None, :, :].astype(jnp.float32)   # (1, B, tm)
        xi = xi_ref[i][None, :, :].astype(jnp.float32)
        wr = wr_ref[i][:, None, :].astype(jnp.float32)   # (Co, 1, tm)
        wi = wi_ref[i][:, None, :].astype(jnp.float32)
        acc_r = acc_r + wr * xr - wi * xi
        acc_i = acc_i + wi * xr + wr * xi
    or_ref[...] = acc_r
    oi_ref[...] = acc_i


def pallas_cmix(xr, xi, wr, wi, tile_m=512):
    ci, b, m = xr.shape
    co = wr.shape[1]
    tile_m = min(tile_m, _round_up(m, 128))
    m_pad = _round_up(m, tile_m)
    if m_pad != m:
        pad3 = ((0, 0), (0, 0), (0, m_pad - m))
        xr = jnp.pad(xr, pad3)
        xi = jnp.pad(xi, pad3)
        wr = jnp.pad(wr, pad3)
        wi = jnp.pad(wi, pad3)
    grid = (m_pad // tile_m,)
    out_r, out_i = pl.pallas_call(
        _cmix_kernel,
        out_shape=(jax.ShapeDtypeStruct((co, b, m_pad), jnp.float32),
                   jax.ShapeDtypeStruct((co, b, m_pad), jnp.float32)),
        grid=grid,
        in_specs=[pl.BlockSpec((ci, b, tile_m), lambda i: (0, 0, i)),
                  pl.BlockSpec((ci, b, tile_m), lambda i: (0, 0, i)),
                  pl.BlockSpec((ci, co, tile_m), lambda i: (0, 0, i)),
                  pl.BlockSpec((ci, co, tile_m), lambda i: (0, 0, i))],
        out_specs=(pl.BlockSpec((co, b, tile_m), lambda i: (0, 0, i)),
                   pl.BlockSpec((co, b, tile_m), lambda i: (0, 0, i))),
        compiler_params=pltpu.CompilerParams(
            dimension_semantics=("parallel",),
            vmem_limit_bytes=_VMEM_LIMIT),
    )(xr, xi, wr, wi)
    if m_pad != m:
        out_r = out_r[:, :, :m]
        out_i = out_i[:, :, :m]
    return out_r, out_i


# ----------------------------------------------------------------------------
# Truncated-DFT bases (built from static shapes -> compile-time constants).
# Forward:  F[p, j] = exp(-2*pi*i * k_j * p / n)
# Inverse:  G[j, p] = c_j * exp(+2*pi*i * k_j * p / n) / n, with c doubling the
#           positive rfft modes (matching irfft's Hermitian reconstruction);
#           the final real part is taken after the last expansion.
# ----------------------------------------------------------------------------
def make_dft_basis(spatial, modes):
    _, X, Y, Z, T = spatial
    m1, m2, m3, m4 = modes
    assert X >= 2 * m1 and Y >= 2 * m2 and Z >= 2 * m3, "overlapping corners"
    assert m4 <= T // 2 + 1, "too many t modes"

    def fwd(n, m, rfft_axis):
        k = (np.arange(m) if rfft_axis
             else np.concatenate([np.arange(m), np.arange(n - m, n)]))
        ang = 2.0 * np.pi * np.outer(np.arange(n), k) / n
        return (jnp.asarray(np.cos(ang), jnp.float32),
                jnp.asarray(-np.sin(ang), jnp.float32))

    def inv(n, m, rfft_axis):
        if rfft_axis:
            k = np.arange(m)
            c = np.where((k == 0) | (2 * k == n), 1.0, 2.0)
        else:
            k = np.concatenate([np.arange(m), np.arange(n - m, n)])
            c = np.ones(2 * m)
        ang = 2.0 * np.pi * np.outer(k, np.arange(n)) / n
        return (jnp.asarray(c[:, None] * np.cos(ang) / n, jnp.float32),
                jnp.asarray(c[:, None] * np.sin(ang) / n, jnp.float32))

    return {"t_f": fwd(T, m4, True), "z_f": fwd(Z, m3, False),
            "y_f": fwd(Y, m2, False), "x_f": fwd(X, m1, False),
            "x_i": inv(X, m1, False), "y_i": inv(Y, m2, False),
            "z_i": inv(Z, m3, False), "t_i": inv(T, m4, True)}


# ----------------------------------------------------------------------------
# Spectral convolution: per-axis truncated DFT projection (XLA einsums on the
# MXU, only kept modes ever computed), per-mode complex mixing (Pallas,
# lane-dense), inverse truncated DFT expansion.  Channel-first in and out;
# all reshapes are free views of the (C, N) flats.
# ----------------------------------------------------------------------------
def spectral_conv_cf(h_cf, wr, wi, modes, spatial, basis):
    B, X, Y, Z, T = spatial
    C = h_cf.shape[0]
    Co = wr.shape[1]
    m1, m2, m3, m4 = modes
    M = (2 * m1) * (2 * m2) * (2 * m3) * m4

    ftr, fti = basis["t_f"]
    fzr, fzi = basis["z_f"]
    fyr, fyi = basis["y_f"]
    fxr, fxi = basis["x_f"]
    gxr, gxi = basis["x_i"]
    gyr, gyi = basis["y_i"]
    gzr, gzi = basis["z_i"]
    gtr, gti = basis["t_i"]

    h = h_cf.reshape(C, B, X, Y, Z, T)            # free view, stays bf16

    # ---- forward truncated DFT (project onto the kept-mode product grid) ----
    hr = jnp.einsum("cbxyzt,tp->cbxyzp", h, ftr)
    hi = jnp.einsum("cbxyzt,tp->cbxyzp", h, fti)
    hr, hi = (jnp.einsum("cbxyzp,zq->cbxyqp", hr, fzr)
              - jnp.einsum("cbxyzp,zq->cbxyqp", hi, fzi),
              jnp.einsum("cbxyzp,zq->cbxyqp", hr, fzi)
              + jnp.einsum("cbxyzp,zq->cbxyqp", hi, fzr))
    hr, hi = (jnp.einsum("cbxyqp,yr->cbxrqp", hr, fyr)
              - jnp.einsum("cbxyqp,yr->cbxrqp", hi, fyi),
              jnp.einsum("cbxyqp,yr->cbxrqp", hr, fyi)
              + jnp.einsum("cbxyqp,yr->cbxrqp", hi, fyr))
    hr, hi = (jnp.einsum("cbxrqp,xs->cbsrqp", hr, fxr)
              - jnp.einsum("cbxrqp,xs->cbsrqp", hi, fxi),
              jnp.einsum("cbxrqp,xs->cbsrqp", hr, fxi)
              + jnp.einsum("cbxrqp,xs->cbsrqp", hi, fxr))

    xr = hr.reshape(C, B, M)                      # (C, B, M) f32
    xi = hi.reshape(C, B, M)

    # ---- per-mode complex channel mixing (one Pallas call for all corners) --
    or_, oi_ = pallas_cmix(xr, xi, wr, wi)        # (Co, B, M) f32 each
    or_ = or_.reshape(Co, B, 2 * m1, 2 * m2, 2 * m3, m4)
    oi_ = oi_.reshape(Co, B, 2 * m1, 2 * m2, 2 * m3, m4)

    # ---- inverse truncated DFT (expand back to the grid; Re at the end) -----
    or_, oi_ = (jnp.einsum("obsrqp,sx->obxrqp", or_, gxr)
                - jnp.einsum("obsrqp,sx->obxrqp", oi_, gxi),
                jnp.einsum("obsrqp,sx->obxrqp", or_, gxi)
                + jnp.einsum("obsrqp,sx->obxrqp", oi_, gxr))
    or_, oi_ = (jnp.einsum("obxrqp,ry->obxyqp", or_, gyr)
                - jnp.einsum("obxrqp,ry->obxyqp", oi_, gyi),
                jnp.einsum("obxrqp,ry->obxyqp", or_, gyi)
                + jnp.einsum("obxrqp,ry->obxyqp", oi_, gyr))
    or_, oi_ = (jnp.einsum("obxyqp,qz->obxyzp", or_, gzr)
                - jnp.einsum("obxyqp,qz->obxyzp", oi_, gzi),
                jnp.einsum("obxyqp,qz->obxyzp", or_, gzi)
                + jnp.einsum("obxyqp,qz->obxyzp", oi_, gzr))
    y = (jnp.einsum("obxyzp,pt->obxyzt", or_, gtr)
         - jnp.einsum("obxyzp,pt->obxyzt", oi_, gti))

    # bf16 skip: the fused w-branch kernel reads 25% fewer HBM bytes.
    return y.reshape(Co, -1).astype(jnp.bfloat16)


# ----------------------------------------------------------------------------
# Parameter init (deterministic, synthetic — matches the shapes of __init__).
# Pointwise weights channel-first (out, in) bf16; biases f32 (out, 1).
# Spectral weights: 8 corner blocks assembled ONCE onto the kept-mode product
# grid -> wr, wi of shape (Ci, Co, M) bf16 (no block-complex duplication).
# ----------------------------------------------------------------------------
def init_params(key, n_layers, width, modes, in_dim, out_dim, fc_dim):
    m1, m2, m3, m4 = modes
    keys = iter(jax.random.split(key, 3 + 2 * n_layers))

    def lin(k, fan_in, fan_out):
        kw, kb = jax.random.split(k)
        bound = 1.0 / math.sqrt(fan_in)
        w = jax.random.uniform(kw, (fan_out, fan_in), jnp.float32, -bound, bound)
        b = jax.random.uniform(kb, (fan_out,), jnp.float32, -bound, bound)
        return w.astype(jnp.bfloat16), b.reshape(fan_out, 1)

    params = {}
    params["fc0_w"], params["fc0_b"] = lin(next(keys), in_dim, width)

    scale = 1.0 / (width * width)
    M = (2 * m1) * (2 * m2) * (2 * m3) * m4
    layers = []
    for _ in range(n_layers):
        k_sp = next(keys)
        # 8 corner blocks, (r/i, Ci, Co, m1, m2, m3, m4); corner order
        # (x lo/hi, y lo/hi, z lo/hi) with z fastest.
        blocks = [scale * jax.random.uniform(
            kc, (2, width, width, m1, m2, m3, m4), jnp.float32)
            for kc in jax.random.split(k_sp, 8)]
        zc = [jnp.concatenate([blocks[i], blocks[i + 1]], axis=5)
              for i in range(0, 8, 2)]
        yc = [jnp.concatenate([zc[i], zc[i + 1]], axis=4) for i in range(0, 4, 2)]
        full = jnp.concatenate([yc[0], yc[1]], axis=3)   # (2,Ci,Co,2m1,2m2,2m3,m4)
        w_r = full[0].reshape(width, width, M).astype(jnp.bfloat16)
        w_i = full[1].reshape(width, width, M).astype(jnp.bfloat16)
        w_pt, b_pt = lin(next(keys), width, width)        # nn.Conv1d(width, width, 1)
        layers.append(dict(w_r=w_r, w_i=w_i, w_pt=w_pt, b_pt=b_pt))
    params["layers"] = layers
    params["fc1_w"], params["fc1_b"] = lin(next(keys), width, fc_dim)
    params["fc2_w"], params["fc2_b"] = lin(next(keys), fc_dim, out_dim)
    return params


# ----------------------------------------------------------------------------
# Full FNO3d forward (LES_coe=True path -> returns only the field).
# ----------------------------------------------------------------------------
def fno3d_forward(x, params, modes):
    # x: (B, X, Y, Z, in_dim, T) — matches the PyTorch input convention.
    B, X, Y, Z, in_dim, T = x.shape
    N = B * X * Y * Z * T
    spatial = (B, X, Y, Z, T)
    basis = make_dft_basis(spatial, modes)

    # permute(0,1,2,3,5,4) + fc0, done channel-first: (in_dim, N) -> (width, N)
    h = jnp.transpose(x, (4, 0, 1, 2, 3, 5)).reshape(in_dim, N)
    h = pallas_linear_cf(h.astype(jnp.bfloat16),
                         params["fc0_w"], params["fc0_b"])      # (width, N) bf16

    n_layers = len(params["layers"])
    for i, lp in enumerate(params["layers"]):
        x1 = spectral_conv_cf(h, lp["w_r"], lp["w_i"],
                              modes, spatial, basis)            # (width, N) bf16
        last = (i == n_layers - 1)
        # x2 = 1x1 conv branch, fused with the skip-add (x1) and activation.
        h = pallas_linear_cf(h, lp["w_pt"], lp["b_pt"],
                             skip=x1, apply_act=not last)       # (width, N) bf16

    # fc1 + act + fc2, fused in one kernel.
    out = pallas_head_cf(h, params["fc1_w"], params["fc1_b"],
                         params["fc2_w"], params["fc2_b"])      # (out_dim, N) f32
    out_dim = params["fc2_w"].shape[0]
    out = out.reshape(out_dim, B, X, Y, Z, T)
    return jnp.transpose(out, (1, 2, 3, 4, 0, 5))               # (B,X,Y,Z,out,T)


# ----------------------------------------------------------------------------
if __name__ == "__main__":
    key = jax.random.PRNGKey(0)

    # Small shapes consistent with the module's forward contract.
    B, X, Y, Z, T = 2, 8, 8, 8, 4
    n_layers, width, fc_dim = 2, 8, 16
    modes = (2, 2, 2, 1)           # (modes1, modes2, modes3, modes4)
    in_dim, out_dim = 7, 3

    params = init_params(key, n_layers, width, modes, in_dim, out_dim, fc_dim)
    kx = jax.random.fold_in(key, 123)
    x = jax.random.normal(kx, (B, X, Y, Z, in_dim, T), dtype=jnp.float32)

    run = jax.jit(functools.partial(fno3d_forward, params=params, modes=modes))
    out = jax.block_until_ready(run(x))

    assert out.shape == (B, X, Y, Z, out_dim, T), out.shape
    assert bool(jnp.all(jnp.isfinite(out)))
    print("KERNEL_OK")
</pallas_src>

<mosaic_0001>
module attributes {stable_mosaic.version = 11 : i64} {
  func.func @kernel(%arg0: i32, %arg1: memref<7x2048xbf16, #tpu.memory_space<vmem>>, %arg2: memref<8x7xbf16, #tpu.memory_space<vmem>>, %arg3: memref<8x1xf32, #tpu.memory_space<vmem>>, %arg4: memref<8x2048xbf16, #tpu.memory_space<vmem>>) attributes {dimension_semantics = [#tpu.dimension_semantics<parallel>], iteration_bounds = array<i64: 2>, scalar_prefetch = 0 : i64, scratch_operands = 0 : i64, tpu.core_type = #tpu.core_type<tc>, window_params = [{transform_indices = @transform_0, window_bounds = array<i64: 7, 2048>}, {pipeline_mode = #tpu.pipeline_mode<synchronous>, transform_indices = @transform_1, window_bounds = array<i64: 8, 7>}, {pipeline_mode = #tpu.pipeline_mode<synchronous>, transform_indices = @transform_2, window_bounds = array<i64: 8, 1>}, {transform_indices = @transform_3, window_bounds = array<i64: 8, 2048>}]} {
    %c0 = arith.constant 0 : index
    %c0_0 = arith.constant 0 : index
    %0 = vector.load %arg2[%c0, %c0_0] : memref<8x7xbf16, #tpu.memory_space<vmem>>, vector<8x7xbf16>
    %c0_1 = arith.constant 0 : index
    %c0_2 = arith.constant 0 : index
    %1 = vector.load %arg1[%c0_1, %c0_2] : memref<7x2048xbf16, #tpu.memory_space<vmem>>, vector<7x2048xbf16>
    %cst = arith.constant dense<0.000000e+00> : vector<8x2048xf32>
    %2 = tpu.matmul %0, %1, %cst {dimension_numbers = #tpu.dot_dimension_numbers<[1], [0], [0], [1], [0, 0, 1, 1], [], []>} : vector<8x7xbf16>, vector<7x2048xbf16>, vector<8x2048xf32> -> vector<8x2048xf32>
    %c0_3 = arith.constant 0 : index
    %c0_4 = arith.constant 0 : index
    %3 = vector.load %arg3[%c0_3, %c0_4] : memref<8x1xf32, #tpu.memory_space<vmem>>, vector<8x1xf32>
    %4 = vector.broadcast %3 : vector<8x1xf32> to vector<8x2048xf32>
    %5 = arith.addf %2, %4 : vector<8x2048xf32>
    %6 = arith.truncf %5 : vector<8x2048xf32> to vector<8x2048xbf16>
    %c0_5 = arith.constant 0 : index
    %c0_6 = arith.constant 0 : index
    %7 = vector.load %arg4[%c0_5, %c0_6] : memref<8x2048xbf16, #tpu.memory_space<vmem>>, vector<8x2048xbf16>
    tpu.vector_store %arg4[%c0_5, %c0_6], %6 {strides = array<i32>} : memref<8x2048xbf16, #tpu.memory_space<vmem>>, vector<8x2048xbf16>,
    return
  }
  func.func @transform_0(%arg0: i32) -> (i32, i32) {
    %c0_i32 = arith.constant 0 : i32
    %c0_i32_0 = arith.constant 0 : i32
    return %c0_i32, %arg0 : i32, i32
  }
  func.func @transform_1(%arg0: i32) -> (i32, i32) {
    %c0_i32 = arith.constant 0 : i32
    %c0_i32_0 = arith.constant 0 : i32
    %c0_i32_1 = arith.constant 0 : i32
    return %c0_i32, %c0_i32_0 : i32, i32
  }
  func.func @transform_2(%arg0: i32) -> (i32, i32) {
    %c0_i32 = arith.constant 0 : i32
    %c0_i32_0 = arith.constant 0 : i32
    %c0_i32_1 = arith.constant 0 : i32
    return %c0_i32, %c0_i32_0 : i32, i32
  }
  func.func @transform_3(%arg0: i32) -> (i32, i32) {
    %c0_i32 = arith.constant 0 : i32
    %c0_i32_0 = arith.constant 0 : i32
    return %c0_i32, %arg0 : i32, i32
  }
}

module attributes {stable_mosaic.version = 11 : i64} {
  func.func @_cmix_kernel(%arg0: i32, %arg1: memref<8x2x128xf32, #tpu.memory_space<vmem>>, %arg2: memref<8x2x128xf32, #tpu.memory_space<vmem>>, %arg3: memref<8x8x128xbf16, #tpu.memory_space<vmem>>, %arg4: memref<8x8x128xbf16, #tpu.memory_space<vmem>>, %arg5: memref<8x2x128xf32, #tpu.memory_space<vmem>>, %arg6: memref<8x2x128xf32, #tpu.memory_space<vmem>>) attributes {dimension_semantics = [#tpu.dimension_semantics<parallel>], iteration_bounds = array<i64: 1>, scalar_prefetch = 0 : i64, scratch_operands = 0 : i64, tpu.core_type = #tpu.core_type<tc>, window_params = [{transform_indices = @transform_0, window_bounds = array<i64: 8, 2, 128>}, {transform_indices = @transform_1, window_bounds = array<i64: 8, 2, 128>}, {transform_indices = @transform_2, window_bounds = array<i64: 8, 8, 128>}, {transform_indices = @transform_3, window_bounds = array<i64: 8, 8, 128>}, {transform_indices = @transform_4, window_bounds = array<i64: 8, 2, 128>}, {transform_indices = @transform_5, window_bounds = array<i64: 8, 2, 128>}]} {
    %cst = arith.constant 0.000000e+00 : f32
    %0 = vector.broadcast %cst : f32 to vector<8x2x128xf32>
    %cst_0 = arith.constant 0.000000e+00 : f32
    %1 = vector.broadcast %cst_0 : f32 to vector<8x2x128xf32>
    %c0 = arith.constant 0 : index
    %c0_1 = arith.constant 0 : index
    %c0_2 = arith.constant 0 : index
    %2 = vector.load %arg1[%c0, %c0_1, %c0_2] : memref<8x2x128xf32, #tpu.memory_space<vmem>>, vector<1x2x128xf32>
    %3 = vector.shape_cast %2 : vector<1x2x128xf32> to vector<2x128xf32>
    %4 = vector.shape_cast %3 : vector<2x128xf32> to vector<1x2x128xf32>
    %c0_3 = arith.constant 0 : index
    %c0_4 = arith.constant 0 : index
    %c0_5 = arith.constant 0 : index
    %5 = vector.load %arg2[%c0_3, %c0_4, %c0_5] : memref<8x2x128xf32, #tpu.memory_space<vmem>>, vector<1x2x128xf32>
    %6 = vector.shape_cast %5 : vector<1x2x128xf32> to vector<2x128xf32>
    %7 = vector.shape_cast %6 : vector<2x128xf32> to vector<1x2x128xf32>
    %c0_6 = arith.constant 0 : index
    %c0_7 = arith.constant 0 : index
    %c0_8 = arith.constant 0 : index
    %8 = vector.load %arg3[%c0_6, %c0_7, %c0_8] : memref<8x8x128xbf16, #tpu.memory_space<vmem>>, vector<1x8x128xbf16>
    %9 = vector.shape_cast %8 : vector<1x8x128xbf16> to vector<8x128xbf16>
    %10 = vector.shape_cast %9 : vector<8x128xbf16> to vector<8x1x128xbf16>
    %11 = arith.extf %10 : vector<8x1x128xbf16> to vector<8x1x128xf32>
    %c0_9 = arith.constant 0 : index
    %c0_10 = arith.constant 0 : index
    %c0_11 = arith.constant 0 : index
    %12 = vector.load %arg4[%c0_9, %c0_10, %c0_11] : memref<8x8x128xbf16, #tpu.memory_space<vmem>>, vector<1x8x128xbf16>
    %13 = vector.shape_cast %12 : vector<1x8x128xbf16> to vector<8x128xbf16>
    %14 = vector.shape_cast %13 : vector<8x128xbf16> to vector<8x1x128xbf16>
    %15 = arith.extf %14 : vector<8x1x128xbf16> to vector<8x1x128xf32>
    %16 = vector.broadcast %11 : vector<8x1x128xf32> to vector<8x2x128xf32>
    %17 = vector.broadcast %4 : vector<1x2x128xf32> to vector<8x2x128xf32>
    %18 = arith.mulf %16, %17 : vector<8x2x128xf32>
    %19 = arith.addf %0, %18 : vector<8x2x128xf32>
    %20 = vector.broadcast %15 : vector<8x1x128xf32> to vector<8x2x128xf32>
    %21 = vector.broadcast %7 : vector<1x2x128xf32> to vector<8x2x128xf32>
    %22 = arith.mulf %20, %21 : vector<8x2x128xf32>
    %23 = arith.subf %19, %22 : vector<8x2x128xf32>
    %24 = vector.broadcast %15 : vector<8x1x128xf32> to vector<8x2x128xf32>
    %25 = vector.broadcast %4 : vector<1x2x128xf32> to vector<8x2x128xf32>
    %26 = arith.mulf %24, %25 : vector<8x2x128xf32>
    %27 = arith.addf %1, %26 : vector<8x2x128xf32>
    %28 = vector.broadcast %11 : vector<8x1x128xf32> to vector<8x2x128xf32>
    %29 = vector.broadcast %7 : vector<1x2x128xf32> to vector<8x2x128xf32>
    %30 = arith.mulf %28, %29 : vector<8x2x128xf32>
    %31 = arith.addf %27, %30 : vector<8x2x128xf32>
    %c1 = arith.constant 1 : index
    %c0_12 = arith.constant 0 : index
    %c0_13 = arith.constant 0 : index
    %32 = vector.load %arg1[%c1, %c0_12, %c0_13] : memref<8x2x128xf32, #tpu.memory_space<vmem>>, vector<1x2x128xf32>
    %33 = vector.shape_cast %32 : vector<1x2x128xf32> to vector<2x128xf32>
    %34 = vector.shape_cast %33 : vector<2x128xf32> to vector<1x2x128xf32>
    %c1_14 = arith.constant 1 : index
    %c0_15 = arith.constant 0 : index
    %c0_16 = arith.constant 0 : index
    %35 = vector.load %arg2[%c1_14, %c0_15, %c0_16] : memref<8x2x128xf32, #tpu.memory_space<vmem>>, vector<1x2x128xf32>
    %36 = vector.shape_cast %35 : vector<1x2x128xf32> to vector<2x128xf32>
    %37 = vector.shape_cast %36 : vector<2x128xf32> to vector<1x2x128xf32>
    %c1_17 = arith.constant 1 : index
    %c0_18 = arith.constant 0 : index
    %c0_19 = arith.constant 0 : index
    %38 = vector.load %arg3[%c1_17, %c0_18, %c0_19] : memref<8x8x128xbf16, #tpu.memory_space<vmem>>, vector<1x8x128xbf16>
    %39 = vector.shape_cast %38 : vector<1x8x128xbf16> to vector<8x128xbf16>
    %40 = vector.shape_cast %39 : vector<8x128xbf16> to vector<8x1x128xbf16>
    %41 = arith.extf %40 : vector<8x1x128xbf16> to vector<8x1x128xf32>
    %c1_20 = arith.constant 1 : index
    %c0_21 = arith.constant 0 : index
    %c0_22 = arith.constant 0 : index
    %42 = vector.load %arg4[%c1_20, %c0_21, %c0_22] : memref<8x8x128xbf16, #tpu.memory_space<vmem>>, vector<1x8x128xbf16>
    %43 = vector.shape_cast %42 : vector<1x8x128xbf16> to vector<8x128xbf16>
    %44 = vector.shape_cast %43 : vector<8x128xbf16> to vector<8x1x128xbf16>
    %45 = arith.extf %44 : vector<8x1x128xbf16> to vector<8x1x128xf32>
    %46 = vector.broadcast %41 : vector<8x1x128xf32> to vector<8x2x128xf32>
    %47 = vector.broadcast %34 : vector<1x2x128xf32> to vector<8x2x128xf32>
    %48 = arith.mulf %46, %47 : vector<8x2x128xf32>
    %49 = arith.addf %23, %48 : vector<8x2x128xf32>
    %50 = vector.broadcast %45 : vector<8x1x128xf32> to vector<8x2x128xf32>
    %51 = vector.broadcast %37 : vector<1x2x128xf32> to vector<8x2x128xf32>
    %52 = arith.mulf %50, %51 : vector<8x2x128xf32>
    %53 = arith.subf %49, %52 : vector<8x2x128xf32>
    %54 = vector.broadcast %45 : vector<8x1x128xf32> to vector<8x2x128xf32>
    %55 = vector.broadcast %34 : vector<1x2x128xf32> to vector<8x2x128xf32>
    %56 = arith.mulf %54, %55 : vector<8x2x128xf32>
    %57 = arith.addf %31, %56 : vector<8x2x128xf32>
    %58 = vector.broadcast %41 : vector<8x1x128xf32> to vector<8x2x128xf32>
    %59 = vector.broadcast %37 : vector<1x2x128xf32> to vector<8x2x128xf32>
    %60 = arith.mulf %58, %59 : vector<8x2x128xf32>
    %61 = arith.addf %57, %60 : vector<8x2x128xf32>
    %c2 = arith.constant 2 : index
    %c0_23 = arith.constant 0 : index
    %c0_24 = arith.constant 0 : index
    %62 = vector.load %arg1[%c2, %c0_23, %c0_24] : memref<8x2x128xf32, #tpu.memory_space<vmem>>, vector<1x2x128xf32>
    %63 = vector.shape_cast %62 : vector<1x2x128xf32> to vector<2x128xf32>
    %64 = vector.shape_cast %63 : vector<2x128xf32> to vector<1x2x128xf32>
    %c2_25 = arith.constant 2 : index
    %c0_26 = arith.constant 0 : index
    %c0_27 = arith.constant 0 : index
    %65 = vector.load %arg2[%c2_25, %c0_26, %c0_27] : memref<8x2x128xf32, #tpu.memory_space<vmem>>, vector<1x2x128xf32>
    %66 = vector.shape_cast %65 : vector<1x2x128xf32> to vector<2x128xf32>
    %67 = vector.shape_cast %66 : vector<2x128xf32> to vector<1x2x128xf32>
    %c2_28 = arith.constant 2 : index
    %c0_29 = arith.constant 0 : index
    %c0_30 = arith.constant 0 : index
    %68 = vector.load %arg3[%c2_28, %c0_29, %c0_30] : memref<8x8x128xbf16, #tpu.memory_space<vmem>>, vector<1x8x128xbf16>
    %69 = vector.shape_cast %68 : vector<1x8x128xbf16> to vector<8x128xbf16>
    %70 = vector.shape_cast %69 : vector<8x128xbf16> to vector<8x1x128xbf16>
    %71 = arith.extf %70 : vector<8x1x128xbf16> to vector<8x1x128xf32>
    %c2_31 = arith.constant 2 : index
    %c0_32 = arith.constant 0 : index
    %c0_33 = arith.constant 0 : index
    %72 = vector.load %arg4[%c2_31, %c0_32, %c0_33] : memref<8x8x128xbf16, #tpu.memory_space<vmem>>, vector<1x8x128xbf16>
    %73 = vector.shape_cast %72 : vector<1x8x128xbf16> to vector<8x128xbf16>
    %74 = vector.shape_cast %73 : vector<8x128xbf16> to vector<8x1x128xbf16>
    %75 = arith.extf %74 : vector<8x1x128xbf16> to vector<8x1x128xf32>
    %76 = vector.broadcast %71 : vector<8x1x128xf32> to vector<8x2x128xf32>
    %77 = vector.broadcast %64 : vector<1x2x128xf32> to vector<8x2x128xf32>
    %78 = arith.mulf %76, %77 : vector<8x2x128xf32>
    %79 = arith.addf %53, %78 : vector<8x2x128xf32>
    %80 = vector.broadcast %75 : vector<8x1x128xf32> to vector<8x2x128xf32>
    %81 = vector.broadcast %67 : vector<1x2x128xf32> to vector<8x2x128xf32>
    %82 = arith.mulf %80, %81 : vector<8x2x128xf32>
    %83 = arith.subf %79, %82 : vector<8x2x128xf32>
    %84 = vector.broadcast %75 : vector<8x1x128xf32> to vector<8x2x128xf32>
    %85 = vector.broadcast %64 : vector<1x2x128xf32> to vector<8x2x128xf32>
    %86 = arith.mulf %84, %85 : vector<8x2x128xf32>
    %87 = arith.addf %61, %86 : vector<8x2x128xf32>
    %88 = vector.broadcast %71 : vector<8x1x128xf32> to vector<8x2x128xf32>
    %89 = vector.broadcast %67 : vector<1x2x128xf32> to vector<8x2x128xf32>
    %90 = arith.mulf %88, %89 : vector<8x2x128xf32>
    %91 = arith.addf %87, %90 : vector<8x2x128xf32>
    %c3 = arith.constant 3 : index
    %c0_34 = arith.constant 0 : index
    %c0_35 = arith.constant 0 : index
    %92 = vector.load %arg1[%c3, %c0_34, %c0_35] : memref<8x2x128xf32, #tpu.memory_space<vmem>>, vector<1x2x128xf32>
    %93 = vector.shape_cast %92 : vector<1x2x128xf32> to vector<2x128xf32>
    %94 = vector.shape_cast %93 : vector<2x128xf32> to vector<1x2x128xf32>
    %c3_36 = arith.constant 3 : index
    %c0_37 = arith.constant 0 : index
    %c0_38 = arith.constant 0 : index
    %95 = vector.load %arg2[%c3_36, %c0_37, %c0_38] : memref<8x2x128xf32, #tpu.memory_space<vmem>>, vector<1x2x128xf32>
    %96 = vector.shape_cast %95 : vector<1x2x128xf32> to vector<2x128xf32>
    %97 = vector.shape_cast %96 : vector<2x128xf32> to vector<1x2x128xf32>
    %c3_39 = arith.constant 3 : index
    %c0_40 = arith.constant 0 : index
    %c0_41 = arith.constant 0 : index
    %98 = vector.load %arg3[%c3_39, %c0_40, %c0_41] : memref<8x8x128xbf16, #tpu.memory_space<vmem>>, vector<1x8x128xbf16>
    %99 = vector.shape_cast %98 : vector<1x8x128xbf16> to vector<8x128xbf16>
    %100 = vector.shape_cast %99 : vector<8x128xbf16> to vector<8x1x128xbf16>
    %101 = arith.extf %100 : vector<8x1x128xbf16> to vector<8x1x128xf32>
    %c3_42 = arith.constant 3 : index
    %c0_43 = arith.constant 0 : index
    %c0_44 = arith.constant 0 : index
    %102 = vector.load %arg4[%c3_42, %c0_43, %c0_44] : memref<8x8x128xbf16, #tpu.memory_space<vmem>>, vector<1x8x128xbf16>
    %103 = vector.shape_cast %102 : vector<1x8x128xbf16> to vector<8x128xbf16>
    %104 = vector.shape_cast %103 : vector<8x128xbf16> to vector<8x1x128xbf16>
    %105 = arith.extf %104 : vector<8x1x128xbf16> to vector<8x1x128xf32>
    %106 = vector.broadcast %101 : vector<8x1x128xf32> to vector<8x2x128xf32>
    %107 = vector.broadcast %94 : vector<1x2x128xf32> to vector<8x2x128xf32>
    %108 = arith.mulf %106, %107 : vector<8x2x128xf32>
    %109 = arith.addf %83, %108 : vector<8x2x128xf32>
    %110 = vector.broadcast %105 : vector<8x1x128xf32> to vector<8x2x128xf32>
    %111 = vector.broadcast %97 : vector<1x2x128xf32> to vector<8x2x128xf32>
    %112 = arith.mulf %110, %111 : vector<8x2x128xf32>
    %113 = arith.subf %109, %112 : vector<8x2x128xf32>
    %114 = vector.broadcast %105 : vector<8x1x128xf32> to vector<8x2x128xf32>
    %115 = vector.broadcast %94 : vector<1x2x128xf32> to vector<8x2x128xf32>
    %116 = arith.mulf %114, %115 : vector<8x2x128xf32>
    %117 = arith.addf %91, %116 : vector<8x2x128xf32>
    %118 = vector.broadcast %101 : vector<8x1x128xf32> to vector<8x2x128xf32>
    %119 = vector.broadcast %97 : vector<1x2x128xf32> to vector<8x2x128xf32>
    %120 = arith.mulf %118, %119 : vector<8x2x128xf32>
    %121 = arith.addf %117, %120 : vector<8x2x128xf32>
    %c4 = arith.constant 4 : index
    %c0_45 = arith.constant 0 : index
    %c0_46 = arith.constant 0 : index
    %122 = vector.load %arg1[%c4, %c0_45, %c0_46] : memref<8x2x128xf32, #tpu.memory_space<vmem>>, vector<1x2x128xf32>
    %123 = vector.shape_cast %122 : vector<1x2x128xf32> to vector<2x128xf32>
    %124 = vector.shape_cast %123 : vector<2x128xf32> to vector<1x2x128xf32>
    %c4_47 = arith.constant 4 : index
    %c0_48 = arith.constant 0 : index
    %c0_49 = arith.constant 0 : index
    %125 = vector.load %arg2[%c4_47, %c0_48, %c0_49] : memref<8x2x128xf32, #tpu.memory_space<vmem>>, vector<1x2x128xf32>
    %126 = vector.shape_cast %125 : vector<1x2x128xf32> to vector<2x128xf32>
    %127 = vector.shape_cast %126 : vector<2x128xf32> to vector<1x2x128xf32>
    %c4_50 = arith.constant 4 : index
    %c0_51 = arith.constant 0 : index
    %c0_52 = arith.constant 0 : index
    %128 = vector.load %arg3[%c4_50, %c0_51, %c0_52] : memref<8x8x128xbf16, #tpu.memory_space<vmem>>, vector<1x8x128xbf16>
    %129 = vector.shape_cast %128 : vector<1x8x128xbf16> to vector<8x128xbf16>
    %130 = vector.shape_cast %129 : vector<8x128xbf16> to vector<8x1x128xbf16>
    %131 = arith.extf %130 : vector<8x1x128xbf16> to vector<8x1x128xf32>
    %c4_53 = arith.constant 4 : index
    %c0_54 = arith.constant 0 : index
    %c0_55 = arith.constant 0 : index
    %132 = vector.load %arg4[%c4_53, %c0_54, %c0_55] : memref<8x8x128xbf16, #tpu.memory_space<vmem>>, vector<1x8x128xbf16>
    %133 = vector.shape_cast %132 : vector<1x8x128xbf16> to vector<8x128xbf16>
    %134 = vector.shape_cast %133 : vector<8x128xbf16> to vector<8x1x128xbf16>
    %135 = arith.extf %134 : vector<8x1x128xbf16> to vector<8x1x128xf32>
    %136 = vector.broadcast %131 : vector<8x1x128xf32> to vector<8x2x128xf32>
    %137 = vector.broadcast %124 : vector<1x2x128xf32> to vector<8x2x128xf32>
    %138 = arith.mulf %136, %137 : vector<8x2x128xf32>
    %139 = arith.addf %113, %138 : vector<8x2x128xf32>
    %140 = vector.broadcast %135 : vector<8x1x128xf32> to vector<8x2x128xf32>
    %141 = vector.broadcast %127 : vector<1x2x128xf32> to vector<8x2x128xf32>
    %142 = arith.mulf %140, %141 : vector<8x2x128xf32>
    %143 = arith.subf %139, %142 : vector<8x2x128xf32>
    %144 = vector.broadcast %135 : vector<8x1x128xf32> to vector<8x2x128xf32>
    %145 = vector.broadcast %124 : vector<1x2x128xf32> to vector<8x2x128xf32>
    %146 = arith.mulf %144, %145 : vector<8x2x128xf32>
    %147 = arith.addf %121, %146 : vector<8x2x128xf32>
    %148 = vector.broadcast %131 : vector<8x1x128xf32> to vector<8x2x128xf32>
    %149 = vector.broadcast %127 : vector<1x2x128xf32> to vector<8x2x128xf32>
    %150 = arith.mulf %148, %149 : vector<8x2x128xf32>
    %151 = arith.addf %147, %150 : vector<8x2x128xf32>
    %c5 = arith.constant 5 : index
    %c0_56 = arith.constant 0 : index
    %c0_57 = arith.constant 0 : index
    %152 = vector.load %arg1[%c5, %c0_56, %c0_57] : memref<8x2x128xf32, #tpu.memory_space<vmem>>, vector<1x2x128xf32>
    %153 = vector.shape_cast %152 : vector<1x2x128xf32> to vector<2x128xf32>
    %154 = vector.shape_cast %153 : vector<2x128xf32> to vector<1x2x128xf32>
    %c5_58 = arith.constant 5 : index
    %c0_59 = arith.constant 0 : index
    %c0_60 = arith.constant 0 : index
    %155 = vector.load %arg2[%c5_58, %c0_59, %c0_60] : memref<8x2x128xf32, #tpu.memory_space<vmem>>, vector<1x2x128xf32>
    %156 = vector.shape_cast %155 : vector<1x2x128xf32> to vector<2x128xf32>
    %157 = vector.shape_cast %156 : vector<2x128xf32> to vector<1x2x128xf32>
    %c5_61 = arith.constant 5 : index
    %c0_62 = arith.constant 0 : index
    %c0_63 = arith.constant 0 : index
    %158 = vector.load %arg3[%c5_61, %c0_62, %c0_63] : memref<8x8x128xbf16, #tpu.memory_space<vmem>>, vector<1x8x128xbf16>
    %159 = vector.shape_cast %158 : vector<1x8x128xbf16> to vector<8x128xbf16>
    %160 = vector.shape_cast %159 : vector<8x128xbf16> to vector<8x1x128xbf16>
    %161 = arith.extf %160 : vector<8x1x128xbf16> to vector<8x1x128xf32>
    %c5_64 = arith.constant 5 : index
    %c0_65 = arith.constant 0 : index
    %c0_66 = arith.constant 0 : index
    %162 = vector.load %arg4[%c5_64, %c0_65, %c0_66] : memref<8x8x128xbf16, #tpu.memory_space<vmem>>, vector<1x8x128xbf16>
    %163 = vector.shape_cast %162 : vector<1x8x128xbf16> to vector<8x128xbf16>
    %164 = vector.shape_cast %163 : vector<8x128xbf16> to vector<8x1x128xbf16>
    %165 = arith.extf %164 : vector<8x1x128xbf16> to vector<8x1x128xf32>
    %166 = vector.broadcast %161 : vector<8x1x128xf32> to vector<8x2x128xf32>
    %167 = vector.broadcast %154 : vector<1x2x128xf32> to vector<8x2x128xf32>
    %168 = arith.mulf %166, %167 : vector<8x2x128xf32>
    %169 = arith.addf %143, %168 : vector<8x2x128xf32>
    %170 = vector.broadcast %165 : vector<8x1x128xf32> to vector<8x2x128xf32>
    %171 = vector.broadcast %157 : vector<1x2x128xf32> to vector<8x2x128xf32>
    %172 = arith.mulf %170, %171 : vector<8x2x128xf32>
    %173 = arith.subf %169, %172 : vector<8x2x128xf32>
    %174 = vector.broadcast %165 : vector<8x1x128xf32> to vector<8x2x128xf32>
    %175 = vector.broadcast %154 : vector<1x2x128xf32> to vector<8x2x128xf32>
    %176 = arith.mulf %174, %175 : vector<8x2x128xf32>
    %177 = arith.addf %151, %176 : vector<8x2x128xf32>
    %178 = vector.broadcast %161 : vector<8x1x128xf32> to vector<8x2x128xf32>
    %179 = vector.broadcast %157 : vector<1x2x128xf32> to vector<8x2x128xf32>
    %180 = arith.mulf %178, %179 : vector<8x2x128xf32>
    %181 = arith.addf %177, %180 : vector<8x2x128xf32>
    %c6 = arith.constant 6 : index
    %c0_67 = arith.constant 0 : index
    %c0_68 = arith.constant 0 : index
    %182 = vector.load %arg1[%c6, %c0_67, %c0_68] : memref<8x2x128xf32, #tpu.memory_space<vmem>>, vector<1x2x128xf32>
    %183 = vector.shape_cast %182 : vector<1x2x128xf32> to vector<2x128xf32>
    %184 = vector.shape_cast %183 : vector<2x128xf32> to vector<1x2x128xf32>
    %c6_69 = arith.constant 6 : index
    %c0_70 = arith.constant 0 : index
    %c0_71 = arith.constant 0 : index
    %185 = vector.load %arg2[%c6_69, %c0_70, %c0_71] : memref<8x2x128xf32, #tpu.memory_space<vmem>>, vector<1x2x128xf32>
    %186 = vector.shape_cast %185 : vector<1x2x128xf32> to vector<2x128xf32>
    %187 = vector.shape_cast %186 : vector<2x128xf32> to vector<1x2x128xf32>
    %c6_72 = arith.constant 6 : index
    %c0_73 = arith.constant 0 : index
    %c0_74 = arith.constant 0 : index
    %188 = vector.load %arg3[%c6_72, %c0_73, %c0_74] : memref<8x8x128xbf16, #tpu.memory_space<vmem>>, vector<1x8x128xbf16>
    %189 = vector.shape_cast %188 : vector<1x8x128xbf16> to vector<8x128xbf16>
    %190 = vector.shape_cast %189 : vector<8x128xbf16> to vector<8x1x128xbf16>
    %191 = arith.extf %190 : vector<8x1x128xbf16> to vector<8x1x128xf32>
    %c6_75 = arith.constant 6 : index
    %c0_76 = arith.constant 0 : index
    %c0_77 = arith.constant 0 : index
    %192 = vector.load %arg4[%c6_75, %c0_76, %c0_77] : memref<8x8x128xbf16, #tpu.memory_space<vmem>>, vector<1x8x128xbf16>
    %193 = vector.shape_cast %192 : vector<1x8x128xbf16> to vector<8x128xbf16>
    %194 = vector.shape_cast %193 : vector<8x128xbf16> to vector<8x1x128xbf16>
    %195 = arith.extf %194 : vector<8x1x128xbf16> to vector<8x1x128xf32>
    %196 = vector.broadcast %191 : vector<8x1x128xf32> to vector<8x2x128xf32>
    %197 = vector.broadcast %184 : vector<1x2x128xf32> to vector<8x2x128xf32>
    %198 = arith.mulf %196, %197 : vector<8x2x128xf32>
    %199 = arith.addf %173, %198 : vector<8x2x128xf32>
    %200 = vector.broadcast %195 : vector<8x1x128xf32> to vector<8x2x128xf32>
    %201 = vector.broadcast %187 : vector<1x2x128xf32> to vector<8x2x128xf32>
    %202 = arith.mulf %200, %201 : vector<8x2x128xf32>
    %203 = arith.subf %199, %202 : vector<8x2x128xf32>
    %204 = vector.broadcast %195 : vector<8x1x128xf32> to vector<8x2x128xf32>
    %205 = vector.broadcast %184 : vector<1x2x128xf32> to vector<8x2x128xf32>
    %206 = arith.mulf %204, %205 : vector<8x2x128xf32>
    %207 = arith.addf %181, %206 : vector<8x2x128xf32>
    %208 = vector.broadcast %191 : vector<8x1x128xf32> to vector<8x2x128xf32>
    %209 = vector.broadcast %187 : vector<1x2x128xf32> to vector<8x2x128xf32>
    %210 = arith.mulf %208, %209 : vector<8x2x128xf32>
    %211 = arith.addf %207, %210 : vector<8x2x128xf32>
    %c7 = arith.constant 7 : index
    %c0_78 = arith.constant 0 : index
    %c0_79 = arith.constant 0 : index
    %212 = vector.load %arg1[%c7, %c0_78, %c0_79] : memref<8x2x128xf32, #tpu.memory_space<vmem>>, vector<1x2x128xf32>
    %213 = vector.shape_cast %212 : vector<1x2x128xf32> to vector<2x128xf32>
    %214 = vector.shape_cast %213 : vector<2x128xf32> to vector<1x2x128xf32>
    %c7_80 = arith.constant 7 : index
    %c0_81 = arith.constant 0 : index
    %c0_82 = arith.constant 0 : index
    %215 = vector.load %arg2[%c7_80, %c0_81, %c0_82] : memref<8x2x128xf32, #tpu.memory_space<vmem>>, vector<1x2x128xf32>
    %216 = vector.shape_cast %215 : vector<1x2x128xf32> to vector<2x128xf32>
    %217 = vector.shape_cast %216 : vector<2x128xf32> to vector<1x2x128xf32>
    %c7_83 = arith.constant 7 : index
    %c0_84 = arith.constant 0 : index
    %c0_85 = arith.constant 0 : index
    %218 = vector.load %arg3[%c7_83, %c0_84, %c0_85] : memref<8x8x128xbf16, #tpu.memory_space<vmem>>, vector<1x8x128xbf16>
    %219 = vector.shape_cast %218 : vector<1x8x128xbf16> to vector<8x128xbf16>
    %220 = vector.shape_cast %219 : vector<8x128xbf16> to vector<8x1x128xbf16>
    %221 = arith.extf %220 : vector<8x1x128xbf16> to vector<8x1x128xf32>
    %c7_86 = arith.constant 7 : index
    %c0_87 = arith.constant 0 : index
    %c0_88 = arith.constant 0 : index
    %222 = vector.load %arg4[%c7_86, %c0_87, %c0_88] : memref<8x8x128xbf16, #tpu.memory_space<vmem>>, vector<1x8x128xbf16>
    %223 = vector.shape_cast %222 : vector<1x8x128xbf16> to vector<8x128xbf16>
    %224 = vector.shape_cast %223 : vector<8x128xbf16> to vector<8x1x128xbf16>
    %225 = arith.extf %224 : vector<8x1x128xbf16> to vector<8x1x128xf32>
    %226 = vector.broadcast %221 : vector<8x1x128xf32> to vector<8x2x128xf32>
    %227 = vector.broadcast %214 : vector<1x2x128xf32> to vector<8x2x128xf32>
    %228 = arith.mulf %226, %227 : vector<8x2x128xf32>
    %229 = arith.addf %203, %228 : vector<8x2x128xf32>
    %230 = vector.broadcast %225 : vector<8x1x128xf32> to vector<8x2x128xf32>
    %231 = vector.broadcast %217 : vector<1x2x128xf32> to vector<8x2x128xf32>
    %232 = arith.mulf %230, %231 : vector<8x2x128xf32>
    %233 = arith.subf %229, %232 : vector<8x2x128xf32>
    %234 = vector.broadcast %225 : vector<8x1x128xf32> to vector<8x2x128xf32>
    %235 = vector.broadcast %214 : vector<1x2x128xf32> to vector<8x2x128xf32>
    %236 = arith.mulf %234, %235 : vector<8x2x128xf32>
    %237 = arith.addf %211, %236 : vector<8x2x128xf32>
    %238 = vector.broadcast %221 : vector<8x1x128xf32> to vector<8x2x128xf32>
    %239 = vector.broadcast %217 : vector<1x2x128xf32> to vector<8x2x128xf32>
    %240 = arith.mulf %238, %239 : vector<8x2x128xf32>
    %241 = arith.addf %237, %240 : vector<8x2x128xf32>
    %c0_89 = arith.constant 0 : index
    %c0_90 = arith.constant 0 : index
    %c0_91 = arith.constant 0 : index
    %242 = vector.load %arg5[%c0_89, %c0_90, %c0_91] : memref<8x2x128xf32, #tpu.memory_space<vmem>>, vector<8x2x128xf32>
    tpu.vector_store %arg5[%c0_89, %c0_90, %c0_91], %233 {strides = array<i32>} : memref<8x2x128xf32, #tpu.memory_space<vmem>>, vector<8x2x128xf32>,
    %c0_92 = arith.constant 0 : index
    %c0_93 = arith.constant 0 : index
    %c0_94 = arith.constant 0 : index
    %243 = vector.load %arg6[%c0_92, %c0_93, %c0_94] : memref<8x2x128xf32, #tpu.memory_space<vmem>>, vector<8x2x128xf32>
    tpu.vector_store %arg6[%c0_92, %c0_93, %c0_94], %241 {strides = array<i32>} : memref<8x2x128xf32, #tpu.memory_space<vmem>>, vector<8x2x128xf32>,
    return
  }
  func.func @transform_0(%arg0: i32) -> (i32, i32, i32) {
    %c0_i32 = arith.constant 0 : i32
    %c0_i32_0 = arith.constant 0 : i32
    %c0_i32_1 = arith.constant 0 : i32
    return %c0_i32, %c0_i32_0, %arg0 : i32, i32, i32
  }
  func.func @transform_1(%arg0: i32) -> (i32, i32, i32) {
    %c0_i32 = arith.constant 0 : i32
    %c0_i32_0 = arith.constant 0 : i32
    %c0_i32_1 = arith.constant 0 : i32
    return %c0_i32, %c0_i32_0, %arg0 : i32, i32, i32
  }
  func.func @transform_2(%arg0: i32) -> (i32, i32, i32) {
    %c0_i32 = arith.constant 0 : i32
    %c0_i32_0 = arith.constant 0 : i32
    %c0_i32_1 = arith.constant 0 : i32
    return %c0_i32, %c0_i32_0, %arg0 : i32, i32, i32
  }
  func.func @transform_3(%arg0: i32) -> (i32, i32, i32) {
    %c0_i32 = arith.constant 0 : i32
    %c0_i32_0 = arith.constant 0 : i32
    %c0_i32_1 = arith.constant 0 : i32
    return %c0_i32, %c0_i32_0, %arg0 : i32, i32, i32
  }
  func.func @transform_4(%arg0: i32) -> (i32, i32, i32) {
    %c0_i32 = arith.constant 0 : i32
    %c0_i32_0 = arith.constant 0 : i32
    %c0_i32_1 = arith.constant 0 : i32
    return %c0_i32, %c0_i32_0, %arg0 : i32, i32, i32
  }
  func.func @transform_5(%arg0: i32) -> (i32, i32, i32) {
    %c0_i32 = arith.constant 0 : i32
    %c0_i32_0 = arith.constant 0 : i32
    %c0_i32_1 = arith.constant 0 : i32
    return %c0_i32, %c0_i32_0, %arg0 : i32, i32, i32
  }
}

module attributes {stable_mosaic.version = 11 : i64} {
  func.func @kernel(%arg0: i32, %arg1: memref<8x2048xbf16, #tpu.memory_space<vmem>>, %arg2: memref<8x2048xbf16, #tpu.memory_space<vmem>>, %arg3: memref<8x8xbf16, #tpu.memory_space<vmem>>, %arg4: memref<8x1xf32, #tpu.memory_space<vmem>>, %arg5: memref<8x2048xbf16, #tpu.memory_space<vmem>>) attributes {dimension_semantics = [#tpu.dimension_semantics<parallel>], iteration_bounds = array<i64: 2>, scalar_prefetch = 0 : i64, scratch_operands = 0 : i64, tpu.core_type = #tpu.core_type<tc>, window_params = [{transform_indices = @transform_0, window_bounds = array<i64: 8, 2048>}, {transform_indices = @transform_1, window_bounds = array<i64: 8, 2048>}, {pipeline_mode = #tpu.pipeline_mode<synchronous>, transform_indices = @transform_2, window_bounds = array<i64: 8, 8>}, {pipeline_mode = #tpu.pipeline_mode<synchronous>, transform_indices = @transform_3, window_bounds = array<i64: 8, 1>}, {transform_indices = @transform_4, window_bounds = array<i64: 8, 2048>}]} {
    %c0 = arith.constant 0 : index
    %c0_0 = arith.constant 0 : index
    %0 = vector.load %arg3[%c0, %c0_0] : memref<8x8xbf16, #tpu.memory_space<vmem>>, vector<8x8xbf16>
    %c0_1 = arith.constant 0 : index
    %c0_2 = arith.constant 0 : index
    %1 = vector.load %arg1[%c0_1, %c0_2] : memref<8x2048xbf16, #tpu.memory_space<vmem>>, vector<8x2048xbf16>
    %cst = arith.constant dense<0.000000e+00> : vector<8x2048xf32>
    %2 = tpu.matmul %0, %1, %cst {dimension_numbers = #tpu.dot_dimension_numbers<[1], [0], [0], [1], [0, 0, 1, 1], [], []>} : vector<8x8xbf16>, vector<8x2048xbf16>, vector<8x2048xf32> -> vector<8x2048xf32>
    %c0_3 = arith.constant 0 : index
    %c0_4 = arith.constant 0 : index
    %3 = vector.load %arg4[%c0_3, %c0_4] : memref<8x1xf32, #tpu.memory_space<vmem>>, vector<8x1xf32>
    %4 = vector.broadcast %3 : vector<8x1xf32> to vector<8x2048xf32>
    %5 = arith.addf %2, %4 : vector<8x2048xf32>
    %c0_5 = arith.constant 0 : index
    %c0_6 = arith.constant 0 : index
    %6 = vector.load %arg2[%c0_5, %c0_6] : memref<8x2048xbf16, #tpu.memory_space<vmem>>, vector<8x2048xbf16>
    %7 = arith.extf %6 : vector<8x2048xbf16> to vector<8x2048xf32>
    %8 = arith.addf %5, %7 : vector<8x2048xf32>
    %cst_7 = arith.constant 5.000000e-01 : f32
    %9 = vector.broadcast %cst_7 : f32 to vector<8x2048xf32>
    %10 = arith.mulf %9, %8 : vector<8x2048xf32>
    %cst_8 = arith.constant 4.471500e-02 : f32
    %11 = vector.broadcast %cst_8 : f32 to vector<8x2048xf32>
    %12 = arith.mulf %11, %8 : vector<8x2048xf32>
    %13 = arith.mulf %12, %8 : vector<8x2048xf32>
    %14 = arith.mulf %13, %8 : vector<8x2048xf32>
    %15 = arith.addf %8, %14 : vector<8x2048xf32>
    %cst_9 = arith.constant 0.797884583 : f32
    %16 = vector.broadcast %cst_9 : f32 to vector<8x2048xf32>
    %17 = arith.mulf %16, %15 : vector<8x2048xf32>
    %18 = math.tanh %17 : vector<8x2048xf32>
    %cst_10 = arith.constant 1.000000e+00 : f32
    %19 = vector.broadcast %cst_10 : f32 to vector<8x2048xf32>
    %20 = arith.addf %19, %18 : vector<8x2048xf32>
    %21 = arith.mulf %10, %20 : vector<8x2048xf32>
    %22 = arith.truncf %21 : vector<8x2048xf32> to vector<8x2048xbf16>
    %c0_11 = arith.constant 0 : index
    %c0_12 = arith.constant 0 : index
    %23 = vector.load %arg5[%c0_11, %c0_12] : memref<8x2048xbf16, #tpu.memory_space<vmem>>, vector<8x2048xbf16>
    tpu.vector_store %arg5[%c0_11, %c0_12], %22 {strides = array<i32>} : memref<8x2048xbf16, #tpu.memory_space<vmem>>, vector<8x2048xbf16>,
    return
  }
  func.func @transform_0(%arg0: i32) -> (i32, i32) {
    %c0_i32 = arith.constant 0 : i32
    %c0_i32_0 = arith.constant 0 : i32
    return %c0_i32, %arg0 : i32, i32
  }
  func.func @transform_1(%arg0: i32) -> (i32, i32) {
    %c0_i32 = arith.constant 0 : i32
    %c0_i32_0 = arith.constant 0 : i32
    return %c0_i32, %arg0 : i32, i32
  }
  func.func @transform_2(%arg0: i32) -> (i32, i32) {
    %c0_i32 = arith.constant 0 : i32
    %c0_i32_0 = arith.constant 0 : i32
    %c0_i32_1 = arith.constant 0 : i32
    return %c0_i32, %c0_i32_0 : i32, i32
  }
  func.func @transform_3(%arg0: i32) -> (i32, i32) {
    %c0_i32 = arith.constant 0 : i32
    %c0_i32_0 = arith.constant 0 : i32
    %c0_i32_1 = arith.constant 0 : i32
    return %c0_i32, %c0_i32_0 : i32, i32
  }
  func.func @transform_4(%arg0: i32) -> (i32, i32) {
    %c0_i32 = arith.constant 0 : i32
    %c0_i32_0 = arith.constant 0 : i32
    return %c0_i32, %arg0 : i32, i32
  }
}

module attributes {stable_mosaic.version = 11 : i64} {
  func.func @kernel(%arg0: i32, %arg1: memref<8x2048xbf16, #tpu.memory_space<vmem>>, %arg2: memref<8x2048xbf16, #tpu.memory_space<vmem>>, %arg3: memref<8x8xbf16, #tpu.memory_space<vmem>>, %arg4: memref<8x1xf32, #tpu.memory_space<vmem>>, %arg5: memref<8x2048xbf16, #tpu.memory_space<vmem>>) attributes {dimension_semantics = [#tpu.dimension_semantics<parallel>], iteration_bounds = array<i64: 2>, scalar_prefetch = 0 : i64, scratch_operands = 0 : i64, tpu.core_type = #tpu.core_type<tc>, window_params = [{transform_indices = @transform_0, window_bounds = array<i64: 8, 2048>}, {transform_indices = @transform_1, window_bounds = array<i64: 8, 2048>}, {pipeline_mode = #tpu.pipeline_mode<synchronous>, transform_indices = @transform_2, window_bounds = array<i64: 8, 8>}, {pipeline_mode = #tpu.pipeline_mode<synchronous>, transform_indices = @transform_3, window_bounds = array<i64: 8, 1>}, {transform_indices = @transform_4, window_bounds = array<i64: 8, 2048>}]} {
    %c0 = arith.constant 0 : index
    %c0_0 = arith.constant 0 : index
    %0 = vector.load %arg3[%c0, %c0_0] : memref<8x8xbf16, #tpu.memory_space<vmem>>, vector<8x8xbf16>
    %c0_1 = arith.constant 0 : index
    %c0_2 = arith.constant 0 : index
    %1 = vector.load %arg1[%c0_1, %c0_2] : memref<8x2048xbf16, #tpu.memory_space<vmem>>, vector<8x2048xbf16>
    %cst = arith.constant dense<0.000000e+00> : vector<8x2048xf32>
    %2 = tpu.matmul %0, %1, %cst {dimension_numbers = #tpu.dot_dimension_numbers<[1], [0], [0], [1], [0, 0, 1, 1], [], []>} : vector<8x8xbf16>, vector<8x2048xbf16>, vector<8x2048xf32> -> vector<8x2048xf32>
    %c0_3 = arith.constant 0 : index
    %c0_4 = arith.constant 0 : index
    %3 = vector.load %arg4[%c0_3, %c0_4] : memref<8x1xf32, #tpu.memory_space<vmem>>, vector<8x1xf32>
    %4 = vector.broadcast %3 : vector<8x1xf32> to vector<8x2048xf32>
    %5 = arith.addf %2, %4 : vector<8x2048xf32>
    %c0_5 = arith.constant 0 : index
    %c0_6 = arith.constant 0 : index
    %6 = vector.load %arg2[%c0_5, %c0_6] : memref<8x2048xbf16, #tpu.memory_space<vmem>>, vector<8x2048xbf16>
    %7 = arith.extf %6 : vector<8x2048xbf16> to vector<8x2048xf32>
    %8 = arith.addf %5, %7 : vector<8x2048xf32>
    %9 = arith.truncf %8 : vector<8x2048xf32> to vector<8x2048xbf16>
    %c0_7 = arith.constant 0 : index
    %c0_8 = arith.constant 0 : index
    %10 = vector.load %arg5[%c0_7, %c0_8] : memref<8x2048xbf16, #tpu.memory_space<vmem>>, vector<8x2048xbf16>
    tpu.vector_store %arg5[%c0_7, %c0_8], %9 {strides = array<i32>} : memref<8x2048xbf16, #tpu.memory_space<vmem>>, vector<8x2048xbf16>,
    return
  }
  func.func @transform_0(%arg0: i32) -> (i32, i32) {
    %c0_i32 = arith.constant 0 : i32
    %c0_i32_0 = arith.constant 0 : i32
    return %c0_i32, %arg0 : i32, i32
  }
  func.func @transform_1(%arg0: i32) -> (i32, i32) {
    %c0_i32 = arith.constant 0 : i32
    %c0_i32_0 = arith.constant 0 : i32
    return %c0_i32, %arg0 : i32, i32
  }
  func.func @transform_2(%arg0: i32) -> (i32, i32) {
    %c0_i32 = arith.constant 0 : i32
    %c0_i32_0 = arith.constant 0 : i32
    %c0_i32_1 = arith.constant 0 : i32
    return %c0_i32, %c0_i32_0 : i32, i32
  }
  func.func @transform_3(%arg0: i32) -> (i32, i32) {
    %c0_i32 = arith.constant 0 : i32
    %c0_i32_0 = arith.constant 0 : i32
    %c0_i32_1 = arith.constant 0 : i32
    return %c0_i32, %c0_i32_0 : i32, i32
  }
  func.func @transform_4(%arg0: i32) -> (i32, i32) {
    %c0_i32 = arith.constant 0 : i32
    %c0_i32_0 = arith.constant 0 : i32
    return %c0_i32, %arg0 : i32, i32
  }
}

module attributes {stable_mosaic.version = 11 : i64} {
  func.func @_head_kernel(%arg0: i32, %arg1: memref<8x2048xbf16, #tpu.memory_space<vmem>>, %arg2: memref<16x8xbf16, #tpu.memory_space<vmem>>, %arg3: memref<16x1xf32, #tpu.memory_space<vmem>>, %arg4: memref<3x16xbf16, #tpu.memory_space<vmem>>, %arg5: memref<3x1xf32, #tpu.memory_space<vmem>>, %arg6: memref<3x2048xf32, #tpu.memory_space<vmem>>) attributes {dimension_semantics = [#tpu.dimension_semantics<parallel>], iteration_bounds = array<i64: 2>, scalar_prefetch = 0 : i64, scratch_operands = 0 : i64, tpu.core_type = #tpu.core_type<tc>, window_params = [{transform_indices = @transform_0, window_bounds = array<i64: 8, 2048>}, {pipeline_mode = #tpu.pipeline_mode<synchronous>, transform_indices = @transform_1, window_bounds = array<i64: 16, 8>}, {pipeline_mode = #tpu.pipeline_mode<synchronous>, transform_indices = @transform_2, window_bounds = array<i64: 16, 1>}, {pipeline_mode = #tpu.pipeline_mode<synchronous>, transform_indices = @transform_3, window_bounds = array<i64: 3, 16>}, {pipeline_mode = #tpu.pipeline_mode<synchronous>, transform_indices = @transform_4, window_bounds = array<i64: 3, 1>}, {transform_indices = @transform_5, window_bounds = array<i64: 3, 2048>}]} {
    %c0 = arith.constant 0 : index
    %c0_0 = arith.constant 0 : index
    %0 = vector.load %arg2[%c0, %c0_0] : memref<16x8xbf16, #tpu.memory_space<vmem>>, vector<16x8xbf16>
    %c0_1 = arith.constant 0 : index
    %c0_2 = arith.constant 0 : index
    %1 = vector.load %arg1[%c0_1, %c0_2] : memref<8x2048xbf16, #tpu.memory_space<vmem>>, vector<8x2048xbf16>
    %cst = arith.constant dense<0.000000e+00> : vector<16x2048xf32>
    %2 = tpu.matmul %0, %1, %cst {dimension_numbers = #tpu.dot_dimension_numbers<[1], [0], [0], [1], [0, 0, 1, 1], [], []>} : vector<16x8xbf16>, vector<8x2048xbf16>, vector<16x2048xf32> -> vector<16x2048xf32>
    %c0_3 = arith.constant 0 : index
    %c0_4 = arith.constant 0 : index
    %3 = vector.load %arg3[%c0_3, %c0_4] : memref<16x1xf32, #tpu.memory_space<vmem>>, vector<16x1xf32>
    %4 = vector.broadcast %3 : vector<16x1xf32> to vector<16x2048xf32>
    %5 = arith.addf %2, %4 : vector<16x2048xf32>
    %6 = arith.truncf %5 : vector<16x2048xf32> to vector<16x2048xbf16>
    %cst_5 = arith.constant 5.000000e-01 : bf16
    %7 = vector.broadcast %cst_5 : bf16 to vector<16x2048xbf16>
    %8 = arith.mulf %7, %6 : vector<16x2048xbf16>
    %cst_6 = arith.constant 4.467770e-02 : bf16
    %9 = vector.broadcast %cst_6 : bf16 to vector<16x2048xbf16>
    %10 = arith.mulf %9, %6 : vector<16x2048xbf16>
    %11 = arith.mulf %10, %6 : vector<16x2048xbf16>
    %12 = arith.mulf %11, %6 : vector<16x2048xbf16>
    %13 = arith.addf %6, %12 : vector<16x2048xbf16>
    %cst_7 = arith.constant 7.968750e-01 : bf16
    %14 = vector.broadcast %cst_7 : bf16 to vector<16x2048xbf16>
    %15 = arith.mulf %14, %13 : vector<16x2048xbf16>
    %16 = math.tanh %15 : vector<16x2048xbf16>
    %cst_8 = arith.constant 1.000000e+00 : bf16
    %17 = vector.broadcast %cst_8 : bf16 to vector<16x2048xbf16>
    %18 = arith.addf %17, %16 : vector<16x2048xbf16>
    %19 = arith.mulf %8, %18 : vector<16x2048xbf16>
    %c0_9 = arith.constant 0 : index
    %c0_10 = arith.constant 0 : index
    %20 = vector.load %arg4[%c0_9, %c0_10] : memref<3x16xbf16, #tpu.memory_space<vmem>>, vector<3x16xbf16>
    %cst_11 = arith.constant dense<0.000000e+00> : vector<3x2048xf32>
    %21 = tpu.matmul %20, %19, %cst_11 {dimension_numbers = #tpu.dot_dimension_numbers<[1], [0], [0], [1], [0, 0, 1, 1], [], []>} : vector<3x16xbf16>, vector<16x2048xbf16>, vector<3x2048xf32> -> vector<3x2048xf32>
    %c0_12 = arith.constant 0 : index
    %c0_13 = arith.constant 0 : index
    %22 = vector.load %arg5[%c0_12, %c0_13] : memref<3x1xf32, #tpu.memory_space<vmem>>, vector<3x1xf32>
    %23 = vector.broadcast %22 : vector<3x1xf32> to vector<3x2048xf32>
    %24 = arith.addf %21, %23 : vector<3x2048xf32>
    %c0_14 = arith.constant 0 : index
    %c0_15 = arith.constant 0 : index
    %25 = vector.load %arg6[%c0_14, %c0_15] : memref<3x2048xf32, #tpu.memory_space<vmem>>, vector<3x2048xf32>
    tpu.vector_store %arg6[%c0_14, %c0_15], %24 {strides = array<i32>} : memref<3x2048xf32, #tpu.memory_space<vmem>>, vector<3x2048xf32>,
    return
  }
  func.func @transform_0(%arg0: i32) -> (i32, i32) {
    %c0_i32 = arith.constant 0 : i32
    %c0_i32_0 = arith.constant 0 : i32
    return %c0_i32, %arg0 : i32, i32
  }
  func.func @transform_1(%arg0: i32) -> (i32, i32) {
    %c0_i32 = arith.constant 0 : i32
    %c0_i32_0 = arith.constant 0 : i32
    %c0_i32_1 = arith.constant 0 : i32
    return %c0_i32, %c0_i32_0 : i32, i32
  }
  func.func @transform_2(%arg0: i32) -> (i32, i32) {
    %c0_i32 = arith.constant 0 : i32
    %c0_i32_0 = arith.constant 0 : i32
    %c0_i32_1 = arith.constant 0 : i32
    return %c0_i32, %c0_i32_0 : i32, i32
  }
  func.func @transform_3(%arg0: i32) -> (i32, i32) {
    %c0_i32 = arith.constant 0 : i32
    %c0_i32_0 = arith.constant 0 : i32
    %c0_i32_1 = arith.constant 0 : i32
    return %c0_i32, %c0_i32_0 : i32, i32
  }
  func.func @transform_4(%arg0: i32) -> (i32, i32) {
    %c0_i32 = arith.constant 0 : i32
    %c0_i32_0 = arith.constant 0 : i32
    %c0_i32_1 = arith.constant 0 : i32
    return %c0_i32, %c0_i32_0 : i32, i32
  }
  func.func @transform_5(%arg0: i32) -> (i32, i32) {
    %c0_i32 = arith.constant 0 : i32
    %c0_i32_0 = arith.constant 0 : i32
    return %c0_i32, %arg0 : i32, i32
  }
}

</mosaic_0001>

<llo_original>
// kernel: fno3d_forward.6
$region0: #{fno3d_forward.6}
  #allocation0 [shape = 'u32[]', space=smem, size = 0x4, offset = 0x4, fixed_abs, tag = 'smem constant byte address 0x4 - core index']
  #allocation1 [shape = 'u32[144,128]{1,0:T(1,128)}', space=vmem, size = 0x12000, scoped, tag = 'internal scratch']
  %s0 = inlined_call_operand.vmem [shape: bf16[7,4096], index: 0, kind: input, shape index: {}]
  %s1 = inlined_call_operand.vmem [shape: bf16[8,7], index: 1, kind: input, shape index: {}]
  %s2 = inlined_call_operand.vmem [shape: f32[8,1], index: 2, kind: input, shape index: {}]
  %s3 = inlined_call_operand.vmem [shape: bf16[8,4096], index: 3, kind: output, shape index: {}]
  %s4 = sld [smem:[#allocation0]]
  $region45: #{fno3d_forward.6} parent=0
    _
  %s6 = ssub.s32 1, %s4
  %s7 = scalar_select 0, %s6, %s4
  loop: start=0, step=1, limit=4
  $region2: #{fno3d_forward.6} parent=0 // loop_pre_header
    _
  $region3: #{fno3d_forward.6} parent=0 // loop_header
    %s9 = sphi 0, %s13
    %p10 = scmp.ge.s32.totalorder %s9, 4
    %s19 = sphi 0, %s21
    %s22 = sphi 0, %s19
    %s23 = sphi 0, %s22
    %s39 = sphi 0, %s23
    %s43 = sphi 0, %s43
    %s45 = sphi 0, %s43
    %s46 = sphi 0, %s45
    %s60 = sphi 0, %s46
    %s64 = sphi 0, %s64
    %s66 = sphi 0, %s64
    %s67 = sphi 0, %s66
    %s81 = sphi 0, %s67
    %s87 = sphi 0, %s89
    %s90 = sphi 0, %s87
    %s91 = sphi 0, %s90
    %s107 = sphi 0, %s91
  $region4: #{fno3d_forward.6} parent=0 // loop_header_branch
    %12 = sbr.rel (%p10) target = $region8
  $region5: #{fno3d_forward.6} parent=0 // loop_body
    %s14 = ssub.s32 %s9, 1
    %s15 = ssub.s32 %s9, 2
    %s16 = sadd.s32 %s9, 1
    %s17 = ssub.s32 %s9, %s16
    %p18 = scmp.eq.s32.totalorder %s17, 0
    %s20 = sadd.s32 %s19, 1
    %s21 = scalar_select %p18, %s19, %s20
    %p24 = pneg %p18
    %p25 = scmp.eq.s32.totalorder %s9, 1
    %p26 = por %p24, %p25
    %p27 = scmp.ne.s32.totalorder %s19, %s22
    %p28 = scmp.eq.s32.totalorder %s9, 0
    %p29 = por %p27, %p28
    %p30 = scmp.ne.s32.totalorder %s19, %s22
    %p31 = scmp.eq.s32.totalorder %s14, 1
    %p32 = por %p30, %p31
    %p33 = scmp.ne.s32.totalorder %s22, %s23
    %p34 = scmp.eq.s32.totalorder %s14, 0
    %p35 = por %p33, %p34
    %p36 = scmp.ne.s32.totalorder %s22, %s23
    %p37 = scmp.eq.s32.totalorder %s15, 1
    %p38 = por %p36, %p37
    %p40 = scmp.ne.s32.totalorder %s23, %s39
    %p41 = scmp.eq.s32.totalorder %s15, 0
    %p42 = por %p40, %p41
    %s44 = sadd.s32 %s43, 1
    %p47 = scmp.eq.s32.totalorder %s9, 1
    %p48 = scmp.ne.s32.totalorder %s43, %s45
    %p49 = scmp.eq.s32.totalorder %s9, 0
    %p50 = por %p48, %p49
    %p51 = scmp.ne.s32.totalorder %s43, %s45
    %p52 = scmp.eq.s32.totalorder %s14, 1
    %p53 = por %p51, %p52
    %p54 = scmp.ne.s32.totalorder %s45, %s46
    %p55 = scmp.eq.s32.totalorder %s14, 0
    %p56 = por %p54, %p55
    %p57 = scmp.ne.s32.totalorder %s45, %s46
    %p58 = scmp.eq.s32.totalorder %s15, 1
    %p59 = por %p57, %p58
    %p61 = scmp.ne.s32.totalorder %s46, %s60
    %p62 = scmp.eq.s32.totalorder %s15, 0
    %p63 = por %p61, %p62
    %s65 = sadd.s32 %s64, 1
    %p68 = scmp.eq.s32.totalorder %s9, 1
    %p69 = scmp.ne.s32.totalorder %s64, %s66
    %p70 = scmp.eq.s32.totalorder %s9, 0
    %p71 = por %p69, %p70
    %p72 = scmp.ne.s32.totalorder %s64, %s66
    %p73 = scmp.eq.s32.totalorder %s14, 1
    %p74 = por %p72, %p73
    %p75 = scmp.ne.s32.totalorder %s66, %s67
    %p76 = scmp.eq.s32.totalorder %s14, 0
    %p77 = por %p75, %p76
    %p78 = scmp.ne.s32.totalorder %s66, %s67
    %p79 = scmp.eq.s32.totalorder %s15, 1
    %p80 = por %p78, %p79
    %p82 = scmp.ne.s32.totalorder %s67, %s81
    %p83 = scmp.eq.s32.totalorder %s15, 0
    %p84 = por %p82, %p83
    %s85 = ssub.s32 %s9, %s16
    %p86 = scmp.eq.s32.totalorder %s85, 0
    %s88 = sadd.s32 %s87, 1
    %s89 = scalar_select %p86, %s87, %s88
    %p92 = pneg %p86
    %p93 = scmp.eq.s32.totalorder %s9, 1
    %p94 = por %p92, %p93
    %p95 = scmp.ne.s32.totalorder %s87, %s90
    %p96 = scmp.eq.s32.totalorder %s9, 0
    %p97 = por %p95, %p96
    %p98 = scmp.ne.s32.totalorder %s87, %s90
    %p99 = scmp.eq.s32.totalorder %s14, 1
    %p100 = por %p98, %p99
    %p101 = scmp.ne.s32.totalorder %s90, %s91
    %p102 = scmp.eq.s32.totalorder %s14, 0
    %p103 = por %p101, %p102
    %p104 = scmp.ne.s32.totalorder %s90, %s91
    %p105 = scmp.eq.s32.totalorder %s15, 1
    %p106 = por %p104, %p105
    %p108 = scmp.ne.s32.totalorder %s91, %s107
    %p109 = scmp.eq.s32.totalorder %s15, 0
    %p110 = por %p108, %p109
    %p111 = scmp.le.s32.totalorder 1, %s9
    %p112 = scmp.lt.s32.totalorder %s9, 3
    %p113 = pnand %p111, %p112
    %p114 = pneg %p113
    // Predicated region
    $region9: #{fno3d_forward.6} parent=5 // pred_check
      _
    $region10: #{fno3d_forward.6} parent=5 // pred_check_branch
      %116 = sbr.rel (%p113) target = $region12
    $region11: #{fno3d_forward.6} parent=5 // pred_region
      %s117 = ssub.s32 %s9, 1
      // Predicated region
      $region13: #{fno3d_forward.6} parent=11 // pred_check
        %p118 = pneg %p56
      $region14: #{fno3d_forward.6} parent=11 // pred_check_branch
        %120 = sbr.rel (%p118) target = $region16
      $region15: #{fno3d_forward.6} parent=11 // pred_region
        _
      $region16: #{fno3d_forward.6} parent=11 // pred_fallthru
        _
      // Predicated region
      $region17: #{fno3d_forward.6} parent=11 // pred_check
        %p121 = pneg %p77
      $region18: #{fno3d_forward.6} parent=11 // pred_check_branch
        %123 = sbr.rel (%p121) target = $region20
      $region19: #{fno3d_forward.6} parent=11 // pred_region
        _
      $region20: #{fno3d_forward.6} parent=11 // pred_fallthru
        _
    $region12: #{fno3d_forward.6} parent=5 // pred_fallthru
      _
    %p124 = scmp.lt.s32.totalorder %s9, 2
    // Predicated region
    $region21: #{fno3d_forward.6} parent=5 // pred_check
      %p125 = pneg %p124
    $region22: #{fno3d_forward.6} parent=5 // pred_check_branch
      %127 = sbr.rel (%p125) target = $region24
    $region23: #{fno3d_forward.6} parent=5 // pred_region
      // Predicated region
      $region25: #{fno3d_forward.6} parent=23 // pred_check
        %p128 = pneg %p29
      $region26: #{fno3d_forward.6} parent=23 // pred_check_branch
        %130 = sbr.rel (%p128) target = $region28
      $region27: #{fno3d_forward.6} parent=23 // pred_region
        %s131 = smul.u32 16, %s9
        %p132 = scmp.lt.s32.totalorder %s131, 31
        %s133 = scalar_select %p132, %s131, 31
        %s134 = smul.addr %s133, 4
        %s135 = scalar_lea.vmem %s0, %s134
        %s136 = smul.u32 16, %s9
      $region28: #{fno3d_forward.6} parent=23 // pred_fallthru
        _
    $region24: #{fno3d_forward.6} parent=5 // pred_fallthru
      _
    %p137 = scmp.le.s32.totalorder 1, %s9
    %p138 = scmp.lt.s32.totalorder %s9, 3
    %p139 = pnand %p137, %p138
    %p140 = pneg %p139
    // Predicated region
    $region29: #{fno3d_forward.6} parent=5 // pred_check
      _
    $region30: #{fno3d_forward.6} parent=5 // pred_check_branch
      %142 = sbr.rel (%p139) target = $region32
    $region31: #{fno3d_forward.6} parent=5 // pred_region
      %s143 = ssub.s32 %s9, 1
      %s144 = smul.u32 16, %s14
      %p145 = scmp.lt.s32.totalorder %s144, 31
      %s146 = scalar_select %p145, %s144, 31
      %s147 = smul.addr %s146, 4
      %s148 = scalar_lea.vmem %s0, %s147
      %p149 = pneg %p35
      %p150 = pneg %p32
      %p151 = pneg %p56
      %p152 = pneg %p53
      %p153 = pneg %p77
      %p154 = pneg %p74
      %p155 = pneg %p103
      %p156 = pneg %p100
      %s157 = smul.u32 16, %s14
      %p158 = scmp.lt.s32.totalorder %s157, 31
      %s159 = scalar_select %p158, %s157, 31
      %s160 = smul.addr %s159, 4
      %s161 = scalar_lea.vmem %s3, %s160
      %s162 = smul.u32 16, %s14
      %p163 = scmp.lt.s32.totalorder %s162, 31
      %s164 = scalar_select %p163, %s162, 31
      %s165 = smul.addr %s164, 4
      %s166 = scalar_lea.vmem %s0, %s165
      %s167 = smul.u32 16, %s14
      %s168 = smul.u32 16, %s14
      %p169 = scmp.lt.s32.totalorder %s168, 31
      %s170 = scalar_select %p169, %s168, 31
      %s171 = smul.addr %s170, 4
      %s172 = scalar_lea.vmem %s3, %s171
      %s173 = smul.u32 16, %s14
      %v175 = vld [vmem:[%s1] sm:$0xf]
      %v176 = vld [vmem:[%s166] sm:$0xff]
      %v177 = vld [vmem:[%s166 + $0x8] sm:$0xff]
      %v178 = vld [vmem:[%s166 + $0x10] sm:$0xff]
      %v179 = vld [vmem:[%s166 + $0x18] sm:$0xff]
      %v180 = vld [vmem:[%s166 + $0x20] sm:$0xff]
      %v181 = vld [vmem:[%s166 + $0x28] sm:$0xff]
      %v182 = vld [vmem:[%s166 + $0x30] sm:$0xff]
      %v183 = vld [vmem:[%s166 + $0x38] sm:$0xff]
      %v184 = vld [vmem:[%s2] sm:$0xff]
      %186 = vset.pattern.permute.xlu0 0
      %187 = vperm.xlu0 %186, %v184
      %v188 = vpop.permute.xlu0 %187
      %v198 = vunpack.c.l.b16 %v176
      %v199 = vunpack.c.h.b16 %v176
      %v200 = vunpack.c.l.b16 %v177
      %v201 = vunpack.c.h.b16 %v177
      %v202 = vunpack.c.l.b16 %v178
      %v203 = vunpack.c.h.b16 %v178
      %v204 = vunpack.c.l.b16 %v179
      %v205 = vunpack.c.h.b16 %v179
      %v206 = vunpack.c.l.b16 %v180
      %v207 = vunpack.c.h.b16 %v180
      %v208 = vunpack.c.l.b16 %v181
      %v209 = vunpack.c.h.b16 %v181
      %v210 = vunpack.c.l.b16 %v182
      %v211 = vunpack.c.h.b16 %v182
      %v212 = vunpack.c.l.b16 %v183
      %v213 = vunpack.c.h.b16 %v183
      %v214 = vpack.c.b16 %v198, %v198
      %v215 = vpack.c.b16 %v199, %v199
      %v216 = vpack.c.b16 %v200, %v200
      %v217 = vpack.c.b16 %v201, %v201
      %v218 = vpack.c.b16 %v202, %v202
      %v219 = vpack.c.b16 %v203, %v203
      %v220 = vpack.c.b16 %v204, %v204
      %v221 = vpack.c.b16 %v205, %v205
      %v222 = vpack.c.b16 %v206, %v206
      %v223 = vpack.c.b16 %v207, %v207
      %v224 = vpack.c.b16 %v208, %v208
      %v225 = vpack.c.b16 %v209, %v209
      %v226 = vpack.c.b16 %v210, %v210
      %v227 = vpack.c.b16 %v211, %v211
      %v228 = vpack.c.b16 %v212, %v212
      %v229 = vpack.c.b16 %v213, %v213
      %vm230 = vcmask 56320
      %v232 = vsel %vm230, %v175, 0
      %vm234 = vcmask 1042432
      %vm235 = vcmask 1043456
      %v236 = vsel %vm234, 4294967295, 65535
      %v237 = vsel %vm235, %v236, 0
      %v239 = vand.u32 %v214, %v237
      %v242 = vand.u32 %v215, %v237
      %v245 = vand.u32 %v216, %v237
      %v248 = vand.u32 %v217, %v237
      %v251 = vand.u32 %v218, %v237
      %v254 = vand.u32 %v219, %v237
      %v257 = vand.u32 %v220, %v237
      %v260 = vand.u32 %v221, %v237
      %v263 = vand.u32 %v222, %v237
      %v266 = vand.u32 %v223, %v237
      %v269 = vand.u32 %v224, %v237
      %v272 = vand.u32 %v225, %v237
      %v275 = vand.u32 %v226, %v237
      %v278 = vand.u32 %v227, %v237
      %v281 = vand.u32 %v228, %v237
      %v284 = vand.u32 %v229, %v237
      %286 = vmatprep.subr.bf16.mxu0 0
      %287 = vmatpush1.bf16.msra.mxu0 0
      %288 = vmatprep.subr.bf16.mxu0 0
      %289 = vmatpush1.bf16.msra.mxu0 0
      %290 = vmatprep.subr.bf16.mxu0 0
      %291 = vmatpush1.bf16.msra.mxu0 0
      %292 = vmatprep.subr.bf16.mxu0 0
      %293 = vmatpush1.bf16.msra.mxu0 0
      %294 = vmatprep.subr.bf16.mxu0 0
      %295 = vmatpush1.bf16.msra.mxu0 0
      %296 = vmatprep.subr.bf16.mxu0 0
      %297 = vmatpush1.bf16.msra.mxu0 0
      %298 = vmatprep.subr.bf16.mxu0 0
      %299 = vmatpush1.bf16.msra.mxu0 0
      %300 = vmatprep.subr.bf16.mxu0 %v242
      %301 = vmatpush1.bf16.msra.mxu0 %v239
      %302 = vmatprep.subr.bf16.mxu0 0
      %303 = vmatpush2.bf16.msra.mxu0 0
      %304 = vmatprep.subr.bf16.mxu0 0
      %305 = vmatpush2.bf16.msra.mxu0 0
      %306 = vmatprep.subr.bf16.mxu0 0
      %307 = vmatpush2.bf16.msra.mxu0 0
      %308 = vmatprep.subr.bf16.mxu0 0
      %309 = vmatpush2.bf16.msra.mxu0 0
      %310 = vmatprep.subr.bf16.mxu0 0
      %311 = vmatpush2.bf16.msra.mxu0 0
      %312 = vmatprep.subr.bf16.mxu0 0
      %313 = vmatpush2.bf16.msra.mxu0 0
      %314 = vmatprep.subr.bf16.mxu0 0
      %315 = vmatpush2.bf16.msra.mxu0 0
      %316 = vmatprep.subr.bf16.mxu0 0
      %317 = vmatpush2.bf16.msra.mxu0 0
      %318 = vmatprep.mubr.bf16.mxu0 0
      %319 = vmatmul.mubr.bf16.gmra.mxu0 %v232
      %v320 = vpop.f32.mrf.mxu0
      %v321 = vadd.f32 %v188, %v320
      %v322 = vpop.f32.mrf.mxu0
      %v323 = vadd.f32 %v188, %v322
      %v324 = vpop.f32.mrf.mxu0
      %v325 = vpop.f32.mrf.mxu0
      %326 = vdwg.mxu0
      %327 = vmatprep.subr.bf16.mxu0 0
      %328 = vmatpush1.bf16.msra.mxu0 0
      %329 = vmatprep.subr.bf16.mxu0 0
      %330 = vmatpush1.bf16.msra.mxu0 0
      %331 = vmatprep.subr.bf16.mxu0 0
      %332 = vmatpush1.bf16.msra.mxu0 0
      %333 = vmatprep.subr.bf16.mxu0 0
      %334 = vmatpush1.bf16.msra.mxu0 0
      %335 = vmatprep.subr.bf16.mxu0 0
      %336 = vmatpush1.bf16.msra.mxu0 0
      %337 = vmatprep.subr.bf16.mxu0 0
      %338 = vmatpush1.bf16.msra.mxu0 0
      %339 = vmatprep.subr.bf16.mxu0 0
      %340 = vmatpush1.bf16.msra.mxu0 0
      %341 = vmatprep.subr.bf16.mxu0 %v248
      %342 = vmatpush1.bf16.msra.mxu0 %v245
      %343 = vmatprep.subr.bf16.mxu0 0
      %344 = vmatpush2.bf16.msra.mxu0 0
      %345 = vmatprep.subr.bf16.mxu0 0
      %346 = vmatpush2.bf16.msra.mxu0 0
      %347 = vmatprep.subr.bf16.mxu0 0
      %348 = vmatpush2.bf16.msra.mxu0 0
      %349 = vmatprep.subr.bf16.mxu0 0
      %350 = vmatpush2.bf16.msra.mxu0 0
      %351 = vmatprep.subr.bf16.mxu0 0
      %352 = vmatpush2.bf16.msra.mxu0 0
      %353 = vmatprep.subr.bf16.mxu0 0
      %354 = vmatpush2.bf16.msra.mxu0 0
      %355 = vmatprep.subr.bf16.mxu0 0
      %356 = vmatpush2.bf16.msra.mxu0 0
      %357 = vmatprep.subr.bf16.mxu0 0
      %358 = vmatpush2.bf16.msra.mxu0 0
      %359 = vmatprep.mubr.bf16.mxu0 0
      %360 = vmatmul.mubr.bf16.gmra.mxu0 %v232
      %v361 = vpop.f32.mrf.mxu0
      %v362 = vadd.f32 %v188, %v361
      %v363 = vpop.f32.mrf.mxu0
      %v364 = vadd.f32 %v188, %v363
      %v365 = vpop.f32.mrf.mxu0
      %v366 = vpop.f32.mrf.mxu0
      %367 = vdwg.mxu0
      %368 = vmatprep.subr.bf16.mxu0 0
      %369 = vmatpush1.bf16.msra.mxu0 0
      %370 = vmatprep.subr.bf16.mxu0 0
      %371 = vmatpush1.bf16.msra.mxu0 0
      %372 = vmatprep.subr.bf16.mxu0 0
      %373 = vmatpush1.bf16.msra.mxu0 0
      %374 = vmatprep.subr.bf16.mxu0 0
      %375 = vmatpush1.bf16.msra.mxu0 0
      %376 = vmatprep.subr.bf16.mxu0 0
      %377 = vmatpush1.bf16.msra.mxu0 0
      %378 = vmatprep.subr.bf16.mxu0 0
      %379 = vmatpush1.bf16.msra.mxu0 0
      %380 = vmatprep.subr.bf16.mxu0 0
      %381 = vmatpush1.bf16.msra.mxu0 0
      %382 = vmatprep.subr.bf16.mxu0 %v254
      %383 = vmatpush1.bf16.msra.mxu0 %v251
      %384 = vmatprep.subr.bf16.mxu0 0
      %385 = vmatpush2.bf16.msra.mxu0 0
      %386 = vmatprep.subr.bf16.mxu0 0
      %387 = vmatpush2.bf16.msra.mxu0 0
      %388 = vmatprep.subr.bf16.mxu0 0
      %389 = vmatpush2.bf16.msra.mxu0 0
      %390 = vmatprep.subr.bf16.mxu0 0
      %391 = vmatpush2.bf16.msra.mxu0 0
      %392 = vmatprep.subr.bf16.mxu0 0
      %393 = vmatpush2.bf16.msra.mxu0 0
      %394 = vmatprep.subr.bf16.mxu0 0
      %395 = vmatpush2.bf16.msra.mxu0 0
      %396 = vmatprep.subr.bf16.mxu0 0
      %397 = vmatpush2.bf16.msra.mxu0 0
      %398 = vmatprep.subr.bf16.mxu0 0
      %399 = vmatpush2.bf16.msra.mxu0 0
      %400 = vmatprep.mubr.bf16.mxu0 0
      %401 = vmatmul.mubr.bf16.gmra.mxu0 %v232
      %v402 = vpop.f32.mrf.mxu0
      %v403 = vadd.f32 %v188, %v402
      %v404 = vpop.f32.mrf.mxu0
      %v405 = vadd.f32 %v188, %v404
      %v406 = vpop.f32.mrf.mxu0
      %v407 = vpop.f32.mrf.mxu0
      %408 = vdwg.mxu0
      %409 = vmatprep.subr.bf16.mxu0 0
      %410 = vmatpush1.bf16.msra.mxu0 0
      %411 = vmatprep.subr.bf16.mxu0 0
      %412 = vmatpush1.bf16.msra.mxu0 0
      %413 = vmatprep.subr.bf16.mxu0 0
      %414 = vmatpush1.bf16.msra.mxu0 0
      %415 = vmatprep.subr.bf16.mxu0 0
      %416 = vmatpush1.bf16.msra.mxu0 0
      %417 = vmatprep.subr.bf16.mxu0 0
      %418 = vmatpush1.bf16.msra.mxu0 0
      %419 = vmatprep.subr.bf16.mxu0 0
      %420 = vmatpush1.bf16.msra.mxu0 0
      %421 = vmatprep.subr.bf16.mxu0 0
      %422 = vmatpush1.bf16.msra.mxu0 0
      %423 = vmatprep.subr.bf16.mxu0 %v260
      %424 = vmatpush1.bf16.msra.mxu0 %v257
      %425 = vmatprep.subr.bf16.mxu0 0
      %426 = vmatpush2.bf16.msra.mxu0 0
      %427 = vmatprep.subr.bf16.mxu0 0
      %428 = vmatpush2.bf16.msra.mxu0 0
      %429 = vmatprep.subr.bf16.mxu0 0
      %430 = vmatpush2.bf16.msra.mxu0 0
      %431 = vmatprep.subr.bf16.mxu0 0
      %432 = vmatpush2.bf16.msra.mxu0 0
      %433 = vmatprep.subr.bf16.mxu0 0
      %434 = vmatpush2.bf16.msra.mxu0 0
      %435 = vmatprep.subr.bf16.mxu0 0
      %436 = vmatpush2.bf16.msra.mxu0 0
      %437 = vmatprep.subr.bf16.mxu0 0
      %438 = vmatpush2.bf16.msra.mxu0 0
      %439 = vmatprep.subr.bf16.mxu0 0
      %440 = vmatpush2.bf16.msra.mxu0 0
      %441 = vmatprep.mubr.bf16.mxu0 0
      %442 = vmatmul.mubr.bf16.gmra.mxu0 %v232
      %v443 = vpop.f32.mrf.mxu0
      %v444 = vadd.f32 %v188, %v443
      %v445 = vpop.f32.mrf.mxu0
      %v446 = vadd.f32 %v188, %v445
      %v447 = vpop.f32.mrf.mxu0
      %v448 = vpop.f32.mrf.mxu0
      %449 = vdwg.mxu0
      %450 = vmatprep.subr.bf16.mxu0 0
      %451 = vmatpush1.bf16.msra.mxu0 0
      %452 = vmatprep.subr.bf16.mxu0 0
      %453 = vmatpush1.bf16.msra.mxu0 0
      %454 = vmatprep.subr.bf16.mxu0 0
      %455 = vmatpush1.bf16.msra.mxu0 0
      %456 = vmatprep.subr.bf16.mxu0 0
      %457 = vmatpush1.bf16.msra.mxu0 0
      %458 = vmatprep.subr.bf16.mxu0 0
      %459 = vmatpush1.bf16.msra.mxu0 0
      %460 = vmatprep.subr.bf16.mxu0 0
      %461 = vmatpush1.bf16.msra.mxu0 0
      %462 = vmatprep.subr.bf16.mxu0 0
      %463 = vmatpush1.bf16.msra.mxu0 0
      %464 = vmatprep.subr.bf16.mxu0 %v266
      %465 = vmatpush1.bf16.msra.mxu0 %v263
      %466 = vmatprep.subr.bf16.mxu0 0
      %467 = vmatpush2.bf16.msra.mxu0 0
      %468 = vmatprep.subr.bf16.mxu0 0
      %469 = vmatpush2.bf16.msra.mxu0 0
      %470 = vmatprep.subr.bf16.mxu0 0
      %471 = vmatpush2.bf16.msra.mxu0 0
      %472 = vmatprep.subr.bf16.mxu0 0
      %473 = vmatpush2.bf16.msra.mxu0 0
      %474 = vmatprep.subr.bf16.mxu0 0
      %475 = vmatpush2.bf16.msra.mxu0 0
      %476 = vmatprep.subr.bf16.mxu0 0
      %477 = vmatpush2.bf16.msra.mxu0 0
      %478 = vmatprep.subr.bf16.mxu0 0
      %479 = vmatpush2.bf16.msra.mxu0 0
      %480 = vmatprep.subr.bf16.mxu0 0
      %481 = vmatpush2.bf16.msra.mxu0 0
      %482 = vmatprep.mubr.bf16.mxu0 0
      %483 = vmatmul.mubr.bf16.gmra.mxu0 %v232
      %v484 = vpop.f32.mrf.mxu0
      %v485 = vadd.f32 %v188, %v484
      %v486 = vpop.f32.mrf.mxu0
      %v487 = vadd.f32 %v188, %v486
      %v488 = vpop.f32.mrf.mxu0
      %v489 = vpop.f32.mrf.mxu0
      %490 = vdwg.mxu0
      %491 = vmatprep.subr.bf16.mxu0 0
      %492 = vmatpush1.bf16.msra.mxu0 0
      %493 = vmatprep.subr.bf16.mxu0 0
      %494 = vmatpush1.bf16.msra.mxu0 0
      %495 = vmatprep.subr.bf16.mxu0 0
      %496 = vmatpush1.bf16.msra.mxu0 0
      %497 = vmatprep.subr.bf16.mxu0 0
      %498 = vmatpush1.bf16.msra.mxu0 0
      %499 = vmatprep.subr.bf16.mxu0 0
      %500 = vmatpush1.bf16.msra.mxu0 0
      %501 = vmatprep.subr.bf16.mxu0 0
      %502 = vmatpush1.bf16.msra.mxu0 0
      %503 = vmatprep.subr.bf16.mxu0 0
      %504 = vmatpush1.bf16.msra.mxu0 0
      %505 = vmatprep.subr.bf16.mxu0 %v272
      %506 = vmatpush1.bf16.msra.mxu0 %v269
      %507 = vmatprep.subr.bf16.mxu0 0
      %508 = vmatpush2.bf16.msra.mxu0 0
      %509 = vmatprep.subr.bf16.mxu0 0
      %510 = vmatpush2.bf16.msra.mxu0 0
      %511 = vmatprep.subr.bf16.mxu0 0
      %512 = vmatpush2.bf16.msra.mxu0 0
      %513 = vmatprep.subr.bf16.mxu0 0
      %514 = vmatpush2.bf16.msra.mxu0 0
      %515 = vmatprep.subr.bf16.mxu0 0
      %516 = vmatpush2.bf16.msra.mxu0 0
      %517 = vmatprep.subr.bf16.mxu0 0
      %518 = vmatpush2.bf16.msra.mxu0 0
      %519 = vmatprep.subr.bf16.mxu0 0
      %520 = vmatpush2.bf16.msra.mxu0 0
      %521 = vmatprep.subr.bf16.mxu0 0
      %522 = vmatpush2.bf16.msra.mxu0 0
      %523 = vmatprep.mubr.bf16.mxu0 0
      %524 = vmatmul.mubr.bf16.gmra.mxu0 %v232
      %v525 = vpop.f32.mrf.mxu0
      %v526 = vadd.f32 %v188, %v525
      %v527 = vpop.f32.mrf.mxu0
      %v528 = vadd.f32 %v188, %v527
      %v529 = vpop.f32.mrf.mxu0
      %v530 = vpop.f32.mrf.mxu0
      %531 = vdwg.mxu0
      %532 = vmatprep.subr.bf16.mxu0 0
      %533 = vmatpush1.bf16.msra.mxu0 0
      %534 = vmatprep.subr.bf16.mxu0 0
      %535 = vmatpush1.bf16.msra.mxu0 0
      %536 = vmatprep.subr.bf16.mxu0 0
      %537 = vmatpush1.bf16.msra.mxu0 0
      %538 = vmatprep.subr.bf16.mxu0 0
      %539 = vmatpush1.bf16.msra.mxu0 0
      %540 = vmatprep.subr.bf16.mxu0 0
      %541 = vmatpush1.bf16.msra.mxu0 0
      %542 = vmatprep.subr.bf16.mxu0 0
      %543 = vmatpush1.bf16.msra.mxu0 0
      %544 = vmatprep.subr.bf16.mxu0 0
      %545 = vmatpush1.bf16.msra.mxu0 0
      %546 = vmatprep.subr.bf16.mxu0 %v278
      %547 = vmatpush1.bf16.msra.mxu0 %v275
      %548 = vmatprep.subr.bf16.mxu0 0
      %549 = vmatpush2.bf16.msra.mxu0 0
      %550 = vmatprep.subr.bf16.mxu0 0
      %551 = vmatpush2.bf16.msra.mxu0 0
      %552 = vmatprep.subr.bf16.mxu0 0
      %553 = vmatpush2.bf16.msra.mxu0 0
      %554 = vmatprep.subr.bf16.mxu0 0
      %555 = vmatpush2.bf16.msra.mxu0 0
      %556 = vmatprep.subr.bf16.mxu0 0
      %557 = vmatpush2.bf16.msra.mxu0 0
      %558 = vmatprep.subr.bf16.mxu0 0
      %559 = vmatpush2.bf16.msra.mxu0 0
      %560 = vmatprep.subr.bf16.mxu0 0
      %561 = vmatpush2.bf16.msra.mxu0 0
      %562 = vmatprep.subr.bf16.mxu0 0
      %563 = vmatpush2.bf16.msra.mxu0 0
      %564 = vmatprep.mubr.bf16.mxu0 0
      %565 = vmatmul.mubr.bf16.gmra.mxu0 %v232
      %v566 = vpop.f32.mrf.mxu0
      %v567 = vadd.f32 %v188, %v566
      %v568 = vpop.f32.mrf.mxu0
      %v569 = vadd.f32 %v188, %v568
      %v570 = vpop.f32.mrf.mxu0
      %v571 = vpop.f32.mrf.mxu0
      %572 = vdwg.mxu0
      %573 = vmatprep.subr.bf16.mxu0 0
      %574 = vmatpush1.bf16.msra.mxu0 0
      %575 = vmatprep.subr.bf16.mxu0 0
      %576 = vmatpush1.bf16.msra.mxu0 0
      %577 = vmatprep.subr.bf16.mxu0 0
      %578 = vmatpush1.bf16.msra.mxu0 0
      %579 = vmatprep.subr.bf16.mxu0 0
      %580 = vmatpush1.bf16.msra.mxu0 0
      %581 = vmatprep.subr.bf16.mxu0 0
      %582 = vmatpush1.bf16.msra.mxu0 0
      %583 = vmatprep.subr.bf16.mxu0 0
      %584 = vmatpush1.bf16.msra.mxu0 0
      %585 = vmatprep.subr.bf16.mxu0 0
      %586 = vmatpush1.bf16.msra.mxu0 0
      %587 = vmatprep.subr.bf16.mxu0 %v284
      %588 = vmatpush1.bf16.msra.mxu0 %v281
      %589 = vmatprep.subr.bf16.mxu0 0
      %590 = vmatpush2.bf16.msra.mxu0 0
      %591 = vmatprep.subr.bf16.mxu0 0
      %592 = vmatpush2.bf16.msra.mxu0 0
      %593 = vmatprep.subr.bf16.mxu0 0
      %594 = vmatpush2.bf16.msra.mxu0 0
      %595 = vmatprep.subr.bf16.mxu0 0
      %596 = vmatpush2.bf16.msra.mxu0 0
      %597 = vmatprep.subr.bf16.mxu0 0
      %598 = vmatpush2.bf16.msra.mxu0 0
      %599 = vmatprep.subr.bf16.mxu0 0
      %600 = vmatpush2.bf16.msra.mxu0 0
      %601 = vmatprep.subr.bf16.mxu0 0
      %602 = vmatpush2.bf16.msra.mxu0 0
      %603 = vmatprep.subr.bf16.mxu0 0
      %604 = vmatpush2.bf16.msra.mxu0 0
      %605 = vmatprep.mubr.bf16.mxu0 0
      %606 = vmatmul.mubr.bf16.gmra.mxu0 %v232
      %v607 = vpop.f32.mrf.mxu0
      %v608 = vadd.f32 %v188, %v607
      %v609 = vpop.f32.mrf.mxu0
      %v610 = vadd.f32 %v188, %v609
      %v611 = vpop.f32.mrf.mxu0
      %v612 = vpop.f32.mrf.mxu0
      %613 = vdwg.mxu0
      %v614 = vpack.c.bf16 %v321, %v321
      %v615 = vpack.c.bf16 %v323, %v323
      %v616 = vpack.c.bf16 %v362, %v362
      %v617 = vpack.c.bf16 %v364, %v364
      %v618 = vpack.c.bf16 %v403, %v403
      %v619 = vpack.c.bf16 %v405, %v405
      %v620 = vpack.c.bf16 %v444, %v444
      %v621 = vpack.c.bf16 %v446, %v446
      %v622 = vpack.c.bf16 %v485, %v485
      %v623 = vpack.c.bf16 %v487, %v487
      %v624 = vpack.c.bf16 %v526, %v526
      %v625 = vpack.c.bf16 %v528, %v528
      %v626 = vpack.c.bf16 %v567, %v567
      %v627 = vpack.c.bf16 %v569, %v569
      %v628 = vpack.c.bf16 %v608, %v608
      %v629 = vpack.c.bf16 %v610, %v610
      %v646 = vunpack.c.l.b16 %v614
      %v647 = vunpack.c.l.b16 %v615
      %v648 = vunpack.c.l.b16 %v616
      %v649 = vunpack.c.l.b16 %v617
      %v650 = vunpack.c.l.b16 %v618
      %v651 = vunpack.c.l.b16 %v619
      %v652 = vunpack.c.l.b16 %v620
      %v653 = vunpack.c.l.b16 %v621
      %v654 = vunpack.c.l.b16 %v622
      %v655 = vunpack.c.l.b16 %v623
      %v656 = vunpack.c.l.b16 %v624
      %v657 = vunpack.c.l.b16 %v625
      %v658 = vunpack.c.l.b16 %v626
      %v659 = vunpack.c.l.b16 %v627
      %v660 = vunpack.c.l.b16 %v628
      %v661 = vunpack.c.l.b16 %v629
      %v662 = vpack.c.b16 %v647, %v646
      %v663 = vpack.c.b16 %v649, %v648
      %v664 = vpack.c.b16 %v651, %v650
      %v665 = vpack.c.b16 %v653, %v652
      %v666 = vpack.c.b16 %v655, %v654
      %v667 = vpack.c.b16 %v657, %v656
      %v668 = vpack.c.b16 %v659, %v658
      %v669 = vpack.c.b16 %v661, %v660
      %678 = vst [vmem:[%s172] sm:$0xff] %v662
      %679 = vst [vmem:[%s172 + $0x8] sm:$0xff] %v663
      %680 = vst [vmem:[%s172 + $0x10] sm:$0xff] %v664
      %681 = vst [vmem:[%s172 + $0x18] sm:$0xff] %v665
      %682 = vst [vmem:[%s172 + $0x20] sm:$0xff] %v666
      %683 = vst [vmem:[%s172 + $0x28] sm:$0xff] %v667
      %684 = vst [vmem:[%s172 + $0x30] sm:$0xff] %v668
      %685 = vst [vmem:[%s172 + $0x38] sm:$0xff] %v669
      %s686 = smul.u32 16, %s14
      %p687 = scmp.lt.s32.totalorder %s686, 31
      %s688 = scalar_select %p687, %s686, 31
      %s689 = smul.addr %s688, 4
      %s690 = scalar_lea.vmem %s3, %s689
      // Predicated region
      $region33: #{fno3d_forward.6} parent=31 // pred_check
        %p691 = pneg %p100
      $region34: #{fno3d_forward.6} parent=31 // pred_check_branch
        %693 = sbr.rel (%p691) target = $region36
      $region35: #{fno3d_forward.6} parent=31 // pred_region
        %s694 = smul.u32 16, %s14
      $region36: #{fno3d_forward.6} parent=31 // pred_fallthru
        _
    $region32: #{fno3d_forward.6} parent=5 // pred_fallthru
      _
    %p695 = scmp.le.s32.totalorder 2, %s9
    // Predicated region
    $region37: #{fno3d_forward.6} parent=5 // pred_check
      %p696 = pneg %p695
    $region38: #{fno3d_forward.6} parent=5 // pred_check_branch
      %698 = sbr.rel (%p696) target = $region40
    $region39: #{fno3d_forward.6} parent=5 // pred_region
      %s699 = ssub.s32 %s9, 2
      // Predicated region
      $region41: #{fno3d_forward.6} parent=39 // pred_check
        %p700 = pneg %p106
      $region42: #{fno3d_forward.6} parent=39 // pred_check_branch
        %702 = sbr.rel (%p700) target = $region44
      $region43: #{fno3d_forward.6} parent=39 // pred_region
        %s703 = smul.u32 16, %s15
        %p704 = scmp.lt.s32.totalorder %s703, 31
        %s705 = scalar_select %p704, %s703, 31
        %s706 = smul.addr %s705, 4
        %s707 = scalar_lea.vmem %s3, %s706
      $region44: #{fno3d_forward.6} parent=39 // pred_fallthru
        _
    $region40: #{fno3d_forward.6} parent=5 // pred_fallthru
      _
  $region6: #{fno3d_forward.6} parent=0 // loop_footer
    %s13 = sadd.s32 1, %s9
  $region7: #{fno3d_forward.6} parent=0 // loop_footer_branch
    %8 = sbr.rel target = $region3
  $region8: #{fno3d_forward.6} parent=0 // loop_exit
    _

// kernel: fno3d_forward.7
$region0: #{fno3d_forward.7}
  #allocation0 [shape = 'u32[]', space=smem, size = 0x4, offset = 0x4, fixed_abs, tag = 'smem constant byte address 0x4 - core index']
  #allocation1 [shape = 'u32[144,128]{1,0:T(1,128)}', space=vmem, size = 0x12000, scoped, tag = 'internal scratch']
  %s0 = inlined_call_operand.vmem [shape: f32[8,2,128], index: 0, kind: input, shape index: {}]
  %s1 = inlined_call_operand.vmem [shape: f32[8,2,128], index: 1, kind: input, shape index: {}]
  %s2 = inlined_call_operand.vmem [shape: bf16[8,8,128], index: 2, kind: input, shape index: {}]
  %s3 = inlined_call_operand.vmem [shape: bf16[8,8,128], index: 3, kind: input, shape index: {}]
  %s4 = inlined_call_operand.vmem [shape: f32[8,2,128], index: 4, kind: output, shape index: {0}]
  %s5 = inlined_call_operand.vmem [shape: f32[8,2,128], index: 5, kind: output, shape index: {1}]
  %6 = xla_tuple %s4, %s5
  %s7 = sld [smem:[#allocation0]]
  $region34: #{fno3d_forward.7} parent=0
    _
  %s9 = ssub.s32 1, %s7
  %s10 = scalar_select 0, %s9, %s7
  // Predicated region
  $region2: #{fno3d_forward.7} parent=0 // pred_check
    _
  $region3: #{fno3d_forward.7} parent=0 // pred_check_branch
    %12 = sbr.rel (0) target = $region5
  $region4: #{fno3d_forward.7} parent=0 // pred_region
    _
  $region5: #{fno3d_forward.7} parent=0 // pred_fallthru
    _
  // Predicated region
  $region6: #{fno3d_forward.7} parent=0 // pred_check
    _
  $region7: #{fno3d_forward.7} parent=0 // pred_check_branch
    %14 = sbr.rel (0) target = $region9
  $region8: #{fno3d_forward.7} parent=0 // pred_region
    _
  $region9: #{fno3d_forward.7} parent=0 // pred_fallthru
    _
  // Predicated region
  $region10: #{fno3d_forward.7} parent=0 // pred_check
    _
  $region11: #{fno3d_forward.7} parent=0 // pred_check_branch
    %16 = sbr.rel (0) target = $region13
  $region12: #{fno3d_forward.7} parent=0 // pred_region
    _
  $region13: #{fno3d_forward.7} parent=0 // pred_fallthru
    _
  // Predicated region
  $region14: #{fno3d_forward.7} parent=0 // pred_check
    _
  $region15: #{fno3d_forward.7} parent=0 // pred_check_branch
    %18 = sbr.rel (0) target = $region17
  $region16: #{fno3d_forward.7} parent=0 // pred_region
    _
  $region17: #{fno3d_forward.7} parent=0 // pred_fallthru
    _
  %v19 = vld [vmem:[%s0] sm:$0x3]
  %v20 = vld [vmem:[%s1] sm:$0x3]
  %v21 = vld [vmem:[%s2] sm:$0xf]
  %v24 = vunpack.c.l.s4 1966171168
  %v25 = vunpack.c.0.s8 %v24
  %v26 = vlaneseq
  %v27 = vshrl.u32 %v26, 7
  %v28 = vsub.s32 %v25, %v27
  %v29 = vrot.slane %v21, %v28
  %v30 = vcombine.high %v29, %v29
  %v32 = vunpack.c.l.s4 1966171168
  %v33 = vunpack.c.0.s8 %v32
  %v34 = vlaneseq
  %v35 = vshrl.u32 %v34, 7
  %v36 = vsub.s32 %v33, %v35
  %v37 = vrot.slane %v29, %v36
  %v39 = vunpack.c.l.s4 1966171168
  %v40 = vunpack.c.0.s8 %v39
  %v41 = vlaneseq
  %v42 = vshrl.u32 %v41, 7
  %v43 = vsub.s32 %v40, %v42
  %v44 = vrot.slane %v30, %v43
  %v45 = vcombine.high %v37, %v37
  %v46 = vcombine.high %v44, %v44
  %v47 = vunpack.i.l.s16 %v37
  %v48 = vunpack.i.h.s16 %v37
  %v49 = vunpack.i.l.s16 %v44
  %v50 = vunpack.i.h.s16 %v44
  %v51 = vunpack.i.l.s16 %v45
  %v52 = vunpack.i.h.s16 %v45
  %v53 = vunpack.i.l.s16 %v46
  %v54 = vunpack.i.h.s16 %v46
  %v55 = vpack.i.b16 %v47, %v47
  %v56 = vpack.i.b16 %v48, %v48
  %v57 = vpack.i.b16 %v49, %v49
  %v58 = vpack.i.b16 %v50, %v50
  %v59 = vpack.i.b16 %v51, %v51
  %v60 = vpack.i.b16 %v52, %v52
  %v61 = vpack.i.b16 %v53, %v53
  %v62 = vpack.i.b16 %v54, %v54
  %v64 = vunpack.c.l.s4 286326784
  %v65 = vunpack.c.0.s8 %v64
  %v66 = vlaneseq
  %v67 = vshrl.u32 %v66, 7
  %v68 = vsub.s32 %v65, %v67
  %v69 = vrot.slane %v55, %v68
  %v71 = vunpack.c.l.s4 286326784
  %v72 = vunpack.c.0.s8 %v71
  %v73 = vlaneseq
  %v74 = vshrl.u32 %v73, 7
  %v75 = vsub.s32 %v72, %v74
  %v76 = vrot.slane %v56, %v75
  %v78 = vunpack.c.l.s4 286326784
  %v79 = vunpack.c.0.s8 %v78
  %v80 = vlaneseq
  %v81 = vshrl.u32 %v80, 7
  %v82 = vsub.s32 %v79, %v81
  %v83 = vrot.slane %v57, %v82
  %v85 = vunpack.c.l.s4 286326784
  %v86 = vunpack.c.0.s8 %v85
  %v87 = vlaneseq
  %v88 = vshrl.u32 %v87, 7
  %v89 = vsub.s32 %v86, %v88
  %v90 = vrot.slane %v58, %v89
  %v92 = vunpack.c.l.s4 286326784
  %v93 = vunpack.c.0.s8 %v92
  %v94 = vlaneseq
  %v95 = vshrl.u32 %v94, 7
  %v96 = vsub.s32 %v93, %v95
  %v97 = vrot.slane %v59, %v96
  %v99 = vunpack.c.l.s4 286326784
  %v100 = vunpack.c.0.s8 %v99
  %v101 = vlaneseq
  %v102 = vshrl.u32 %v101, 7
  %v103 = vsub.s32 %v100, %v102
  %v104 = vrot.slane %v60, %v103
  %v106 = vunpack.c.l.s4 286326784
  %v107 = vunpack.c.0.s8 %v106
  %v108 = vlaneseq
  %v109 = vshrl.u32 %v108, 7
  %v110 = vsub.s32 %v107, %v109
  %v111 = vrot.slane %v61, %v110
  %v113 = vunpack.c.l.s4 286326784
  %v114 = vunpack.c.0.s8 %v113
  %v115 = vlaneseq
  %v116 = vshrl.u32 %v115, 7
  %v117 = vsub.s32 %v114, %v116
  %v118 = vrot.slane %v62, %v117
  %v127 = vunpack.c.l.bf16 %v69
  %v128 = vunpack.c.l.bf16 %v76
  %v129 = vunpack.c.l.bf16 %v83
  %v130 = vunpack.c.l.bf16 %v90
  %v131 = vunpack.c.l.bf16 %v97
  %v132 = vunpack.c.l.bf16 %v104
  %v133 = vunpack.c.l.bf16 %v111
  %v134 = vunpack.c.l.bf16 %v118
  %v135 = vld [vmem:[%s3] sm:$0xf]
  %v138 = vunpack.c.l.s4 1966171168
  %v139 = vunpack.c.0.s8 %v138
  %v140 = vlaneseq
  %v141 = vshrl.u32 %v140, 7
  %v142 = vsub.s32 %v139, %v141
  %v143 = vrot.slane %v135, %v142
  %v144 = vcombine.high %v143, %v143
  %v146 = vunpack.c.l.s4 1966171168
  %v147 = vunpack.c.0.s8 %v146
  %v148 = vlaneseq
  %v149 = vshrl.u32 %v148, 7
  %v150 = vsub.s32 %v147, %v149
  %v151 = vrot.slane %v143, %v150
  %v153 = vunpack.c.l.s4 1966171168
  %v154 = vunpack.c.0.s8 %v153
  %v155 = vlaneseq
  %v156 = vshrl.u32 %v155, 7
  %v157 = vsub.s32 %v154, %v156
  %v158 = vrot.slane %v144, %v157
  %v159 = vcombine.high %v151, %v151
  %v160 = vcombine.high %v158, %v158
  %v161 = vunpack.i.l.s16 %v151
  %v162 = vunpack.i.h.s16 %v151
  %v163 = vunpack.i.l.s16 %v158
  %v164 = vunpack.i.h.s16 %v158
  %v165 = vunpack.i.l.s16 %v159
  %v166 = vunpack.i.h.s16 %v159
  %v167 = vunpack.i.l.s16 %v160
  %v168 = vunpack.i.h.s16 %v160
  %v169 = vpack.i.b16 %v161, %v161
  %v170 = vpack.i.b16 %v162, %v162
  %v171 = vpack.i.b16 %v163, %v163
  %v172 = vpack.i.b16 %v164, %v164
  %v173 = vpack.i.b16 %v165, %v165
  %v174 = vpack.i.b16 %v166, %v166
  %v175 = vpack.i.b16 %v167, %v167
  %v176 = vpack.i.b16 %v168, %v168
  %v178 = vunpack.c.l.s4 286326784
  %v179 = vunpack.c.0.s8 %v178
  %v180 = vlaneseq
  %v181 = vshrl.u32 %v180, 7
  %v182 = vsub.s32 %v179, %v181
  %v183 = vrot.slane %v169, %v182
  %v185 = vunpack.c.l.s4 286326784
  %v186 = vunpack.c.0.s8 %v185
  %v187 = vlaneseq
  %v188 = vshrl.u32 %v187, 7
  %v189 = vsub.s32 %v186, %v188
  %v190 = vrot.slane %v170, %v189
  %v192 = vunpack.c.l.s4 286326784
  %v193 = vunpack.c.0.s8 %v192
  %v194 = vlaneseq
  %v195 = vshrl.u32 %v194, 7
  %v196 = vsub.s32 %v193, %v195
  %v197 = vrot.slane %v171, %v196
  %v199 = vunpack.c.l.s4 286326784
  %v200 = vunpack.c.0.s8 %v199
  %v201 = vlaneseq
  %v202 = vshrl.u32 %v201, 7
  %v203 = vsub.s32 %v200, %v202
  %v204 = vrot.slane %v172, %v203
  %v206 = vunpack.c.l.s4 286326784
  %v207 = vunpack.c.0.s8 %v206
  %v208 = vlaneseq
  %v209 = vshrl.u32 %v208, 7
  %v210 = vsub.s32 %v207, %v209
  %v211 = vrot.slane %v173, %v210
  %v213 = vunpack.c.l.s4 286326784
  %v214 = vunpack.c.0.s8 %v213
  %v215 = vlaneseq
  %v216 = vshrl.u32 %v215, 7
  %v217 = vsub.s32 %v214, %v216
  %v218 = vrot.slane %v174, %v217
  %v220 = vunpack.c.l.s4 286326784
  %v221 = vunpack.c.0.s8 %v220
  %v222 = vlaneseq
  %v223 = vshrl.u32 %v222, 7
  %v224 = vsub.s32 %v221, %v223
  %v225 = vrot.slane %v175, %v224
  %v227 = vunpack.c.l.s4 286326784
  %v228 = vunpack.c.0.s8 %v227
  %v229 = vlaneseq
  %v230 = vshrl.u32 %v229, 7
  %v231 = vsub.s32 %v228, %v230
  %v232 = vrot.slane %v176, %v231
  %v241 = vunpack.c.l.bf16 %v183
  %v242 = vunpack.c.l.bf16 %v190
  %v243 = vunpack.c.l.bf16 %v197
  %v244 = vunpack.c.l.bf16 %v204
  %v245 = vunpack.c.l.bf16 %v211
  %v246 = vunpack.c.l.bf16 %v218
  %v247 = vunpack.c.l.bf16 %v225
  %v248 = vunpack.c.l.bf16 %v232
  %v249 = vlaneseq
  %v250 = vshrl.u32 %v249, 7
  %v251 = vsub.s32 0, %v250
  %v252 = vrot.slane %v127, %v251
  %v253 = vlaneseq
  %v254 = vshrl.u32 %v253, 7
  %v255 = vsub.s32 0, %v254
  %v256 = vrot.slane %v128, %v255
  %v257 = vlaneseq
  %v258 = vshrl.u32 %v257, 7
  %v259 = vsub.s32 0, %v258
  %v260 = vrot.slane %v129, %v259
  %v261 = vlaneseq
  %v262 = vshrl.u32 %v261, 7
  %v263 = vsub.s32 0, %v262
  %v264 = vrot.slane %v130, %v263
  %v265 = vlaneseq
  %v266 = vshrl.u32 %v265, 7
  %v267 = vsub.s32 0, %v266
  %v268 = vrot.slane %v131, %v267
  %v269 = vlaneseq
  %v270 = vshrl.u32 %v269, 7
  %v271 = vsub.s32 0, %v270
  %v272 = vrot.slane %v132, %v271
  %v273 = vlaneseq
  %v274 = vshrl.u32 %v273, 7
  %v275 = vsub.s32 0, %v274
  %v276 = vrot.slane %v133, %v275
  %v277 = vlaneseq
  %v278 = vshrl.u32 %v277, 7
  %v279 = vsub.s32 0, %v278
  %v280 = vrot.slane %v134, %v279
  %v281 = vmul.f32 %v252, %v19
  %v282 = vmul.f32 %v256, %v19
  %v283 = vmul.f32 %v260, %v19
  %v284 = vmul.f32 %v264, %v19
  %v285 = vmul.f32 %v268, %v19
  %v286 = vmul.f32 %v272, %v19
  %v287 = vmul.f32 %v276, %v19
  %v288 = vmul.f32 %v280, %v19
  %v289 = vadd.f32 %v281, 0.0
  %v290 = vadd.f32 %v282, 0.0
  %v291 = vadd.f32 %v283, 0.0
  %v292 = vadd.f32 %v284, 0.0
  %v293 = vadd.f32 %v285, 0.0
  %v294 = vadd.f32 %v286, 0.0
  %v295 = vadd.f32 %v287, 0.0
  %v296 = vadd.f32 %v288, 0.0
  %v297 = vlaneseq
  %v298 = vshrl.u32 %v297, 7
  %v299 = vsub.s32 0, %v298
  %v300 = vrot.slane %v241, %v299
  %v301 = vlaneseq
  %v302 = vshrl.u32 %v301, 7
  %v303 = vsub.s32 0, %v302
  %v304 = vrot.slane %v242, %v303
  %v305 = vlaneseq
  %v306 = vshrl.u32 %v305, 7
  %v307 = vsub.s32 0, %v306
  %v308 = vrot.slane %v243, %v307
  %v309 = vlaneseq
  %v310 = vshrl.u32 %v309, 7
  %v311 = vsub.s32 0, %v310
  %v312 = vrot.slane %v244, %v311
  %v313 = vlaneseq
  %v314 = vshrl.u32 %v313, 7
  %v315 = vsub.s32 0, %v314
  %v316 = vrot.slane %v245, %v315
  %v317 = vlaneseq
  %v318 = vshrl.u32 %v317, 7
  %v319 = vsub.s32 0, %v318
  %v320 = vrot.slane %v246, %v319
  %v321 = vlaneseq
  %v322 = vshrl.u32 %v321, 7
  %v323 = vsub.s32 0, %v322
  %v324 = vrot.slane %v247, %v323
  %v325 = vlaneseq
  %v326 = vshrl.u32 %v325, 7
  %v327 = vsub.s32 0, %v326
  %v328 = vrot.slane %v248, %v327
  %v329 = vmul.f32 %v300, %v20
  %v330 = vmul.f32 %v304, %v20
  %v331 = vmul.f32 %v308, %v20
  %v332 = vmul.f32 %v312, %v20
  %v333 = vmul.f32 %v316, %v20
  %v334 = vmul.f32 %v320, %v20
  %v335 = vmul.f32 %v324, %v20
  %v336 = vmul.f32 %v328, %v20
  %v337 = vsub.f32 %v289, %v329
  %v338 = vsub.f32 %v290, %v330
  %v339 = vsub.f32 %v291, %v331
  %v340 = vsub.f32 %v292, %v332
  %v341 = vsub.f32 %v293, %v333
  %v342 = vsub.f32 %v294, %v334
  %v343 = vsub.f32 %v295, %v335
  %v344 = vsub.f32 %v296, %v336
  %v345 = vmul.f32 %v300, %v19
  %v346 = vmul.f32 %v304, %v19
  %v347 = vmul.f32 %v308, %v19
  %v348 = vmul.f32 %v312, %v19
  %v349 = vmul.f32 %v316, %v19
  %v350 = vmul.f32 %v320, %v19
  %v351 = vmul.f32 %v324, %v19
  %v352 = vmul.f32 %v328, %v19
  %v353 = vadd.f32 %v345, 0.0
  %v354 = vadd.f32 %v346, 0.0
  %v355 = vadd.f32 %v347, 0.0
  %v356 = vadd.f32 %v348, 0.0
  %v357 = vadd.f32 %v349, 0.0
  %v358 = vadd.f32 %v350, 0.0
  %v359 = vadd.f32 %v351, 0.0
  %v360 = vadd.f32 %v352, 0.0
  %v361 = vmul.f32 %v252, %v20
  %v362 = vmul.f32 %v256, %v20
  %v363 = vmul.f32 %v260, %v20
  %v364 = vmul.f32 %v264, %v20
  %v365 = vmul.f32 %v268, %v20
  %v366 = vmul.f32 %v272, %v20
  %v367 = vmul.f32 %v276, %v20
  %v368 = vmul.f32 %v280, %v20
  %v369 = vadd.f32 %v353, %v361
  %v370 = vadd.f32 %v354, %v362
  %v371 = vadd.f32 %v355, %v363
  %v372 = vadd.f32 %v356, %v364
  %v373 = vadd.f32 %v357, %v365
  %v374 = vadd.f32 %v358, %v366
  %v375 = vadd.f32 %v359, %v367
  %v376 = vadd.f32 %v360, %v368
  %s377 = scalar_lea.vmem %s0, 2
  %v378 = vld [vmem:[%s377] sm:$0x3]
  %s379 = scalar_lea.vmem %s1, 2
  %v380 = vld [vmem:[%s379] sm:$0x3]
  %s381 = scalar_lea.vmem %s2, 4
  %v382 = vld [vmem:[%s381] sm:$0xf]
  %v385 = vunpack.c.l.s4 1966171168
  %v386 = vunpack.c.0.s8 %v385
  %v387 = vlaneseq
  %v388 = vshrl.u32 %v387, 7
  %v389 = vsub.s32 %v386, %v388
  %v390 = vrot.slane %v382, %v389
  %v391 = vcombine.high %v390, %v390
  %v393 = vunpack.c.l.s4 1966171168
  %v394 = vunpack.c.0.s8 %v393
  %v395 = vlaneseq
  %v396 = vshrl.u32 %v395, 7
  %v397 = vsub.s32 %v394, %v396
  %v398 = vrot.slane %v390, %v397
  %v400 = vunpack.c.l.s4 1966171168
  %v401 = vunpack.c.0.s8 %v400
  %v402 = vlaneseq
  %v403 = vshrl.u32 %v402, 7
  %v404 = vsub.s32 %v401, %v403
  %v405 = vrot.slane %v391, %v404
  %v406 = vcombine.high %v398, %v398
  %v407 = vcombine.high %v405, %v405
  %v408 = vunpack.i.l.s16 %v398
  %v409 = vunpack.i.h.s16 %v398
  %v410 = vunpack.i.l.s16 %v405
  %v411 = vunpack.i.h.s16 %v405
  %v412 = vunpack.i.l.s16 %v406
  %v413 = vunpack.i.h.s16 %v406
  %v414 = vunpack.i.l.s16 %v407
  %v415 = vunpack.i.h.s16 %v407
  %v416 = vpack.i.b16 %v408, %v408
  %v417 = vpack.i.b16 %v409, %v409
  %v418 = vpack.i.b16 %v410, %v410
  %v419 = vpack.i.b16 %v411, %v411
  %v420 = vpack.i.b16 %v412, %v412
  %v421 = vpack.i.b16 %v413, %v413
  %v422 = vpack.i.b16 %v414, %v414
  %v423 = vpack.i.b16 %v415, %v415
  %v425 = vunpack.c.l.s4 286326784
  %v426 = vunpack.c.0.s8 %v425
  %v427 = vlaneseq
  %v428 = vshrl.u32 %v427, 7
  %v429 = vsub.s32 %v426, %v428
  %v430 = vrot.slane %v416, %v429
  %v432 = vunpack.c.l.s4 286326784
  %v433 = vunpack.c.0.s8 %v432
  %v434 = vlaneseq
  %v435 = vshrl.u32 %v434, 7
  %v436 = vsub.s32 %v433, %v435
  %v437 = vrot.slane %v417, %v436
  %v439 = vunpack.c.l.s4 286326784
  %v440 = vunpack.c.0.s8 %v439
  %v441 = vlaneseq
  %v442 = vshrl.u32 %v441, 7
  %v443 = vsub.s32 %v440, %v442
  %v444 = vrot.slane %v418, %v443
  %v446 = vunpack.c.l.s4 286326784
  %v447 = vunpack.c.0.s8 %v446
  %v448 = vlaneseq
  %v449 = vshrl.u32 %v448, 7
  %v450 = vsub.s32 %v447, %v449
  %v451 = vrot.slane %v419, %v450
  %v453 = vunpack.c.l.s4 286326784
  %v454 = vunpack.c.0.s8 %v453
  %v455 = vlaneseq
  %v456 = vshrl.u32 %v455, 7
  %v457 = vsub.s32 %v454, %v456
  %v458 = vrot.slane %v420, %v457
  %v460 = vunpack.c.l.s4 286326784
  %v461 = vunpack.c.0.s8 %v460
  %v462 = vlaneseq
  %v463 = vshrl.u32 %v462, 7
  %v464 = vsub.s32 %v461, %v463
  %v465 = vrot.slane %v421, %v464
  %v467 = vunpack.c.l.s4 286326784
  %v468 = vunpack.c.0.s8 %v467
  %v469 = vlaneseq
  %v470 = vshrl.u32 %v469, 7
  %v471 = vsub.s32 %v468, %v470
  %v472 = vrot.slane %v422, %v471
  %v474 = vunpack.c.l.s4 286326784
  %v475 = vunpack.c.0.s8 %v474
  %v476 = vlaneseq
  %v477 = vshrl.u32 %v476, 7
  %v478 = vsub.s32 %v475, %v477
  %v479 = vrot.slane %v423, %v478
  %v488 = vunpack.c.l.bf16 %v430
  %v489 = vunpack.c.l.bf16 %v437
  %v490 = vunpack.c.l.bf16 %v444
  %v491 = vunpack.c.l.bf16 %v451
  %v492 = vunpack.c.l.bf16 %v458
  %v493 = vunpack.c.l.bf16 %v465
  %v494 = vunpack.c.l.bf16 %v472
  %v495 = vunpack.c.l.bf16 %v479
  %s496 = scalar_lea.vmem %s3, 4
  %v497 = vld [vmem:[%s496] sm:$0xf]
  %v500 = vunpack.c.l.s4 1966171168
  %v501 = vunpack.c.0.s8 %v500
  %v502 = vlaneseq
  %v503 = vshrl.u32 %v502, 7
  %v504 = vsub.s32 %v501, %v503
  %v505 = vrot.slane %v497, %v504
  %v506 = vcombine.high %v505, %v505
  %v508 = vunpack.c.l.s4 1966171168
  %v509 = vunpack.c.0.s8 %v508
  %v510 = vlaneseq
  %v511 = vshrl.u32 %v510, 7
  %v512 = vsub.s32 %v509, %v511
  %v513 = vrot.slane %v505, %v512
  %v515 = vunpack.c.l.s4 1966171168
  %v516 = vunpack.c.0.s8 %v515
  %v517 = vlaneseq
  %v518 = vshrl.u32 %v517, 7
  %v519 = vsub.s32 %v516, %v518
  %v520 = vrot.slane %v506, %v519
  %v521 = vcombine.high %v513, %v513
  %v522 = vcombine.high %v520, %v520
  %v523 = vunpack.i.l.s16 %v513
  %v524 = vunpack.i.h.s16 %v513
  %v525 = vunpack.i.l.s16 %v520
  %v526 = vunpack.i.h.s16 %v520
  %v527 = vunpack.i.l.s16 %v521
  %v528 = vunpack.i.h.s16 %v521
  %v529 = vunpack.i.l.s16 %v522
  %v530 = vunpack.i.h.s16 %v522
  %v531 = vpack.i.b16 %v523, %v523
  %v532 = vpack.i.b16 %v524, %v524
  %v533 = vpack.i.b16 %v525, %v525
  %v534 = vpack.i.b16 %v526, %v526
  %v535 = vpack.i.b16 %v527, %v527
  %v536 = vpack.i.b16 %v528, %v528
  %v537 = vpack.i.b16 %v529, %v529
  %v538 = vpack.i.b16 %v530, %v530
  %v540 = vunpack.c.l.s4 286326784
  %v541 = vunpack.c.0.s8 %v540
  %v542 = vlaneseq
  %v543 = vshrl.u32 %v542, 7
  %v544 = vsub.s32 %v541, %v543
  %v545 = vrot.slane %v531, %v544
  %v547 = vunpack.c.l.s4 286326784
  %v548 = vunpack.c.0.s8 %v547
  %v549 = vlaneseq
  %v550 = vshrl.u32 %v549, 7
  %v551 = vsub.s32 %v548, %v550
  %v552 = vrot.slane %v532, %v551
  %v554 = vunpack.c.l.s4 286326784
  %v555 = vunpack.c.0.s8 %v554
  %v556 = vlaneseq
  %v557 = vshrl.u32 %v556, 7
  %v558 = vsub.s32 %v555, %v557
  %v559 = vrot.slane %v533, %v558
  %v561 = vunpack.c.l.s4 286326784
  %v562 = vunpack.c.0.s8 %v561
  %v563 = vlaneseq
  %v564 = vshrl.u32 %v563, 7
  %v565 = vsub.s32 %v562, %v564
  %v566 = vrot.slane %v534, %v565
  %v568 = vunpack.c.l.s4 286326784
  %v569 = vunpack.c.0.s8 %v568
  %v570 = vlaneseq
  %v571 = vshrl.u32 %v570, 7
  %v572 = vsub.s32 %v569, %v571
  %v573 = vrot.slane %v535, %v572
  %v575 = vunpack.c.l.s4 286326784
  %v576 = vunpack.c.0.s8 %v575
  %v577 = vlaneseq
  %v578 = vshrl.u32 %v577, 7
  %v579 = vsub.s32 %v576, %v578
  %v580 = vrot.slane %v536, %v579
  %v582 = vunpack.c.l.s4 286326784
  %v583 = vunpack.c.0.s8 %v582
  %v584 = vlaneseq
  %v585 = vshrl.u32 %v584, 7
  %v586 = vsub.s32 %v583, %v585
  %v587 = vrot.slane %v537, %v586
  %v589 = vunpack.c.l.s4 286326784
  %v590 = vunpack.c.0.s8 %v589
  %v591 = vlaneseq
  %v592 = vshrl.u32 %v591, 7
  %v593 = vsub.s32 %v590, %v592
  %v594 = vrot.slane %v538, %v593
  %v603 = vunpack.c.l.bf16 %v545
  %v604 = vunpack.c.l.bf16 %v552
  %v605 = vunpack.c.l.bf16 %v559
  %v606 = vunpack.c.l.bf16 %v566
  %v607 = vunpack.c.l.bf16 %v573
  %v608 = vunpack.c.l.bf16 %v580
  %v609 = vunpack.c.l.bf16 %v587
  %v610 = vunpack.c.l.bf16 %v594
  %v611 = vlaneseq
  %v612 = vshrl.u32 %v611, 7
  %v613 = vsub.s32 0, %v612
  %v614 = vrot.slane %v488, %v613
  %v615 = vlaneseq
  %v616 = vshrl.u32 %v615, 7
  %v617 = vsub.s32 0, %v616
  %v618 = vrot.slane %v489, %v617
  %v619 = vlaneseq
  %v620 = vshrl.u32 %v619, 7
  %v621 = vsub.s32 0, %v620
  %v622 = vrot.slane %v490, %v621
  %v623 = vlaneseq
  %v624 = vshrl.u32 %v623, 7
  %v625 = vsub.s32 0, %v624
  %v626 = vrot.slane %v491, %v625
  %v627 = vlaneseq
  %v628 = vshrl.u32 %v627, 7
  %v629 = vsub.s32 0, %v628
  %v630 = vrot.slane %v492, %v629
  %v631 = vlaneseq
  %v632 = vshrl.u32 %v631, 7
  %v633 = vsub.s32 0, %v632
  %v634 = vrot.slane %v493, %v633
  %v635 = vlaneseq
  %v636 = vshrl.u32 %v635, 7
  %v637 = vsub.s32 0, %v636
  %v638 = vrot.slane %v494, %v637
  %v639 = vlaneseq
  %v640 = vshrl.u32 %v639, 7
  %v641 = vsub.s32 0, %v640
  %v642 = vrot.slane %v495, %v641
  %v643 = vmul.f32 %v614, %v378
  %v644 = vmul.f32 %v618, %v378
  %v645 = vmul.f32 %v622, %v378
  %v646 = vmul.f32 %v626, %v378
  %v647 = vmul.f32 %v630, %v378
  %v648 = vmul.f32 %v634, %v378
  %v649 = vmul.f32 %v638, %v378
  %v650 = vmul.f32 %v642, %v378
  %v651 = vadd.f32 %v337, %v643
  %v652 = vadd.f32 %v338, %v644
  %v653 = vadd.f32 %v339, %v645
  %v654 = vadd.f32 %v340, %v646
  %v655 = vadd.f32 %v341, %v647
  %v656 = vadd.f32 %v342, %v648
  %v657 = vadd.f32 %v343, %v649
  %v658 = vadd.f32 %v344, %v650
  %v659 = vlaneseq
  %v660 = vshrl.u32 %v659, 7
  %v661 = vsub.s32 0, %v660
  %v662 = vrot.slane %v603, %v661
  %v663 = vlaneseq
  %v664 = vshrl.u32 %v663, 7
  %v665 = vsub.s32 0, %v664
  %v666 = vrot.slane %v604, %v665
  %v667 = vlaneseq
  %v668 = vshrl.u32 %v667, 7
  %v669 = vsub.s32 0, %v668
  %v670 = vrot.slane %v605, %v669
  %v671 = vlaneseq
  %v672 = vshrl.u32 %v671, 7
  %v673 = vsub.s32 0, %v672
  %v674 = vrot.slane %v606, %v673
  %v675 = vlaneseq
  %v676 = vshrl.u32 %v675, 7
  %v677 = vsub.s32 0, %v676
  %v678 = vrot.slane %v607, %v677
  %v679 = vlaneseq
  %v680 = vshrl.u32 %v679, 7
  %v681 = vsub.s32 0, %v680
  %v682 = vrot.slane %v608, %v681
  %v683 = vlaneseq
  %v684 = vshrl.u32 %v683, 7
  %v685 = vsub.s32 0, %v684
  %v686 = vrot.slane %v609, %v685
  %v687 = vlaneseq
  %v688 = vshrl.u32 %v687, 7
  %v689 = vsub.s32 0, %v688
  %v690 = vrot.slane %v610, %v689
  %v691 = vmul.f32 %v662, %v380
  %v692 = vmul.f32 %v666, %v380
  %v693 = vmul.f32 %v670, %v380
  %v694 = vmul.f32 %v674, %v380
  %v695 = vmul.f32 %v678, %v380
  %v696 = vmul.f32 %v682, %v380
  %v697 = vmul.f32 %v686, %v380
  %v698 = vmul.f32 %v690, %v380
  %v699 = vsub.f32 %v651, %v691
  %v700 = vsub.f32 %v652, %v692
  %v701 = vsub.f32 %v653, %v693
  %v702 = vsub.f32 %v654, %v694
  %v703 = vsub.f32 %v655, %v695
  %v704 = vsub.f32 %v656, %v696
  %v705 = vsub.f32 %v657, %v697
  %v706 = vsub.f32 %v658, %v698
  %v707 = vmul.f32 %v662, %v378
  %v708 = vmul.f32 %v666, %v378
  %v709 = vmul.f32 %v670, %v378
  %v710 = vmul.f32 %v674, %v378
  %v711 = vmul.f32 %v678, %v378
  %v712 = vmul.f32 %v682, %v378
  %v713 = vmul.f32 %v686, %v378
  %v714 = vmul.f32 %v690, %v378
  %v715 = vadd.f32 %v369, %v707
  %v716 = vadd.f32 %v370, %v708
  %v717 = vadd.f32 %v371, %v709
  %v718 = vadd.f32 %v372, %v710
  %v719 = vadd.f32 %v373, %v711
  %v720 = vadd.f32 %v374, %v712
  %v721 = vadd.f32 %v375, %v713
  %v722 = vadd.f32 %v376, %v714
  %v723 = vmul.f32 %v614, %v380
  %v724 = vmul.f32 %v618, %v380
  %v725 = vmul.f32 %v622, %v380
  %v726 = vmul.f32 %v626, %v380
  %v727 = vmul.f32 %v630, %v380
  %v728 = vmul.f32 %v634, %v380
  %v729 = vmul.f32 %v638, %v380
  %v730 = vmul.f32 %v642, %v380
  %v731 = vadd.f32 %v715, %v723
  %v732 = vadd.f32 %v716, %v724
  %v733 = vadd.f32 %v717, %v725
  %v734 = vadd.f32 %v718, %v726
  %v735 = vadd.f32 %v719, %v727
  %v736 = vadd.f32 %v720, %v728
  %v737 = vadd.f32 %v721, %v729
  %v738 = vadd.f32 %v722, %v730
  %s739 = scalar_lea.vmem %s0, 4
  %v740 = vld [vmem:[%s739] sm:$0x3]
  %s741 = scalar_lea.vmem %s1, 4
  %v742 = vld [vmem:[%s741] sm:$0x3]
  %s743 = scalar_lea.vmem %s2, 8
  %v744 = vld [vmem:[%s743] sm:$0xf]
  %v747 = vunpack.c.l.s4 1966171168
  %v748 = vunpack.c.0.s8 %v747
  %v749 = vlaneseq
  %v750 = vshrl.u32 %v749, 7
  %v751 = vsub.s32 %v748, %v750
  %v752 = vrot.slane %v744, %v751
  %v753 = vcombine.high %v752, %v752
  %v755 = vunpack.c.l.s4 1966171168
  %v756 = vunpack.c.0.s8 %v755
  %v757 = vlaneseq
  %v758 = vshrl.u32 %v757, 7
  %v759 = vsub.s32 %v756, %v758
  %v760 = vrot.slane %v752, %v759
  %v762 = vunpack.c.l.s4 1966171168
  %v763 = vunpack.c.0.s8 %v762
  %v764 = vlaneseq
  %v765 = vshrl.u32 %v764, 7
  %v766 = vsub.s32 %v763, %v765
  %v767 = vrot.slane %v753, %v766
  %v768 = vcombine.high %v760, %v760
  %v769 = vcombine.high %v767, %v767
  %v770 = vunpack.i.l.s16 %v760
  %v771 = vunpack.i.h.s16 %v760
  %v772 = vunpack.i.l.s16 %v767
  %v773 = vunpack.i.h.s16 %v767
  %v774 = vunpack.i.l.s16 %v768
  %v775 = vunpack.i.h.s16 %v768
  %v776 = vunpack.i.l.s16 %v769
  %v777 = vunpack.i.h.s16 %v769
  %v778 = vpack.i.b16 %v770, %v770
  %v779 = vpack.i.b16 %v771, %v771
  %v780 = vpack.i.b16 %v772, %v772
  %v781 = vpack.i.b16 %v773, %v773
  %v782 = vpack.i.b16 %v774, %v774
  %v783 = vpack.i.b16 %v775, %v775
  %v784 = vpack.i.b16 %v776, %v776
  %v785 = vpack.i.b16 %v777, %v777
  %v787 = vunpack.c.l.s4 286326784
  %v788 = vunpack.c.0.s8 %v787
  %v789 = vlaneseq
  %v790 = vshrl.u32 %v789, 7
  %v791 = vsub.s32 %v788, %v790
  %v792 = vrot.slane %v778, %v791
  %v794 = vunpack.c.l.s4 286326784
  %v795 = vunpack.c.0.s8 %v794
  %v796 = vlaneseq
  %v797 = vshrl.u32 %v796, 7
  %v798 = vsub.s32 %v795, %v797
  %v799 = vrot.slane %v779, %v798
  %v801 = vunpack.c.l.s4 286326784
  %v802 = vunpack.c.0.s8 %v801
  %v803 = vlaneseq
  %v804 = vshrl.u32 %v803, 7
  %v805 = vsub.s32 %v802, %v804
  %v806 = vrot.slane %v780, %v805
  %v808 = vunpack.c.l.s4 286326784
  %v809 = vunpack.c.0.s8 %v808
  %v810 = vlaneseq
  %v811 = vshrl.u32 %v810, 7
  %v812 = vsub.s32 %v809, %v811
  %v813 = vrot.slane %v781, %v812
  %v815 = vunpack.c.l.s4 286326784
  %v816 = vunpack.c.0.s8 %v815
  %v817 = vlaneseq
  %v818 = vshrl.u32 %v817, 7
  %v819 = vsub.s32 %v816, %v818
  %v820 = vrot.slane %v782, %v819
  %v822 = vunpack.c.l.s4 286326784
  %v823 = vunpack.c.0.s8 %v822
  %v824 = vlaneseq
  %v825 = vshrl.u32 %v824, 7
  %v826 = vsub.s32 %v823, %v825
  %v827 = vrot.slane %v783, %v826
  %v829 = vunpack.c.l.s4 286326784
  %v830 = vunpack.c.0.s8 %v829
  %v831 = vlaneseq
  %v832 = vshrl.u32 %v831, 7
  %v833 = vsub.s32 %v830, %v832
  %v834 = vrot.slane %v784, %v833
  %v836 = vunpack.c.l.s4 286326784
  %v837 = vunpack.c.0.s8 %v836
  %v838 = vlaneseq
  %v839 = vshrl.u32 %v838, 7
  %v840 = vsub.s32 %v837, %v839
  %v841 = vrot.slane %v785, %v840
  %v850 = vunpack.c.l.bf16 %v792
  %v851 = vunpack.c.l.bf16 %v799
  %v852 = vunpack.c.l.bf16 %v806
  %v853 = vunpack.c.l.bf16 %v813
  %v854 = vunpack.c.l.bf16 %v820
  %v855 = vunpack.c.l.bf16 %v827
  %v856 = vunpack.c.l.bf16 %v834
  %v857 = vunpack.c.l.bf16 %v841
  %s858 = scalar_lea.vmem %s3, 8
  %v859 = vld [vmem:[%s858] sm:$0xf]
  %v862 = vunpack.c.l.s4 1966171168
  %v863 = vunpack.c.0.s8 %v862
  %v864 = vlaneseq
  %v865 = vshrl.u32 %v864, 7
  %v866 = vsub.s32 %v863, %v865
  %v867 = vrot.slane %v859, %v866
  %v868 = vcombine.high %v867, %v867
  %v870 = vunpack.c.l.s4 1966171168
  %v871 = vunpack.c.0.s8 %v870
  %v872 = vlaneseq
  %v873 = vshrl.u32 %v872, 7
  %v874 = vsub.s32 %v871, %v873
  %v875 = vrot.slane %v867, %v874
  %v877 = vunpack.c.l.s4 1966171168
  %v878 = vunpack.c.0.s8 %v877
  %v879 = vlaneseq
  %v880 = vshrl.u32 %v879, 7
  %v881 = vsub.s32 %v878, %v880
  %v882 = vrot.slane %v868, %v881
  %v883 = vcombine.high %v875, %v875
  %v884 = vcombine.high %v882, %v882
  %v885 = vunpack.i.l.s16 %v875
  %v886 = vunpack.i.h.s16 %v875
  %v887 = vunpack.i.l.s16 %v882
  %v888 = vunpack.i.h.s16 %v882
  %v889 = vunpack.i.l.s16 %v883
  %v890 = vunpack.i.h.s16 %v883
  %v891 = vunpack.i.l.s16 %v884
  %v892 = vunpack.i.h.s16 %v884
  %v893 = vpack.i.b16 %v885, %v885
  %v894 = vpack.i.b16 %v886, %v886
  %v895 = vpack.i.b16 %v887, %v887
  %v896 = vpack.i.b16 %v888, %v888
  %v897 = vpack.i.b16 %v889, %v889
  %v898 = vpack.i.b16 %v890, %v890
  %v899 = vpack.i.b16 %v891, %v891
  %v900 = vpack.i.b16 %v892, %v892
  %v902 = vunpack.c.l.s4 286326784
  %v903 = vunpack.c.0.s8 %v902
  %v904 = vlaneseq
  %v905 = vshrl.u32 %v904, 7
  %v906 = vsub.s32 %v903, %v905
  %v907 = vrot.slane %v893, %v906
  %v909 = vunpack.c.l.s4 286326784
  %v910 = vunpack.c.0.s8 %v909
  %v911 = vlaneseq
  %v912 = vshrl.u32 %v911, 7
  %v913 = vsub.s32 %v910, %v912
  %v914 = vrot.slane %v894, %v913
  %v916 = vunpack.c.l.s4 286326784
  %v917 = vunpack.c.0.s8 %v916
  %v918 = vlaneseq
  %v919 = vshrl.u32 %v918, 7
  %v920 = vsub.s32 %v917, %v919
  %v921 = vrot.slane %v895, %v920
  %v923 = vunpack.c.l.s4 286326784
  %v924 = vunpack.c.0.s8 %v923
  %v925 = vlaneseq
  %v926 = vshrl.u32 %v925, 7
  %v927 = vsub.s32 %v924, %v926
  %v928 = vrot.slane %v896, %v927
  %v930 = vunpack.c.l.s4 286326784
  %v931 = vunpack.c.0.s8 %v930
  %v932 = vlaneseq
  %v933 = vshrl.u32 %v932, 7
  %v934 = vsub.s32 %v931, %v933
  %v935 = vrot.slane %v897, %v934
  %v937 = vunpack.c.l.s4 286326784
  %v938 = vunpack.c.0.s8 %v937
  %v939 = vlaneseq
  %v940 = vshrl.u32 %v939, 7
  %v941 = vsub.s32 %v938, %v940
  %v942 = vrot.slane %v898, %v941
  %v944 = vunpack.c.l.s4 286326784
  %v945 = vunpack.c.0.s8 %v944
  %v946 = vlaneseq
  %v947 = vshrl.u32 %v946, 7
  %v948 = vsub.s32 %v945, %v947
  %v949 = vrot.slane %v899, %v948
  %v951 = vunpack.c.l.s4 286326784
  %v952 = vunpack.c.0.s8 %v951
  %v953 = vlaneseq
  %v954 = vshrl.u32 %v953, 7
  %v955 = vsub.s32 %v952, %v954
  %v956 = vrot.slane %v900, %v955
  %v965 = vunpack.c.l.bf16 %v907
  %v966 = vunpack.c.l.bf16 %v914
  %v967 = vunpack.c.l.bf16 %v921
  %v968 = vunpack.c.l.bf16 %v928
  %v969 = vunpack.c.l.bf16 %v935
  %v970 = vunpack.c.l.bf16 %v942
  %v971 = vunpack.c.l.bf16 %v949
  %v972 = vunpack.c.l.bf16 %v956
  %v973 = vlaneseq
  %v974 = vshrl.u32 %v973, 7
  %v975 = vsub.s32 0, %v974
  %v976 = vrot.slane %v850, %v975
  %v977 = vlaneseq
  %v978 = vshrl.u32 %v977, 7
  %v979 = vsub.s32 0, %v978
  %v980 = vrot.slane %v851, %v979
  %v981 = vlaneseq
  %v982 = vshrl.u32 %v981, 7
  %v983 = vsub.s32 0, %v982
  %v984 = vrot.slane %v852, %v983
  %v985 = vlaneseq
  %v986 = vshrl.u32 %v985, 7
  %v987 = vsub.s32 0, %v986
  %v988 = vrot.slane %v853, %v987
  %v989 = vlaneseq
  %v990 = vshrl.u32 %v989, 7
  %v991 = vsub.s32 0, %v990
  %v992 = vrot.slane %v854, %v991
  %v993 = vlaneseq
  %v994 = vshrl.u32 %v993, 7
  %v995 = vsub.s32 0, %v994
  %v996 = vrot.slane %v855, %v995
  %v997 = vlaneseq
  %v998 = vshrl.u32 %v997, 7
  %v999 = vsub.s32 0, %v998
  %v1000 = vrot.slane %v856, %v999
  %v1001 = vlaneseq
  %v1002 = vshrl.u32 %v1001, 7
  %v1003 = vsub.s32 0, %v1002
  %v1004 = vrot.slane %v857, %v1003
  %v1005 = vmul.f32 %v976, %v740
  %v1006 = vmul.f32 %v980, %v740
  %v1007 = vmul.f32 %v984, %v740
  %v1008 = vmul.f32 %v988, %v740
  %v1009 = vmul.f32 %v992, %v740
  %v1010 = vmul.f32 %v996, %v740
  %v1011 = vmul.f32 %v1000, %v740
  %v1012 = vmul.f32 %v1004, %v740
  %v1013 = vadd.f32 %v699, %v1005
  %v1014 = vadd.f32 %v700, %v1006
  %v1015 = vadd.f32 %v701, %v1007
  %v1016 = vadd.f32 %v702, %v1008
  %v1017 = vadd.f32 %v703, %v1009
  %v1018 = vadd.f32 %v704, %v1010
  %v1019 = vadd.f32 %v705, %v1011
  %v1020 = vadd.f32 %v706, %v1012
  %v1021 = vlaneseq
  %v1022 = vshrl.u32 %v1021, 7
  %v1023 = vsub.s32 0, %v1022
  %v1024 = vrot.slane %v965, %v1023
  %v1025 = vlaneseq
  %v1026 = vshrl.u32 %v1025, 7
  %v1027 = vsub.s32 0, %v1026
  %v1028 = vrot.slane %v966, %v1027
  %v1029 = vlaneseq
  %v1030 = vshrl.u32 %v1029, 7
  %v1031 = vsub.s32 0, %v1030
  %v1032 = vrot.slane %v967, %v1031
  %v1033 = vlaneseq
  %v1034 = vshrl.u32 %v1033, 7
  %v1035 = vsub.s32 0, %v1034
  %v1036 = vrot.slane %v968, %v1035
  %v1037 = vlaneseq
  %v1038 = vshrl.u32 %v1037, 7
  %v1039 = vsub.s32 0, %v1038
  %v1040 = vrot.slane %v969, %v1039
  %v1041 = vlaneseq
  %v1042 = vshrl.u32 %v1041, 7
  %v1043 = vsub.s32 0, %v1042
  %v1044 = vrot.slane %v970, %v1043
  %v1045 = vlaneseq
  %v1046 = vshrl.u32 %v1045, 7
  %v1047 = vsub.s32 0, %v1046
  %v1048 = vrot.slane %v971, %v1047
  %v1049 = vlaneseq
  %v1050 = vshrl.u32 %v1049, 7
  %v1051 = vsub.s32 0, %v1050
  %v1052 = vrot.slane %v972, %v1051
  %v1053 = vmul.f32 %v1024, %v742
  %v1054 = vmul.f32 %v1028, %v742
  %v1055 = vmul.f32 %v1032, %v742
  %v1056 = vmul.f32 %v1036, %v742
  %v1057 = vmul.f32 %v1040, %v742
  %v1058 = vmul.f32 %v1044, %v742
  %v1059 = vmul.f32 %v1048, %v742
  %v1060 = vmul.f32 %v1052, %v742
  %v1061 = vsub.f32 %v1013, %v1053
  %v1062 = vsub.f32 %v1014, %v1054
  %v1063 = vsub.f32 %v1015, %v1055
  %v1064 = vsub.f32 %v1016, %v1056
  %v1065 = vsub.f32 %v1017, %v1057
  %v1066 = vsub.f32 %v1018, %v1058
  %v1067 = vsub.f32 %v1019, %v1059
  %v1068 = vsub.f32 %v1020, %v1060
  %v1069 = vmul.f32 %v1024, %v740
  %v1070 = vmul.f32 %v1028, %v740
  %v1071 = vmul.f32 %v1032, %v740
  %v1072 = vmul.f32 %v1036, %v740
  %v1073 = vmul.f32 %v1040, %v740
  %v1074 = vmul.f32 %v1044, %v740
  %v1075 = vmul.f32 %v1048, %v740
  %v1076 = vmul.f32 %v1052, %v740
  %v1077 = vadd.f32 %v731, %v1069
  %v1078 = vadd.f32 %v732, %v1070
  %v1079 = vadd.f32 %v733, %v1071
  %v1080 = vadd.f32 %v734, %v1072
  %v1081 = vadd.f32 %v735, %v1073
  %v1082 = vadd.f32 %v736, %v1074
  %v1083 = vadd.f32 %v737, %v1075
  %v1084 = vadd.f32 %v738, %v1076
  %v1085 = vmul.f32 %v976, %v742
  %v1086 = vmul.f32 %v980, %v742
  %v1087 = vmul.f32 %v984, %v742
  %v1088 = vmul.f32 %v988, %v742
  %v1089 = vmul.f32 %v992, %v742
  %v1090 = vmul.f32 %v996, %v742
  %v1091 = vmul.f32 %v1000, %v742
  %v1092 = vmul.f32 %v1004, %v742
  %v1093 = vadd.f32 %v1077, %v1085
  %v1094 = vadd.f32 %v1078, %v1086
  %v1095 = vadd.f32 %v1079, %v1087
  %v1096 = vadd.f32 %v1080, %v1088
  %v1097 = vadd.f32 %v1081, %v1089
  %v1098 = vadd.f32 %v1082, %v1090
  %v1099 = vadd.f32 %v1083, %v1091
  %v1100 = vadd.f32 %v1084, %v1092
  %s1101 = scalar_lea.vmem %s0, 6
  %v1102 = vld [vmem:[%s1101] sm:$0x3]
  %s1103 = scalar_lea.vmem %s1, 6
  %v1104 = vld [vmem:[%s1103] sm:$0x3]
  %s1105 = scalar_lea.vmem %s2, 12
  %v1106 = vld [vmem:[%s1105] sm:$0xf]
  %v1109 = vunpack.c.l.s4 1966171168
  %v1110 = vunpack.c.0.s8 %v1109
  %v1111 = vlaneseq
  %v1112 = vshrl.u32 %v1111, 7
  %v1113 = vsub.s32 %v1110, %v1112
  %v1114 = vrot.slane %v1106, %v1113
  %v1115 = vcombine.high %v1114, %v1114
  %v1117 = vunpack.c.l.s4 1966171168
  %v1118 = vunpack.c.0.s8 %v1117
  %v1119 = vlaneseq
  %v1120 = vshrl.u32 %v1119, 7
  %v1121 = vsub.s32 %v1118, %v1120
  %v1122 = vrot.slane %v1114, %v1121
  %v1124 = vunpack.c.l.s4 1966171168
  %v1125 = vunpack.c.0.s8 %v1124
  %v1126 = vlaneseq
  %v1127 = vshrl.u32 %v1126, 7
  %v1128 = vsub.s32 %v1125, %v1127
  %v1129 = vrot.slane %v1115, %v1128
  %v1130 = vcombine.high %v1122, %v1122
  %v1131 = vcombine.high %v1129, %v1129
  %v1132 = vunpack.i.l.s16 %v1122
  %v1133 = vunpack.i.h.s16 %v1122
  %v1134 = vunpack.i.l.s16 %v1129
  %v1135 = vunpack.i.h.s16 %v1129
  %v1136 = vunpack.i.l.s16 %v1130
  %v1137 = vunpack.i.h.s16 %v1130
  %v1138 = vunpack.i.l.s16 %v1131
  %v1139 = vunpack.i.h.s16 %v1131
  %v1140 = vpack.i.b16 %v1132, %v1132
  %v1141 = vpack.i.b16 %v1133, %v1133
  %v1142 = vpack.i.b16 %v1134, %v1134
  %v1143 = vpack.i.b16 %v1135, %v1135
  %v1144 = vpack.i.b16 %v1136, %v1136
  %v1145 = vpack.i.b16 %v1137, %v1137
  %v1146 = vpack.i.b16 %v1138, %v1138
  %v1147 = vpack.i.b16 %v1139, %v1139
  %v1149 = vunpack.c.l.s4 286326784
  %v1150 = vunpack.c.0.s8 %v1149
  %v1151 = vlaneseq
  %v1152 = vshrl.u32 %v1151, 7
  %v1153 = vsub.s32 %v1150, %v1152
  %v1154 = vrot.slane %v1140, %v1153
  %v1156 = vunpack.c.l.s4 286326784
  %v1157 = vunpack.c.0.s8 %v1156
  %v1158 = vlaneseq
  %v1159 = vshrl.u32 %v1158, 7
  %v1160 = vsub.s32 %v1157, %v1159
  %v1161 = vrot.slane %v1141, %v1160
  %v1163 = vunpack.c.l.s4 286326784
  %v1164 = vunpack.c.0.s8 %v1163
  %v1165 = vlaneseq
  %v1166 = vshrl.u32 %v1165, 7
  %v1167 = vsub.s32 %v1164, %v1166
  %v1168 = vrot.slane %v1142, %v1167
  %v1170 = vunpack.c.l.s4 286326784
  %v1171 = vunpack.c.0.s8 %v1170
  %v1172 = vlaneseq
  %v1173 = vshrl.u32 %v1172, 7
  %v1174 = vsub.s32 %v1171, %v1173
  %v1175 = vrot.slane %v1143, %v1174
  %v1177 = vunpack.c.l.s4 286326784
  %v1178 = vunpack.c.0.s8 %v1177
  %v1179 = vlaneseq
  %v1180 = vshrl.u32 %v1179, 7
  %v1181 = vsub.s32 %v1178, %v1180
  %v1182 = vrot.slane %v1144, %v1181
  %v1184 = vunpack.c.l.s4 286326784
  %v1185 = vunpack.c.0.s8 %v1184
  %v1186 = vlaneseq
  %v1187 = vshrl.u32 %v1186, 7
  %v1188 = vsub.s32 %v1185, %v1187
  %v1189 = vrot.slane %v1145, %v1188
  %v1191 = vunpack.c.l.s4 286326784
  %v1192 = vunpack.c.0.s8 %v1191
  %v1193 = vlaneseq
  %v1194 = vshrl.u32 %v1193, 7
  %v1195 = vsub.s32 %v1192, %v1194
  %v1196 = vrot.slane %v1146, %v1195
  %v1198 = vunpack.c.l.s4 286326784
  %v1199 = vunpack.c.0.s8 %v1198
  %v1200 = vlaneseq
  %v1201 = vshrl.u32 %v1200, 7
  %v1202 = vsub.s32 %v1199, %v1201
  %v1203 = vrot.slane %v1147, %v1202
  %v1212 = vunpack.c.l.bf16 %v1154
  %v1213 = vunpack.c.l.bf16 %v1161
  %v1214 = vunpack.c.l.bf16 %v1168
  %v1215 = vunpack.c.l.bf16 %v1175
  %v1216 = vunpack.c.l.bf16 %v1182
  %v1217 = vunpack.c.l.bf16 %v1189
  %v1218 = vunpack.c.l.bf16 %v1196
  %v1219 = vunpack.c.l.bf16 %v1203
  %s1220 = scalar_lea.vmem %s3, 12
  %v1221 = vld [vmem:[%s1220] sm:$0xf]
  %v1224 = vunpack.c.l.s4 1966171168
  %v1225 = vunpack.c.0.s8 %v1224
  %v1226 = vlaneseq
  %v1227 = vshrl.u32 %v1226, 7
  %v1228 = vsub.s32 %v1225, %v1227
  %v1229 = vrot.slane %v1221, %v1228
  %v1230 = vcombine.high %v1229, %v1229
  %v1232 = vunpack.c.l.s4 1966171168
  %v1233 = vunpack.c.0.s8 %v1232
  %v1234 = vlaneseq
  %v1235 = vshrl.u32 %v1234, 7
  %v1236 = vsub.s32 %v1233, %v1235
  %v1237 = vrot.slane %v1229, %v1236
  %v1239 = vunpack.c.l.s4 1966171168
  %v1240 = vunpack.c.0.s8 %v1239
  %v1241 = vlaneseq
  %v1242 = vshrl.u32 %v1241, 7
  %v1243 = vsub.s32 %v1240, %v1242
  %v1244 = vrot.slane %v1230, %v1243
  %v1245 = vcombine.high %v1237, %v1237
  %v1246 = vcombine.high %v1244, %v1244
  %v1247 = vunpack.i.l.s16 %v1237
  %v1248 = vunpack.i.h.s16 %v1237
  %v1249 = vunpack.i.l.s16 %v1244
  %v1250 = vunpack.i.h.s16 %v1244
  %v1251 = vunpack.i.l.s16 %v1245
  %v1252 = vunpack.i.h.s16 %v1245
  %v1253 = vunpack.i.l.s16 %v1246
  %v1254 = vunpack.i.h.s16 %v1246
  %v1255 = vpack.i.b16 %v1247, %v1247
  %v1256 = vpack.i.b16 %v1248, %v1248
  %v1257 = vpack.i.b16 %v1249, %v1249
  %v1258 = vpack.i.b16 %v1250, %v1250
  %v1259 = vpack.i.b16 %v1251, %v1251
  %v1260 = vpack.i.b16 %v1252, %v1252
  %v1261 = vpack.i.b16 %v1253, %v1253
  %v1262 = vpack.i.b16 %v1254, %v1254
  %v1264 = vunpack.c.l.s4 286326784
  %v1265 = vunpack.c.0.s8 %v1264
  %v1266 = vlaneseq
  %v1267 = vshrl.u32 %v1266, 7
  %v1268 = vsub.s32 %v1265, %v1267
  %v1269 = vrot.slane %v1255, %v1268
  %v1271 = vunpack.c.l.s4 286326784
  %v1272 = vunpack.c.0.s8 %v1271
  %v1273 = vlaneseq
  %v1274 = vshrl.u32 %v1273, 7
  %v1275 = vsub.s32 %v1272, %v1274
  %v1276 = vrot.slane %v1256, %v1275
  %v1278 = vunpack.c.l.s4 286326784
  %v1279 = vunpack.c.0.s8 %v1278
  %v1280 = vlaneseq
  %v1281 = vshrl.u32 %v1280, 7
  %v1282 = vsub.s32 %v1279, %v1281
  %v1283 = vrot.slane %v1257, %v1282
  %v1285 = vunpack.c.l.s4 286326784
  %v1286 = vunpack.c.0.s8 %v1285
  %v1287 = vlaneseq
  %v1288 = vshrl.u32 %v1287, 7
  %v1289 = vsub.s32 %v1286, %v1288
  %v1290 = vrot.slane %v1258, %v1289
  %v1292 = vunpack.c.l.s4 286326784
  %v1293 = vunpack.c.0.s8 %v1292
  %v1294 = vlaneseq
  %v1295 = vshrl.u32 %v1294, 7
  %v1296 = vsub.s32 %v1293, %v1295
  %v1297 = vrot.slane %v1259, %v1296
  %v1299 = vunpack.c.l.s4 286326784
  %v1300 = vunpack.c.0.s8 %v1299
  %v1301 = vlaneseq
  %v1302 = vshrl.u32 %v1301, 7
  %v1303 = vsub.s32 %v1300, %v1302
  %v1304 = vrot.slane %v1260, %v1303
  %v1306 = vunpack.c.l.s4 286326784
  %v1307 = vunpack.c.0.s8 %v1306
  %v1308 = vlaneseq
  %v1309 = vshrl.u32 %v1308, 7
  %v1310 = vsub.s32 %v1307, %v1309
  %v1311 = vrot.slane %v1261, %v1310
  %v1313 = vunpack.c.l.s4 286326784
  %v1314 = vunpack.c.0.s8 %v1313
  %v1315 = vlaneseq
  %v1316 = vshrl.u32 %v1315, 7
  %v1317 = vsub.s32 %v1314, %v1316
  %v1318 = vrot.slane %v1262, %v1317
  %v1327 = vunpack.c.l.bf16 %v1269
  %v1328 = vunpack.c.l.bf16 %v1276
  %v1329 = vunpack.c.l.bf16 %v1283
  %v1330 = vunpack.c.l.bf16 %v1290
  %v1331 = vunpack.c.l.bf16 %v1297
  %v1332 = vunpack.c.l.bf16 %v1304
  %v1333 = vunpack.c.l.bf16 %v1311
  %v1334 = vunpack.c.l.bf16 %v1318
  %v1335 = vlaneseq
  %v1336 = vshrl.u32 %v1335, 7
  %v1337 = vsub.s32 0, %v1336
  %v1338 = vrot.slane %v1212, %v1337
  %v1339 = vlaneseq
  %v1340 = vshrl.u32 %v1339, 7
  %v1341 = vsub.s32 0, %v1340
  %v1342 = vrot.slane %v1213, %v1341
  %v1343 = vlaneseq
  %v1344 = vshrl.u32 %v1343, 7
  %v1345 = vsub.s32 0, %v1344
  %v1346 = vrot.slane %v1214, %v1345
  %v1347 = vlaneseq
  %v1348 = vshrl.u32 %v1347, 7
  %v1349 = vsub.s32 0, %v1348
  %v1350 = vrot.slane %v1215, %v1349
  %v1351 = vlaneseq
  %v1352 = vshrl.u32 %v1351, 7
  %v1353 = vsub.s32 0, %v1352
  %v1354 = vrot.slane %v1216, %v1353
  %v1355 = vlaneseq
  %v1356 = vshrl.u32 %v1355, 7
  %v1357 = vsub.s32 0, %v1356
  %v1358 = vrot.slane %v1217, %v1357
  %v1359 = vlaneseq
  %v1360 = vshrl.u32 %v1359, 7
  %v1361 = vsub.s32 0, %v1360
  %v1362 = vrot.slane %v1218, %v1361
  %v1363 = vlaneseq
  %v1364 = vshrl.u32 %v1363, 7
  %v1365 = vsub.s32 0, %v1364
  %v1366 = vrot.slane %v1219, %v1365
  %v1367 = vmul.f32 %v1338, %v1102
  %v1368 = vmul.f32 %v1342, %v1102
  %v1369 = vmul.f32 %v1346, %v1102
  %v1370 = vmul.f32 %v1350, %v1102
  %v1371 = vmul.f32 %v1354, %v1102
  %v1372 = vmul.f32 %v1358, %v1102
  %v1373 = vmul.f32 %v1362, %v1102
  %v1374 = vmul.f32 %v1366, %v1102
  %v1375 = vadd.f32 %v1061, %v1367
  %v1376 = vadd.f32 %v1062, %v1368
  %v1377 = vadd.f32 %v1063, %v1369
  %v1378 = vadd.f32 %v1064, %v1370
  %v1379 = vadd.f32 %v1065, %v1371
  %v1380 = vadd.f32 %v1066, %v1372
  %v1381 = vadd.f32 %v1067, %v1373
  %v1382 = vadd.f32 %v1068, %v1374
  %v1383 = vlaneseq
  %v1384 = vshrl.u32 %v1383, 7
  %v1385 = vsub.s32 0, %v1384
  %v1386 = vrot.slane %v1327, %v1385
  %v1387 = vlaneseq
  %v1388 = vshrl.u32 %v1387, 7
  %v1389 = vsub.s32 0, %v1388
  %v1390 = vrot.slane %v1328, %v1389
  %v1391 = vlaneseq
  %v1392 = vshrl.u32 %v1391, 7
  %v1393 = vsub.s32 0, %v1392
  %v1394 = vrot.slane %v1329, %v1393
  %v1395 = vlaneseq
  %v1396 = vshrl.u32 %v1395, 7
  %v1397 = vsub.s32 0, %v1396
  %v1398 = vrot.slane %v1330, %v1397
  %v1399 = vlaneseq
  %v1400 = vshrl.u32 %v1399, 7
  %v1401 = vsub.s32 0, %v1400
  %v1402 = vrot.slane %v1331, %v1401
  %v1403 = vlaneseq
  %v1404 = vshrl.u32 %v1403, 7
  %v1405 = vsub.s32 0, %v1404
  %v1406 = vrot.slane %v1332, %v1405
  %v1407 = vlaneseq
  %v1408 = vshrl.u32 %v1407, 7
  %v1409 = vsub.s32 0, %v1408
  %v1410 = vrot.slane %v1333, %v1409
  %v1411 = vlaneseq
  %v1412 = vshrl.u32 %v1411, 7
  %v1413 = vsub.s32 0, %v1412
  %v1414 = vrot.slane %v1334, %v1413
  %v1415 = vmul.f32 %v1386, %v1104
  %v1416 = vmul.f32 %v1390, %v1104
  %v1417 = vmul.f32 %v1394, %v1104
  %v1418 = vmul.f32 %v1398, %v1104
  %v1419 = vmul.f32 %v1402, %v1104
  %v1420 = vmul.f32 %v1406, %v1104
  %v1421 = vmul.f32 %v1410, %v1104
  %v1422 = vmul.f32 %v1414, %v1104
  %v1423 = vsub.f32 %v1375, %v1415
  %v1424 = vsub.f32 %v1376, %v1416
  %v1425 = vsub.f32 %v1377, %v1417
  %v1426 = vsub.f32 %v1378, %v1418
  %v1427 = vsub.f32 %v1379, %v1419
  %v1428 = vsub.f32 %v1380, %v1420
  %v1429 = vsub.f32 %v1381, %v1421
  %v1430 = vsub.f32 %v1382, %v1422
  %v1431 = vmul.f32 %v1386, %v1102
  %v1432 = vmul.f32 %v1390, %v1102
  %v1433 = vmul.f32 %v1394, %v1102
  %v1434 = vmul.f32 %v1398, %v1102
  %v1435 = vmul.f32 %v1402, %v1102
  %v1436 = vmul.f32 %v1406, %v1102
  %v1437 = vmul.f32 %v1410, %v1102
  %v1438 = vmul.f32 %v1414, %v1102
  %v1439 = vadd.f32 %v1093, %v1431
  %v1440 = vadd.f32 %v1094, %v1432
  %v1441 = vadd.f32 %v1095, %v1433
  %v1442 = vadd.f32 %v1096, %v1434
  %v1443 = vadd.f32 %v1097, %v1435
  %v1444 = vadd.f32 %v1098, %v1436
  %v1445 = vadd.f32 %v1099, %v1437
  %v1446 = vadd.f32 %v1100, %v1438
  %v1447 = vmul.f32 %v1338, %v1104
  %v1448 = vmul.f32 %v1342, %v1104
  %v1449 = vmul.f32 %v1346, %v1104
  %v1450 = vmul.f32 %v1350, %v1104
  %v1451 = vmul.f32 %v1354, %v1104
  %v1452 = vmul.f32 %v1358, %v1104
  %v1453 = vmul.f32 %v1362, %v1104
  %v1454 = vmul.f32 %v1366, %v1104
  %v1455 = vadd.f32 %v1439, %v1447
  %v1456 = vadd.f32 %v1440, %v1448
  %v1457 = vadd.f32 %v1441, %v1449
  %v1458 = vadd.f32 %v1442, %v1450
  %v1459 = vadd.f32 %v1443, %v1451
  %v1460 = vadd.f32 %v1444, %v1452
  %v1461 = vadd.f32 %v1445, %v1453
  %v1462 = vadd.f32 %v1446, %v1454
  %s1463 = scalar_lea.vmem %s0, 8
  %v1464 = vld [vmem:[%s1463] sm:$0x3]
  %s1465 = scalar_lea.vmem %s1, 8
  %v1466 = vld [vmem:[%s1465] sm:$0x3]
  %s1467 = scalar_lea.vmem %s2, 16
  %v1468 = vld [vmem:[%s1467] sm:$0xf]
  %v1471 = vunpack.c.l.s4 1966171168
  %v1472 = vunpack.c.0.s8 %v1471
  %v1473 = vlaneseq
  %v1474 = vshrl.u32 %v1473, 7
  %v1475 = vsub.s32 %v1472, %v1474
  %v1476 = vrot.slane %v1468, %v1475
  %v1477 = vcombine.high %v1476, %v1476
  %v1479 = vunpack.c.l.s4 1966171168
  %v1480 = vunpack.c.0.s8 %v1479
  %v1481 = vlaneseq
  %v1482 = vshrl.u32 %v1481, 7
  %v1483 = vsub.s32 %v1480, %v1482
  %v1484 = vrot.slane %v1476, %v1483
  %v1486 = vunpack.c.l.s4 1966171168
  %v1487 = vunpack.c.0.s8 %v1486
  %v1488 = vlaneseq
  %v1489 = vshrl.u32 %v1488, 7
  %v1490 = vsub.s32 %v1487, %v1489
  %v1491 = vrot.slane %v1477, %v1490
  %v1492 = vcombine.high %v1484, %v1484
  %v1493 = vcombine.high %v1491, %v1491
  %v1494 = vunpack.i.l.s16 %v1484
  %v1495 = vunpack.i.h.s16 %v1484
  %v1496 = vunpack.i.l.s16 %v1491
  %v1497 = vunpack.i.h.s16 %v1491
  %v1498 = vunpack.i.l.s16 %v1492
  %v1499 = vunpack.i.h.s16 %v1492
  %v1500 = vunpack.i.l.s16 %v1493
  %v1501 = vunpack.i.h.s16 %v1493
  %v1502 = vpack.i.b16 %v1494, %v1494
  %v1503 = vpack.i.b16 %v1495, %v1495
  %v1504 = vpack.i.b16 %v1496, %v1496
  %v1505 = vpack.i.b16 %v1497, %v1497
  %v1506 = vpack.i.b16 %v1498, %v1498
  %v1507 = vpack.i.b16 %v1499, %v1499
  %v1508 = vpack.i.b16 %v1500, %v1500
  %v1509 = vpack.i.b16 %v1501, %v1501
  %v1511 = vunpack.c.l.s4 286326784
  %v1512 = vunpack.c.0.s8 %v1511
  %v1513 = vlaneseq
  %v1514 = vshrl.u32 %v1513, 7
  %v1515 = vsub.s32 %v1512, %v1514
  %v1516 = vrot.slane %v1502, %v1515
  %v1518 = vunpack.c.l.s4 286326784
  %v1519 = vunpack.c.0.s8 %v1518
  %v1520 = vlaneseq
  %v1521 = vshrl.u32 %v1520, 7
  %v1522 = vsub.s32 %v1519, %v1521
  %v1523 = vrot.slane %v1503, %v1522
  %v1525 = vunpack.c.l.s4 286326784
  %v1526 = vunpack.c.0.s8 %v1525
  %v1527 = vlaneseq
  %v1528 = vshrl.u32 %v1527, 7
  %v1529 = vsub.s32 %v1526, %v1528
  %v1530 = vrot.slane %v1504, %v1529
  %v1532 = vunpack.c.l.s4 286326784
  %v1533 = vunpack.c.0.s8 %v1532
  %v1534 = vlaneseq
  %v1535 = vshrl.u32 %v1534, 7
  %v1536 = vsub.s32 %v1533, %v1535
  %v1537 = vrot.slane %v1505, %v1536
  %v1539 = vunpack.c.l.s4 286326784
  %v1540 = vunpack.c.0.s8 %v1539
  %v1541 = vlaneseq
  %v1542 = vshrl.u32 %v1541, 7
  %v1543 = vsub.s32 %v1540, %v1542
  %v1544 = vrot.slane %v1506, %v1543
  %v1546 = vunpack.c.l.s4 286326784
  %v1547 = vunpack.c.0.s8 %v1546
  %v1548 = vlaneseq
  %v1549 = vshrl.u32 %v1548, 7
  %v1550 = vsub.s32 %v1547, %v1549
  %v1551 = vrot.slane %v1507, %v1550
  %v1553 = vunpack.c.l.s4 286326784
  %v1554 = vunpack.c.0.s8 %v1553
  %v1555 = vlaneseq
  %v1556 = vshrl.u32 %v1555, 7
  %v1557 = vsub.s32 %v1554, %v1556
  %v1558 = vrot.slane %v1508, %v1557
  %v1560 = vunpack.c.l.s4 286326784
  %v1561 = vunpack.c.0.s8 %v1560
  %v1562 = vlaneseq
  %v1563 = vshrl.u32 %v1562, 7
  %v1564 = vsub.s32 %v1561, %v1563
  %v1565 = vrot.slane %v1509, %v1564
  %v1574 = vunpack.c.l.bf16 %v1516
  %v1575 = vunpack.c.l.bf16 %v1523
  %v1576 = vunpack.c.l.bf16 %v1530
  %v1577 = vunpack.c.l.bf16 %v1537
  %v1578 = vunpack.c.l.bf16 %v1544
  %v1579 = vunpack.c.l.bf16 %v1551
  %v1580 = vunpack.c.l.bf16 %v1558
  %v1581 = vunpack.c.l.bf16 %v1565
  %s1582 = scalar_lea.vmem %s3, 16
  %v1583 = vld [vmem:[%s1582] sm:$0xf]
  %v1586 = vunpack.c.l.s4 1966171168
  %v1587 = vunpack.c.0.s8 %v1586
  %v1588 = vlaneseq
  %v1589 = vshrl.u32 %v1588, 7
  %v1590 = vsub.s32 %v1587, %v1589
  %v1591 = vrot.slane %v1583, %v1590
  %v1592 = vcombine.high %v1591, %v1591
  %v1594 = vunpack.c.l.s4 1966171168
  %v1595 = vunpack.c.0.s8 %v1594
  %v1596 = vlaneseq
  %v1597 = vshrl.u32 %v1596, 7
  %v1598 = vsub.s32 %v1595, %v1597
  %v1599 = vrot.slane %v1591, %v1598
  %v1601 = vunpack.c.l.s4 1966171168
  %v1602 = vunpack.c.0.s8 %v1601
  %v1603 = vlaneseq
  %v1604 = vshrl.u32 %v1603, 7
  %v1605 = vsub.s32 %v1602, %v1604
  %v1606 = vrot.slane %v1592, %v1605
  %v1607 = vcombine.high %v1599, %v1599
  %v1608 = vcombine.high %v1606, %v1606
  %v1609 = vunpack.i.l.s16 %v1599
  %v1610 = vunpack.i.h.s16 %v1599
  %v1611 = vunpack.i.l.s16 %v1606
  %v1612 = vunpack.i.h.s16 %v1606
  %v1613 = vunpack.i.l.s16 %v1607
  %v1614 = vunpack.i.h.s16 %v1607
  %v1615 = vunpack.i.l.s16 %v1608
  %v1616 = vunpack.i.h.s16 %v1608
  %v1617 = vpack.i.b16 %v1609, %v1609
  %v1618 = vpack.i.b16 %v1610, %v1610
  %v1619 = vpack.i.b16 %v1611, %v1611
  %v1620 = vpack.i.b16 %v1612, %v1612
  %v1621 = vpack.i.b16 %v1613, %v1613
  %v1622 = vpack.i.b16 %v1614, %v1614
  %v1623 = vpack.i.b16 %v1615, %v1615
  %v1624 = vpack.i.b16 %v1616, %v1616
  %v1626 = vunpack.c.l.s4 286326784
  %v1627 = vunpack.c.0.s8 %v1626
  %v1628 = vlaneseq
  %v1629 = vshrl.u32 %v1628, 7
  %v1630 = vsub.s32 %v1627, %v1629
  %v1631 = vrot.slane %v1617, %v1630
  %v1633 = vunpack.c.l.s4 286326784
  %v1634 = vunpack.c.0.s8 %v1633
  %v1635 = vlaneseq
  %v1636 = vshrl.u32 %v1635, 7
  %v1637 = vsub.s32 %v1634, %v1636
  %v1638 = vrot.slane %v1618, %v1637
  %v1640 = vunpack.c.l.s4 286326784
  %v1641 = vunpack.c.0.s8 %v1640
  %v1642 = vlaneseq
  %v1643 = vshrl.u32 %v1642, 7
  %v1644 = vsub.s32 %v1641, %v1643
  %v1645 = vrot.slane %v1619, %v1644
  %v1647 = vunpack.c.l.s4 286326784
  %v1648 = vunpack.c.0.s8 %v1647
  %v1649 = vlaneseq
  %v1650 = vshrl.u32 %v1649, 7
  %v1651 = vsub.s32 %v1648, %v1650
  %v1652 = vrot.slane %v1620, %v1651
  %v1654 = vunpack.c.l.s4 286326784
  %v1655 = vunpack.c.0.s8 %v1654
  %v1656 = vlaneseq
  %v1657 = vshrl.u32 %v1656, 7
  %v1658 = vsub.s32 %v1655, %v1657
  %v1659 = vrot.slane %v1621, %v1658
  %v1661 = vunpack.c.l.s4 286326784
  %v1662 = vunpack.c.0.s8 %v1661
  %v1663 = vlaneseq
  %v1664 = vshrl.u32 %v1663, 7
  %v1665 = vsub.s32 %v1662, %v1664
  %v1666 = vrot.slane %v1622, %v1665
  %v1668 = vunpack.c.l.s4 286326784
  %v1669 = vunpack.c.0.s8 %v1668
  %v1670 = vlaneseq
  %v1671 = vshrl.u32 %v1670, 7
  %v1672 = vsub.s32 %v1669, %v1671
  %v1673 = vrot.slane %v1623, %v1672
  %v1675 = vunpack.c.l.s4 286326784
  %v1676 = vunpack.c.0.s8 %v1675
  %v1677 = vlaneseq
  %v1678 = vshrl.u32 %v1677, 7
  %v1679 = vsub.s32 %v1676, %v1678
  %v1680 = vrot.slane %v1624, %v1679
  %v1689 = vunpack.c.l.bf16 %v1631
  %v1690 = vunpack.c.l.bf16 %v1638
  %v1691 = vunpack.c.l.bf16 %v1645
  %v1692 = vunpack.c.l.bf16 %v1652
  %v1693 = vunpack.c.l.bf16 %v1659
  %v1694 = vunpack.c.l.bf16 %v1666
  %v1695 = vunpack.c.l.bf16 %v1673
  %v1696 = vunpack.c.l.bf16 %v1680
  %v1697 = vlaneseq
  %v1698 = vshrl.u32 %v1697, 7
  %v1699 = vsub.s32 0, %v1698
  %v1700 = vrot.slane %v1574, %v1699
  %v1701 = vlaneseq
  %v1702 = vshrl.u32 %v1701, 7
  %v1703 = vsub.s32 0, %v1702
  %v1704 = vrot.slane %v1575, %v1703
  %v1705 = vlaneseq
  %v1706 = vshrl.u32 %v1705, 7
  %v1707 = vsub.s32 0, %v1706
  %v1708 = vrot.slane %v1576, %v1707
  %v1709 = vlaneseq
  %v1710 = vshrl.u32 %v1709, 7
  %v1711 = vsub.s32 0, %v1710
  %v1712 = vrot.slane %v1577, %v1711
  %v1713 = vlaneseq
  %v1714 = vshrl.u32 %v1713, 7
  %v1715 = vsub.s32 0, %v1714
  %v1716 = vrot.slane %v1578, %v1715
  %v1717 = vlaneseq
  %v1718 = vshrl.u32 %v1717, 7
  %v1719 = vsub.s32 0, %v1718
  %v1720 = vrot.slane %v1579, %v1719
  %v1721 = vlaneseq
  %v1722 = vshrl.u32 %v1721, 7
  %v1723 = vsub.s32 0, %v1722
  %v1724 = vrot.slane %v1580, %v1723
  %v1725 = vlaneseq
  %v1726 = vshrl.u32 %v1725, 7
  %v1727 = vsub.s32 0, %v1726
  %v1728 = vrot.slane %v1581, %v1727
  %v1729 = vmul.f32 %v1700, %v1464
  %v1730 = vmul.f32 %v1704, %v1464
  %v1731 = vmul.f32 %v1708, %v1464
  %v1732 = vmul.f32 %v1712, %v1464
  %v1733 = vmul.f32 %v1716, %v1464
  %v1734 = vmul.f32 %v1720, %v1464
  %v1735 = vmul.f32 %v1724, %v1464
  %v1736 = vmul.f32 %v1728, %v1464
  %v1737 = vadd.f32 %v1423, %v1729
  %v1738 = vadd.f32 %v1424, %v1730
  %v1739 = vadd.f32 %v1425, %v1731
  %v1740 = vadd.f32 %v1426, %v1732
  %v1741 = vadd.f32 %v1427, %v1733
  %v1742 = vadd.f32 %v1428, %v1734
  %v1743 = vadd.f32 %v1429, %v1735
  %v1744 = vadd.f32 %v1430, %v1736
  %v1745 = vlaneseq
  %v1746 = vshrl.u32 %v1745, 7
  %v1747 = vsub.s32 0, %v1746
  %v1748 = vrot.slane %v1689, %v1747
  %v1749 = vlaneseq
  %v1750 = vshrl.u32 %v1749, 7
  %v1751 = vsub.s32 0, %v1750
  %v1752 = vrot.slane %v1690, %v1751
  %v1753 = vlaneseq
  %v1754 = vshrl.u32 %v1753, 7
  %v1755 = vsub.s32 0, %v1754
  %v1756 = vrot.slane %v1691, %v1755
  %v1757 = vlaneseq
  %v1758 = vshrl.u32 %v1757, 7
  %v1759 = vsub.s32 0, %v1758
  %v1760 = vrot.slane %v1692, %v1759
  %v1761 = vlaneseq
  %v1762 = vshrl.u32 %v1761, 7
  %v1763 = vsub.s32 0, %v1762
  %v1764 = vrot.slane %v1693, %v1763
  %v1765 = vlaneseq
  %v1766 = vshrl.u32 %v1765, 7
  %v1767 = vsub.s32 0, %v1766
  %v1768 = vrot.slane %v1694, %v1767
  %v1769 = vlaneseq
  %v1770 = vshrl.u32 %v1769, 7
  %v1771 = vsub.s32 0, %v1770
  %v1772 = vrot.slane %v1695, %v1771
  %v1773 = vlaneseq
  %v1774 = vshrl.u32 %v1773, 7
  %v1775 = vsub.s32 0, %v1774
  %v1776 = vrot.slane %v1696, %v1775
  %v1777 = vmul.f32 %v1748, %v1466
  %v1778 = vmul.f32 %v1752, %v1466
  %v1779 = vmul.f32 %v1756, %v1466
  %v1780 = vmul.f32 %v1760, %v1466
  %v1781 = vmul.f32 %v1764, %v1466
  %v1782 = vmul.f32 %v1768, %v1466
  %v1783 = vmul.f32 %v1772, %v1466
  %v1784 = vmul.f32 %v1776, %v1466
  %v1785 = vsub.f32 %v1737, %v1777
  %v1786 = vsub.f32 %v1738, %v1778
  %v1787 = vsub.f32 %v1739, %v1779
  %v1788 = vsub.f32 %v1740, %v1780
  %v1789 = vsub.f32 %v1741, %v1781
  %v1790 = vsub.f32 %v1742, %v1782
  %v1791 = vsub.f32 %v1743, %v1783
  %v1792 = vsub.f32 %v1744, %v1784
  %v1793 = vmul.f32 %v1748, %v1464
  %v1794 = vmul.f32 %v1752, %v1464
  %v1795 = vmul.f32 %v1756, %v1464
  %v1796 = vmul.f32 %v1760, %v1464
  %v1797 = vmul.f32 %v1764, %v1464
  %v1798 = vmul.f32 %v1768, %v1464
  %v1799 = vmul.f32 %v1772, %v1464
  %v1800 = vmul.f32 %v1776, %v1464
  %v1801 = vadd.f32 %v1455, %v1793
  %v1802 = vadd.f32 %v1456, %v1794
  %v1803 = vadd.f32 %v1457, %v1795
  %v1804 = vadd.f32 %v1458, %v1796
  %v1805 = vadd.f32 %v1459, %v1797
  %v1806 = vadd.f32 %v1460, %v1798
  %v1807 = vadd.f32 %v1461, %v1799
  %v1808 = vadd.f32 %v1462, %v1800
  %v1809 = vmul.f32 %v1700, %v1466
  %v1810 = vmul.f32 %v1704, %v1466
  %v1811 = vmul.f32 %v1708, %v1466
  %v1812 = vmul.f32 %v1712, %v1466
  %v1813 = vmul.f32 %v1716, %v1466
  %v1814 = vmul.f32 %v1720, %v1466
  %v1815 = vmul.f32 %v1724, %v1466
  %v1816 = vmul.f32 %v1728, %v1466
  %v1817 = vadd.f32 %v1801, %v1809
  %v1818 = vadd.f32 %v1802, %v1810
  %v1819 = vadd.f32 %v1803, %v1811
  %v1820 = vadd.f32 %v1804, %v1812
  %v1821 = vadd.f32 %v1805, %v1813
  %v1822 = vadd.f32 %v1806, %v1814
  %v1823 = vadd.f32 %v1807, %v1815
  %v1824 = vadd.f32 %v1808, %v1816
  %s1825 = scalar_lea.vmem %s0, 10
  %v1826 = vld [vmem:[%s1825] sm:$0x3]
  %s1827 = scalar_lea.vmem %s1, 10
  %v1828 = vld [vmem:[%s1827] sm:$0x3]
  %s1829 = scalar_lea.vmem %s2, 20
  %v1830 = vld [vmem:[%s1829] sm:$0xf]
  %v1833 = vunpack.c.l.s4 1966171168
  %v1834 = vunpack.c.0.s8 %v1833
  %v1835 = vlaneseq
  %v1836 = vshrl.u32 %v1835, 7
  %v1837 = vsub.s32 %v1834, %v1836
  %v1838 = vrot.slane %v1830, %v1837
  %v1839 = vcombine.high %v1838, %v1838
  %v1841 = vunpack.c.l.s4 1966171168
  %v1842 = vunpack.c.0.s8 %v1841
  %v1843 = vlaneseq
  %v1844 = vshrl.u32 %v1843, 7
  %v1845 = vsub.s32 %v1842, %v1844
  %v1846 = vrot.slane %v1838, %v1845
  %v1848 = vunpack.c.l.s4 1966171168
  %v1849 = vunpack.c.0.s8 %v1848
  %v1850 = vlaneseq
  %v1851 = vshrl.u32 %v1850, 7
  %v1852 = vsub.s32 %v1849, %v1851
  %v1853 = vrot.slane %v1839, %v1852
  %v1854 = vcombine.high %v1846, %v1846
  %v1855 = vcombine.high %v1853, %v1853
  %v1856 = vunpack.i.l.s16 %v1846
  %v1857 = vunpack.i.h.s16 %v1846
  %v1858 = vunpack.i.l.s16 %v1853
  %v1859 = vunpack.i.h.s16 %v1853
  %v1860 = vunpack.i.l.s16 %v1854
  %v1861 = vunpack.i.h.s16 %v1854
  %v1862 = vunpack.i.l.s16 %v1855
  %v1863 = vunpack.i.h.s16 %v1855
  %v1864 = vpack.i.b16 %v1856, %v1856
  %v1865 = vpack.i.b16 %v1857, %v1857
  %v1866 = vpack.i.b16 %v1858, %v1858
  %v1867 = vpack.i.b16 %v1859, %v1859
  %v1868 = vpack.i.b16 %v1860, %v1860
  %v1869 = vpack.i.b16 %v1861, %v1861
  %v1870 = vpack.i.b16 %v1862, %v1862
  %v1871 = vpack.i.b16 %v1863, %v1863
  %v1873 = vunpack.c.l.s4 286326784
  %v1874 = vunpack.c.0.s8 %v1873
  %v1875 = vlaneseq
  %v1876 = vshrl.u32 %v1875, 7
  %v1877 = vsub.s32 %v1874, %v1876
  %v1878 = vrot.slane %v1864, %v1877
  %v1880 = vunpack.c.l.s4 286326784
  %v1881 = vunpack.c.0.s8 %v1880
  %v1882 = vlaneseq
  %v1883 = vshrl.u32 %v1882, 7
  %v1884 = vsub.s32 %v1881, %v1883
  %v1885 = vrot.slane %v1865, %v1884
  %v1887 = vunpack.c.l.s4 286326784
  %v1888 = vunpack.c.0.s8 %v1887
  %v1889 = vlaneseq
  %v1890 = vshrl.u32 %v1889, 7
  %v1891 = vsub.s32 %v1888, %v1890
  %v1892 = vrot.slane %v1866, %v1891
  %v1894 = vunpack.c.l.s4 286326784
  %v1895 = vunpack.c.0.s8 %v1894
  %v1896 = vlaneseq
  %v1897 = vshrl.u32 %v1896, 7
  %v1898 = vsub.s32 %v1895, %v1897
  %v1899 = vrot.slane %v1867, %v1898
  %v1901 = vunpack.c.l.s4 286326784
  %v1902 = vunpack.c.0.s8 %v1901
  %v1903 = vlaneseq
  %v1904 = vshrl.u32 %v1903, 7
  %v1905 = vsub.s32 %v1902, %v1904
  %v1906 = vrot.slane %v1868, %v1905
  %v1908 = vunpack.c.l.s4 286326784
  %v1909 = vunpack.c.0.s8 %v1908
  %v1910 = vlaneseq
  %v1911 = vshrl.u32 %v1910, 7
  %v1912 = vsub.s32 %v1909, %v1911
  %v1913 = vrot.slane %v1869, %v1912
  %v1915 = vunpack.c.l.s4 286326784
  %v1916 = vunpack.c.0.s8 %v1915
  %v1917 = vlaneseq
  %v1918 = vshrl.u32 %v1917, 7
  %v1919 = vsub.s32 %v1916, %v1918
  %v1920 = vrot.slane %v1870, %v1919
  %v1922 = vunpack.c.l.s4 286326784
  %v1923 = vunpack.c.0.s8 %v1922
  %v1924 = vlaneseq
  %v1925 = vshrl.u32 %v1924, 7
  %v1926 = vsub.s32 %v1923, %v1925
  %v1927 = vrot.slane %v1871, %v1926
  %v1936 = vunpack.c.l.bf16 %v1878
  %v1937 = vunpack.c.l.bf16 %v1885
  %v1938 = vunpack.c.l.bf16 %v1892
  %v1939 = vunpack.c.l.bf16 %v1899
  %v1940 = vunpack.c.l.bf16 %v1906
  %v1941 = vunpack.c.l.bf16 %v1913
  %v1942 = vunpack.c.l.bf16 %v1920
  %v1943 = vunpack.c.l.bf16 %v1927
  %s1944 = scalar_lea.vmem %s3, 20
  %v1945 = vld [vmem:[%s1944] sm:$0xf]
  %v1948 = vunpack.c.l.s4 1966171168
  %v1949 = vunpack.c.0.s8 %v1948
  %v1950 = vlaneseq
  %v1951 = vshrl.u32 %v1950, 7
  %v1952 = vsub.s32 %v1949, %v1951
  %v1953 = vrot.slane %v1945, %v1952
  %v1954 = vcombine.high %v1953, %v1953
  %v1956 = vunpack.c.l.s4 1966171168
  %v1957 = vunpack.c.0.s8 %v1956
  %v1958 = vlaneseq
  %v1959 = vshrl.u32 %v1958, 7
  %v1960 = vsub.s32 %v1957, %v1959
  %v1961 = vrot.slane %v1953, %v1960
  %v1963 = vunpack.c.l.s4 1966171168
  %v1964 = vunpack.c.0.s8 %v1963
  %v1965 = vlaneseq
  %v1966 = vshrl.u32 %v1965, 7
  %v1967 = vsub.s32 %v1964, %v1966
  %v1968 = vrot.slane %v1954, %v1967
  %v1969 = vcombine.high %v1961, %v1961
  %v1970 = vcombine.high %v1968, %v1968
  %v1971 = vunpack.i.l.s16 %v1961
  %v1972 = vunpack.i.h.s16 %v1961
  %v1973 = vunpack.i.l.s16 %v1968
  %v1974 = vunpack.i.h.s16 %v1968
  %v1975 = vunpack.i.l.s16 %v1969
  %v1976 = vunpack.i.h.s16 %v1969
  %v1977 = vunpack.i.l.s16 %v1970
  %v1978 = vunpack.i.h.s16 %v1970
  %v1979 = vpack.i.b16 %v1971, %v1971
  %v1980 = vpack.i.b16 %v1972, %v1972
  %v1981 = vpack.i.b16 %v1973, %v1973
  %v1982 = vpack.i.b16 %v1974, %v1974
  %v1983 = vpack.i.b16 %v1975, %v1975
  %v1984 = vpack.i.b16 %v1976, %v1976
  %v1985 = vpack.i.b16 %v1977, %v1977
  %v1986 = vpack.i.b16 %v1978, %v1978
  %v1988 = vunpack.c.l.s4 286326784
  %v1989 = vunpack.c.0.s8 %v1988
  %v1990 = vlaneseq
  %v1991 = vshrl.u32 %v1990, 7
  %v1992 = vsub.s32 %v1989, %v1991
  %v1993 = vrot.slane %v1979, %v1992
  %v1995 = vunpack.c.l.s4 286326784
  %v1996 = vunpack.c.0.s8 %v1995
  %v1997 = vlaneseq
  %v1998 = vshrl.u32 %v1997, 7
  %v1999 = vsub.s32 %v1996, %v1998
  %v2000 = vrot.slane %v1980, %v1999
  %v2002 = vunpack.c.l.s4 286326784
  %v2003 = vunpack.c.0.s8 %v2002
  %v2004 = vlaneseq
  %v2005 = vshrl.u32 %v2004, 7
  %v2006 = vsub.s32 %v2003, %v2005
  %v2007 = vrot.slane %v1981, %v2006
  %v2009 = vunpack.c.l.s4 286326784
  %v2010 = vunpack.c.0.s8 %v2009
  %v2011 = vlaneseq
  %v2012 = vshrl.u32 %v2011, 7
  %v2013 = vsub.s32 %v2010, %v2012
  %v2014 = vrot.slane %v1982, %v2013
  %v2016 = vunpack.c.l.s4 286326784
  %v2017 = vunpack.c.0.s8 %v2016
  %v2018 = vlaneseq
  %v2019 = vshrl.u32 %v2018, 7
  %v2020 = vsub.s32 %v2017, %v2019
  %v2021 = vrot.slane %v1983, %v2020
  %v2023 = vunpack.c.l.s4 286326784
  %v2024 = vunpack.c.0.s8 %v2023
  %v2025 = vlaneseq
  %v2026 = vshrl.u32 %v2025, 7
  %v2027 = vsub.s32 %v2024, %v2026
  %v2028 = vrot.slane %v1984, %v2027
  %v2030 = vunpack.c.l.s4 286326784
  %v2031 = vunpack.c.0.s8 %v2030
  %v2032 = vlaneseq
  %v2033 = vshrl.u32 %v2032, 7
  %v2034 = vsub.s32 %v2031, %v2033
  %v2035 = vrot.slane %v1985, %v2034
  %v2037 = vunpack.c.l.s4 286326784
  %v2038 = vunpack.c.0.s8 %v2037
  %v2039 = vlaneseq
  %v2040 = vshrl.u32 %v2039, 7
  %v2041 = vsub.s32 %v2038, %v2040
  %v2042 = vrot.slane %v1986, %v2041
  %v2051 = vunpack.c.l.bf16 %v1993
  %v2052 = vunpack.c.l.bf16 %v2000
  %v2053 = vunpack.c.l.bf16 %v2007
  %v2054 = vunpack.c.l.bf16 %v2014
  %v2055 = vunpack.c.l.bf16 %v2021
  %v2056 = vunpack.c.l.bf16 %v2028
  %v2057 = vunpack.c.l.bf16 %v2035
  %v2058 = vunpack.c.l.bf16 %v2042
  %v2059 = vlaneseq
  %v2060 = vshrl.u32 %v2059, 7
  %v2061 = vsub.s32 0, %v2060
  %v2062 = vrot.slane %v1936, %v2061
  %v2063 = vlaneseq
  %v2064 = vshrl.u32 %v2063, 7
  %v2065 = vsub.s32 0, %v2064
  %v2066 = vrot.slane %v1937, %v2065
  %v2067 = vlaneseq
  %v2068 = vshrl.u32 %v2067, 7
  %v2069 = vsub.s32 0, %v2068
  %v2070 = vrot.slane %v1938, %v2069
  %v2071 = vlaneseq
  %v2072 = vshrl.u32 %v2071, 7
  %v2073 = vsub.s32 0, %v2072
  %v2074 = vrot.slane %v1939, %v2073
  %v2075 = vlaneseq
  %v2076 = vshrl.u32 %v2075, 7
  %v2077 = vsub.s32 0, %v2076
  %v2078 = vrot.slane %v1940, %v2077
  %v2079 = vlaneseq
  %v2080 = vshrl.u32 %v2079, 7
  %v2081 = vsub.s32 0, %v2080
  %v2082 = vrot.slane %v1941, %v2081
  %v2083 = vlaneseq
  %v2084 = vshrl.u32 %v2083, 7
  %v2085 = vsub.s32 0, %v2084
  %v2086 = vrot.slane %v1942, %v2085
  %v2087 = vlaneseq
  %v2088 = vshrl.u32 %v2087, 7
  %v2089 = vsub.s32 0, %v2088
  %v2090 = vrot.slane %v1943, %v2089
  %v2091 = vmul.f32 %v2062, %v1826
  %v2092 = vmul.f32 %v2066, %v1826
  %v2093 = vmul.f32 %v2070, %v1826
  %v2094 = vmul.f32 %v2074, %v1826
  %v2095 = vmul.f32 %v2078, %v1826
  %v2096 = vmul.f32 %v2082, %v1826
  %v2097 = vmul.f32 %v2086, %v1826
  %v2098 = vmul.f32 %v2090, %v1826
  %v2099 = vadd.f32 %v1785, %v2091
  %v2100 = vadd.f32 %v1786, %v2092
  %v2101 = vadd.f32 %v1787, %v2093
  %v2102 = vadd.f32 %v1788, %v2094
  %v2103 = vadd.f32 %v1789, %v2095
  %v2104 = vadd.f32 %v1790, %v2096
  %v2105 = vadd.f32 %v1791, %v2097
  %v2106 = vadd.f32 %v1792, %v2098
  %v2107 = vlaneseq
  %v2108 = vshrl.u32 %v2107, 7
  %v2109 = vsub.s32 0, %v2108
  %v2110 = vrot.slane %v2051, %v2109
  %v2111 = vlaneseq
  %v2112 = vshrl.u32 %v2111, 7
  %v2113 = vsub.s32 0, %v2112
  %v2114 = vrot.slane %v2052, %v2113
  %v2115 = vlaneseq
  %v2116 = vshrl.u32 %v2115, 7
  %v2117 = vsub.s32 0, %v2116
  %v2118 = vrot.slane %v2053, %v2117
  %v2119 = vlaneseq
  %v2120 = vshrl.u32 %v2119, 7
  %v2121 = vsub.s32 0, %v2120
  %v2122 = vrot.slane %v2054, %v2121
  %v2123 = vlaneseq
  %v2124 = vshrl.u32 %v2123, 7
  %v2125 = vsub.s32 0, %v2124
  %v2126 = vrot.slane %v2055, %v2125
  %v2127 = vlaneseq
  %v2128 = vshrl.u32 %v2127, 7
  %v2129 = vsub.s32 0, %v2128
  %v2130 = vrot.slane %v2056, %v2129
  %v2131 = vlaneseq
  %v2132 = vshrl.u32 %v2131, 7
  %v2133 = vsub.s32 0, %v2132
  %v2134 = vrot.slane %v2057, %v2133
  %v2135 = vlaneseq
  %v2136 = vshrl.u32 %v2135, 7
  %v2137 = vsub.s32 0, %v2136
  %v2138 = vrot.slane %v2058, %v2137
  %v2139 = vmul.f32 %v2110, %v1828
  %v2140 = vmul.f32 %v2114, %v1828
  %v2141 = vmul.f32 %v2118, %v1828
  %v2142 = vmul.f32 %v2122, %v1828
  %v2143 = vmul.f32 %v2126, %v1828
  %v2144 = vmul.f32 %v2130, %v1828
  %v2145 = vmul.f32 %v2134, %v1828
  %v2146 = vmul.f32 %v2138, %v1828
  %v2147 = vsub.f32 %v2099, %v2139
  %v2148 = vsub.f32 %v2100, %v2140
  %v2149 = vsub.f32 %v2101, %v2141
  %v2150 = vsub.f32 %v2102, %v2142
  %v2151 = vsub.f32 %v2103, %v2143
  %v2152 = vsub.f32 %v2104, %v2144
  %v2153 = vsub.f32 %v2105, %v2145
  %v2154 = vsub.f32 %v2106, %v2146
  %v2155 = vmul.f32 %v2110, %v1826
  %v2156 = vmul.f32 %v2114, %v1826
  %v2157 = vmul.f32 %v2118, %v1826
  %v2158 = vmul.f32 %v2122, %v1826
  %v2159 = vmul.f32 %v2126, %v1826
  %v2160 = vmul.f32 %v2130, %v1826
  %v2161 = vmul.f32 %v2134, %v1826
  %v2162 = vmul.f32 %v2138, %v1826
  %v2163 = vadd.f32 %v1817, %v2155
  %v2164 = vadd.f32 %v1818, %v2156
  %v2165 = vadd.f32 %v1819, %v2157
  %v2166 = vadd.f32 %v1820, %v2158
  %v2167 = vadd.f32 %v1821, %v2159
  %v2168 = vadd.f32 %v1822, %v2160
  %v2169 = vadd.f32 %v1823, %v2161
  %v2170 = vadd.f32 %v1824, %v2162
  %v2171 = vmul.f32 %v2062, %v1828
  %v2172 = vmul.f32 %v2066, %v1828
  %v2173 = vmul.f32 %v2070, %v1828
  %v2174 = vmul.f32 %v2074, %v1828
  %v2175 = vmul.f32 %v2078, %v1828
  %v2176 = vmul.f32 %v2082, %v1828
  %v2177 = vmul.f32 %v2086, %v1828
  %v2178 = vmul.f32 %v2090, %v1828
  %v2179 = vadd.f32 %v2163, %v2171
  %v2180 = vadd.f32 %v2164, %v2172
  %v2181 = vadd.f32 %v2165, %v2173
  %v2182 = vadd.f32 %v2166, %v2174
  %v2183 = vadd.f32 %v2167, %v2175
  %v2184 = vadd.f32 %v2168, %v2176
  %v2185 = vadd.f32 %v2169, %v2177
  %v2186 = vadd.f32 %v2170, %v2178
  %s2187 = scalar_lea.vmem %s0, 12
  %v2188 = vld [vmem:[%s2187] sm:$0x3]
  %s2189 = scalar_lea.vmem %s1, 12
  %v2190 = vld [vmem:[%s2189] sm:$0x3]
  %s2191 = scalar_lea.vmem %s2, 24
  %v2192 = vld [vmem:[%s2191] sm:$0xf]
  %v2195 = vunpack.c.l.s4 1966171168
  %v2196 = vunpack.c.0.s8 %v2195
  %v2197 = vlaneseq
  %v2198 = vshrl.u32 %v2197, 7
  %v2199 = vsub.s32 %v2196, %v2198
  %v2200 = vrot.slane %v2192, %v2199
  %v2201 = vcombine.high %v2200, %v2200
  %v2203 = vunpack.c.l.s4 1966171168
  %v2204 = vunpack.c.0.s8 %v2203
  %v2205 = vlaneseq
  %v2206 = vshrl.u32 %v2205, 7
  %v2207 = vsub.s32 %v2204, %v2206
  %v2208 = vrot.slane %v2200, %v2207
  %v2210 = vunpack.c.l.s4 1966171168
  %v2211 = vunpack.c.0.s8 %v2210
  %v2212 = vlaneseq
  %v2213 = vshrl.u32 %v2212, 7
  %v2214 = vsub.s32 %v2211, %v2213
  %v2215 = vrot.slane %v2201, %v2214
  %v2216 = vcombine.high %v2208, %v2208
  %v2217 = vcombine.high %v2215, %v2215
  %v2218 = vunpack.i.l.s16 %v2208
  %v2219 = vunpack.i.h.s16 %v2208
  %v2220 = vunpack.i.l.s16 %v2215
  %v2221 = vunpack.i.h.s16 %v2215
  %v2222 = vunpack.i.l.s16 %v2216
  %v2223 = vunpack.i.h.s16 %v2216
  %v2224 = vunpack.i.l.s16 %v2217
  %v2225 = vunpack.i.h.s16 %v2217
  %v2226 = vpack.i.b16 %v2218, %v2218
  %v2227 = vpack.i.b16 %v2219, %v2219
  %v2228 = vpack.i.b16 %v2220, %v2220
  %v2229 = vpack.i.b16 %v2221, %v2221
  %v2230 = vpack.i.b16 %v2222, %v2222
  %v2231 = vpack.i.b16 %v2223, %v2223
  %v2232 = vpack.i.b16 %v2224, %v2224
  %v2233 = vpack.i.b16 %v2225, %v2225
  %v2235 = vunpack.c.l.s4 286326784
  %v2236 = vunpack.c.0.s8 %v2235
  %v2237 = vlaneseq
  %v2238 = vshrl.u32 %v2237, 7
  %v2239 = vsub.s32 %v2236, %v2238
  %v2240 = vrot.slane %v2226, %v2239
  %v2242 = vunpack.c.l.s4 286326784
  %v2243 = vunpack.c.0.s8 %v2242
  %v2244 = vlaneseq
  %v2245 = vshrl.u32 %v2244, 7
  %v2246 = vsub.s32 %v2243, %v2245
  %v2247 = vrot.slane %v2227, %v2246
  %v2249 = vunpack.c.l.s4 286326784
  %v2250 = vunpack.c.0.s8 %v2249
  %v2251 = vlaneseq
  %v2252 = vshrl.u32 %v2251, 7
  %v2253 = vsub.s32 %v2250, %v2252
  %v2254 = vrot.slane %v2228, %v2253
  %v2256 = vunpack.c.l.s4 286326784
  %v2257 = vunpack.c.0.s8 %v2256
  %v2258 = vlaneseq
  %v2259 = vshrl.u32 %v2258, 7
  %v2260 = vsub.s32 %v2257, %v2259
  %v2261 = vrot.slane %v2229, %v2260
  %v2263 = vunpack.c.l.s4 286326784
  %v2264 = vunpack.c.0.s8 %v2263
  %v2265 = vlaneseq
  %v2266 = vshrl.u32 %v2265, 7
  %v2267 = vsub.s32 %v2264, %v2266
  %v2268 = vrot.slane %v2230, %v2267
  %v2270 = vunpack.c.l.s4 286326784
  %v2271 = vunpack.c.0.s8 %v2270
  %v2272 = vlaneseq
  %v2273 = vshrl.u32 %v2272, 7
  %v2274 = vsub.s32 %v2271, %v2273
  %v2275 = vrot.slane %v2231, %v2274
  %v2277 = vunpack.c.l.s4 286326784
  %v2278 = vunpack.c.0.s8 %v2277
  %v2279 = vlaneseq
  %v2280 = vshrl.u32 %v2279, 7
  %v2281 = vsub.s32 %v2278, %v2280
  %v2282 = vrot.slane %v2232, %v2281
  %v2284 = vunpack.c.l.s4 286326784
  %v2285 = vunpack.c.0.s8 %v2284
  %v2286 = vlaneseq
  %v2287 = vshrl.u32 %v2286, 7
  %v2288 = vsub.s32 %v2285, %v2287
  %v2289 = vrot.slane %v2233, %v2288
  %v2298 = vunpack.c.l.bf16 %v2240
  %v2299 = vunpack.c.l.bf16 %v2247
  %v2300 = vunpack.c.l.bf16 %v2254
  %v2301 = vunpack.c.l.bf16 %v2261
  %v2302 = vunpack.c.l.bf16 %v2268
  %v2303 = vunpack.c.l.bf16 %v2275
  %v2304 = vunpack.c.l.bf16 %v2282
  %v2305 = vunpack.c.l.bf16 %v2289
  %s2306 = scalar_lea.vmem %s3, 24
  %v2307 = vld [vmem:[%s2306] sm:$0xf]
  %v2310 = vunpack.c.l.s4 1966171168
  %v2311 = vunpack.c.0.s8 %v2310
  %v2312 = vlaneseq
  %v2313 = vshrl.u32 %v2312, 7
  %v2314 = vsub.s32 %v2311, %v2313
  %v2315 = vrot.slane %v2307, %v2314
  %v2316 = vcombine.high %v2315, %v2315
  %v2318 = vunpack.c.l.s4 1966171168
  %v2319 = vunpack.c.0.s8 %v2318
  %v2320 = vlaneseq
  %v2321 = vshrl.u32 %v2320, 7
  %v2322 = vsub.s32 %v2319, %v2321
  %v2323 = vrot.slane %v2315, %v2322
  %v2325 = vunpack.c.l.s4 1966171168
  %v2326 = vunpack.c.0.s8 %v2325
  %v2327 = vlaneseq
  %v2328 = vshrl.u32 %v2327, 7
  %v2329 = vsub.s32 %v2326, %v2328
  %v2330 = vrot.slane %v2316, %v2329
  %v2331 = vcombine.high %v2323, %v2323
  %v2332 = vcombine.high %v2330, %v2330
  %v2333 = vunpack.i.l.s16 %v2323
  %v2334 = vunpack.i.h.s16 %v2323
  %v2335 = vunpack.i.l.s16 %v2330
  %v2336 = vunpack.i.h.s16 %v2330
  %v2337 = vunpack.i.l.s16 %v2331
  %v2338 = vunpack.i.h.s16 %v2331
  %v2339 = vunpack.i.l.s16 %v2332
  %v2340 = vunpack.i.h.s16 %v2332
  %v2341 = vpack.i.b16 %v2333, %v2333
  %v2342 = vpack.i.b16 %v2334, %v2334
  %v2343 = vpack.i.b16 %v2335, %v2335
  %v2344 = vpack.i.b16 %v2336, %v2336
  %v2345 = vpack.i.b16 %v2337, %v2337
  %v2346 = vpack.i.b16 %v2338, %v2338
  %v2347 = vpack.i.b16 %v2339, %v2339
  %v2348 = vpack.i.b16 %v2340, %v2340
  %v2350 = vunpack.c.l.s4 286326784
  %v2351 = vunpack.c.0.s8 %v2350
  %v2352 = vlaneseq
  %v2353 = vshrl.u32 %v2352, 7
  %v2354 = vsub.s32 %v2351, %v2353
  %v2355 = vrot.slane %v2341, %v2354
  %v2357 = vunpack.c.l.s4 286326784
  %v2358 = vunpack.c.0.s8 %v2357
  %v2359 = vlaneseq
  %v2360 = vshrl.u32 %v2359, 7
  %v2361 = vsub.s32 %v2358, %v2360
  %v2362 = vrot.slane %v2342, %v2361
  %v2364 = vunpack.c.l.s4 286326784
  %v2365 = vunpack.c.0.s8 %v2364
  %v2366 = vlaneseq
  %v2367 = vshrl.u32 %v2366, 7
  %v2368 = vsub.s32 %v2365, %v2367
  %v2369 = vrot.slane %v2343, %v2368
  %v2371 = vunpack.c.l.s4 286326784
  %v2372 = vunpack.c.0.s8 %v2371
  %v2373 = vlaneseq
  %v2374 = vshrl.u32 %v2373, 7
  %v2375 = vsub.s32 %v2372, %v2374
  %v2376 = vrot.slane %v2344, %v2375
  %v2378 = vunpack.c.l.s4 286326784
  %v2379 = vunpack.c.0.s8 %v2378
  %v2380 = vlaneseq
  %v2381 = vshrl.u32 %v2380, 7
  %v2382 = vsub.s32 %v2379, %v2381
  %v2383 = vrot.slane %v2345, %v2382
  %v2385 = vunpack.c.l.s4 286326784
  %v2386 = vunpack.c.0.s8 %v2385
  %v2387 = vlaneseq
  %v2388 = vshrl.u32 %v2387, 7
  %v2389 = vsub.s32 %v2386, %v2388
  %v2390 = vrot.slane %v2346, %v2389
  %v2392 = vunpack.c.l.s4 286326784
  %v2393 = vunpack.c.0.s8 %v2392
  %v2394 = vlaneseq
  %v2395 = vshrl.u32 %v2394, 7
  %v2396 = vsub.s32 %v2393, %v2395
  %v2397 = vrot.slane %v2347, %v2396
  %v2399 = vunpack.c.l.s4 286326784
  %v2400 = vunpack.c.0.s8 %v2399
  %v2401 = vlaneseq
  %v2402 = vshrl.u32 %v2401, 7
  %v2403 = vsub.s32 %v2400, %v2402
  %v2404 = vrot.slane %v2348, %v2403
  %v2413 = vunpack.c.l.bf16 %v2355
  %v2414 = vunpack.c.l.bf16 %v2362
  %v2415 = vunpack.c.l.bf16 %v2369
  %v2416 = vunpack.c.l.bf16 %v2376
  %v2417 = vunpack.c.l.bf16 %v2383
  %v2418 = vunpack.c.l.bf16 %v2390
  %v2419 = vunpack.c.l.bf16 %v2397
  %v2420 = vunpack.c.l.bf16 %v2404
  %v2421 = vlaneseq
  %v2422 = vshrl.u32 %v2421, 7
  %v2423 = vsub.s32 0, %v2422
  %v2424 = vrot.slane %v2298, %v2423
  %v2425 = vlaneseq
  %v2426 = vshrl.u32 %v2425, 7
  %v2427 = vsub.s32 0, %v2426
  %v2428 = vrot.slane %v2299, %v2427
  %v2429 = vlaneseq
  %v2430 = vshrl.u32 %v2429, 7
  %v2431 = vsub.s32 0, %v2430
  %v2432 = vrot.slane %v2300, %v2431
  %v2433 = vlaneseq
  %v2434 = vshrl.u32 %v2433, 7
  %v2435 = vsub.s32 0, %v2434
  %v2436 = vrot.slane %v2301, %v2435
  %v2437 = vlaneseq
  %v2438 = vshrl.u32 %v2437, 7
  %v2439 = vsub.s32 0, %v2438
  %v2440 = vrot.slane %v2302, %v2439
  %v2441 = vlaneseq
  %v2442 = vshrl.u32 %v2441, 7
  %v2443 = vsub.s32 0, %v2442
  %v2444 = vrot.slane %v2303, %v2443
  %v2445 = vlaneseq
  %v2446 = vshrl.u32 %v2445, 7
  %v2447 = vsub.s32 0, %v2446
  %v2448 = vrot.slane %v2304, %v2447
  %v2449 = vlaneseq
  %v2450 = vshrl.u32 %v2449, 7
  %v2451 = vsub.s32 0, %v2450
  %v2452 = vrot.slane %v2305, %v2451
  %v2453 = vmul.f32 %v2424, %v2188
  %v2454 = vmul.f32 %v2428, %v2188
  %v2455 = vmul.f32 %v2432, %v2188
  %v2456 = vmul.f32 %v2436, %v2188
  %v2457 = vmul.f32 %v2440, %v2188
  %v2458 = vmul.f32 %v2444, %v2188
  %v2459 = vmul.f32 %v2448, %v2188
  %v2460 = vmul.f32 %v2452, %v2188
  %v2461 = vadd.f32 %v2147, %v2453
  %v2462 = vadd.f32 %v2148, %v2454
  %v2463 = vadd.f32 %v2149, %v2455
  %v2464 = vadd.f32 %v2150, %v2456
  %v2465 = vadd.f32 %v2151, %v2457
  %v2466 = vadd.f32 %v2152, %v2458
  %v2467 = vadd.f32 %v2153, %v2459
  %v2468 = vadd.f32 %v2154, %v2460
  %v2469 = vlaneseq
  %v2470 = vshrl.u32 %v2469, 7
  %v2471 = vsub.s32 0, %v2470
  %v2472 = vrot.slane %v2413, %v2471
  %v2473 = vlaneseq
  %v2474 = vshrl.u32 %v2473, 7
  %v2475 = vsub.s32 0, %v2474
  %v2476 = vrot.slane %v2414, %v2475
  %v2477 = vlaneseq
  %v2478 = vshrl.u32 %v2477, 7
  %v2479 = vsub.s32 0, %v2478
  %v2480 = vrot.slane %v2415, %v2479
  %v2481 = vlaneseq
  %v2482 = vshrl.u32 %v2481, 7
  %v2483 = vsub.s32 0, %v2482
  %v2484 = vrot.slane %v2416, %v2483
  %v2485 = vlaneseq
  %v2486 = vshrl.u32 %v2485, 7
  %v2487 = vsub.s32 0, %v2486
  %v2488 = vrot.slane %v2417, %v2487
  %v2489 = vlaneseq
  %v2490 = vshrl.u32 %v2489, 7
  %v2491 = vsub.s32 0, %v2490
  %v2492 = vrot.slane %v2418, %v2491
  %v2493 = vlaneseq
  %v2494 = vshrl.u32 %v2493, 7
  %v2495 = vsub.s32 0, %v2494
  %v2496 = vrot.slane %v2419, %v2495
  %v2497 = vlaneseq
  %v2498 = vshrl.u32 %v2497, 7
  %v2499 = vsub.s32 0, %v2498
  %v2500 = vrot.slane %v2420, %v2499
  %v2501 = vmul.f32 %v2472, %v2190
  %v2502 = vmul.f32 %v2476, %v2190
  %v2503 = vmul.f32 %v2480, %v2190
  %v2504 = vmul.f32 %v2484, %v2190
  %v2505 = vmul.f32 %v2488, %v2190
  %v2506 = vmul.f32 %v2492, %v2190
  %v2507 = vmul.f32 %v2496, %v2190
  %v2508 = vmul.f32 %v2500, %v2190
  %v2509 = vsub.f32 %v2461, %v2501
  %v2510 = vsub.f32 %v2462, %v2502
  %v2511 = vsub.f32 %v2463, %v2503
  %v2512 = vsub.f32 %v2464, %v2504
  %v2513 = vsub.f32 %v2465, %v2505
  %v2514 = vsub.f32 %v2466, %v2506
  %v2515 = vsub.f32 %v2467, %v2507
  %v2516 = vsub.f32 %v2468, %v2508
  %v2517 = vmul.f32 %v2472, %v2188
  %v2518 = vmul.f32 %v2476, %v2188
  %v2519 = vmul.f32 %v2480, %v2188
  %v2520 = vmul.f32 %v2484, %v2188
  %v2521 = vmul.f32 %v2488, %v2188
  %v2522 = vmul.f32 %v2492, %v2188
  %v2523 = vmul.f32 %v2496, %v2188
  %v2524 = vmul.f32 %v2500, %v2188
  %v2525 = vadd.f32 %v2179, %v2517
  %v2526 = vadd.f32 %v2180, %v2518
  %v2527 = vadd.f32 %v2181, %v2519
  %v2528 = vadd.f32 %v2182, %v2520
  %v2529 = vadd.f32 %v2183, %v2521
  %v2530 = vadd.f32 %v2184, %v2522
  %v2531 = vadd.f32 %v2185, %v2523
  %v2532 = vadd.f32 %v2186, %v2524
  %v2533 = vmul.f32 %v2424, %v2190
  %v2534 = vmul.f32 %v2428, %v2190
  %v2535 = vmul.f32 %v2432, %v2190
  %v2536 = vmul.f32 %v2436, %v2190
  %v2537 = vmul.f32 %v2440, %v2190
  %v2538 = vmul.f32 %v2444, %v2190
  %v2539 = vmul.f32 %v2448, %v2190
  %v2540 = vmul.f32 %v2452, %v2190
  %v2541 = vadd.f32 %v2525, %v2533
  %v2542 = vadd.f32 %v2526, %v2534
  %v2543 = vadd.f32 %v2527, %v2535
  %v2544 = vadd.f32 %v2528, %v2536
  %v2545 = vadd.f32 %v2529, %v2537
  %v2546 = vadd.f32 %v2530, %v2538
  %v2547 = vadd.f32 %v2531, %v2539
  %v2548 = vadd.f32 %v2532, %v2540
  %s2549 = scalar_lea.vmem %s0, 14
  %v2550 = vld [vmem:[%s2549] sm:$0x3]
  %s2551 = scalar_lea.vmem %s1, 14
  %v2552 = vld [vmem:[%s2551] sm:$0x3]
  %s2553 = scalar_lea.vmem %s2, 28
  %v2554 = vld [vmem:[%s2553] sm:$0xf]
  %v2557 = vunpack.c.l.s4 1966171168
  %v2558 = vunpack.c.0.s8 %v2557
  %v2559 = vlaneseq
  %v2560 = vshrl.u32 %v2559, 7
  %v2561 = vsub.s32 %v2558, %v2560
  %v2562 = vrot.slane %v2554, %v2561
  %v2563 = vcombine.high %v2562, %v2562
  %v2565 = vunpack.c.l.s4 1966171168
  %v2566 = vunpack.c.0.s8 %v2565
  %v2567 = vlaneseq
  %v2568 = vshrl.u32 %v2567, 7
  %v2569 = vsub.s32 %v2566, %v2568
  %v2570 = vrot.slane %v2562, %v2569
  %v2572 = vunpack.c.l.s4 1966171168
  %v2573 = vunpack.c.0.s8 %v2572
  %v2574 = vlaneseq
  %v2575 = vshrl.u32 %v2574, 7
  %v2576 = vsub.s32 %v2573, %v2575
  %v2577 = vrot.slane %v2563, %v2576
  %v2578 = vcombine.high %v2570, %v2570
  %v2579 = vcombine.high %v2577, %v2577
  %v2580 = vunpack.i.l.s16 %v2570
  %v2581 = vunpack.i.h.s16 %v2570
  %v2582 = vunpack.i.l.s16 %v2577
  %v2583 = vunpack.i.h.s16 %v2577
  %v2584 = vunpack.i.l.s16 %v2578
  %v2585 = vunpack.i.h.s16 %v2578
  %v2586 = vunpack.i.l.s16 %v2579
  %v2587 = vunpack.i.h.s16 %v2579
  %v2588 = vpack.i.b16 %v2580, %v2580
  %v2589 = vpack.i.b16 %v2581, %v2581
  %v2590 = vpack.i.b16 %v2582, %v2582
  %v2591 = vpack.i.b16 %v2583, %v2583
  %v2592 = vpack.i.b16 %v2584, %v2584
  %v2593 = vpack.i.b16 %v2585, %v2585
  %v2594 = vpack.i.b16 %v2586, %v2586
  %v2595 = vpack.i.b16 %v2587, %v2587
  %v2597 = vunpack.c.l.s4 286326784
  %v2598 = vunpack.c.0.s8 %v2597
  %v2599 = vlaneseq
  %v2600 = vshrl.u32 %v2599, 7
  %v2601 = vsub.s32 %v2598, %v2600
  %v2602 = vrot.slane %v2588, %v2601
  %v2604 = vunpack.c.l.s4 286326784
  %v2605 = vunpack.c.0.s8 %v2604
  %v2606 = vlaneseq
  %v2607 = vshrl.u32 %v2606, 7
  %v2608 = vsub.s32 %v2605, %v2607
  %v2609 = vrot.slane %v2589, %v2608
  %v2611 = vunpack.c.l.s4 286326784
  %v2612 = vunpack.c.0.s8 %v2611
  %v2613 = vlaneseq
  %v2614 = vshrl.u32 %v2613, 7
  %v2615 = vsub.s32 %v2612, %v2614
  %v2616 = vrot.slane %v2590, %v2615
  %v2618 = vunpack.c.l.s4 286326784
  %v2619 = vunpack.c.0.s8 %v2618
  %v2620 = vlaneseq
  %v2621 = vshrl.u32 %v2620, 7
  %v2622 = vsub.s32 %v2619, %v2621
  %v2623 = vrot.slane %v2591, %v2622
  %v2625 = vunpack.c.l.s4 286326784
  %v2626 = vunpack.c.0.s8 %v2625
  %v2627 = vlaneseq
  %v2628 = vshrl.u32 %v2627, 7
  %v2629 = vsub.s32 %v2626, %v2628
  %v2630 = vrot.slane %v2592, %v2629
  %v2632 = vunpack.c.l.s4 286326784
  %v2633 = vunpack.c.0.s8 %v2632
  %v2634 = vlaneseq
  %v2635 = vshrl.u32 %v2634, 7
  %v2636 = vsub.s32 %v2633, %v2635
  %v2637 = vrot.slane %v2593, %v2636
  %v2639 = vunpack.c.l.s4 286326784
  %v2640 = vunpack.c.0.s8 %v2639
  %v2641 = vlaneseq
  %v2642 = vshrl.u32 %v2641, 7
  %v2643 = vsub.s32 %v2640, %v2642
  %v2644 = vrot.slane %v2594, %v2643
  %v2646 = vunpack.c.l.s4 286326784
  %v2647 = vunpack.c.0.s8 %v2646
  %v2648 = vlaneseq
  %v2649 = vshrl.u32 %v2648, 7
  %v2650 = vsub.s32 %v2647, %v2649
  %v2651 = vrot.slane %v2595, %v2650
  %v2660 = vunpack.c.l.bf16 %v2602
  %v2661 = vunpack.c.l.bf16 %v2609
  %v2662 = vunpack.c.l.bf16 %v2616
  %v2663 = vunpack.c.l.bf16 %v2623
  %v2664 = vunpack.c.l.bf16 %v2630
  %v2665 = vunpack.c.l.bf16 %v2637
  %v2666 = vunpack.c.l.bf16 %v2644
  %v2667 = vunpack.c.l.bf16 %v2651
  %s2668 = scalar_lea.vmem %s3, 28
  %v2669 = vld [vmem:[%s2668] sm:$0xf]
  %v2672 = vunpack.c.l.s4 1966171168
  %v2673 = vunpack.c.0.s8 %v2672
  %v2674 = vlaneseq
  %v2675 = vshrl.u32 %v2674, 7
  %v2676 = vsub.s32 %v2673, %v2675
  %v2677 = vrot.slane %v2669, %v2676
  %v2678 = vcombine.high %v2677, %v2677
  %v2680 = vunpack.c.l.s4 1966171168
  %v2681 = vunpack.c.0.s8 %v2680
  %v2682 = vlaneseq
  %v2683 = vshrl.u32 %v2682, 7
  %v2684 = vsub.s32 %v2681, %v2683
  %v2685 = vrot.slane %v2677, %v2684
  %v2687 = vunpack.c.l.s4 1966171168
  %v2688 = vunpack.c.0.s8 %v2687
  %v2689 = vlaneseq
  %v2690 = vshrl.u32 %v2689, 7
  %v2691 = vsub.s32 %v2688, %v2690
  %v2692 = vrot.slane %v2678, %v2691
  %v2693 = vcombine.high %v2685, %v2685
  %v2694 = vcombine.high %v2692, %v2692
  %v2695 = vunpack.i.l.s16 %v2685
  %v2696 = vunpack.i.h.s16 %v2685
  %v2697 = vunpack.i.l.s16 %v2692
  %v2698 = vunpack.i.h.s16 %v2692
  %v2699 = vunpack.i.l.s16 %v2693
  %v2700 = vunpack.i.h.s16 %v2693
  %v2701 = vunpack.i.l.s16 %v2694
  %v2702 = vunpack.i.h.s16 %v2694
  %v2703 = vpack.i.b16 %v2695, %v2695
  %v2704 = vpack.i.b16 %v2696, %v2696
  %v2705 = vpack.i.b16 %v2697, %v2697
  %v2706 = vpack.i.b16 %v2698, %v2698
  %v2707 = vpack.i.b16 %v2699, %v2699
  %v2708 = vpack.i.b16 %v2700, %v2700
  %v2709 = vpack.i.b16 %v2701, %v2701
  %v2710 = vpack.i.b16 %v2702, %v2702
  %v2712 = vunpack.c.l.s4 286326784
  %v2713 = vunpack.c.0.s8 %v2712
  %v2714 = vlaneseq
  %v2715 = vshrl.u32 %v2714, 7
  %v2716 = vsub.s32 %v2713, %v2715
  %v2717 = vrot.slane %v2703, %v2716
  %v2719 = vunpack.c.l.s4 286326784
  %v2720 = vunpack.c.0.s8 %v2719
  %v2721 = vlaneseq
  %v2722 = vshrl.u32 %v2721, 7
  %v2723 = vsub.s32 %v2720, %v2722
  %v2724 = vrot.slane %v2704, %v2723
  %v2726 = vunpack.c.l.s4 286326784
  %v2727 = vunpack.c.0.s8 %v2726
  %v2728 = vlaneseq
  %v2729 = vshrl.u32 %v2728, 7
  %v2730 = vsub.s32 %v2727, %v2729
  %v2731 = vrot.slane %v2705, %v2730
  %v2733 = vunpack.c.l.s4 286326784
  %v2734 = vunpack.c.0.s8 %v2733
  %v2735 = vlaneseq
  %v2736 = vshrl.u32 %v2735, 7
  %v2737 = vsub.s32 %v2734, %v2736
  %v2738 = vrot.slane %v2706, %v2737
  %v2740 = vunpack.c.l.s4 286326784
  %v2741 = vunpack.c.0.s8 %v2740
  %v2742 = vlaneseq
  %v2743 = vshrl.u32 %v2742, 7
  %v2744 = vsub.s32 %v2741, %v2743
  %v2745 = vrot.slane %v2707, %v2744
  %v2747 = vunpack.c.l.s4 286326784
  %v2748 = vunpack.c.0.s8 %v2747
  %v2749 = vlaneseq
  %v2750 = vshrl.u32 %v2749, 7
  %v2751 = vsub.s32 %v2748, %v2750
  %v2752 = vrot.slane %v2708, %v2751
  %v2754 = vunpack.c.l.s4 286326784
  %v2755 = vunpack.c.0.s8 %v2754
  %v2756 = vlaneseq
  %v2757 = vshrl.u32 %v2756, 7
  %v2758 = vsub.s32 %v2755, %v2757
  %v2759 = vrot.slane %v2709, %v2758
  %v2761 = vunpack.c.l.s4 286326784
  %v2762 = vunpack.c.0.s8 %v2761
  %v2763 = vlaneseq
  %v2764 = vshrl.u32 %v2763, 7
  %v2765 = vsub.s32 %v2762, %v2764
  %v2766 = vrot.slane %v2710, %v2765
  %v2775 = vunpack.c.l.bf16 %v2717
  %v2776 = vunpack.c.l.bf16 %v2724
  %v2777 = vunpack.c.l.bf16 %v2731
  %v2778 = vunpack.c.l.bf16 %v2738
  %v2779 = vunpack.c.l.bf16 %v2745
  %v2780 = vunpack.c.l.bf16 %v2752
  %v2781 = vunpack.c.l.bf16 %v2759
  %v2782 = vunpack.c.l.bf16 %v2766
  %v2783 = vlaneseq
  %v2784 = vshrl.u32 %v2783, 7
  %v2785 = vsub.s32 0, %v2784
  %v2786 = vrot.slane %v2660, %v2785
  %v2787 = vlaneseq
  %v2788 = vshrl.u32 %v2787, 7
  %v2789 = vsub.s32 0, %v2788
  %v2790 = vrot.slane %v2661, %v2789
  %v2791 = vlaneseq
  %v2792 = vshrl.u32 %v2791, 7
  %v2793 = vsub.s32 0, %v2792
  %v2794 = vrot.slane %v2662, %v2793
  %v2795 = vlaneseq
  %v2796 = vshrl.u32 %v2795, 7
  %v2797 = vsub.s32 0, %v2796
  %v2798 = vrot.slane %v2663, %v2797
  %v2799 = vlaneseq
  %v2800 = vshrl.u32 %v2799, 7
  %v2801 = vsub.s32 0, %v2800
  %v2802 = vrot.slane %v2664, %v2801
  %v2803 = vlaneseq
  %v2804 = vshrl.u32 %v2803, 7
  %v2805 = vsub.s32 0, %v2804
  %v2806 = vrot.slane %v2665, %v2805
  %v2807 = vlaneseq
  %v2808 = vshrl.u32 %v2807, 7
  %v2809 = vsub.s32 0, %v2808
  %v2810 = vrot.slane %v2666, %v2809
  %v2811 = vlaneseq
  %v2812 = vshrl.u32 %v2811, 7
  %v2813 = vsub.s32 0, %v2812
  %v2814 = vrot.slane %v2667, %v2813
  %v2815 = vmul.f32 %v2786, %v2550
  %v2816 = vmul.f32 %v2790, %v2550
  %v2817 = vmul.f32 %v2794, %v2550
  %v2818 = vmul.f32 %v2798, %v2550
  %v2819 = vmul.f32 %v2802, %v2550
  %v2820 = vmul.f32 %v2806, %v2550
  %v2821 = vmul.f32 %v2810, %v2550
  %v2822 = vmul.f32 %v2814, %v2550
  %v2823 = vadd.f32 %v2509, %v2815
  %v2824 = vadd.f32 %v2510, %v2816
  %v2825 = vadd.f32 %v2511, %v2817
  %v2826 = vadd.f32 %v2512, %v2818
  %v2827 = vadd.f32 %v2513, %v2819
  %v2828 = vadd.f32 %v2514, %v2820
  %v2829 = vadd.f32 %v2515, %v2821
  %v2830 = vadd.f32 %v2516, %v2822
  %v2831 = vlaneseq
  %v2832 = vshrl.u32 %v2831, 7
  %v2833 = vsub.s32 0, %v2832
  %v2834 = vrot.slane %v2775, %v2833
  %v2835 = vlaneseq
  %v2836 = vshrl.u32 %v2835, 7
  %v2837 = vsub.s32 0, %v2836
  %v2838 = vrot.slane %v2776, %v2837
  %v2839 = vlaneseq
  %v2840 = vshrl.u32 %v2839, 7
  %v2841 = vsub.s32 0, %v2840
  %v2842 = vrot.slane %v2777, %v2841
  %v2843 = vlaneseq
  %v2844 = vshrl.u32 %v2843, 7
  %v2845 = vsub.s32 0, %v2844
  %v2846 = vrot.slane %v2778, %v2845
  %v2847 = vlaneseq
  %v2848 = vshrl.u32 %v2847, 7
  %v2849 = vsub.s32 0, %v2848
  %v2850 = vrot.slane %v2779, %v2849
  %v2851 = vlaneseq
  %v2852 = vshrl.u32 %v2851, 7
  %v2853 = vsub.s32 0, %v2852
  %v2854 = vrot.slane %v2780, %v2853
  %v2855 = vlaneseq
  %v2856 = vshrl.u32 %v2855, 7
  %v2857 = vsub.s32 0, %v2856
  %v2858 = vrot.slane %v2781, %v2857
  %v2859 = vlaneseq
  %v2860 = vshrl.u32 %v2859, 7
  %v2861 = vsub.s32 0, %v2860
  %v2862 = vrot.slane %v2782, %v2861
  %v2863 = vmul.f32 %v2834, %v2552
  %v2864 = vmul.f32 %v2838, %v2552
  %v2865 = vmul.f32 %v2842, %v2552
  %v2866 = vmul.f32 %v2846, %v2552
  %v2867 = vmul.f32 %v2850, %v2552
  %v2868 = vmul.f32 %v2854, %v2552
  %v2869 = vmul.f32 %v2858, %v2552
  %v2870 = vmul.f32 %v2862, %v2552
  %v2871 = vsub.f32 %v2823, %v2863
  %v2872 = vsub.f32 %v2824, %v2864
  %v2873 = vsub.f32 %v2825, %v2865
  %v2874 = vsub.f32 %v2826, %v2866
  %v2875 = vsub.f32 %v2827, %v2867
  %v2876 = vsub.f32 %v2828, %v2868
  %v2877 = vsub.f32 %v2829, %v2869
  %v2878 = vsub.f32 %v2830, %v2870
  %v2879 = vmul.f32 %v2834, %v2550
  %v2880 = vmul.f32 %v2838, %v2550
  %v2881 = vmul.f32 %v2842, %v2550
  %v2882 = vmul.f32 %v2846, %v2550
  %v2883 = vmul.f32 %v2850, %v2550
  %v2884 = vmul.f32 %v2854, %v2550
  %v2885 = vmul.f32 %v2858, %v2550
  %v2886 = vmul.f32 %v2862, %v2550
  %v2887 = vadd.f32 %v2541, %v2879
  %v2888 = vadd.f32 %v2542, %v2880
  %v2889 = vadd.f32 %v2543, %v2881
  %v2890 = vadd.f32 %v2544, %v2882
  %v2891 = vadd.f32 %v2545, %v2883
  %v2892 = vadd.f32 %v2546, %v2884
  %v2893 = vadd.f32 %v2547, %v2885
  %v2894 = vadd.f32 %v2548, %v2886
  %v2895 = vmul.f32 %v2786, %v2552
  %v2896 = vmul.f32 %v2790, %v2552
  %v2897 = vmul.f32 %v2794, %v2552
  %v2898 = vmul.f32 %v2798, %v2552
  %v2899 = vmul.f32 %v2802, %v2552
  %v2900 = vmul.f32 %v2806, %v2552
  %v2901 = vmul.f32 %v2810, %v2552
  %v2902 = vmul.f32 %v2814, %v2552
  %v2903 = vadd.f32 %v2887, %v2895
  %v2904 = vadd.f32 %v2888, %v2896
  %v2905 = vadd.f32 %v2889, %v2897
  %v2906 = vadd.f32 %v2890, %v2898
  %v2907 = vadd.f32 %v2891, %v2899
  %v2908 = vadd.f32 %v2892, %v2900
  %v2909 = vadd.f32 %v2893, %v2901
  %v2910 = vadd.f32 %v2894, %v2902
  %2911 = vst [vmem:[%s4] sm:$0x3] %v2871
  %2912 = vst [vmem:[%s4 + $0x2] sm:$0x3] %v2872
  %2913 = vst [vmem:[%s4 + $0x4] sm:$0x3] %v2873
  %2914 = vst [vmem:[%s4 + $0x6] sm:$0x3] %v2874
  %2915 = vst [vmem:[%s4 + $0x8] sm:$0x3] %v2875
  %2916 = vst [vmem:[%s4 + $0xa] sm:$0x3] %v2876
  %2917 = vst [vmem:[%s4 + $0xc] sm:$0x3] %v2877
  %2918 = vst [vmem:[%s4 + $0xe] sm:$0x3] %v2878
  %2919 = vst [vmem:[%s5] sm:$0x3] %v2903
  %2920 = vst [vmem:[%s5 + $0x2] sm:$0x3] %v2904
  %2921 = vst [vmem:[%s5 + $0x4] sm:$0x3] %v2905
  %2922 = vst [vmem:[%s5 + $0x6] sm:$0x3] %v2906
  %2923 = vst [vmem:[%s5 + $0x8] sm:$0x3] %v2907
  %2924 = vst [vmem:[%s5 + $0xa] sm:$0x3] %v2908
  %2925 = vst [vmem:[%s5 + $0xc] sm:$0x3] %v2909
  %2926 = vst [vmem:[%s5 + $0xe] sm:$0x3] %v2910
  // Predicated region
  $region18: #{fno3d_forward.7} parent=0 // pred_check
    _
  $region19: #{fno3d_forward.7} parent=0 // pred_check_branch
    %2928 = sbr.rel (0) target = $region21
  $region20: #{fno3d_forward.7} parent=0 // pred_region
    _
  $region21: #{fno3d_forward.7} parent=0 // pred_fallthru
    _
  // Predicated region
  $region22: #{fno3d_forward.7} parent=0 // pred_check
    _
  $region23: #{fno3d_forward.7} parent=0 // pred_check_branch
    %2930 = sbr.rel (0) target = $region25
  $region24: #{fno3d_forward.7} parent=0 // pred_region
    _
  $region25: #{fno3d_forward.7} parent=0 // pred_fallthru
    _
  // Predicated region
  $region26: #{fno3d_forward.7} parent=0 // pred_check
    _
  $region27: #{fno3d_forward.7} parent=0 // pred_check_branch
    %2932 = sbr.rel (0) target = $region29
  $region28: #{fno3d_forward.7} parent=0 // pred_region
    _
  $region29: #{fno3d_forward.7} parent=0 // pred_fallthru
    _
  // Predicated region
  $region30: #{fno3d_forward.7} parent=0 // pred_check
    _
  $region31: #{fno3d_forward.7} parent=0 // pred_check_branch
    %2934 = sbr.rel (0) target = $region33
  $region32: #{fno3d_forward.7} parent=0 // pred_region
    _
  $region33: #{fno3d_forward.7} parent=0 // pred_fallthru
    _

// kernel: fno3d_forward.8
$region0: #{fno3d_forward.8}
  #allocation0 [shape = 'u32[]', space=smem, size = 0x4, offset = 0x4, fixed_abs, tag = 'smem constant byte address 0x4 - core index']
  #allocation1 [shape = 'u32[144,128]{1,0:T(1,128)}', space=vmem, size = 0x12000, scoped, tag = 'internal scratch']
  %s0 = inlined_call_operand.vmem [shape: bf16[8,4096], index: 0, kind: input, shape index: {}]
  %s1 = inlined_call_operand.vmem [shape: bf16[8,4096], index: 1, kind: input, shape index: {}]
  %s2 = inlined_call_operand.vmem [shape: bf16[8,8], index: 2, kind: input, shape index: {}]
  %s3 = inlined_call_operand.vmem [shape: f32[8,1], index: 3, kind: input, shape index: {}]
  %s4 = inlined_call_operand.vmem [shape: bf16[8,4096], index: 4, kind: output, shape index: {}]
  %s5 = sld [smem:[#allocation0]]
  $region49: #{fno3d_forward.8} parent=0
    _
  %s7 = ssub.s32 1, %s5
  %s8 = scalar_select 0, %s7, %s5
  loop: start=0, step=1, limit=4
  $region2: #{fno3d_forward.8} parent=0 // loop_pre_header
    _
  $region3: #{fno3d_forward.8} parent=0 // loop_header
    %s10 = sphi 0, %s14
    %p11 = scmp.ge.s32.totalorder %s10, 4
    %s20 = sphi 0, %s22
    %s23 = sphi 0, %s20
    %s24 = sphi 0, %s23
    %s40 = sphi 0, %s24
    %s46 = sphi 0, %s48
    %s49 = sphi 0, %s46
    %s50 = sphi 0, %s49
    %s66 = sphi 0, %s50
    %s70 = sphi 0, %s70
    %s72 = sphi 0, %s70
    %s73 = sphi 0, %s72
    %s87 = sphi 0, %s73
    %s91 = sphi 0, %s91
    %s93 = sphi 0, %s91
    %s94 = sphi 0, %s93
    %s108 = sphi 0, %s94
    %s114 = sphi 0, %s116
    %s117 = sphi 0, %s114
    %s118 = sphi 0, %s117
    %s134 = sphi 0, %s118
  $region4: #{fno3d_forward.8} parent=0 // loop_header_branch
    %13 = sbr.rel (%p11) target = $region8
  $region5: #{fno3d_forward.8} parent=0 // loop_body
    %s15 = ssub.s32 %s10, 1
    %s16 = ssub.s32 %s10, 2
    %s17 = sadd.s32 %s10, 1
    %s18 = ssub.s32 %s10, %s17
    %p19 = scmp.eq.s32.totalorder %s18, 0
    %s21 = sadd.s32 %s20, 1
    %s22 = scalar_select %p19, %s20, %s21
    %p25 = pneg %p19
    %p26 = scmp.eq.s32.totalorder %s10, 1
    %p27 = por %p25, %p26
    %p28 = scmp.ne.s32.totalorder %s20, %s23
    %p29 = scmp.eq.s32.totalorder %s10, 0
    %p30 = por %p28, %p29
    %p31 = scmp.ne.s32.totalorder %s20, %s23
    %p32 = scmp.eq.s32.totalorder %s15, 1
    %p33 = por %p31, %p32
    %p34 = scmp.ne.s32.totalorder %s23, %s24
    %p35 = scmp.eq.s32.totalorder %s15, 0
    %p36 = por %p34, %p35
    %p37 = scmp.ne.s32.totalorder %s23, %s24
    %p38 = scmp.eq.s32.totalorder %s16, 1
    %p39 = por %p37, %p38
    %p41 = scmp.ne.s32.totalorder %s24, %s40
    %p42 = scmp.eq.s32.totalorder %s16, 0
    %p43 = por %p41, %p42
    %s44 = ssub.s32 %s10, %s17
    %p45 = scmp.eq.s32.totalorder %s44, 0
    %s47 = sadd.s32 %s46, 1
    %s48 = scalar_select %p45, %s46, %s47
    %p51 = pneg %p45
    %p52 = scmp.eq.s32.totalorder %s10, 1
    %p53 = por %p51, %p52
    %p54 = scmp.ne.s32.totalorder %s46, %s49
    %p55 = scmp.eq.s32.totalorder %s10, 0
    %p56 = por %p54, %p55
    %p57 = scmp.ne.s32.totalorder %s46, %s49
    %p58 = scmp.eq.s32.totalorder %s15, 1
    %p59 = por %p57, %p58
    %p60 = scmp.ne.s32.totalorder %s49, %s50
    %p61 = scmp.eq.s32.totalorder %s15, 0
    %p62 = por %p60, %p61
    %p63 = scmp.ne.s32.totalorder %s49, %s50
    %p64 = scmp.eq.s32.totalorder %s16, 1
    %p65 = por %p63, %p64
    %p67 = scmp.ne.s32.totalorder %s50, %s66
    %p68 = scmp.eq.s32.totalorder %s16, 0
    %p69 = por %p67, %p68
    %s71 = sadd.s32 %s70, 1
    %p74 = scmp.eq.s32.totalorder %s10, 1
    %p75 = scmp.ne.s32.totalorder %s70, %s72
    %p76 = scmp.eq.s32.totalorder %s10, 0
    %p77 = por %p75, %p76
    %p78 = scmp.ne.s32.totalorder %s70, %s72
    %p79 = scmp.eq.s32.totalorder %s15, 1
    %p80 = por %p78, %p79
    %p81 = scmp.ne.s32.totalorder %s72, %s73
    %p82 = scmp.eq.s32.totalorder %s15, 0
    %p83 = por %p81, %p82
    %p84 = scmp.ne.s32.totalorder %s72, %s73
    %p85 = scmp.eq.s32.totalorder %s16, 1
    %p86 = por %p84, %p85
    %p88 = scmp.ne.s32.totalorder %s73, %s87
    %p89 = scmp.eq.s32.totalorder %s16, 0
    %p90 = por %p88, %p89
    %s92 = sadd.s32 %s91, 1
    %p95 = scmp.eq.s32.totalorder %s10, 1
    %p96 = scmp.ne.s32.totalorder %s91, %s93
    %p97 = scmp.eq.s32.totalorder %s10, 0
    %p98 = por %p96, %p97
    %p99 = scmp.ne.s32.totalorder %s91, %s93
    %p100 = scmp.eq.s32.totalorder %s15, 1
    %p101 = por %p99, %p100
    %p102 = scmp.ne.s32.totalorder %s93, %s94
    %p103 = scmp.eq.s32.totalorder %s15, 0
    %p104 = por %p102, %p103
    %p105 = scmp.ne.s32.totalorder %s93, %s94
    %p106 = scmp.eq.s32.totalorder %s16, 1
    %p107 = por %p105, %p106
    %p109 = scmp.ne.s32.totalorder %s94, %s108
    %p110 = scmp.eq.s32.totalorder %s16, 0
    %p111 = por %p109, %p110
    %s112 = ssub.s32 %s10, %s17
    %p113 = scmp.eq.s32.totalorder %s112, 0
    %s115 = sadd.s32 %s114, 1
    %s116 = scalar_select %p113, %s114, %s115
    %p119 = pneg %p113
    %p120 = scmp.eq.s32.totalorder %s10, 1
    %p121 = por %p119, %p120
    %p122 = scmp.ne.s32.totalorder %s114, %s117
    %p123 = scmp.eq.s32.totalorder %s10, 0
    %p124 = por %p122, %p123
    %p125 = scmp.ne.s32.totalorder %s114, %s117
    %p126 = scmp.eq.s32.totalorder %s15, 1
    %p127 = por %p125, %p126
    %p128 = scmp.ne.s32.totalorder %s117, %s118
    %p129 = scmp.eq.s32.totalorder %s15, 0
    %p130 = por %p128, %p129
    %p131 = scmp.ne.s32.totalorder %s117, %s118
    %p132 = scmp.eq.s32.totalorder %s16, 1
    %p133 = por %p131, %p132
    %p135 = scmp.ne.s32.totalorder %s118, %s134
    %p136 = scmp.eq.s32.totalorder %s16, 0
    %p137 = por %p135, %p136
    %p138 = scmp.le.s32.totalorder 1, %s10
    %p139 = scmp.lt.s32.totalorder %s10, 3
    %p140 = pnand %p138, %p139
    %p141 = pneg %p140
    // Predicated region
    $region9: #{fno3d_forward.8} parent=5 // pred_check
      _
    $region10: #{fno3d_forward.8} parent=5 // pred_check_branch
      %143 = sbr.rel (%p140) target = $region12
    $region11: #{fno3d_forward.8} parent=5 // pred_region
      %s144 = ssub.s32 %s10, 1
      // Predicated region
      $region13: #{fno3d_forward.8} parent=11 // pred_check
        %p145 = pneg %p83
      $region14: #{fno3d_forward.8} parent=11 // pred_check_branch
        %147 = sbr.rel (%p145) target = $region16
      $region15: #{fno3d_forward.8} parent=11 // pred_region
        _
      $region16: #{fno3d_forward.8} parent=11 // pred_fallthru
        _
      // Predicated region
      $region17: #{fno3d_forward.8} parent=11 // pred_check
        %p148 = pneg %p104
      $region18: #{fno3d_forward.8} parent=11 // pred_check_branch
        %150 = sbr.rel (%p148) target = $region20
      $region19: #{fno3d_forward.8} parent=11 // pred_region
        _
      $region20: #{fno3d_forward.8} parent=11 // pred_fallthru
        _
    $region12: #{fno3d_forward.8} parent=5 // pred_fallthru
      _
    %p151 = scmp.lt.s32.totalorder %s10, 2
    // Predicated region
    $region21: #{fno3d_forward.8} parent=5 // pred_check
      %p152 = pneg %p151
    $region22: #{fno3d_forward.8} parent=5 // pred_check_branch
      %154 = sbr.rel (%p152) target = $region24
    $region23: #{fno3d_forward.8} parent=5 // pred_region
      // Predicated region
      $region25: #{fno3d_forward.8} parent=23 // pred_check
        %p155 = pneg %p30
      $region26: #{fno3d_forward.8} parent=23 // pred_check_branch
        %157 = sbr.rel (%p155) target = $region28
      $region27: #{fno3d_forward.8} parent=23 // pred_region
        %s158 = smul.u32 16, %s10
        %p159 = scmp.lt.s32.totalorder %s158, 31
        %s160 = scalar_select %p159, %s158, 31
        %s161 = smul.addr %s160, 4
        %s162 = scalar_lea.vmem %s0, %s161
        %s163 = smul.u32 16, %s10
      $region28: #{fno3d_forward.8} parent=23 // pred_fallthru
        _
      // Predicated region
      $region29: #{fno3d_forward.8} parent=23 // pred_check
        %p164 = pneg %p56
      $region30: #{fno3d_forward.8} parent=23 // pred_check_branch
        %166 = sbr.rel (%p164) target = $region32
      $region31: #{fno3d_forward.8} parent=23 // pred_region
        %s167 = smul.u32 16, %s10
        %p168 = scmp.lt.s32.totalorder %s167, 31
        %s169 = scalar_select %p168, %s167, 31
        %s170 = smul.addr %s169, 4
        %s171 = scalar_lea.vmem %s1, %s170
        %s172 = smul.u32 16, %s10
      $region32: #{fno3d_forward.8} parent=23 // pred_fallthru
        _
    $region24: #{fno3d_forward.8} parent=5 // pred_fallthru
      _
    %p173 = scmp.le.s32.totalorder 1, %s10
    %p174 = scmp.lt.s32.totalorder %s10, 3
    %p175 = pnand %p173, %p174
    %p176 = pneg %p175
    // Predicated region
    $region33: #{fno3d_forward.8} parent=5 // pred_check
      _
    $region34: #{fno3d_forward.8} parent=5 // pred_check_branch
      %178 = sbr.rel (%p175) target = $region36
    $region35: #{fno3d_forward.8} parent=5 // pred_region
      %s179 = ssub.s32 %s10, 1
      %s180 = smul.u32 16, %s15
      %p181 = scmp.lt.s32.totalorder %s180, 31
      %s182 = scalar_select %p181, %s180, 31
      %s183 = smul.addr %s182, 4
      %s184 = scalar_lea.vmem %s0, %s183
      %p185 = pneg %p36
      %p186 = pneg %p33
      %s187 = smul.u32 16, %s15
      %p188 = scmp.lt.s32.totalorder %s187, 31
      %s189 = scalar_select %p188, %s187, 31
      %s190 = smul.addr %s189, 4
      %s191 = scalar_lea.vmem %s1, %s190
      %p192 = pneg %p62
      %p193 = pneg %p59
      %p194 = pneg %p83
      %p195 = pneg %p80
      %p196 = pneg %p104
      %p197 = pneg %p101
      %p198 = pneg %p130
      %p199 = pneg %p127
      %s200 = smul.u32 16, %s15
      %p201 = scmp.lt.s32.totalorder %s200, 31
      %s202 = scalar_select %p201, %s200, 31
      %s203 = smul.addr %s202, 4
      %s204 = scalar_lea.vmem %s4, %s203
      %s205 = smul.u32 16, %s15
      %p206 = scmp.lt.s32.totalorder %s205, 31
      %s207 = scalar_select %p206, %s205, 31
      %s208 = smul.addr %s207, 4
      %s209 = scalar_lea.vmem %s0, %s208
      %s210 = smul.u32 16, %s15
      %s211 = smul.u32 16, %s15
      %p212 = scmp.lt.s32.totalorder %s211, 31
      %s213 = scalar_select %p212, %s211, 31
      %s214 = smul.addr %s213, 4
      %s215 = scalar_lea.vmem %s1, %s214
      %s216 = smul.u32 16, %s15
      %s217 = smul.u32 16, %s15
      %p218 = scmp.lt.s32.totalorder %s217, 31
      %s219 = scalar_select %p218, %s217, 31
      %s220 = smul.addr %s219, 4
      %s221 = scalar_lea.vmem %s4, %s220
      %s222 = smul.u32 16, %s15
      %v224 = vld [vmem:[%s2] sm:$0xf]
      %v225 = vld [vmem:[%s209] sm:$0xff]
      %v226 = vld [vmem:[%s209 + $0x8] sm:$0xff]
      %v227 = vld [vmem:[%s209 + $0x10] sm:$0xff]
      %v228 = vld [vmem:[%s209 + $0x18] sm:$0xff]
      %v229 = vld [vmem:[%s209 + $0x20] sm:$0xff]
      %v230 = vld [vmem:[%s209 + $0x28] sm:$0xff]
      %v231 = vld [vmem:[%s209 + $0x30] sm:$0xff]
      %v232 = vld [vmem:[%s209 + $0x38] sm:$0xff]
      %v233 = vld [vmem:[%s3] sm:$0xff]
      %235 = vset.pattern.permute.xlu0 0
      %236 = vperm.xlu0 %235, %v233
      %v237 = vpop.permute.xlu0 %236
      %v247 = vunpack.c.l.b16 %v225
      %v248 = vunpack.c.h.b16 %v225
      %v249 = vunpack.c.l.b16 %v226
      %v250 = vunpack.c.h.b16 %v226
      %v251 = vunpack.c.l.b16 %v227
      %v252 = vunpack.c.h.b16 %v227
      %v253 = vunpack.c.l.b16 %v228
      %v254 = vunpack.c.h.b16 %v228
      %v255 = vunpack.c.l.b16 %v229
      %v256 = vunpack.c.h.b16 %v229
      %v257 = vunpack.c.l.b16 %v230
      %v258 = vunpack.c.h.b16 %v230
      %v259 = vunpack.c.l.b16 %v231
      %v260 = vunpack.c.h.b16 %v231
      %v261 = vunpack.c.l.b16 %v232
      %v262 = vunpack.c.h.b16 %v232
      %v263 = vpack.c.b16 %v247, %v247
      %v264 = vpack.c.b16 %v248, %v248
      %v265 = vpack.c.b16 %v249, %v249
      %v266 = vpack.c.b16 %v250, %v250
      %v267 = vpack.c.b16 %v251, %v251
      %v268 = vpack.c.b16 %v252, %v252
      %v269 = vpack.c.b16 %v253, %v253
      %v270 = vpack.c.b16 %v254, %v254
      %v271 = vpack.c.b16 %v255, %v255
      %v272 = vpack.c.b16 %v256, %v256
      %v273 = vpack.c.b16 %v257, %v257
      %v274 = vpack.c.b16 %v258, %v258
      %v275 = vpack.c.b16 %v259, %v259
      %v276 = vpack.c.b16 %v260, %v260
      %v277 = vpack.c.b16 %v261, %v261
      %v278 = vpack.c.b16 %v262, %v262
      %vm279 = vcmask 64512
      %v281 = vsel %vm279, %v224, 0
      %vm283 = vcmask 1043456
      %v285 = vsel %vm283, %v263, 0
      %v288 = vsel %vm283, %v264, 0
      %v291 = vsel %vm283, %v265, 0
      %v294 = vsel %vm283, %v266, 0
      %v297 = vsel %vm283, %v267, 0
      %v300 = vsel %vm283, %v268, 0
      %v303 = vsel %vm283, %v269, 0
      %v306 = vsel %vm283, %v270, 0
      %v309 = vsel %vm283, %v271, 0
      %v312 = vsel %vm283, %v272, 0
      %v315 = vsel %vm283, %v273, 0
      %v318 = vsel %vm283, %v274, 0
      %v321 = vsel %vm283, %v275, 0
      %v324 = vsel %vm283, %v276, 0
      %v327 = vsel %vm283, %v277, 0
      %v330 = vsel %vm283, %v278, 0
      %332 = vmatprep.subr.bf16.mxu0 0
      %333 = vmatpush1.bf16.msra.mxu0 0
      %334 = vmatprep.subr.bf16.mxu0 0
      %335 = vmatpush1.bf16.msra.mxu0 0
      %336 = vmatprep.subr.bf16.mxu0 0
      %337 = vmatpush1.bf16.msra.mxu0 0
      %338 = vmatprep.subr.bf16.mxu0 0
      %339 = vmatpush1.bf16.msra.mxu0 0
      %340 = vmatprep.subr.bf16.mxu0 0
      %341 = vmatpush1.bf16.msra.mxu0 0
      %342 = vmatprep.subr.bf16.mxu0 0
      %343 = vmatpush1.bf16.msra.mxu0 0
      %344 = vmatprep.subr.bf16.mxu0 0
      %345 = vmatpush1.bf16.msra.mxu0 0
      %346 = vmatprep.subr.bf16.mxu0 %v288
      %347 = vmatpush1.bf16.msra.mxu0 %v285
      %348 = vmatprep.subr.bf16.mxu0 0
      %349 = vmatpush2.bf16.msra.mxu0 0
      %350 = vmatprep.subr.bf16.mxu0 0
      %351 = vmatpush2.bf16.msra.mxu0 0
      %352 = vmatprep.subr.bf16.mxu0 0
      %353 = vmatpush2.bf16.msra.mxu0 0
      %354 = vmatprep.subr.bf16.mxu0 0
      %355 = vmatpush2.bf16.msra.mxu0 0
      %356 = vmatprep.subr.bf16.mxu0 0
      %357 = vmatpush2.bf16.msra.mxu0 0
      %358 = vmatprep.subr.bf16.mxu0 0
      %359 = vmatpush2.bf16.msra.mxu0 0
      %360 = vmatprep.subr.bf16.mxu0 0
      %361 = vmatpush2.bf16.msra.mxu0 0
      %362 = vmatprep.subr.bf16.mxu0 0
      %363 = vmatpush2.bf16.msra.mxu0 0
      %364 = vmatprep.mubr.bf16.mxu0 0
      %365 = vmatmul.mubr.bf16.gmra.mxu0 %v281
      %v366 = vpop.f32.mrf.mxu0
      %v367 = vadd.f32 %v237, %v366
      %v368 = vpop.f32.mrf.mxu0
      %v369 = vadd.f32 %v237, %v368
      %v370 = vpop.f32.mrf.mxu0
      %v371 = vpop.f32.mrf.mxu0
      %372 = vdwg.mxu0
      %373 = vmatprep.subr.bf16.mxu0 0
      %374 = vmatpush1.bf16.msra.mxu0 0
      %375 = vmatprep.subr.bf16.mxu0 0
      %376 = vmatpush1.bf16.msra.mxu0 0
      %377 = vmatprep.subr.bf16.mxu0 0
      %378 = vmatpush1.bf16.msra.mxu0 0
      %379 = vmatprep.subr.bf16.mxu0 0
      %380 = vmatpush1.bf16.msra.mxu0 0
      %381 = vmatprep.subr.bf16.mxu0 0
      %382 = vmatpush1.bf16.msra.mxu0 0
      %383 = vmatprep.subr.bf16.mxu0 0
      %384 = vmatpush1.bf16.msra.mxu0 0
      %385 = vmatprep.subr.bf16.mxu0 0
      %386 = vmatpush1.bf16.msra.mxu0 0
      %387 = vmatprep.subr.bf16.mxu0 %v294
      %388 = vmatpush1.bf16.msra.mxu0 %v291
      %389 = vmatprep.subr.bf16.mxu0 0
      %390 = vmatpush2.bf16.msra.mxu0 0
      %391 = vmatprep.subr.bf16.mxu0 0
      %392 = vmatpush2.bf16.msra.mxu0 0
      %393 = vmatprep.subr.bf16.mxu0 0
      %394 = vmatpush2.bf16.msra.mxu0 0
      %395 = vmatprep.subr.bf16.mxu0 0
      %396 = vmatpush2.bf16.msra.mxu0 0
      %397 = vmatprep.subr.bf16.mxu0 0
      %398 = vmatpush2.bf16.msra.mxu0 0
      %399 = vmatprep.subr.bf16.mxu0 0
      %400 = vmatpush2.bf16.msra.mxu0 0
      %401 = vmatprep.subr.bf16.mxu0 0
      %402 = vmatpush2.bf16.msra.mxu0 0
      %403 = vmatprep.subr.bf16.mxu0 0
      %404 = vmatpush2.bf16.msra.mxu0 0
      %405 = vmatprep.mubr.bf16.mxu0 0
      %406 = vmatmul.mubr.bf16.gmra.mxu0 %v281
      %v407 = vpop.f32.mrf.mxu0
      %v408 = vadd.f32 %v237, %v407
      %v409 = vpop.f32.mrf.mxu0
      %v410 = vadd.f32 %v237, %v409
      %v411 = vpop.f32.mrf.mxu0
      %v412 = vpop.f32.mrf.mxu0
      %413 = vdwg.mxu0
      %414 = vmatprep.subr.bf16.mxu0 0
      %415 = vmatpush1.bf16.msra.mxu0 0
      %416 = vmatprep.subr.bf16.mxu0 0
      %417 = vmatpush1.bf16.msra.mxu0 0
      %418 = vmatprep.subr.bf16.mxu0 0
      %419 = vmatpush1.bf16.msra.mxu0 0
      %420 = vmatprep.subr.bf16.mxu0 0
      %421 = vmatpush1.bf16.msra.mxu0 0
      %422 = vmatprep.subr.bf16.mxu0 0
      %423 = vmatpush1.bf16.msra.mxu0 0
      %424 = vmatprep.subr.bf16.mxu0 0
      %425 = vmatpush1.bf16.msra.mxu0 0
      %426 = vmatprep.subr.bf16.mxu0 0
      %427 = vmatpush1.bf16.msra.mxu0 0
      %428 = vmatprep.subr.bf16.mxu0 %v300
      %429 = vmatpush1.bf16.msra.mxu0 %v297
      %430 = vmatprep.subr.bf16.mxu0 0
      %431 = vmatpush2.bf16.msra.mxu0 0
      %432 = vmatprep.subr.bf16.mxu0 0
      %433 = vmatpush2.bf16.msra.mxu0 0
      %434 = vmatprep.subr.bf16.mxu0 0
      %435 = vmatpush2.bf16.msra.mxu0 0
      %436 = vmatprep.subr.bf16.mxu0 0
      %437 = vmatpush2.bf16.msra.mxu0 0
      %438 = vmatprep.subr.bf16.mxu0 0
      %439 = vmatpush2.bf16.msra.mxu0 0
      %440 = vmatprep.subr.bf16.mxu0 0
      %441 = vmatpush2.bf16.msra.mxu0 0
      %442 = vmatprep.subr.bf16.mxu0 0
      %443 = vmatpush2.bf16.msra.mxu0 0
      %444 = vmatprep.subr.bf16.mxu0 0
      %445 = vmatpush2.bf16.msra.mxu0 0
      %446 = vmatprep.mubr.bf16.mxu0 0
      %447 = vmatmul.mubr.bf16.gmra.mxu0 %v281
      %v448 = vpop.f32.mrf.mxu0
      %v449 = vadd.f32 %v237, %v448
      %v450 = vpop.f32.mrf.mxu0
      %v451 = vadd.f32 %v237, %v450
      %v452 = vpop.f32.mrf.mxu0
      %v453 = vpop.f32.mrf.mxu0
      %454 = vdwg.mxu0
      %455 = vmatprep.subr.bf16.mxu0 0
      %456 = vmatpush1.bf16.msra.mxu0 0
      %457 = vmatprep.subr.bf16.mxu0 0
      %458 = vmatpush1.bf16.msra.mxu0 0
      %459 = vmatprep.subr.bf16.mxu0 0
      %460 = vmatpush1.bf16.msra.mxu0 0
      %461 = vmatprep.subr.bf16.mxu0 0
      %462 = vmatpush1.bf16.msra.mxu0 0
      %463 = vmatprep.subr.bf16.mxu0 0
      %464 = vmatpush1.bf16.msra.mxu0 0
      %465 = vmatprep.subr.bf16.mxu0 0
      %466 = vmatpush1.bf16.msra.mxu0 0
      %467 = vmatprep.subr.bf16.mxu0 0
      %468 = vmatpush1.bf16.msra.mxu0 0
      %469 = vmatprep.subr.bf16.mxu0 %v306
      %470 = vmatpush1.bf16.msra.mxu0 %v303
      %471 = vmatprep.subr.bf16.mxu0 0
      %472 = vmatpush2.bf16.msra.mxu0 0
      %473 = vmatprep.subr.bf16.mxu0 0
      %474 = vmatpush2.bf16.msra.mxu0 0
      %475 = vmatprep.subr.bf16.mxu0 0
      %476 = vmatpush2.bf16.msra.mxu0 0
      %477 = vmatprep.subr.bf16.mxu0 0
      %478 = vmatpush2.bf16.msra.mxu0 0
      %479 = vmatprep.subr.bf16.mxu0 0
      %480 = vmatpush2.bf16.msra.mxu0 0
      %481 = vmatprep.subr.bf16.mxu0 0
      %482 = vmatpush2.bf16.msra.mxu0 0
      %483 = vmatprep.subr.bf16.mxu0 0
      %484 = vmatpush2.bf16.msra.mxu0 0
      %485 = vmatprep.subr.bf16.mxu0 0
      %486 = vmatpush2.bf16.msra.mxu0 0
      %487 = vmatprep.mubr.bf16.mxu0 0
      %488 = vmatmul.mubr.bf16.gmra.mxu0 %v281
      %v489 = vpop.f32.mrf.mxu0
      %v490 = vadd.f32 %v237, %v489
      %v491 = vpop.f32.mrf.mxu0
      %v492 = vadd.f32 %v237, %v491
      %v493 = vpop.f32.mrf.mxu0
      %v494 = vpop.f32.mrf.mxu0
      %495 = vdwg.mxu0
      %496 = vmatprep.subr.bf16.mxu0 0
      %497 = vmatpush1.bf16.msra.mxu0 0
      %498 = vmatprep.subr.bf16.mxu0 0
      %499 = vmatpush1.bf16.msra.mxu0 0
      %500 = vmatprep.subr.bf16.mxu0 0
      %501 = vmatpush1.bf16.msra.mxu0 0
      %502 = vmatprep.subr.bf16.mxu0 0
      %503 = vmatpush1.bf16.msra.mxu0 0
      %504 = vmatprep.subr.bf16.mxu0 0
      %505 = vmatpush1.bf16.msra.mxu0 0
      %506 = vmatprep.subr.bf16.mxu0 0
      %507 = vmatpush1.bf16.msra.mxu0 0
      %508 = vmatprep.subr.bf16.mxu0 0
      %509 = vmatpush1.bf16.msra.mxu0 0
      %510 = vmatprep.subr.bf16.mxu0 %v312
      %511 = vmatpush1.bf16.msra.mxu0 %v309
      %512 = vmatprep.subr.bf16.mxu0 0
      %513 = vmatpush2.bf16.msra.mxu0 0
      %514 = vmatprep.subr.bf16.mxu0 0
      %515 = vmatpush2.bf16.msra.mxu0 0
      %516 = vmatprep.subr.bf16.mxu0 0
      %517 = vmatpush2.bf16.msra.mxu0 0
      %518 = vmatprep.subr.bf16.mxu0 0
      %519 = vmatpush2.bf16.msra.mxu0 0
      %520 = vmatprep.subr.bf16.mxu0 0
      %521 = vmatpush2.bf16.msra.mxu0 0
      %522 = vmatprep.subr.bf16.mxu0 0
      %523 = vmatpush2.bf16.msra.mxu0 0
      %524 = vmatprep.subr.bf16.mxu0 0
      %525 = vmatpush2.bf16.msra.mxu0 0
      %526 = vmatprep.subr.bf16.mxu0 0
      %527 = vmatpush2.bf16.msra.mxu0 0
      %528 = vmatprep.mubr.bf16.mxu0 0
      %529 = vmatmul.mubr.bf16.gmra.mxu0 %v281
      %v530 = vpop.f32.mrf.mxu0
      %v531 = vadd.f32 %v237, %v530
      %v532 = vpop.f32.mrf.mxu0
      %v533 = vadd.f32 %v237, %v532
      %v534 = vpop.f32.mrf.mxu0
      %v535 = vpop.f32.mrf.mxu0
      %536 = vdwg.mxu0
      %537 = vmatprep.subr.bf16.mxu0 0
      %538 = vmatpush1.bf16.msra.mxu0 0
      %539 = vmatprep.subr.bf16.mxu0 0
      %540 = vmatpush1.bf16.msra.mxu0 0
      %541 = vmatprep.subr.bf16.mxu0 0
      %542 = vmatpush1.bf16.msra.mxu0 0
      %543 = vmatprep.subr.bf16.mxu0 0
      %544 = vmatpush1.bf16.msra.mxu0 0
      %545 = vmatprep.subr.bf16.mxu0 0
      %546 = vmatpush1.bf16.msra.mxu0 0
      %547 = vmatprep.subr.bf16.mxu0 0
      %548 = vmatpush1.bf16.msra.mxu0 0
      %549 = vmatprep.subr.bf16.mxu0 0
      %550 = vmatpush1.bf16.msra.mxu0 0
      %551 = vmatprep.subr.bf16.mxu0 %v318
      %552 = vmatpush1.bf16.msra.mxu0 %v315
      %553 = vmatprep.subr.bf16.mxu0 0
      %554 = vmatpush2.bf16.msra.mxu0 0
      %555 = vmatprep.subr.bf16.mxu0 0
      %556 = vmatpush2.bf16.msra.mxu0 0
      %557 = vmatprep.subr.bf16.mxu0 0
      %558 = vmatpush2.bf16.msra.mxu0 0
      %559 = vmatprep.subr.bf16.mxu0 0
      %560 = vmatpush2.bf16.msra.mxu0 0
      %561 = vmatprep.subr.bf16.mxu0 0
      %562 = vmatpush2.bf16.msra.mxu0 0
      %563 = vmatprep.subr.bf16.mxu0 0
      %564 = vmatpush2.bf16.msra.mxu0 0
      %565 = vmatprep.subr.bf16.mxu0 0
      %566 = vmatpush2.bf16.msra.mxu0 0
      %567 = vmatprep.subr.bf16.mxu0 0
      %568 = vmatpush2.bf16.msra.mxu0 0
      %569 = vmatprep.mubr.bf16.mxu0 0
      %570 = vmatmul.mubr.bf16.gmra.mxu0 %v281
      %v571 = vpop.f32.mrf.mxu0
      %v572 = vadd.f32 %v237, %v571
      %v573 = vpop.f32.mrf.mxu0
      %v574 = vadd.f32 %v237, %v573
      %v575 = vpop.f32.mrf.mxu0
      %v576 = vpop.f32.mrf.mxu0
      %577 = vdwg.mxu0
      %578 = vmatprep.subr.bf16.mxu0 0
      %579 = vmatpush1.bf16.msra.mxu0 0
      %580 = vmatprep.subr.bf16.mxu0 0
      %581 = vmatpush1.bf16.msra.mxu0 0
      %582 = vmatprep.subr.bf16.mxu0 0
      %583 = vmatpush1.bf16.msra.mxu0 0
      %584 = vmatprep.subr.bf16.mxu0 0
      %585 = vmatpush1.bf16.msra.mxu0 0
      %586 = vmatprep.subr.bf16.mxu0 0
      %587 = vmatpush1.bf16.msra.mxu0 0
      %588 = vmatprep.subr.bf16.mxu0 0
      %589 = vmatpush1.bf16.msra.mxu0 0
      %590 = vmatprep.subr.bf16.mxu0 0
      %591 = vmatpush1.bf16.msra.mxu0 0
      %592 = vmatprep.subr.bf16.mxu0 %v324
      %593 = vmatpush1.bf16.msra.mxu0 %v321
      %594 = vmatprep.subr.bf16.mxu0 0
      %595 = vmatpush2.bf16.msra.mxu0 0
      %596 = vmatprep.subr.bf16.mxu0 0
      %597 = vmatpush2.bf16.msra.mxu0 0
      %598 = vmatprep.subr.bf16.mxu0 0
      %599 = vmatpush2.bf16.msra.mxu0 0
      %600 = vmatprep.subr.bf16.mxu0 0
      %601 = vmatpush2.bf16.msra.mxu0 0
      %602 = vmatprep.subr.bf16.mxu0 0
      %603 = vmatpush2.bf16.msra.mxu0 0
      %604 = vmatprep.subr.bf16.mxu0 0
      %605 = vmatpush2.bf16.msra.mxu0 0
      %606 = vmatprep.subr.bf16.mxu0 0
      %607 = vmatpush2.bf16.msra.mxu0 0
      %608 = vmatprep.subr.bf16.mxu0 0
      %609 = vmatpush2.bf16.msra.mxu0 0
      %610 = vmatprep.mubr.bf16.mxu0 0
      %611 = vmatmul.mubr.bf16.gmra.mxu0 %v281
      %v612 = vpop.f32.mrf.mxu0
      %v613 = vadd.f32 %v237, %v612
      %v614 = vpop.f32.mrf.mxu0
      %v615 = vadd.f32 %v237, %v614
      %v616 = vpop.f32.mrf.mxu0
      %v617 = vpop.f32.mrf.mxu0
      %618 = vdwg.mxu0
      %619 = vmatprep.subr.bf16.mxu0 0
      %620 = vmatpush1.bf16.msra.mxu0 0
      %621 = vmatprep.subr.bf16.mxu0 0
      %622 = vmatpush1.bf16.msra.mxu0 0
      %623 = vmatprep.subr.bf16.mxu0 0
      %624 = vmatpush1.bf16.msra.mxu0 0
      %625 = vmatprep.subr.bf16.mxu0 0
      %626 = vmatpush1.bf16.msra.mxu0 0
      %627 = vmatprep.subr.bf16.mxu0 0
      %628 = vmatpush1.bf16.msra.mxu0 0
      %629 = vmatprep.subr.bf16.mxu0 0
      %630 = vmatpush1.bf16.msra.mxu0 0
      %631 = vmatprep.subr.bf16.mxu0 0
      %632 = vmatpush1.bf16.msra.mxu0 0
      %633 = vmatprep.subr.bf16.mxu0 %v330
      %634 = vmatpush1.bf16.msra.mxu0 %v327
      %635 = vmatprep.subr.bf16.mxu0 0
      %636 = vmatpush2.bf16.msra.mxu0 0
      %637 = vmatprep.subr.bf16.mxu0 0
      %638 = vmatpush2.bf16.msra.mxu0 0
      %639 = vmatprep.subr.bf16.mxu0 0
      %640 = vmatpush2.bf16.msra.mxu0 0
      %641 = vmatprep.subr.bf16.mxu0 0
      %642 = vmatpush2.bf16.msra.mxu0 0
      %643 = vmatprep.subr.bf16.mxu0 0
      %644 = vmatpush2.bf16.msra.mxu0 0
      %645 = vmatprep.subr.bf16.mxu0 0
      %646 = vmatpush2.bf16.msra.mxu0 0
      %647 = vmatprep.subr.bf16.mxu0 0
      %648 = vmatpush2.bf16.msra.mxu0 0
      %649 = vmatprep.subr.bf16.mxu0 0
      %650 = vmatpush2.bf16.msra.mxu0 0
      %651 = vmatprep.mubr.bf16.mxu0 0
      %652 = vmatmul.mubr.bf16.gmra.mxu0 %v281
      %v653 = vpop.f32.mrf.mxu0
      %v654 = vadd.f32 %v237, %v653
      %v655 = vpop.f32.mrf.mxu0
      %v656 = vadd.f32 %v237, %v655
      %v657 = vpop.f32.mrf.mxu0
      %v658 = vpop.f32.mrf.mxu0
      %659 = vdwg.mxu0
      %v660 = vld [vmem:[%s215] sm:$0xff]
      %v661 = vld [vmem:[%s215 + $0x8] sm:$0xff]
      %v662 = vld [vmem:[%s215 + $0x10] sm:$0xff]
      %v663 = vld [vmem:[%s215 + $0x18] sm:$0xff]
      %v664 = vld [vmem:[%s215 + $0x20] sm:$0xff]
      %v665 = vld [vmem:[%s215 + $0x28] sm:$0xff]
      %v666 = vld [vmem:[%s215 + $0x30] sm:$0xff]
      %v667 = vld [vmem:[%s215 + $0x38] sm:$0xff]
      %v668 = vunpack.c.l.bf16 %v660
      %v669 = vunpack.c.h.bf16 %v660
      %v670 = vunpack.c.l.bf16 %v661
      %v671 = vunpack.c.h.bf16 %v661
      %v672 = vunpack.c.l.bf16 %v662
      %v673 = vunpack.c.h.bf16 %v662
      %v674 = vunpack.c.l.bf16 %v663
      %v675 = vunpack.c.h.bf16 %v663
      %v676 = vunpack.c.l.bf16 %v664
      %v677 = vunpack.c.h.bf16 %v664
      %v678 = vunpack.c.l.bf16 %v665
      %v679 = vunpack.c.h.bf16 %v665
      %v680 = vunpack.c.l.bf16 %v666
      %v681 = vunpack.c.h.bf16 %v666
      %v682 = vunpack.c.l.bf16 %v667
      %v683 = vunpack.c.h.bf16 %v667
      %v684 = vadd.f32 %v367, %v668
      %v685 = vadd.f32 %v369, %v669
      %v686 = vadd.f32 %v408, %v670
      %v687 = vadd.f32 %v410, %v671
      %v688 = vadd.f32 %v449, %v672
      %v689 = vadd.f32 %v451, %v673
      %v690 = vadd.f32 %v490, %v674
      %v691 = vadd.f32 %v492, %v675
      %v692 = vadd.f32 %v531, %v676
      %v693 = vadd.f32 %v533, %v677
      %v694 = vadd.f32 %v572, %v678
      %v695 = vadd.f32 %v574, %v679
      %v696 = vadd.f32 %v613, %v680
      %v697 = vadd.f32 %v615, %v681
      %v698 = vadd.f32 %v654, %v682
      %v699 = vadd.f32 %v656, %v683
      %v700 = vmul.f32 %v684, 0.5
      %v701 = vmul.f32 %v685, 0.5
      %v702 = vmul.f32 %v686, 0.5
      %v703 = vmul.f32 %v687, 0.5
      %v704 = vmul.f32 %v688, 0.5
      %v705 = vmul.f32 %v689, 0.5
      %v706 = vmul.f32 %v690, 0.5
      %v707 = vmul.f32 %v691, 0.5
      %v708 = vmul.f32 %v692, 0.5
      %v709 = vmul.f32 %v693, 0.5
      %v710 = vmul.f32 %v694, 0.5
      %v711 = vmul.f32 %v695, 0.5
      %v712 = vmul.f32 %v696, 0.5
      %v713 = vmul.f32 %v697, 0.5
      %v714 = vmul.f32 %v698, 0.5
      %v715 = vmul.f32 %v699, 0.5
      %v716 = vmul.f32 %v684, 0.044715
      %v717 = vmul.f32 %v685, 0.044715
      %v718 = vmul.f32 %v686, 0.044715
      %v719 = vmul.f32 %v687, 0.044715
      %v720 = vmul.f32 %v688, 0.044715
      %v721 = vmul.f32 %v689, 0.044715
      %v722 = vmul.f32 %v690, 0.044715
      %v723 = vmul.f32 %v691, 0.044715
      %v724 = vmul.f32 %v692, 0.044715
      %v725 = vmul.f32 %v693, 0.044715
      %v726 = vmul.f32 %v694, 0.044715
      %v727 = vmul.f32 %v695, 0.044715
      %v728 = vmul.f32 %v696, 0.044715
      %v729 = vmul.f32 %v697, 0.044715
      %v730 = vmul.f32 %v698, 0.044715
      %v731 = vmul.f32 %v699, 0.044715
      %v732 = vmul.f32 %v716, %v684
      %v733 = vmul.f32 %v717, %v685
      %v734 = vmul.f32 %v718, %v686
      %v735 = vmul.f32 %v719, %v687
      %v736 = vmul.f32 %v720, %v688
      %v737 = vmul.f32 %v721, %v689
      %v738 = vmul.f32 %v722, %v690
      %v739 = vmul.f32 %v723, %v691
      %v740 = vmul.f32 %v724, %v692
      %v741 = vmul.f32 %v725, %v693
      %v742 = vmul.f32 %v726, %v694
      %v743 = vmul.f32 %v727, %v695
      %v744 = vmul.f32 %v728, %v696
      %v745 = vmul.f32 %v729, %v697
      %v746 = vmul.f32 %v730, %v698
      %v747 = vmul.f32 %v731, %v699
      %v748 = vmul.f32 %v732, %v684
      %v749 = vmul.f32 %v733, %v685
      %v750 = vmul.f32 %v734, %v686
      %v751 = vmul.f32 %v735, %v687
      %v752 = vmul.f32 %v736, %v688
      %v753 = vmul.f32 %v737, %v689
      %v754 = vmul.f32 %v738, %v690
      %v755 = vmul.f32 %v739, %v691
      %v756 = vmul.f32 %v740, %v692
      %v757 = vmul.f32 %v741, %v693
      %v758 = vmul.f32 %v742, %v694
      %v759 = vmul.f32 %v743, %v695
      %v760 = vmul.f32 %v744, %v696
      %v761 = vmul.f32 %v745, %v697
      %v762 = vmul.f32 %v746, %v698
      %v763 = vmul.f32 %v747, %v699
      %v764 = vadd.f32 %v684, %v748
      %v765 = vadd.f32 %v685, %v749
      %v766 = vadd.f32 %v686, %v750
      %v767 = vadd.f32 %v687, %v751
      %v768 = vadd.f32 %v688, %v752
      %v769 = vadd.f32 %v689, %v753
      %v770 = vadd.f32 %v690, %v754
      %v771 = vadd.f32 %v691, %v755
      %v772 = vadd.f32 %v692, %v756
      %v773 = vadd.f32 %v693, %v757
      %v774 = vadd.f32 %v694, %v758
      %v775 = vadd.f32 %v695, %v759
      %v776 = vadd.f32 %v696, %v760
      %v777 = vadd.f32 %v697, %v761
      %v778 = vadd.f32 %v698, %v762
      %v779 = vadd.f32 %v699, %v763
      %v780 = vmul.f32 %v764, 0.7978846
      %v781 = vmul.f32 %v765, 0.7978846
      %v782 = vmul.f32 %v766, 0.7978846
      %v783 = vmul.f32 %v767, 0.7978846
      %v784 = vmul.f32 %v768, 0.7978846
      %v785 = vmul.f32 %v769, 0.7978846
      %v786 = vmul.f32 %v770, 0.7978846
      %v787 = vmul.f32 %v771, 0.7978846
      %v788 = vmul.f32 %v772, 0.7978846
      %v789 = vmul.f32 %v773, 0.7978846
      %v790 = vmul.f32 %v774, 0.7978846
      %v791 = vmul.f32 %v775, 0.7978846
      %v792 = vmul.f32 %v776, 0.7978846
      %v793 = vmul.f32 %v777, 0.7978846
      %v794 = vmul.f32 %v778, 0.7978846
      %v795 = vmul.f32 %v779, 0.7978846
      %v796 = vtanh.pop %v780
      %v797 = vtanh.pop %v781
      %v798 = vtanh.pop %v782
      %v799 = vtanh.pop %v783
      %v800 = vtanh.pop %v784
      %v801 = vtanh.pop %v785
      %v802 = vtanh.pop %v786
      %v803 = vtanh.pop %v787
      %v804 = vtanh.pop %v788
      %v805 = vtanh.pop %v789
      %v806 = vtanh.pop %v790
      %v807 = vtanh.pop %v791
      %v808 = vtanh.pop %v792
      %v809 = vtanh.pop %v793
      %v810 = vtanh.pop %v794
      %v811 = vtanh.pop %v795
      %v812 = vadd.f32 %v796, 1.0
      %v813 = vadd.f32 %v797, 1.0
      %v814 = vadd.f32 %v798, 1.0
      %v815 = vadd.f32 %v799, 1.0
      %v816 = vadd.f32 %v800, 1.0
      %v817 = vadd.f32 %v801, 1.0
      %v818 = vadd.f32 %v802, 1.0
      %v819 = vadd.f32 %v803, 1.0
      %v820 = vadd.f32 %v804, 1.0
      %v821 = vadd.f32 %v805, 1.0
      %v822 = vadd.f32 %v806, 1.0
      %v823 = vadd.f32 %v807, 1.0
      %v824 = vadd.f32 %v808, 1.0
      %v825 = vadd.f32 %v809, 1.0
      %v826 = vadd.f32 %v810, 1.0
      %v827 = vadd.f32 %v811, 1.0
      %v828 = vmul.f32 %v700, %v812
      %v829 = vmul.f32 %v701, %v813
      %v830 = vmul.f32 %v702, %v814
      %v831 = vmul.f32 %v703, %v815
      %v832 = vmul.f32 %v704, %v816
      %v833 = vmul.f32 %v705, %v817
      %v834 = vmul.f32 %v706, %v818
      %v835 = vmul.f32 %v707, %v819
      %v836 = vmul.f32 %v708, %v820
      %v837 = vmul.f32 %v709, %v821
      %v838 = vmul.f32 %v710, %v822
      %v839 = vmul.f32 %v711, %v823
      %v840 = vmul.f32 %v712, %v824
      %v841 = vmul.f32 %v713, %v825
      %v842 = vmul.f32 %v714, %v826
      %v843 = vmul.f32 %v715, %v827
      %v844 = vpack.c.bf16 %v828, %v828
      %v845 = vpack.c.bf16 %v829, %v829
      %v846 = vpack.c.bf16 %v830, %v830
      %v847 = vpack.c.bf16 %v831, %v831
      %v848 = vpack.c.bf16 %v832, %v832
      %v849 = vpack.c.bf16 %v833, %v833
      %v850 = vpack.c.bf16 %v834, %v834
      %v851 = vpack.c.bf16 %v835, %v835
      %v852 = vpack.c.bf16 %v836, %v836
      %v853 = vpack.c.bf16 %v837, %v837
      %v854 = vpack.c.bf16 %v838, %v838
      %v855 = vpack.c.bf16 %v839, %v839
      %v856 = vpack.c.bf16 %v840, %v840
      %v857 = vpack.c.bf16 %v841, %v841
      %v858 = vpack.c.bf16 %v842, %v842
      %v859 = vpack.c.bf16 %v843, %v843
      %v876 = vunpack.c.l.b16 %v844
      %v877 = vunpack.c.l.b16 %v845
      %v878 = vunpack.c.l.b16 %v846
      %v879 = vunpack.c.l.b16 %v847
      %v880 = vunpack.c.l.b16 %v848
      %v881 = vunpack.c.l.b16 %v849
      %v882 = vunpack.c.l.b16 %v850
      %v883 = vunpack.c.l.b16 %v851
      %v884 = vunpack.c.l.b16 %v852
      %v885 = vunpack.c.l.b16 %v853
      %v886 = vunpack.c.l.b16 %v854
      %v887 = vunpack.c.l.b16 %v855
      %v888 = vunpack.c.l.b16 %v856
      %v889 = vunpack.c.l.b16 %v857
      %v890 = vunpack.c.l.b16 %v858
      %v891 = vunpack.c.l.b16 %v859
      %v892 = vpack.c.b16 %v877, %v876
      %v893 = vpack.c.b16 %v879, %v878
      %v894 = vpack.c.b16 %v881, %v880
      %v895 = vpack.c.b16 %v883, %v882
      %v896 = vpack.c.b16 %v885, %v884
      %v897 = vpack.c.b16 %v887, %v886
      %v898 = vpack.c.b16 %v889, %v888
      %v899 = vpack.c.b16 %v891, %v890
      %908 = vst [vmem:[%s221] sm:$0xff] %v892
      %909 = vst [vmem:[%s221 + $0x8] sm:$0xff] %v893
      %910 = vst [vmem:[%s221 + $0x10] sm:$0xff] %v894
      %911 = vst [vmem:[%s221 + $0x18] sm:$0xff] %v895
      %912 = vst [vmem:[%s221 + $0x20] sm:$0xff] %v896
      %913 = vst [vmem:[%s221 + $0x28] sm:$0xff] %v897
      %914 = vst [vmem:[%s221 + $0x30] sm:$0xff] %v898
      %915 = vst [vmem:[%s221 + $0x38] sm:$0xff] %v899
      %s916 = smul.u32 16, %s15
      %p917 = scmp.lt.s32.totalorder %s916, 31
      %s918 = scalar_select %p917, %s916, 31
      %s919 = smul.addr %s918, 4
      %s920 = scalar_lea.vmem %s4, %s919
      // Predicated region
      $region37: #{fno3d_forward.8} parent=35 // pred_check
        %p921 = pneg %p127
      $region38: #{fno3d_forward.8} parent=35 // pred_check_branch
        %923 = sbr.rel (%p921) target = $region40
      $region39: #{fno3d_forward.8} parent=35 // pred_region
        %s924 = smul.u32 16, %s15
      $region40: #{fno3d_forward.8} parent=35 // pred_fallthru
        _
    $region36: #{fno3d_forward.8} parent=5 // pred_fallthru
      _
    %p925 = scmp.le.s32.totalorder 2, %s10
    // Predicated region
    $region41: #{fno3d_forward.8} parent=5 // pred_check
      %p926 = pneg %p925
    $region42: #{fno3d_forward.8} parent=5 // pred_check_branch
      %928 = sbr.rel (%p926) target = $region44
    $region43: #{fno3d_forward.8} parent=5 // pred_region
      %s929 = ssub.s32 %s10, 2
      // Predicated region
      $region45: #{fno3d_forward.8} parent=43 // pred_check
        %p930 = pneg %p133
      $region46: #{fno3d_forward.8} parent=43 // pred_check_branch
        %932 = sbr.rel (%p930) target = $region48
      $region47: #{fno3d_forward.8} parent=43 // pred_region
        %s933 = smul.u32 16, %s16
        %p934 = scmp.lt.s32.totalorder %s933, 31
        %s935 = scalar_select %p934, %s933, 31
        %s936 = smul.addr %s935, 4
        %s937 = scalar_lea.vmem %s4, %s936
      $region48: #{fno3d_forward.8} parent=43 // pred_fallthru
        _
    $region44: #{fno3d_forward.8} parent=5 // pred_fallthru
      _
  $region6: #{fno3d_forward.8} parent=0 // loop_footer
    %s14 = sadd.s32 1, %s10
  $region7: #{fno3d_forward.8} parent=0 // loop_footer_branch
    %9 = sbr.rel target = $region3
  $region8: #{fno3d_forward.8} parent=0 // loop_exit
    _

// kernel: fno3d_forward.10
$region0: #{fno3d_forward.10}
  #allocation0 [shape = 'u32[]', space=smem, size = 0x4, offset = 0x4, fixed_abs, tag = 'smem constant byte address 0x4 - core index']
  #allocation1 [shape = 'u32[144,128]{1,0:T(1,128)}', space=vmem, size = 0x12000, scoped, tag = 'internal scratch']
  %s0 = inlined_call_operand.vmem [shape: bf16[8,4096], index: 0, kind: input, shape index: {}]
  %s1 = inlined_call_operand.vmem [shape: bf16[8,4096], index: 1, kind: input, shape index: {}]
  %s2 = inlined_call_operand.vmem [shape: bf16[8,8], index: 2, kind: input, shape index: {}]
  %s3 = inlined_call_operand.vmem [shape: f32[8,1], index: 3, kind: input, shape index: {}]
  %s4 = inlined_call_operand.vmem [shape: bf16[8,4096], index: 4, kind: output, shape index: {}]
  %s5 = sld [smem:[#allocation0]]
  $region49: #{fno3d_forward.10} parent=0
    _
  %s7 = ssub.s32 1, %s5
  %s8 = scalar_select 0, %s7, %s5
  loop: start=0, step=1, limit=4
  $region2: #{fno3d_forward.10} parent=0 // loop_pre_header
    _
  $region3: #{fno3d_forward.10} parent=0 // loop_header
    %s10 = sphi 0, %s14
    %p11 = scmp.ge.s32.totalorder %s10, 4
    %s20 = sphi 0, %s22
    %s23 = sphi 0, %s20
    %s24 = sphi 0, %s23
    %s40 = sphi 0, %s24
    %s46 = sphi 0, %s48
    %s49 = sphi 0, %s46
    %s50 = sphi 0, %s49
    %s66 = sphi 0, %s50
    %s70 = sphi 0, %s70
    %s72 = sphi 0, %s70
    %s73 = sphi 0, %s72
    %s87 = sphi 0, %s73
    %s91 = sphi 0, %s91
    %s93 = sphi 0, %s91
    %s94 = sphi 0, %s93
    %s108 = sphi 0, %s94
    %s114 = sphi 0, %s116
    %s117 = sphi 0, %s114
    %s118 = sphi 0, %s117
    %s134 = sphi 0, %s118
  $region4: #{fno3d_forward.10} parent=0 // loop_header_branch
    %13 = sbr.rel (%p11) target = $region8
  $region5: #{fno3d_forward.10} parent=0 // loop_body
    %s15 = ssub.s32 %s10, 1
    %s16 = ssub.s32 %s10, 2
    %s17 = sadd.s32 %s10, 1
    %s18 = ssub.s32 %s10, %s17
    %p19 = scmp.eq.s32.totalorder %s18, 0
    %s21 = sadd.s32 %s20, 1
    %s22 = scalar_select %p19, %s20, %s21
    %p25 = pneg %p19
    %p26 = scmp.eq.s32.totalorder %s10, 1
    %p27 = por %p25, %p26
    %p28 = scmp.ne.s32.totalorder %s20, %s23
    %p29 = scmp.eq.s32.totalorder %s10, 0
    %p30 = por %p28, %p29
    %p31 = scmp.ne.s32.totalorder %s20, %s23
    %p32 = scmp.eq.s32.totalorder %s15, 1
    %p33 = por %p31, %p32
    %p34 = scmp.ne.s32.totalorder %s23, %s24
    %p35 = scmp.eq.s32.totalorder %s15, 0
    %p36 = por %p34, %p35
    %p37 = scmp.ne.s32.totalorder %s23, %s24
    %p38 = scmp.eq.s32.totalorder %s16, 1
    %p39 = por %p37, %p38
    %p41 = scmp.ne.s32.totalorder %s24, %s40
    %p42 = scmp.eq.s32.totalorder %s16, 0
    %p43 = por %p41, %p42
    %s44 = ssub.s32 %s10, %s17
    %p45 = scmp.eq.s32.totalorder %s44, 0
    %s47 = sadd.s32 %s46, 1
    %s48 = scalar_select %p45, %s46, %s47
    %p51 = pneg %p45
    %p52 = scmp.eq.s32.totalorder %s10, 1
    %p53 = por %p51, %p52
    %p54 = scmp.ne.s32.totalorder %s46, %s49
    %p55 = scmp.eq.s32.totalorder %s10, 0
    %p56 = por %p54, %p55
    %p57 = scmp.ne.s32.totalorder %s46, %s49
    %p58 = scmp.eq.s32.totalorder %s15, 1
    %p59 = por %p57, %p58
    %p60 = scmp.ne.s32.totalorder %s49, %s50
    %p61 = scmp.eq.s32.totalorder %s15, 0
    %p62 = por %p60, %p61
    %p63 = scmp.ne.s32.totalorder %s49, %s50
    %p64 = scmp.eq.s32.totalorder %s16, 1
    %p65 = por %p63, %p64
    %p67 = scmp.ne.s32.totalorder %s50, %s66
    %p68 = scmp.eq.s32.totalorder %s16, 0
    %p69 = por %p67, %p68
    %s71 = sadd.s32 %s70, 1
    %p74 = scmp.eq.s32.totalorder %s10, 1
    %p75 = scmp.ne.s32.totalorder %s70, %s72
    %p76 = scmp.eq.s32.totalorder %s10, 0
    %p77 = por %p75, %p76
    %p78 = scmp.ne.s32.totalorder %s70, %s72
    %p79 = scmp.eq.s32.totalorder %s15, 1
    %p80 = por %p78, %p79
    %p81 = scmp.ne.s32.totalorder %s72, %s73
    %p82 = scmp.eq.s32.totalorder %s15, 0
    %p83 = por %p81, %p82
    %p84 = scmp.ne.s32.totalorder %s72, %s73
    %p85 = scmp.eq.s32.totalorder %s16, 1
    %p86 = por %p84, %p85
    %p88 = scmp.ne.s32.totalorder %s73, %s87
    %p89 = scmp.eq.s32.totalorder %s16, 0
    %p90 = por %p88, %p89
    %s92 = sadd.s32 %s91, 1
    %p95 = scmp.eq.s32.totalorder %s10, 1
    %p96 = scmp.ne.s32.totalorder %s91, %s93
    %p97 = scmp.eq.s32.totalorder %s10, 0
    %p98 = por %p96, %p97
    %p99 = scmp.ne.s32.totalorder %s91, %s93
    %p100 = scmp.eq.s32.totalorder %s15, 1
    %p101 = por %p99, %p100
    %p102 = scmp.ne.s32.totalorder %s93, %s94
    %p103 = scmp.eq.s32.totalorder %s15, 0
    %p104 = por %p102, %p103
    %p105 = scmp.ne.s32.totalorder %s93, %s94
    %p106 = scmp.eq.s32.totalorder %s16, 1
    %p107 = por %p105, %p106
    %p109 = scmp.ne.s32.totalorder %s94, %s108
    %p110 = scmp.eq.s32.totalorder %s16, 0
    %p111 = por %p109, %p110
    %s112 = ssub.s32 %s10, %s17
    %p113 = scmp.eq.s32.totalorder %s112, 0
    %s115 = sadd.s32 %s114, 1
    %s116 = scalar_select %p113, %s114, %s115
    %p119 = pneg %p113
    %p120 = scmp.eq.s32.totalorder %s10, 1
    %p121 = por %p119, %p120
    %p122 = scmp.ne.s32.totalorder %s114, %s117
    %p123 = scmp.eq.s32.totalorder %s10, 0
    %p124 = por %p122, %p123
    %p125 = scmp.ne.s32.totalorder %s114, %s117
    %p126 = scmp.eq.s32.totalorder %s15, 1
    %p127 = por %p125, %p126
    %p128 = scmp.ne.s32.totalorder %s117, %s118
    %p129 = scmp.eq.s32.totalorder %s15, 0
    %p130 = por %p128, %p129
    %p131 = scmp.ne.s32.totalorder %s117, %s118
    %p132 = scmp.eq.s32.totalorder %s16, 1
    %p133 = por %p131, %p132
    %p135 = scmp.ne.s32.totalorder %s118, %s134
    %p136 = scmp.eq.s32.totalorder %s16, 0
    %p137 = por %p135, %p136
    %p138 = scmp.le.s32.totalorder 1, %s10
    %p139 = scmp.lt.s32.totalorder %s10, 3
    %p140 = pnand %p138, %p139
    %p141 = pneg %p140
    // Predicated region
    $region9: #{fno3d_forward.10} parent=5 // pred_check
      _
    $region10: #{fno3d_forward.10} parent=5 // pred_check_branch
      %143 = sbr.rel (%p140) target = $region12
    $region11: #{fno3d_forward.10} parent=5 // pred_region
      %s144 = ssub.s32 %s10, 1
      // Predicated region
      $region13: #{fno3d_forward.10} parent=11 // pred_check
        %p145 = pneg %p83
      $region14: #{fno3d_forward.10} parent=11 // pred_check_branch
        %147 = sbr.rel (%p145) target = $region16
      $region15: #{fno3d_forward.10} parent=11 // pred_region
        _
      $region16: #{fno3d_forward.10} parent=11 // pred_fallthru
        _
      // Predicated region
      $region17: #{fno3d_forward.10} parent=11 // pred_check
        %p148 = pneg %p104
      $region18: #{fno3d_forward.10} parent=11 // pred_check_branch
        %150 = sbr.rel (%p148) target = $region20
      $region19: #{fno3d_forward.10} parent=11 // pred_region
        _
      $region20: #{fno3d_forward.10} parent=11 // pred_fallthru
        _
    $region12: #{fno3d_forward.10} parent=5 // pred_fallthru
      _
    %p151 = scmp.lt.s32.totalorder %s10, 2
    // Predicated region
    $region21: #{fno3d_forward.10} parent=5 // pred_check
      %p152 = pneg %p151
    $region22: #{fno3d_forward.10} parent=5 // pred_check_branch
      %154 = sbr.rel (%p152) target = $region24
    $region23: #{fno3d_forward.10} parent=5 // pred_region
      // Predicated region
      $region25: #{fno3d_forward.10} parent=23 // pred_check
        %p155 = pneg %p30
      $region26: #{fno3d_forward.10} parent=23 // pred_check_branch
        %157 = sbr.rel (%p155) target = $region28
      $region27: #{fno3d_forward.10} parent=23 // pred_region
        %s158 = smul.u32 16, %s10
        %p159 = scmp.lt.s32.totalorder %s158, 31
        %s160 = scalar_select %p159, %s158, 31
        %s161 = smul.addr %s160, 4
        %s162 = scalar_lea.vmem %s0, %s161
        %s163 = smul.u32 16, %s10
      $region28: #{fno3d_forward.10} parent=23 // pred_fallthru
        _
      // Predicated region
      $region29: #{fno3d_forward.10} parent=23 // pred_check
        %p164 = pneg %p56
      $region30: #{fno3d_forward.10} parent=23 // pred_check_branch
        %166 = sbr.rel (%p164) target = $region32
      $region31: #{fno3d_forward.10} parent=23 // pred_region
        %s167 = smul.u32 16, %s10
        %p168 = scmp.lt.s32.totalorder %s167, 31
        %s169 = scalar_select %p168, %s167, 31
        %s170 = smul.addr %s169, 4
        %s171 = scalar_lea.vmem %s1, %s170
        %s172 = smul.u32 16, %s10
      $region32: #{fno3d_forward.10} parent=23 // pred_fallthru
        _
    $region24: #{fno3d_forward.10} parent=5 // pred_fallthru
      _
    %p173 = scmp.le.s32.totalorder 1, %s10
    %p174 = scmp.lt.s32.totalorder %s10, 3
    %p175 = pnand %p173, %p174
    %p176 = pneg %p175
    // Predicated region
    $region33: #{fno3d_forward.10} parent=5 // pred_check
      _
    $region34: #{fno3d_forward.10} parent=5 // pred_check_branch
      %178 = sbr.rel (%p175) target = $region36
    $region35: #{fno3d_forward.10} parent=5 // pred_region
      %s179 = ssub.s32 %s10, 1
      %s180 = smul.u32 16, %s15
      %p181 = scmp.lt.s32.totalorder %s180, 31
      %s182 = scalar_select %p181, %s180, 31
      %s183 = smul.addr %s182, 4
      %s184 = scalar_lea.vmem %s0, %s183
      %p185 = pneg %p36
      %p186 = pneg %p33
      %s187 = smul.u32 16, %s15
      %p188 = scmp.lt.s32.totalorder %s187, 31
      %s189 = scalar_select %p188, %s187, 31
      %s190 = smul.addr %s189, 4
      %s191 = scalar_lea.vmem %s1, %s190
      %p192 = pneg %p62
      %p193 = pneg %p59
      %p194 = pneg %p83
      %p195 = pneg %p80
      %p196 = pneg %p104
      %p197 = pneg %p101
      %p198 = pneg %p130
      %p199 = pneg %p127
      %s200 = smul.u32 16, %s15
      %p201 = scmp.lt.s32.totalorder %s200, 31
      %s202 = scalar_select %p201, %s200, 31
      %s203 = smul.addr %s202, 4
      %s204 = scalar_lea.vmem %s4, %s203
      %s205 = smul.u32 16, %s15
      %p206 = scmp.lt.s32.totalorder %s205, 31
      %s207 = scalar_select %p206, %s205, 31
      %s208 = smul.addr %s207, 4
      %s209 = scalar_lea.vmem %s0, %s208
      %s210 = smul.u32 16, %s15
      %s211 = smul.u32 16, %s15
      %p212 = scmp.lt.s32.totalorder %s211, 31
      %s213 = scalar_select %p212, %s211, 31
      %s214 = smul.addr %s213, 4
      %s215 = scalar_lea.vmem %s1, %s214
      %s216 = smul.u32 16, %s15
      %s217 = smul.u32 16, %s15
      %p218 = scmp.lt.s32.totalorder %s217, 31
      %s219 = scalar_select %p218, %s217, 31
      %s220 = smul.addr %s219, 4
      %s221 = scalar_lea.vmem %s4, %s220
      %s222 = smul.u32 16, %s15
      %v224 = vld [vmem:[%s2] sm:$0xf]
      %v225 = vld [vmem:[%s209] sm:$0xff]
      %v226 = vld [vmem:[%s209 + $0x8] sm:$0xff]
      %v227 = vld [vmem:[%s209 + $0x10] sm:$0xff]
      %v228 = vld [vmem:[%s209 + $0x18] sm:$0xff]
      %v229 = vld [vmem:[%s209 + $0x20] sm:$0xff]
      %v230 = vld [vmem:[%s209 + $0x28] sm:$0xff]
      %v231 = vld [vmem:[%s209 + $0x30] sm:$0xff]
      %v232 = vld [vmem:[%s209 + $0x38] sm:$0xff]
      %v233 = vld [vmem:[%s3] sm:$0xff]
      %235 = vset.pattern.permute.xlu0 0
      %236 = vperm.xlu0 %235, %v233
      %v237 = vpop.permute.xlu0 %236
      %v247 = vunpack.c.l.b16 %v225
      %v248 = vunpack.c.h.b16 %v225
      %v249 = vunpack.c.l.b16 %v226
      %v250 = vunpack.c.h.b16 %v226
      %v251 = vunpack.c.l.b16 %v227
      %v252 = vunpack.c.h.b16 %v227
      %v253 = vunpack.c.l.b16 %v228
      %v254 = vunpack.c.h.b16 %v228
      %v255 = vunpack.c.l.b16 %v229
      %v256 = vunpack.c.h.b16 %v229
      %v257 = vunpack.c.l.b16 %v230
      %v258 = vunpack.c.h.b16 %v230
      %v259 = vunpack.c.l.b16 %v231
      %v260 = vunpack.c.h.b16 %v231
      %v261 = vunpack.c.l.b16 %v232
      %v262 = vunpack.c.h.b16 %v232
      %v263 = vpack.c.b16 %v247, %v247
      %v264 = vpack.c.b16 %v248, %v248
      %v265 = vpack.c.b16 %v249, %v249
      %v266 = vpack.c.b16 %v250, %v250
      %v267 = vpack.c.b16 %v251, %v251
      %v268 = vpack.c.b16 %v252, %v252
      %v269 = vpack.c.b16 %v253, %v253
      %v270 = vpack.c.b16 %v254, %v254
      %v271 = vpack.c.b16 %v255, %v255
      %v272 = vpack.c.b16 %v256, %v256
      %v273 = vpack.c.b16 %v257, %v257
      %v274 = vpack.c.b16 %v258, %v258
      %v275 = vpack.c.b16 %v259, %v259
      %v276 = vpack.c.b16 %v260, %v260
      %v277 = vpack.c.b16 %v261, %v261
      %v278 = vpack.c.b16 %v262, %v262
      %vm279 = vcmask 64512
      %v281 = vsel %vm279, %v224, 0
      %vm283 = vcmask 1043456
      %v285 = vsel %vm283, %v263, 0
      %v288 = vsel %vm283, %v264, 0
      %v291 = vsel %vm283, %v265, 0
      %v294 = vsel %vm283, %v266, 0
      %v297 = vsel %vm283, %v267, 0
      %v300 = vsel %vm283, %v268, 0
      %v303 = vsel %vm283, %v269, 0
      %v306 = vsel %vm283, %v270, 0
      %v309 = vsel %vm283, %v271, 0
      %v312 = vsel %vm283, %v272, 0
      %v315 = vsel %vm283, %v273, 0
      %v318 = vsel %vm283, %v274, 0
      %v321 = vsel %vm283, %v275, 0
      %v324 = vsel %vm283, %v276, 0
      %v327 = vsel %vm283, %v277, 0
      %v330 = vsel %vm283, %v278, 0
      %332 = vmatprep.subr.bf16.mxu0 0
      %333 = vmatpush1.bf16.msra.mxu0 0
      %334 = vmatprep.subr.bf16.mxu0 0
      %335 = vmatpush1.bf16.msra.mxu0 0
      %336 = vmatprep.subr.bf16.mxu0 0
      %337 = vmatpush1.bf16.msra.mxu0 0
      %338 = vmatprep.subr.bf16.mxu0 0
      %339 = vmatpush1.bf16.msra.mxu0 0
      %340 = vmatprep.subr.bf16.mxu0 0
      %341 = vmatpush1.bf16.msra.mxu0 0
      %342 = vmatprep.subr.bf16.mxu0 0
      %343 = vmatpush1.bf16.msra.mxu0 0
      %344 = vmatprep.subr.bf16.mxu0 0
      %345 = vmatpush1.bf16.msra.mxu0 0
      %346 = vmatprep.subr.bf16.mxu0 %v288
      %347 = vmatpush1.bf16.msra.mxu0 %v285
      %348 = vmatprep.subr.bf16.mxu0 0
      %349 = vmatpush2.bf16.msra.mxu0 0
      %350 = vmatprep.subr.bf16.mxu0 0
      %351 = vmatpush2.bf16.msra.mxu0 0
      %352 = vmatprep.subr.bf16.mxu0 0
      %353 = vmatpush2.bf16.msra.mxu0 0
      %354 = vmatprep.subr.bf16.mxu0 0
      %355 = vmatpush2.bf16.msra.mxu0 0
      %356 = vmatprep.subr.bf16.mxu0 0
      %357 = vmatpush2.bf16.msra.mxu0 0
      %358 = vmatprep.subr.bf16.mxu0 0
      %359 = vmatpush2.bf16.msra.mxu0 0
      %360 = vmatprep.subr.bf16.mxu0 0
      %361 = vmatpush2.bf16.msra.mxu0 0
      %362 = vmatprep.subr.bf16.mxu0 0
      %363 = vmatpush2.bf16.msra.mxu0 0
      %364 = vmatprep.mubr.bf16.mxu0 0
      %365 = vmatmul.mubr.bf16.gmra.mxu0 %v281
      %v366 = vpop.f32.mrf.mxu0
      %v367 = vadd.f32 %v237, %v366
      %v368 = vpop.f32.mrf.mxu0
      %v369 = vadd.f32 %v237, %v368
      %v370 = vpop.f32.mrf.mxu0
      %v371 = vpop.f32.mrf.mxu0
      %372 = vdwg.mxu0
      %373 = vmatprep.subr.bf16.mxu0 0
      %374 = vmatpush1.bf16.msra.mxu0 0
      %375 = vmatprep.subr.bf16.mxu0 0
      %376 = vmatpush1.bf16.msra.mxu0 0
      %377 = vmatprep.subr.bf16.mxu0 0
      %378 = vmatpush1.bf16.msra.mxu0 0
      %379 = vmatprep.subr.bf16.mxu0 0
      %380 = vmatpush1.bf16.msra.mxu0 0
      %381 = vmatprep.subr.bf16.mxu0 0
      %382 = vmatpush1.bf16.msra.mxu0 0
      %383 = vmatprep.subr.bf16.mxu0 0
      %384 = vmatpush1.bf16.msra.mxu0 0
      %385 = vmatprep.subr.bf16.mxu0 0
      %386 = vmatpush1.bf16.msra.mxu0 0
      %387 = vmatprep.subr.bf16.mxu0 %v294
      %388 = vmatpush1.bf16.msra.mxu0 %v291
      %389 = vmatprep.subr.bf16.mxu0 0
      %390 = vmatpush2.bf16.msra.mxu0 0
      %391 = vmatprep.subr.bf16.mxu0 0
      %392 = vmatpush2.bf16.msra.mxu0 0
      %393 = vmatprep.subr.bf16.mxu0 0
      %394 = vmatpush2.bf16.msra.mxu0 0
      %395 = vmatprep.subr.bf16.mxu0 0
      %396 = vmatpush2.bf16.msra.mxu0 0
      %397 = vmatprep.subr.bf16.mxu0 0
      %398 = vmatpush2.bf16.msra.mxu0 0
      %399 = vmatprep.subr.bf16.mxu0 0
      %400 = vmatpush2.bf16.msra.mxu0 0
      %401 = vmatprep.subr.bf16.mxu0 0
      %402 = vmatpush2.bf16.msra.mxu0 0
      %403 = vmatprep.subr.bf16.mxu0 0
      %404 = vmatpush2.bf16.msra.mxu0 0
      %405 = vmatprep.mubr.bf16.mxu0 0
      %406 = vmatmul.mubr.bf16.gmra.mxu0 %v281
      %v407 = vpop.f32.mrf.mxu0
      %v408 = vadd.f32 %v237, %v407
      %v409 = vpop.f32.mrf.mxu0
      %v410 = vadd.f32 %v237, %v409
      %v411 = vpop.f32.mrf.mxu0
      %v412 = vpop.f32.mrf.mxu0
      %413 = vdwg.mxu0
      %414 = vmatprep.subr.bf16.mxu0 0
      %415 = vmatpush1.bf16.msra.mxu0 0
      %416 = vmatprep.subr.bf16.mxu0 0
      %417 = vmatpush1.bf16.msra.mxu0 0
      %418 = vmatprep.subr.bf16.mxu0 0
      %419 = vmatpush1.bf16.msra.mxu0 0
      %420 = vmatprep.subr.bf16.mxu0 0
      %421 = vmatpush1.bf16.msra.mxu0 0
      %422 = vmatprep.subr.bf16.mxu0 0
      %423 = vmatpush1.bf16.msra.mxu0 0
      %424 = vmatprep.subr.bf16.mxu0 0
      %425 = vmatpush1.bf16.msra.mxu0 0
      %426 = vmatprep.subr.bf16.mxu0 0
      %427 = vmatpush1.bf16.msra.mxu0 0
      %428 = vmatprep.subr.bf16.mxu0 %v300
      %429 = vmatpush1.bf16.msra.mxu0 %v297
      %430 = vmatprep.subr.bf16.mxu0 0
      %431 = vmatpush2.bf16.msra.mxu0 0
      %432 = vmatprep.subr.bf16.mxu0 0
      %433 = vmatpush2.bf16.msra.mxu0 0
      %434 = vmatprep.subr.bf16.mxu0 0
      %435 = vmatpush2.bf16.msra.mxu0 0
      %436 = vmatprep.subr.bf16.mxu0 0
      %437 = vmatpush2.bf16.msra.mxu0 0
      %438 = vmatprep.subr.bf16.mxu0 0
      %439 = vmatpush2.bf16.msra.mxu0 0
      %440 = vmatprep.subr.bf16.mxu0 0
      %441 = vmatpush2.bf16.msra.mxu0 0
      %442 = vmatprep.subr.bf16.mxu0 0
      %443 = vmatpush2.bf16.msra.mxu0 0
      %444 = vmatprep.subr.bf16.mxu0 0
      %445 = vmatpush2.bf16.msra.mxu0 0
      %446 = vmatprep.mubr.bf16.mxu0 0
      %447 = vmatmul.mubr.bf16.gmra.mxu0 %v281
      %v448 = vpop.f32.mrf.mxu0
      %v449 = vadd.f32 %v237, %v448
      %v450 = vpop.f32.mrf.mxu0
      %v451 = vadd.f32 %v237, %v450
      %v452 = vpop.f32.mrf.mxu0
      %v453 = vpop.f32.mrf.mxu0
      %454 = vdwg.mxu0
      %455 = vmatprep.subr.bf16.mxu0 0
      %456 = vmatpush1.bf16.msra.mxu0 0
      %457 = vmatprep.subr.bf16.mxu0 0
      %458 = vmatpush1.bf16.msra.mxu0 0
      %459 = vmatprep.subr.bf16.mxu0 0
      %460 = vmatpush1.bf16.msra.mxu0 0
      %461 = vmatprep.subr.bf16.mxu0 0
      %462 = vmatpush1.bf16.msra.mxu0 0
      %463 = vmatprep.subr.bf16.mxu0 0
      %464 = vmatpush1.bf16.msra.mxu0 0
      %465 = vmatprep.subr.bf16.mxu0 0
      %466 = vmatpush1.bf16.msra.mxu0 0
      %467 = vmatprep.subr.bf16.mxu0 0
      %468 = vmatpush1.bf16.msra.mxu0 0
      %469 = vmatprep.subr.bf16.mxu0 %v306
      %470 = vmatpush1.bf16.msra.mxu0 %v303
      %471 = vmatprep.subr.bf16.mxu0 0
      %472 = vmatpush2.bf16.msra.mxu0 0
      %473 = vmatprep.subr.bf16.mxu0 0
      %474 = vmatpush2.bf16.msra.mxu0 0
      %475 = vmatprep.subr.bf16.mxu0 0
      %476 = vmatpush2.bf16.msra.mxu0 0
      %477 = vmatprep.subr.bf16.mxu0 0
      %478 = vmatpush2.bf16.msra.mxu0 0
      %479 = vmatprep.subr.bf16.mxu0 0
      %480 = vmatpush2.bf16.msra.mxu0 0
      %481 = vmatprep.subr.bf16.mxu0 0
      %482 = vmatpush2.bf16.msra.mxu0 0
      %483 = vmatprep.subr.bf16.mxu0 0
      %484 = vmatpush2.bf16.msra.mxu0 0
      %485 = vmatprep.subr.bf16.mxu0 0
      %486 = vmatpush2.bf16.msra.mxu0 0
      %487 = vmatprep.mubr.bf16.mxu0 0
      %488 = vmatmul.mubr.bf16.gmra.mxu0 %v281
      %v489 = vpop.f32.mrf.mxu0
      %v490 = vadd.f32 %v237, %v489
      %v491 = vpop.f32.mrf.mxu0
      %v492 = vadd.f32 %v237, %v491
      %v493 = vpop.f32.mrf.mxu0
      %v494 = vpop.f32.mrf.mxu0
      %495 = vdwg.mxu0
      %496 = vmatprep.subr.bf16.mxu0 0
      %497 = vmatpush1.bf16.msra.mxu0 0
      %498 = vmatprep.subr.bf16.mxu0 0
      %499 = vmatpush1.bf16.msra.mxu0 0
      %500 = vmatprep.subr.bf16.mxu0 0
      %501 = vmatpush1.bf16.msra.mxu0 0
      %502 = vmatprep.subr.bf16.mxu0 0
      %503 = vmatpush1.bf16.msra.mxu0 0
      %504 = vmatprep.subr.bf16.mxu0 0
      %505 = vmatpush1.bf16.msra.mxu0 0
      %506 = vmatprep.subr.bf16.mxu0 0
      %507 = vmatpush1.bf16.msra.mxu0 0
      %508 = vmatprep.subr.bf16.mxu0 0
      %509 = vmatpush1.bf16.msra.mxu0 0
      %510 = vmatprep.subr.bf16.mxu0 %v312
      %511 = vmatpush1.bf16.msra.mxu0 %v309
      %512 = vmatprep.subr.bf16.mxu0 0
      %513 = vmatpush2.bf16.msra.mxu0 0
      %514 = vmatprep.subr.bf16.mxu0 0
      %515 = vmatpush2.bf16.msra.mxu0 0
      %516 = vmatprep.subr.bf16.mxu0 0
      %517 = vmatpush2.bf16.msra.mxu0 0
      %518 = vmatprep.subr.bf16.mxu0 0
      %519 = vmatpush2.bf16.msra.mxu0 0
      %520 = vmatprep.subr.bf16.mxu0 0
      %521 = vmatpush2.bf16.msra.mxu0 0
      %522 = vmatprep.subr.bf16.mxu0 0
      %523 = vmatpush2.bf16.msra.mxu0 0
      %524 = vmatprep.subr.bf16.mxu0 0
      %525 = vmatpush2.bf16.msra.mxu0 0
      %526 = vmatprep.subr.bf16.mxu0 0
      %527 = vmatpush2.bf16.msra.mxu0 0
      %528 = vmatprep.mubr.bf16.mxu0 0
      %529 = vmatmul.mubr.bf16.gmra.mxu0 %v281
      %v530 = vpop.f32.mrf.mxu0
      %v531 = vadd.f32 %v237, %v530
      %v532 = vpop.f32.mrf.mxu0
      %v533 = vadd.f32 %v237, %v532
      %v534 = vpop.f32.mrf.mxu0
      %v535 = vpop.f32.mrf.mxu0
      %536 = vdwg.mxu0
      %537 = vmatprep.subr.bf16.mxu0 0
      %538 = vmatpush1.bf16.msra.mxu0 0
      %539 = vmatprep.subr.bf16.mxu0 0
      %540 = vmatpush1.bf16.msra.mxu0 0
      %541 = vmatprep.subr.bf16.mxu0 0
      %542 = vmatpush1.bf16.msra.mxu0 0
      %543 = vmatprep.subr.bf16.mxu0 0
      %544 = vmatpush1.bf16.msra.mxu0 0
      %545 = vmatprep.subr.bf16.mxu0 0
      %546 = vmatpush1.bf16.msra.mxu0 0
      %547 = vmatprep.subr.bf16.mxu0 0
      %548 = vmatpush1.bf16.msra.mxu0 0
      %549 = vmatprep.subr.bf16.mxu0 0
      %550 = vmatpush1.bf16.msra.mxu0 0
      %551 = vmatprep.subr.bf16.mxu0 %v318
      %552 = vmatpush1.bf16.msra.mxu0 %v315
      %553 = vmatprep.subr.bf16.mxu0 0
      %554 = vmatpush2.bf16.msra.mxu0 0
      %555 = vmatprep.subr.bf16.mxu0 0
      %556 = vmatpush2.bf16.msra.mxu0 0
      %557 = vmatprep.subr.bf16.mxu0 0
      %558 = vmatpush2.bf16.msra.mxu0 0
      %559 = vmatprep.subr.bf16.mxu0 0
      %560 = vmatpush2.bf16.msra.mxu0 0
      %561 = vmatprep.subr.bf16.mxu0 0
      %562 = vmatpush2.bf16.msra.mxu0 0
      %563 = vmatprep.subr.bf16.mxu0 0
      %564 = vmatpush2.bf16.msra.mxu0 0
      %565 = vmatprep.subr.bf16.mxu0 0
      %566 = vmatpush2.bf16.msra.mxu0 0
      %567 = vmatprep.subr.bf16.mxu0 0
      %568 = vmatpush2.bf16.msra.mxu0 0
      %569 = vmatprep.mubr.bf16.mxu0 0
      %570 = vmatmul.mubr.bf16.gmra.mxu0 %v281
      %v571 = vpop.f32.mrf.mxu0
      %v572 = vadd.f32 %v237, %v571
      %v573 = vpop.f32.mrf.mxu0
      %v574 = vadd.f32 %v237, %v573
      %v575 = vpop.f32.mrf.mxu0
      %v576 = vpop.f32.mrf.mxu0
      %577 = vdwg.mxu0
      %578 = vmatprep.subr.bf16.mxu0 0
      %579 = vmatpush1.bf16.msra.mxu0 0
      %580 = vmatprep.subr.bf16.mxu0 0
      %581 = vmatpush1.bf16.msra.mxu0 0
      %582 = vmatprep.subr.bf16.mxu0 0
      %583 = vmatpush1.bf16.msra.mxu0 0
      %584 = vmatprep.subr.bf16.mxu0 0
      %585 = vmatpush1.bf16.msra.mxu0 0
      %586 = vmatprep.subr.bf16.mxu0 0
      %587 = vmatpush1.bf16.msra.mxu0 0
      %588 = vmatprep.subr.bf16.mxu0 0
      %589 = vmatpush1.bf16.msra.mxu0 0
      %590 = vmatprep.subr.bf16.mxu0 0
      %591 = vmatpush1.bf16.msra.mxu0 0
      %592 = vmatprep.subr.bf16.mxu0 %v324
      %593 = vmatpush1.bf16.msra.mxu0 %v321
      %594 = vmatprep.subr.bf16.mxu0 0
      %595 = vmatpush2.bf16.msra.mxu0 0
      %596 = vmatprep.subr.bf16.mxu0 0
      %597 = vmatpush2.bf16.msra.mxu0 0
      %598 = vmatprep.subr.bf16.mxu0 0
      %599 = vmatpush2.bf16.msra.mxu0 0
      %600 = vmatprep.subr.bf16.mxu0 0
      %601 = vmatpush2.bf16.msra.mxu0 0
      %602 = vmatprep.subr.bf16.mxu0 0
      %603 = vmatpush2.bf16.msra.mxu0 0
      %604 = vmatprep.subr.bf16.mxu0 0
      %605 = vmatpush2.bf16.msra.mxu0 0
      %606 = vmatprep.subr.bf16.mxu0 0
      %607 = vmatpush2.bf16.msra.mxu0 0
      %608 = vmatprep.subr.bf16.mxu0 0
      %609 = vmatpush2.bf16.msra.mxu0 0
      %610 = vmatprep.mubr.bf16.mxu0 0
      %611 = vmatmul.mubr.bf16.gmra.mxu0 %v281
      %v612 = vpop.f32.mrf.mxu0
      %v613 = vadd.f32 %v237, %v612
      %v614 = vpop.f32.mrf.mxu0
      %v615 = vadd.f32 %v237, %v614
      %v616 = vpop.f32.mrf.mxu0
      %v617 = vpop.f32.mrf.mxu0
      %618 = vdwg.mxu0
      %619 = vmatprep.subr.bf16.mxu0 0
      %620 = vmatpush1.bf16.msra.mxu0 0
      %621 = vmatprep.subr.bf16.mxu0 0
      %622 = vmatpush1.bf16.msra.mxu0 0
      %623 = vmatprep.subr.bf16.mxu0 0
      %624 = vmatpush1.bf16.msra.mxu0 0
      %625 = vmatprep.subr.bf16.mxu0 0
      %626 = vmatpush1.bf16.msra.mxu0 0
      %627 = vmatprep.subr.bf16.mxu0 0
      %628 = vmatpush1.bf16.msra.mxu0 0
      %629 = vmatprep.subr.bf16.mxu0 0
      %630 = vmatpush1.bf16.msra.mxu0 0
      %631 = vmatprep.subr.bf16.mxu0 0
      %632 = vmatpush1.bf16.msra.mxu0 0
      %633 = vmatprep.subr.bf16.mxu0 %v330
      %634 = vmatpush1.bf16.msra.mxu0 %v327
      %635 = vmatprep.subr.bf16.mxu0 0
      %636 = vmatpush2.bf16.msra.mxu0 0
      %637 = vmatprep.subr.bf16.mxu0 0
      %638 = vmatpush2.bf16.msra.mxu0 0
      %639 = vmatprep.subr.bf16.mxu0 0
      %640 = vmatpush2.bf16.msra.mxu0 0
      %641 = vmatprep.subr.bf16.mxu0 0
      %642 = vmatpush2.bf16.msra.mxu0 0
      %643 = vmatprep.subr.bf16.mxu0 0
      %644 = vmatpush2.bf16.msra.mxu0 0
      %645 = vmatprep.subr.bf16.mxu0 0
      %646 = vmatpush2.bf16.msra.mxu0 0
      %647 = vmatprep.subr.bf16.mxu0 0
      %648 = vmatpush2.bf16.msra.mxu0 0
      %649 = vmatprep.subr.bf16.mxu0 0
      %650 = vmatpush2.bf16.msra.mxu0 0
      %651 = vmatprep.mubr.bf16.mxu0 0
      %652 = vmatmul.mubr.bf16.gmra.mxu0 %v281
      %v653 = vpop.f32.mrf.mxu0
      %v654 = vadd.f32 %v237, %v653
      %v655 = vpop.f32.mrf.mxu0
      %v656 = vadd.f32 %v237, %v655
      %v657 = vpop.f32.mrf.mxu0
      %v658 = vpop.f32.mrf.mxu0
      %659 = vdwg.mxu0
      %v660 = vld [vmem:[%s215] sm:$0xff]
      %v661 = vld [vmem:[%s215 + $0x8] sm:$0xff]
      %v662 = vld [vmem:[%s215 + $0x10] sm:$0xff]
      %v663 = vld [vmem:[%s215 + $0x18] sm:$0xff]
      %v664 = vld [vmem:[%s215 + $0x20] sm:$0xff]
      %v665 = vld [vmem:[%s215 + $0x28] sm:$0xff]
      %v666 = vld [vmem:[%s215 + $0x30] sm:$0xff]
      %v667 = vld [vmem:[%s215 + $0x38] sm:$0xff]
      %v668 = vunpack.c.l.bf16 %v660
      %v669 = vunpack.c.h.bf16 %v660
      %v670 = vunpack.c.l.bf16 %v661
      %v671 = vunpack.c.h.bf16 %v661
      %v672 = vunpack.c.l.bf16 %v662
      %v673 = vunpack.c.h.bf16 %v662
      %v674 = vunpack.c.l.bf16 %v663
      %v675 = vunpack.c.h.bf16 %v663
      %v676 = vunpack.c.l.bf16 %v664
      %v677 = vunpack.c.h.bf16 %v664
      %v678 = vunpack.c.l.bf16 %v665
      %v679 = vunpack.c.h.bf16 %v665
      %v680 = vunpack.c.l.bf16 %v666
      %v681 = vunpack.c.h.bf16 %v666
      %v682 = vunpack.c.l.bf16 %v667
      %v683 = vunpack.c.h.bf16 %v667
      %v684 = vadd.f32 %v367, %v668
      %v685 = vadd.f32 %v369, %v669
      %v686 = vadd.f32 %v408, %v670
      %v687 = vadd.f32 %v410, %v671
      %v688 = vadd.f32 %v449, %v672
      %v689 = vadd.f32 %v451, %v673
      %v690 = vadd.f32 %v490, %v674
      %v691 = vadd.f32 %v492, %v675
      %v692 = vadd.f32 %v531, %v676
      %v693 = vadd.f32 %v533, %v677
      %v694 = vadd.f32 %v572, %v678
      %v695 = vadd.f32 %v574, %v679
      %v696 = vadd.f32 %v613, %v680
      %v697 = vadd.f32 %v615, %v681
      %v698 = vadd.f32 %v654, %v682
      %v699 = vadd.f32 %v656, %v683
      %v700 = vpack.c.bf16 %v684, %v684
      %v701 = vpack.c.bf16 %v685, %v685
      %v702 = vpack.c.bf16 %v686, %v686
      %v703 = vpack.c.bf16 %v687, %v687
      %v704 = vpack.c.bf16 %v688, %v688
      %v705 = vpack.c.bf16 %v689, %v689
      %v706 = vpack.c.bf16 %v690, %v690
      %v707 = vpack.c.bf16 %v691, %v691
      %v708 = vpack.c.bf16 %v692, %v692
      %v709 = vpack.c.bf16 %v693, %v693
      %v710 = vpack.c.bf16 %v694, %v694
      %v711 = vpack.c.bf16 %v695, %v695
      %v712 = vpack.c.bf16 %v696, %v696
      %v713 = vpack.c.bf16 %v697, %v697
      %v714 = vpack.c.bf16 %v698, %v698
      %v715 = vpack.c.bf16 %v699, %v699
      %v732 = vunpack.c.l.b16 %v700
      %v733 = vunpack.c.l.b16 %v701
      %v734 = vunpack.c.l.b16 %v702
      %v735 = vunpack.c.l.b16 %v703
      %v736 = vunpack.c.l.b16 %v704
      %v737 = vunpack.c.l.b16 %v705
      %v738 = vunpack.c.l.b16 %v706
      %v739 = vunpack.c.l.b16 %v707
      %v740 = vunpack.c.l.b16 %v708
      %v741 = vunpack.c.l.b16 %v709
      %v742 = vunpack.c.l.b16 %v710
      %v743 = vunpack.c.l.b16 %v711
      %v744 = vunpack.c.l.b16 %v712
      %v745 = vunpack.c.l.b16 %v713
      %v746 = vunpack.c.l.b16 %v714
      %v747 = vunpack.c.l.b16 %v715
      %v748 = vpack.c.b16 %v733, %v732
      %v749 = vpack.c.b16 %v735, %v734
      %v750 = vpack.c.b16 %v737, %v736
      %v751 = vpack.c.b16 %v739, %v738
      %v752 = vpack.c.b16 %v741, %v740
      %v753 = vpack.c.b16 %v743, %v742
      %v754 = vpack.c.b16 %v745, %v744
      %v755 = vpack.c.b16 %v747, %v746
      %764 = vst [vmem:[%s221] sm:$0xff] %v748
      %765 = vst [vmem:[%s221 + $0x8] sm:$0xff] %v749
      %766 = vst [vmem:[%s221 + $0x10] sm:$0xff] %v750
      %767 = vst [vmem:[%s221 + $0x18] sm:$0xff] %v751
      %768 = vst [vmem:[%s221 + $0x20] sm:$0xff] %v752
      %769 = vst [vmem:[%s221 + $0x28] sm:$0xff] %v753
      %770 = vst [vmem:[%s221 + $0x30] sm:$0xff] %v754
      %771 = vst [vmem:[%s221 + $0x38] sm:$0xff] %v755
      %s772 = smul.u32 16, %s15
      %p773 = scmp.lt.s32.totalorder %s772, 31
      %s774 = scalar_select %p773, %s772, 31
      %s775 = smul.addr %s774, 4
      %s776 = scalar_lea.vmem %s4, %s775
      // Predicated region
      $region37: #{fno3d_forward.10} parent=35 // pred_check
        %p777 = pneg %p127
      $region38: #{fno3d_forward.10} parent=35 // pred_check_branch
        %779 = sbr.rel (%p777) target = $region40
      $region39: #{fno3d_forward.10} parent=35 // pred_region
        %s780 = smul.u32 16, %s15
      $region40: #{fno3d_forward.10} parent=35 // pred_fallthru
        _
    $region36: #{fno3d_forward.10} parent=5 // pred_fallthru
      _
    %p781 = scmp.le.s32.totalorder 2, %s10
    // Predicated region
    $region41: #{fno3d_forward.10} parent=5 // pred_check
      %p782 = pneg %p781
    $region42: #{fno3d_forward.10} parent=5 // pred_check_branch
      %784 = sbr.rel (%p782) target = $region44
    $region43: #{fno3d_forward.10} parent=5 // pred_region
      %s785 = ssub.s32 %s10, 2
      // Predicated region
      $region45: #{fno3d_forward.10} parent=43 // pred_check
        %p786 = pneg %p133
      $region46: #{fno3d_forward.10} parent=43 // pred_check_branch
        %788 = sbr.rel (%p786) target = $region48
      $region47: #{fno3d_forward.10} parent=43 // pred_region
        %s789 = smul.u32 16, %s16
        %p790 = scmp.lt.s32.totalorder %s789, 31
        %s791 = scalar_select %p790, %s789, 31
        %s792 = smul.addr %s791, 4
        %s793 = scalar_lea.vmem %s4, %s792
      $region48: #{fno3d_forward.10} parent=43 // pred_fallthru
        _
    $region44: #{fno3d_forward.10} parent=5 // pred_fallthru
      _
  $region6: #{fno3d_forward.10} parent=0 // loop_footer
    %s14 = sadd.s32 1, %s10
  $region7: #{fno3d_forward.10} parent=0 // loop_footer_branch
    %9 = sbr.rel target = $region3
  $region8: #{fno3d_forward.10} parent=0 // loop_exit
    _

// kernel: fno3d_forward.11
$region0: #{fno3d_forward.11}
  #allocation0 [shape = 'u32[]', space=smem, size = 0x4, offset = 0x4, fixed_abs, tag = 'smem constant byte address 0x4 - core index']
  #allocation1 [shape = 'u32[144,128]{1,0:T(1,128)}', space=vmem, size = 0x12000, scoped, tag = 'internal scratch']
  %s0 = inlined_call_operand.vmem [shape: bf16[8,4096], index: 0, kind: input, shape index: {}]
  %s1 = inlined_call_operand.vmem [shape: bf16[16,8], index: 1, kind: input, shape index: {}]
  %s2 = inlined_call_operand.vmem [shape: f32[16,1], index: 2, kind: input, shape index: {}]
  %s3 = inlined_call_operand.vmem [shape: bf16[3,16], index: 3, kind: input, shape index: {}]
  %s4 = inlined_call_operand.vmem [shape: f32[3,1], index: 4, kind: input, shape index: {}]
  %s5 = inlined_call_operand.vmem [shape: f32[3,4096], index: 5, kind: output, shape index: {}]
  %s6 = sld [smem:[#allocation0]]
  $region53: #{fno3d_forward.11} parent=0
    _
  %s8 = ssub.s32 1, %s6
  %s9 = scalar_select 0, %s8, %s6
  loop: start=0, step=1, limit=4
  $region2: #{fno3d_forward.11} parent=0 // loop_pre_header
    _
  $region3: #{fno3d_forward.11} parent=0 // loop_header
    %s11 = sphi 0, %s15
    %p12 = scmp.ge.s32.totalorder %s11, 4
    %s21 = sphi 0, %s23
    %s24 = sphi 0, %s21
    %s25 = sphi 0, %s24
    %s41 = sphi 0, %s25
    %s45 = sphi 0, %s45
    %s47 = sphi 0, %s45
    %s48 = sphi 0, %s47
    %s62 = sphi 0, %s48
    %s66 = sphi 0, %s66
    %s68 = sphi 0, %s66
    %s69 = sphi 0, %s68
    %s83 = sphi 0, %s69
    %s87 = sphi 0, %s87
    %s89 = sphi 0, %s87
    %s90 = sphi 0, %s89
    %s104 = sphi 0, %s90
    %s108 = sphi 0, %s108
    %s110 = sphi 0, %s108
    %s111 = sphi 0, %s110
    %s125 = sphi 0, %s111
    %s131 = sphi 0, %s133
    %s134 = sphi 0, %s131
    %s135 = sphi 0, %s134
    %s151 = sphi 0, %s135
  $region4: #{fno3d_forward.11} parent=0 // loop_header_branch
    %14 = sbr.rel (%p12) target = $region8
  $region5: #{fno3d_forward.11} parent=0 // loop_body
    %s16 = ssub.s32 %s11, 1
    %s17 = ssub.s32 %s11, 2
    %s18 = sadd.s32 %s11, 1
    %s19 = ssub.s32 %s11, %s18
    %p20 = scmp.eq.s32.totalorder %s19, 0
    %s22 = sadd.s32 %s21, 1
    %s23 = scalar_select %p20, %s21, %s22
    %p26 = pneg %p20
    %p27 = scmp.eq.s32.totalorder %s11, 1
    %p28 = por %p26, %p27
    %p29 = scmp.ne.s32.totalorder %s21, %s24
    %p30 = scmp.eq.s32.totalorder %s11, 0
    %p31 = por %p29, %p30
    %p32 = scmp.ne.s32.totalorder %s21, %s24
    %p33 = scmp.eq.s32.totalorder %s16, 1
    %p34 = por %p32, %p33
    %p35 = scmp.ne.s32.totalorder %s24, %s25
    %p36 = scmp.eq.s32.totalorder %s16, 0
    %p37 = por %p35, %p36
    %p38 = scmp.ne.s32.totalorder %s24, %s25
    %p39 = scmp.eq.s32.totalorder %s17, 1
    %p40 = por %p38, %p39
    %p42 = scmp.ne.s32.totalorder %s25, %s41
    %p43 = scmp.eq.s32.totalorder %s17, 0
    %p44 = por %p42, %p43
    %s46 = sadd.s32 %s45, 1
    %p49 = scmp.eq.s32.totalorder %s11, 1
    %p50 = scmp.ne.s32.totalorder %s45, %s47
    %p51 = scmp.eq.s32.totalorder %s11, 0
    %p52 = por %p50, %p51
    %p53 = scmp.ne.s32.totalorder %s45, %s47
    %p54 = scmp.eq.s32.totalorder %s16, 1
    %p55 = por %p53, %p54
    %p56 = scmp.ne.s32.totalorder %s47, %s48
    %p57 = scmp.eq.s32.totalorder %s16, 0
    %p58 = por %p56, %p57
    %p59 = scmp.ne.s32.totalorder %s47, %s48
    %p60 = scmp.eq.s32.totalorder %s17, 1
    %p61 = por %p59, %p60
    %p63 = scmp.ne.s32.totalorder %s48, %s62
    %p64 = scmp.eq.s32.totalorder %s17, 0
    %p65 = por %p63, %p64
    %s67 = sadd.s32 %s66, 1
    %p70 = scmp.eq.s32.totalorder %s11, 1
    %p71 = scmp.ne.s32.totalorder %s66, %s68
    %p72 = scmp.eq.s32.totalorder %s11, 0
    %p73 = por %p71, %p72
    %p74 = scmp.ne.s32.totalorder %s66, %s68
    %p75 = scmp.eq.s32.totalorder %s16, 1
    %p76 = por %p74, %p75
    %p77 = scmp.ne.s32.totalorder %s68, %s69
    %p78 = scmp.eq.s32.totalorder %s16, 0
    %p79 = por %p77, %p78
    %p80 = scmp.ne.s32.totalorder %s68, %s69
    %p81 = scmp.eq.s32.totalorder %s17, 1
    %p82 = por %p80, %p81
    %p84 = scmp.ne.s32.totalorder %s69, %s83
    %p85 = scmp.eq.s32.totalorder %s17, 0
    %p86 = por %p84, %p85
    %s88 = sadd.s32 %s87, 1
    %p91 = scmp.eq.s32.totalorder %s11, 1
    %p92 = scmp.ne.s32.totalorder %s87, %s89
    %p93 = scmp.eq.s32.totalorder %s11, 0
    %p94 = por %p92, %p93
    %p95 = scmp.ne.s32.totalorder %s87, %s89
    %p96 = scmp.eq.s32.totalorder %s16, 1
    %p97 = por %p95, %p96
    %p98 = scmp.ne.s32.totalorder %s89, %s90
    %p99 = scmp.eq.s32.totalorder %s16, 0
    %p100 = por %p98, %p99
    %p101 = scmp.ne.s32.totalorder %s89, %s90
    %p102 = scmp.eq.s32.totalorder %s17, 1
    %p103 = por %p101, %p102
    %p105 = scmp.ne.s32.totalorder %s90, %s104
    %p106 = scmp.eq.s32.totalorder %s17, 0
    %p107 = por %p105, %p106
    %s109 = sadd.s32 %s108, 1
    %p112 = scmp.eq.s32.totalorder %s11, 1
    %p113 = scmp.ne.s32.totalorder %s108, %s110
    %p114 = scmp.eq.s32.totalorder %s11, 0
    %p115 = por %p113, %p114
    %p116 = scmp.ne.s32.totalorder %s108, %s110
    %p117 = scmp.eq.s32.totalorder %s16, 1
    %p118 = por %p116, %p117
    %p119 = scmp.ne.s32.totalorder %s110, %s111
    %p120 = scmp.eq.s32.totalorder %s16, 0
    %p121 = por %p119, %p120
    %p122 = scmp.ne.s32.totalorder %s110, %s111
    %p123 = scmp.eq.s32.totalorder %s17, 1
    %p124 = por %p122, %p123
    %p126 = scmp.ne.s32.totalorder %s111, %s125
    %p127 = scmp.eq.s32.totalorder %s17, 0
    %p128 = por %p126, %p127
    %s129 = ssub.s32 %s11, %s18
    %p130 = scmp.eq.s32.totalorder %s129, 0
    %s132 = sadd.s32 %s131, 1
    %s133 = scalar_select %p130, %s131, %s132
    %p136 = pneg %p130
    %p137 = scmp.eq.s32.totalorder %s11, 1
    %p138 = por %p136, %p137
    %p139 = scmp.ne.s32.totalorder %s131, %s134
    %p140 = scmp.eq.s32.totalorder %s11, 0
    %p141 = por %p139, %p140
    %p142 = scmp.ne.s32.totalorder %s131, %s134
    %p143 = scmp.eq.s32.totalorder %s16, 1
    %p144 = por %p142, %p143
    %p145 = scmp.ne.s32.totalorder %s134, %s135
    %p146 = scmp.eq.s32.totalorder %s16, 0
    %p147 = por %p145, %p146
    %p148 = scmp.ne.s32.totalorder %s134, %s135
    %p149 = scmp.eq.s32.totalorder %s17, 1
    %p150 = por %p148, %p149
    %p152 = scmp.ne.s32.totalorder %s135, %s151
    %p153 = scmp.eq.s32.totalorder %s17, 0
    %p154 = por %p152, %p153
    %p155 = scmp.le.s32.totalorder 1, %s11
    %p156 = scmp.lt.s32.totalorder %s11, 3
    %p157 = pnand %p155, %p156
    %p158 = pneg %p157
    // Predicated region
    $region9: #{fno3d_forward.11} parent=5 // pred_check
      _
    $region10: #{fno3d_forward.11} parent=5 // pred_check_branch
      %160 = sbr.rel (%p157) target = $region12
    $region11: #{fno3d_forward.11} parent=5 // pred_region
      %s161 = ssub.s32 %s11, 1
      // Predicated region
      $region13: #{fno3d_forward.11} parent=11 // pred_check
        %p162 = pneg %p58
      $region14: #{fno3d_forward.11} parent=11 // pred_check_branch
        %164 = sbr.rel (%p162) target = $region16
      $region15: #{fno3d_forward.11} parent=11 // pred_region
        _
      $region16: #{fno3d_forward.11} parent=11 // pred_fallthru
        _
      // Predicated region
      $region17: #{fno3d_forward.11} parent=11 // pred_check
        %p165 = pneg %p79
      $region18: #{fno3d_forward.11} parent=11 // pred_check_branch
        %167 = sbr.rel (%p165) target = $region20
      $region19: #{fno3d_forward.11} parent=11 // pred_region
        _
      $region20: #{fno3d_forward.11} parent=11 // pred_fallthru
        _
      // Predicated region
      $region21: #{fno3d_forward.11} parent=11 // pred_check
        %p168 = pneg %p100
      $region22: #{fno3d_forward.11} parent=11 // pred_check_branch
        %170 = sbr.rel (%p168) target = $region24
      $region23: #{fno3d_forward.11} parent=11 // pred_region
        _
      $region24: #{fno3d_forward.11} parent=11 // pred_fallthru
        _
      // Predicated region
      $region25: #{fno3d_forward.11} parent=11 // pred_check
        %p171 = pneg %p121
      $region26: #{fno3d_forward.11} parent=11 // pred_check_branch
        %173 = sbr.rel (%p171) target = $region28
      $region27: #{fno3d_forward.11} parent=11 // pred_region
        _
      $region28: #{fno3d_forward.11} parent=11 // pred_fallthru
        _
    $region12: #{fno3d_forward.11} parent=5 // pred_fallthru
      _
    %p174 = scmp.lt.s32.totalorder %s11, 2
    // Predicated region
    $region29: #{fno3d_forward.11} parent=5 // pred_check
      %p175 = pneg %p174
    $region30: #{fno3d_forward.11} parent=5 // pred_check_branch
      %177 = sbr.rel (%p175) target = $region32
    $region31: #{fno3d_forward.11} parent=5 // pred_region
      // Predicated region
      $region33: #{fno3d_forward.11} parent=31 // pred_check
        %p178 = pneg %p31
      $region34: #{fno3d_forward.11} parent=31 // pred_check_branch
        %180 = sbr.rel (%p178) target = $region36
      $region35: #{fno3d_forward.11} parent=31 // pred_region
        %s181 = smul.u32 16, %s11
        %p182 = scmp.lt.s32.totalorder %s181, 31
        %s183 = scalar_select %p182, %s181, 31
        %s184 = smul.addr %s183, 4
        %s185 = scalar_lea.vmem %s0, %s184
        %s186 = smul.u32 16, %s11
      $region36: #{fno3d_forward.11} parent=31 // pred_fallthru
        _
    $region32: #{fno3d_forward.11} parent=5 // pred_fallthru
      _
    %p187 = scmp.le.s32.totalorder 1, %s11
    %p188 = scmp.lt.s32.totalorder %s11, 3
    %p189 = pnand %p187, %p188
    %p190 = pneg %p189
    // Predicated region
    $region37: #{fno3d_forward.11} parent=5 // pred_check
      _
    $region38: #{fno3d_forward.11} parent=5 // pred_check_branch
      %192 = sbr.rel (%p189) target = $region40
    $region39: #{fno3d_forward.11} parent=5 // pred_region
      %s193 = ssub.s32 %s11, 1
      %s194 = smul.u32 16, %s16
      %p195 = scmp.lt.s32.totalorder %s194, 31
      %s196 = scalar_select %p195, %s194, 31
      %s197 = smul.addr %s196, 4
      %s198 = scalar_lea.vmem %s0, %s197
      %p199 = pneg %p37
      %p200 = pneg %p34
      %p201 = pneg %p58
      %p202 = pneg %p55
      %p203 = pneg %p79
      %p204 = pneg %p76
      %p205 = pneg %p100
      %p206 = pneg %p97
      %p207 = pneg %p121
      %p208 = pneg %p118
      %p209 = pneg %p147
      %p210 = pneg %p144
      %s211 = smul.u32 16, %s16
      %p212 = scmp.lt.s32.totalorder %s211, 31
      %s213 = scalar_select %p212, %s211, 31
      %s214 = smul.addr %s213, 4
      %s215 = scalar_lea.vmem %s5, %s214
      %s216 = smul.u32 16, %s16
      %p217 = scmp.lt.s32.totalorder %s216, 31
      %s218 = scalar_select %p217, %s216, 31
      %s219 = smul.addr %s218, 4
      %s220 = scalar_lea.vmem %s0, %s219
      %s221 = smul.u32 16, %s16
      %s222 = smul.u32 16, %s16
      %p223 = scmp.lt.s32.totalorder %s222, 31
      %s224 = scalar_select %p223, %s222, 31
      %s225 = smul.addr %s224, 4
      %s226 = scalar_lea.vmem %s5, %s225
      %s227 = smul.u32 16, %s16
      %v233 = vld [vmem:[%s1] sm:$0xf]
      %v234 = vld [vmem:[%s1 + $0x4] sm:$0xf]
      %v235 = vld [vmem:[%s220] sm:$0xff]
      %v236 = vld [vmem:[%s220 + $0x8] sm:$0xff]
      %v237 = vld [vmem:[%s220 + $0x10] sm:$0xff]
      %v238 = vld [vmem:[%s220 + $0x18] sm:$0xff]
      %v239 = vld [vmem:[%s220 + $0x20] sm:$0xff]
      %v240 = vld [vmem:[%s220 + $0x28] sm:$0xff]
      %v241 = vld [vmem:[%s220 + $0x30] sm:$0xff]
      %v242 = vld [vmem:[%s220 + $0x38] sm:$0xff]
      %v243 = vld [vmem:[%s2] sm:$0xff]
      %v244 = vld [vmem:[%s2 + $0x8] sm:$0xff]
      %246 = vset.pattern.permute.xlu0 0
      %247 = vperm.xlu0 %246, %v243
      %v248 = vpop.permute.xlu0 %247
      %251 = vset.pattern.permute.xlu0 0
      %252 = vperm.xlu0 %251, %v244
      %v253 = vpop.permute.xlu0 %252
      %v257 = vunpack.c.l.b16 %v233
      %v258 = vunpack.c.l.b16 %v234
      %v259 = vpack.c.b16 %v258, %v257
      %v268 = vunpack.c.l.b16 %v235
      %v269 = vunpack.c.h.b16 %v235
      %v270 = vunpack.c.l.b16 %v236
      %v271 = vunpack.c.h.b16 %v236
      %v272 = vunpack.c.l.b16 %v237
      %v273 = vunpack.c.h.b16 %v237
      %v274 = vunpack.c.l.b16 %v238
      %v275 = vunpack.c.h.b16 %v238
      %v276 = vunpack.c.l.b16 %v239
      %v277 = vunpack.c.h.b16 %v239
      %v278 = vunpack.c.l.b16 %v240
      %v279 = vunpack.c.h.b16 %v240
      %v280 = vunpack.c.l.b16 %v241
      %v281 = vunpack.c.h.b16 %v241
      %v282 = vunpack.c.l.b16 %v242
      %v283 = vunpack.c.h.b16 %v242
      %v284 = vpack.c.b16 %v268, %v268
      %v285 = vpack.c.b16 %v269, %v269
      %v286 = vpack.c.b16 %v270, %v270
      %v287 = vpack.c.b16 %v271, %v271
      %v288 = vpack.c.b16 %v272, %v272
      %v289 = vpack.c.b16 %v273, %v273
      %v290 = vpack.c.b16 %v274, %v274
      %v291 = vpack.c.b16 %v275, %v275
      %v292 = vpack.c.b16 %v276, %v276
      %v293 = vpack.c.b16 %v277, %v277
      %v294 = vpack.c.b16 %v278, %v278
      %v295 = vpack.c.b16 %v279, %v279
      %v296 = vpack.c.b16 %v280, %v280
      %v297 = vpack.c.b16 %v281, %v281
      %v298 = vpack.c.b16 %v282, %v282
      %v299 = vpack.c.b16 %v283, %v283
      %vm300 = vcmask 64512
      %v302 = vsel %vm300, %v259, 0
      %vm304 = vcmask 1043456
      %v306 = vsel %vm304, %v284, 0
      %v309 = vsel %vm304, %v285, 0
      %v312 = vsel %vm304, %v286, 0
      %v315 = vsel %vm304, %v287, 0
      %v318 = vsel %vm304, %v288, 0
      %v321 = vsel %vm304, %v289, 0
      %v324 = vsel %vm304, %v290, 0
      %v327 = vsel %vm304, %v291, 0
      %v330 = vsel %vm304, %v292, 0
      %v333 = vsel %vm304, %v293, 0
      %v336 = vsel %vm304, %v294, 0
      %v339 = vsel %vm304, %v295, 0
      %v342 = vsel %vm304, %v296, 0
      %v345 = vsel %vm304, %v297, 0
      %v348 = vsel %vm304, %v298, 0
      %v351 = vsel %vm304, %v299, 0
      %353 = vmatprep.subr.bf16.mxu0 0
      %354 = vmatpush1.bf16.msra.mxu0 0
      %355 = vmatprep.subr.bf16.mxu0 0
      %356 = vmatpush1.bf16.msra.mxu0 0
      %357 = vmatprep.subr.bf16.mxu0 0
      %358 = vmatpush1.bf16.msra.mxu0 0
      %359 = vmatprep.subr.bf16.mxu0 0
      %360 = vmatpush1.bf16.msra.mxu0 0
      %361 = vmatprep.subr.bf16.mxu0 0
      %362 = vmatpush1.bf16.msra.mxu0 0
      %363 = vmatprep.subr.bf16.mxu0 0
      %364 = vmatpush1.bf16.msra.mxu0 0
      %365 = vmatprep.subr.bf16.mxu0 0
      %366 = vmatpush1.bf16.msra.mxu0 0
      %367 = vmatprep.subr.bf16.mxu0 %v309
      %368 = vmatpush1.bf16.msra.mxu0 %v306
      %369 = vmatprep.subr.bf16.mxu0 0
      %370 = vmatpush2.bf16.msra.mxu0 0
      %371 = vmatprep.subr.bf16.mxu0 0
      %372 = vmatpush2.bf16.msra.mxu0 0
      %373 = vmatprep.subr.bf16.mxu0 0
      %374 = vmatpush2.bf16.msra.mxu0 0
      %375 = vmatprep.subr.bf16.mxu0 0
      %376 = vmatpush2.bf16.msra.mxu0 0
      %377 = vmatprep.subr.bf16.mxu0 0
      %378 = vmatpush2.bf16.msra.mxu0 0
      %379 = vmatprep.subr.bf16.mxu0 0
      %380 = vmatpush2.bf16.msra.mxu0 0
      %381 = vmatprep.subr.bf16.mxu0 0
      %382 = vmatpush2.bf16.msra.mxu0 0
      %383 = vmatprep.subr.bf16.mxu0 0
      %384 = vmatpush2.bf16.msra.mxu0 0
      %385 = vmatprep.mubr.bf16.mxu0 0
      %386 = vmatmul.mubr.bf16.gmra.mxu0 %v302
      %v387 = vpop.f32.mrf.mxu0
      %v388 = vadd.f32 %v248, %v387
      %v389 = vpop.f32.mrf.mxu0
      %v390 = vadd.f32 %v248, %v389
      %v391 = vpop.f32.mrf.mxu0
      %v392 = vadd.f32 %v253, %v391
      %v393 = vpop.f32.mrf.mxu0
      %v394 = vadd.f32 %v253, %v393
      %395 = vdwg.mxu0
      %396 = vmatprep.subr.bf16.mxu0 0
      %397 = vmatpush1.bf16.msra.mxu0 0
      %398 = vmatprep.subr.bf16.mxu0 0
      %399 = vmatpush1.bf16.msra.mxu0 0
      %400 = vmatprep.subr.bf16.mxu0 0
      %401 = vmatpush1.bf16.msra.mxu0 0
      %402 = vmatprep.subr.bf16.mxu0 0
      %403 = vmatpush1.bf16.msra.mxu0 0
      %404 = vmatprep.subr.bf16.mxu0 0
      %405 = vmatpush1.bf16.msra.mxu0 0
      %406 = vmatprep.subr.bf16.mxu0 0
      %407 = vmatpush1.bf16.msra.mxu0 0
      %408 = vmatprep.subr.bf16.mxu0 0
      %409 = vmatpush1.bf16.msra.mxu0 0
      %410 = vmatprep.subr.bf16.mxu0 %v315
      %411 = vmatpush1.bf16.msra.mxu0 %v312
      %412 = vmatprep.subr.bf16.mxu0 0
      %413 = vmatpush2.bf16.msra.mxu0 0
      %414 = vmatprep.subr.bf16.mxu0 0
      %415 = vmatpush2.bf16.msra.mxu0 0
      %416 = vmatprep.subr.bf16.mxu0 0
      %417 = vmatpush2.bf16.msra.mxu0 0
      %418 = vmatprep.subr.bf16.mxu0 0
      %419 = vmatpush2.bf16.msra.mxu0 0
      %420 = vmatprep.subr.bf16.mxu0 0
      %421 = vmatpush2.bf16.msra.mxu0 0
      %422 = vmatprep.subr.bf16.mxu0 0
      %423 = vmatpush2.bf16.msra.mxu0 0
      %424 = vmatprep.subr.bf16.mxu0 0
      %425 = vmatpush2.bf16.msra.mxu0 0
      %426 = vmatprep.subr.bf16.mxu0 0
      %427 = vmatpush2.bf16.msra.mxu0 0
      %428 = vmatprep.mubr.bf16.mxu0 0
      %429 = vmatmul.mubr.bf16.gmra.mxu0 %v302
      %v430 = vpop.f32.mrf.mxu0
      %v431 = vadd.f32 %v248, %v430
      %v432 = vpop.f32.mrf.mxu0
      %v433 = vadd.f32 %v248, %v432
      %v434 = vpop.f32.mrf.mxu0
      %v435 = vadd.f32 %v253, %v434
      %v436 = vpop.f32.mrf.mxu0
      %v437 = vadd.f32 %v253, %v436
      %438 = vdwg.mxu0
      %439 = vmatprep.subr.bf16.mxu0 0
      %440 = vmatpush1.bf16.msra.mxu0 0
      %441 = vmatprep.subr.bf16.mxu0 0
      %442 = vmatpush1.bf16.msra.mxu0 0
      %443 = vmatprep.subr.bf16.mxu0 0
      %444 = vmatpush1.bf16.msra.mxu0 0
      %445 = vmatprep.subr.bf16.mxu0 0
      %446 = vmatpush1.bf16.msra.mxu0 0
      %447 = vmatprep.subr.bf16.mxu0 0
      %448 = vmatpush1.bf16.msra.mxu0 0
      %449 = vmatprep.subr.bf16.mxu0 0
      %450 = vmatpush1.bf16.msra.mxu0 0
      %451 = vmatprep.subr.bf16.mxu0 0
      %452 = vmatpush1.bf16.msra.mxu0 0
      %453 = vmatprep.subr.bf16.mxu0 %v321
      %454 = vmatpush1.bf16.msra.mxu0 %v318
      %455 = vmatprep.subr.bf16.mxu0 0
      %456 = vmatpush2.bf16.msra.mxu0 0
      %457 = vmatprep.subr.bf16.mxu0 0
      %458 = vmatpush2.bf16.msra.mxu0 0
      %459 = vmatprep.subr.bf16.mxu0 0
      %460 = vmatpush2.bf16.msra.mxu0 0
      %461 = vmatprep.subr.bf16.mxu0 0
      %462 = vmatpush2.bf16.msra.mxu0 0
      %463 = vmatprep.subr.bf16.mxu0 0
      %464 = vmatpush2.bf16.msra.mxu0 0
      %465 = vmatprep.subr.bf16.mxu0 0
      %466 = vmatpush2.bf16.msra.mxu0 0
      %467 = vmatprep.subr.bf16.mxu0 0
      %468 = vmatpush2.bf16.msra.mxu0 0
      %469 = vmatprep.subr.bf16.mxu0 0
      %470 = vmatpush2.bf16.msra.mxu0 0
      %471 = vmatprep.mubr.bf16.mxu0 0
      %472 = vmatmul.mubr.bf16.gmra.mxu0 %v302
      %v473 = vpop.f32.mrf.mxu0
      %v474 = vadd.f32 %v248, %v473
      %v475 = vpop.f32.mrf.mxu0
      %v476 = vadd.f32 %v248, %v475
      %v477 = vpop.f32.mrf.mxu0
      %v478 = vadd.f32 %v253, %v477
      %v479 = vpop.f32.mrf.mxu0
      %v480 = vadd.f32 %v253, %v479
      %481 = vdwg.mxu0
      %482 = vmatprep.subr.bf16.mxu0 0
      %483 = vmatpush1.bf16.msra.mxu0 0
      %484 = vmatprep.subr.bf16.mxu0 0
      %485 = vmatpush1.bf16.msra.mxu0 0
      %486 = vmatprep.subr.bf16.mxu0 0
      %487 = vmatpush1.bf16.msra.mxu0 0
      %488 = vmatprep.subr.bf16.mxu0 0
      %489 = vmatpush1.bf16.msra.mxu0 0
      %490 = vmatprep.subr.bf16.mxu0 0
      %491 = vmatpush1.bf16.msra.mxu0 0
      %492 = vmatprep.subr.bf16.mxu0 0
      %493 = vmatpush1.bf16.msra.mxu0 0
      %494 = vmatprep.subr.bf16.mxu0 0
      %495 = vmatpush1.bf16.msra.mxu0 0
      %496 = vmatprep.subr.bf16.mxu0 %v327
      %497 = vmatpush1.bf16.msra.mxu0 %v324
      %498 = vmatprep.subr.bf16.mxu0 0
      %499 = vmatpush2.bf16.msra.mxu0 0
      %500 = vmatprep.subr.bf16.mxu0 0
      %501 = vmatpush2.bf16.msra.mxu0 0
      %502 = vmatprep.subr.bf16.mxu0 0
      %503 = vmatpush2.bf16.msra.mxu0 0
      %504 = vmatprep.subr.bf16.mxu0 0
      %505 = vmatpush2.bf16.msra.mxu0 0
      %506 = vmatprep.subr.bf16.mxu0 0
      %507 = vmatpush2.bf16.msra.mxu0 0
      %508 = vmatprep.subr.bf16.mxu0 0
      %509 = vmatpush2.bf16.msra.mxu0 0
      %510 = vmatprep.subr.bf16.mxu0 0
      %511 = vmatpush2.bf16.msra.mxu0 0
      %512 = vmatprep.subr.bf16.mxu0 0
      %513 = vmatpush2.bf16.msra.mxu0 0
      %514 = vmatprep.mubr.bf16.mxu0 0
      %515 = vmatmul.mubr.bf16.gmra.mxu0 %v302
      %v516 = vpop.f32.mrf.mxu0
      %v517 = vadd.f32 %v248, %v516
      %v518 = vpop.f32.mrf.mxu0
      %v519 = vadd.f32 %v248, %v518
      %v520 = vpop.f32.mrf.mxu0
      %v521 = vadd.f32 %v253, %v520
      %v522 = vpop.f32.mrf.mxu0
      %v523 = vadd.f32 %v253, %v522
      %524 = vdwg.mxu0
      %525 = vmatprep.subr.bf16.mxu0 0
      %526 = vmatpush1.bf16.msra.mxu0 0
      %527 = vmatprep.subr.bf16.mxu0 0
      %528 = vmatpush1.bf16.msra.mxu0 0
      %529 = vmatprep.subr.bf16.mxu0 0
      %530 = vmatpush1.bf16.msra.mxu0 0
      %531 = vmatprep.subr.bf16.mxu0 0
      %532 = vmatpush1.bf16.msra.mxu0 0
      %533 = vmatprep.subr.bf16.mxu0 0
      %534 = vmatpush1.bf16.msra.mxu0 0
      %535 = vmatprep.subr.bf16.mxu0 0
      %536 = vmatpush1.bf16.msra.mxu0 0
      %537 = vmatprep.subr.bf16.mxu0 0
      %538 = vmatpush1.bf16.msra.mxu0 0
      %539 = vmatprep.subr.bf16.mxu0 %v333
      %540 = vmatpush1.bf16.msra.mxu0 %v330
      %541 = vmatprep.subr.bf16.mxu0 0
      %542 = vmatpush2.bf16.msra.mxu0 0
      %543 = vmatprep.subr.bf16.mxu0 0
      %544 = vmatpush2.bf16.msra.mxu0 0
      %545 = vmatprep.subr.bf16.mxu0 0
      %546 = vmatpush2.bf16.msra.mxu0 0
      %547 = vmatprep.subr.bf16.mxu0 0
      %548 = vmatpush2.bf16.msra.mxu0 0
      %549 = vmatprep.subr.bf16.mxu0 0
      %550 = vmatpush2.bf16.msra.mxu0 0
      %551 = vmatprep.subr.bf16.mxu0 0
      %552 = vmatpush2.bf16.msra.mxu0 0
      %553 = vmatprep.subr.bf16.mxu0 0
      %554 = vmatpush2.bf16.msra.mxu0 0
      %555 = vmatprep.subr.bf16.mxu0 0
      %556 = vmatpush2.bf16.msra.mxu0 0
      %557 = vmatprep.mubr.bf16.mxu0 0
      %558 = vmatmul.mubr.bf16.gmra.mxu0 %v302
      %v559 = vpop.f32.mrf.mxu0
      %v560 = vadd.f32 %v248, %v559
      %v561 = vpop.f32.mrf.mxu0
      %v562 = vadd.f32 %v248, %v561
      %v563 = vpop.f32.mrf.mxu0
      %v564 = vadd.f32 %v253, %v563
      %v565 = vpop.f32.mrf.mxu0
      %v566 = vadd.f32 %v253, %v565
      %567 = vdwg.mxu0
      %568 = vmatprep.subr.bf16.mxu0 0
      %569 = vmatpush1.bf16.msra.mxu0 0
      %570 = vmatprep.subr.bf16.mxu0 0
      %571 = vmatpush1.bf16.msra.mxu0 0
      %572 = vmatprep.subr.bf16.mxu0 0
      %573 = vmatpush1.bf16.msra.mxu0 0
      %574 = vmatprep.subr.bf16.mxu0 0
      %575 = vmatpush1.bf16.msra.mxu0 0
      %576 = vmatprep.subr.bf16.mxu0 0
      %577 = vmatpush1.bf16.msra.mxu0 0
      %578 = vmatprep.subr.bf16.mxu0 0
      %579 = vmatpush1.bf16.msra.mxu0 0
      %580 = vmatprep.subr.bf16.mxu0 0
      %581 = vmatpush1.bf16.msra.mxu0 0
      %582 = vmatprep.subr.bf16.mxu0 %v339
      %583 = vmatpush1.bf16.msra.mxu0 %v336
      %584 = vmatprep.subr.bf16.mxu0 0
      %585 = vmatpush2.bf16.msra.mxu0 0
      %586 = vmatprep.subr.bf16.mxu0 0
      %587 = vmatpush2.bf16.msra.mxu0 0
      %588 = vmatprep.subr.bf16.mxu0 0
      %589 = vmatpush2.bf16.msra.mxu0 0
      %590 = vmatprep.subr.bf16.mxu0 0
      %591 = vmatpush2.bf16.msra.mxu0 0
      %592 = vmatprep.subr.bf16.mxu0 0
      %593 = vmatpush2.bf16.msra.mxu0 0
      %594 = vmatprep.subr.bf16.mxu0 0
      %595 = vmatpush2.bf16.msra.mxu0 0
      %596 = vmatprep.subr.bf16.mxu0 0
      %597 = vmatpush2.bf16.msra.mxu0 0
      %598 = vmatprep.subr.bf16.mxu0 0
      %599 = vmatpush2.bf16.msra.mxu0 0
      %600 = vmatprep.mubr.bf16.mxu0 0
      %601 = vmatmul.mubr.bf16.gmra.mxu0 %v302
      %v602 = vpop.f32.mrf.mxu0
      %v603 = vadd.f32 %v248, %v602
      %v604 = vpop.f32.mrf.mxu0
      %v605 = vadd.f32 %v248, %v604
      %v606 = vpop.f32.mrf.mxu0
      %v607 = vadd.f32 %v253, %v606
      %v608 = vpop.f32.mrf.mxu0
      %v609 = vadd.f32 %v253, %v608
      %610 = vdwg.mxu0
      %611 = vmatprep.subr.bf16.mxu0 0
      %612 = vmatpush1.bf16.msra.mxu0 0
      %613 = vmatprep.subr.bf16.mxu0 0
      %614 = vmatpush1.bf16.msra.mxu0 0
      %615 = vmatprep.subr.bf16.mxu0 0
      %616 = vmatpush1.bf16.msra.mxu0 0
      %617 = vmatprep.subr.bf16.mxu0 0
      %618 = vmatpush1.bf16.msra.mxu0 0
      %619 = vmatprep.subr.bf16.mxu0 0
      %620 = vmatpush1.bf16.msra.mxu0 0
      %621 = vmatprep.subr.bf16.mxu0 0
      %622 = vmatpush1.bf16.msra.mxu0 0
      %623 = vmatprep.subr.bf16.mxu0 0
      %624 = vmatpush1.bf16.msra.mxu0 0
      %625 = vmatprep.subr.bf16.mxu0 %v345
      %626 = vmatpush1.bf16.msra.mxu0 %v342
      %627 = vmatprep.subr.bf16.mxu0 0
      %628 = vmatpush2.bf16.msra.mxu0 0
      %629 = vmatprep.subr.bf16.mxu0 0
      %630 = vmatpush2.bf16.msra.mxu0 0
      %631 = vmatprep.subr.bf16.mxu0 0
      %632 = vmatpush2.bf16.msra.mxu0 0
      %633 = vmatprep.subr.bf16.mxu0 0
      %634 = vmatpush2.bf16.msra.mxu0 0
      %635 = vmatprep.subr.bf16.mxu0 0
      %636 = vmatpush2.bf16.msra.mxu0 0
      %637 = vmatprep.subr.bf16.mxu0 0
      %638 = vmatpush2.bf16.msra.mxu0 0
      %639 = vmatprep.subr.bf16.mxu0 0
      %640 = vmatpush2.bf16.msra.mxu0 0
      %641 = vmatprep.subr.bf16.mxu0 0
      %642 = vmatpush2.bf16.msra.mxu0 0
      %643 = vmatprep.mubr.bf16.mxu0 0
      %644 = vmatmul.mubr.bf16.gmra.mxu0 %v302
      %v645 = vpop.f32.mrf.mxu0
      %v646 = vadd.f32 %v248, %v645
      %v647 = vpop.f32.mrf.mxu0
      %v648 = vadd.f32 %v248, %v647
      %v649 = vpop.f32.mrf.mxu0
      %v650 = vadd.f32 %v253, %v649
      %v651 = vpop.f32.mrf.mxu0
      %v652 = vadd.f32 %v253, %v651
      %653 = vdwg.mxu0
      %654 = vmatprep.subr.bf16.mxu0 0
      %655 = vmatpush1.bf16.msra.mxu0 0
      %656 = vmatprep.subr.bf16.mxu0 0
      %657 = vmatpush1.bf16.msra.mxu0 0
      %658 = vmatprep.subr.bf16.mxu0 0
      %659 = vmatpush1.bf16.msra.mxu0 0
      %660 = vmatprep.subr.bf16.mxu0 0
      %661 = vmatpush1.bf16.msra.mxu0 0
      %662 = vmatprep.subr.bf16.mxu0 0
      %663 = vmatpush1.bf16.msra.mxu0 0
      %664 = vmatprep.subr.bf16.mxu0 0
      %665 = vmatpush1.bf16.msra.mxu0 0
      %666 = vmatprep.subr.bf16.mxu0 0
      %667 = vmatpush1.bf16.msra.mxu0 0
      %668 = vmatprep.subr.bf16.mxu0 %v351
      %669 = vmatpush1.bf16.msra.mxu0 %v348
      %670 = vmatprep.subr.bf16.mxu0 0
      %671 = vmatpush2.bf16.msra.mxu0 0
      %672 = vmatprep.subr.bf16.mxu0 0
      %673 = vmatpush2.bf16.msra.mxu0 0
      %674 = vmatprep.subr.bf16.mxu0 0
      %675 = vmatpush2.bf16.msra.mxu0 0
      %676 = vmatprep.subr.bf16.mxu0 0
      %677 = vmatpush2.bf16.msra.mxu0 0
      %678 = vmatprep.subr.bf16.mxu0 0
      %679 = vmatpush2.bf16.msra.mxu0 0
      %680 = vmatprep.subr.bf16.mxu0 0
      %681 = vmatpush2.bf16.msra.mxu0 0
      %682 = vmatprep.subr.bf16.mxu0 0
      %683 = vmatpush2.bf16.msra.mxu0 0
      %684 = vmatprep.subr.bf16.mxu0 0
      %685 = vmatpush2.bf16.msra.mxu0 0
      %686 = vmatprep.mubr.bf16.mxu0 0
      %687 = vmatmul.mubr.bf16.gmra.mxu0 %v302
      %v688 = vpop.f32.mrf.mxu0
      %v689 = vadd.f32 %v248, %v688
      %v690 = vpop.f32.mrf.mxu0
      %v691 = vadd.f32 %v248, %v690
      %v692 = vpop.f32.mrf.mxu0
      %v693 = vadd.f32 %v253, %v692
      %v694 = vpop.f32.mrf.mxu0
      %v695 = vadd.f32 %v253, %v694
      %696 = vdwg.mxu0
      %v697 = vpack.c.bf16 %v392, %v388
      %v698 = vpack.c.bf16 %v394, %v390
      %v699 = vpack.c.bf16 %v435, %v431
      %v700 = vpack.c.bf16 %v437, %v433
      %v701 = vpack.c.bf16 %v478, %v474
      %v702 = vpack.c.bf16 %v480, %v476
      %v703 = vpack.c.bf16 %v521, %v517
      %v704 = vpack.c.bf16 %v523, %v519
      %v705 = vpack.c.bf16 %v564, %v560
      %v706 = vpack.c.bf16 %v566, %v562
      %v707 = vpack.c.bf16 %v607, %v603
      %v708 = vpack.c.bf16 %v609, %v605
      %v709 = vpack.c.bf16 %v650, %v646
      %v710 = vpack.c.bf16 %v652, %v648
      %v711 = vpack.c.bf16 %v693, %v689
      %v712 = vpack.c.bf16 %v695, %v691
      %v713 = vmul.bf16 %v697, 1056980736
      %v714 = vmul.bf16 %v698, 1056980736
      %v715 = vmul.bf16 %v699, 1056980736
      %v716 = vmul.bf16 %v700, 1056980736
      %v717 = vmul.bf16 %v701, 1056980736
      %v718 = vmul.bf16 %v702, 1056980736
      %v719 = vmul.bf16 %v703, 1056980736
      %v720 = vmul.bf16 %v704, 1056980736
      %v721 = vmul.bf16 %v705, 1056980736
      %v722 = vmul.bf16 %v706, 1056980736
      %v723 = vmul.bf16 %v707, 1056980736
      %v724 = vmul.bf16 %v708, 1056980736
      %v725 = vmul.bf16 %v709, 1056980736
      %v726 = vmul.bf16 %v710, 1056980736
      %v727 = vmul.bf16 %v711, 1056980736
      %v728 = vmul.bf16 %v712, 1056980736
      %v729 = vmul.bf16 %v697, 1027030327
      %v730 = vmul.bf16 %v698, 1027030327
      %v731 = vmul.bf16 %v699, 1027030327
      %v732 = vmul.bf16 %v700, 1027030327
      %v733 = vmul.bf16 %v701, 1027030327
      %v734 = vmul.bf16 %v702, 1027030327
      %v735 = vmul.bf16 %v703, 1027030327
      %v736 = vmul.bf16 %v704, 1027030327
      %v737 = vmul.bf16 %v705, 1027030327
      %v738 = vmul.bf16 %v706, 1027030327
      %v739 = vmul.bf16 %v707, 1027030327
      %v740 = vmul.bf16 %v708, 1027030327
      %v741 = vmul.bf16 %v709, 1027030327
      %v742 = vmul.bf16 %v710, 1027030327
      %v743 = vmul.bf16 %v711, 1027030327
      %v744 = vmul.bf16 %v712, 1027030327
      %v745 = vmul.bf16 %v729, %v697
      %v746 = vmul.bf16 %v730, %v698
      %v747 = vmul.bf16 %v731, %v699
      %v748 = vmul.bf16 %v732, %v700
      %v749 = vmul.bf16 %v733, %v701
      %v750 = vmul.bf16 %v734, %v702
      %v751 = vmul.bf16 %v735, %v703
      %v752 = vmul.bf16 %v736, %v704
      %v753 = vmul.bf16 %v737, %v705
      %v754 = vmul.bf16 %v738, %v706
      %v755 = vmul.bf16 %v739, %v707
      %v756 = vmul.bf16 %v740, %v708
      %v757 = vmul.bf16 %v741, %v709
      %v758 = vmul.bf16 %v742, %v710
      %v759 = vmul.bf16 %v743, %v711
      %v760 = vmul.bf16 %v744, %v712
      %v761 = vmul.bf16 %v745, %v697
      %v762 = vmul.bf16 %v746, %v698
      %v763 = vmul.bf16 %v747, %v699
      %v764 = vmul.bf16 %v748, %v700
      %v765 = vmul.bf16 %v749, %v701
      %v766 = vmul.bf16 %v750, %v702
      %v767 = vmul.bf16 %v751, %v703
      %v768 = vmul.bf16 %v752, %v704
      %v769 = vmul.bf16 %v753, %v705
      %v770 = vmul.bf16 %v754, %v706
      %v771 = vmul.bf16 %v755, %v707
      %v772 = vmul.bf16 %v756, %v708
      %v773 = vmul.bf16 %v757, %v709
      %v774 = vmul.bf16 %v758, %v710
      %v775 = vmul.bf16 %v759, %v711
      %v776 = vmul.bf16 %v760, %v712
      %v777 = vadd.bf16 %v697, %v761
      %v778 = vadd.bf16 %v698, %v762
      %v779 = vadd.bf16 %v699, %v763
      %v780 = vadd.bf16 %v700, %v764
      %v781 = vadd.bf16 %v701, %v765
      %v782 = vadd.bf16 %v702, %v766
      %v783 = vadd.bf16 %v703, %v767
      %v784 = vadd.bf16 %v704, %v768
      %v785 = vadd.bf16 %v705, %v769
      %v786 = vadd.bf16 %v706, %v770
      %v787 = vadd.bf16 %v707, %v771
      %v788 = vadd.bf16 %v708, %v772
      %v789 = vadd.bf16 %v709, %v773
      %v790 = vadd.bf16 %v710, %v774
      %v791 = vadd.bf16 %v711, %v775
      %v792 = vadd.bf16 %v712, %v776
      %v793 = vmul.bf16 %v777, 1061961548
      %v794 = vmul.bf16 %v778, 1061961548
      %v795 = vmul.bf16 %v779, 1061961548
      %v796 = vmul.bf16 %v780, 1061961548
      %v797 = vmul.bf16 %v781, 1061961548
      %v798 = vmul.bf16 %v782, 1061961548
      %v799 = vmul.bf16 %v783, 1061961548
      %v800 = vmul.bf16 %v784, 1061961548
      %v801 = vmul.bf16 %v785, 1061961548
      %v802 = vmul.bf16 %v786, 1061961548
      %v803 = vmul.bf16 %v787, 1061961548
      %v804 = vmul.bf16 %v788, 1061961548
      %v805 = vmul.bf16 %v789, 1061961548
      %v806 = vmul.bf16 %v790, 1061961548
      %v807 = vmul.bf16 %v791, 1061961548
      %v808 = vmul.bf16 %v792, 1061961548
      %v809 = vtanh.bf16.pop %v793
      %v810 = vtanh.bf16.pop %v794
      %v811 = vtanh.bf16.pop %v795
      %v812 = vtanh.bf16.pop %v796
      %v813 = vtanh.bf16.pop %v797
      %v814 = vtanh.bf16.pop %v798
      %v815 = vtanh.bf16.pop %v799
      %v816 = vtanh.bf16.pop %v800
      %v817 = vtanh.bf16.pop %v801
      %v818 = vtanh.bf16.pop %v802
      %v819 = vtanh.bf16.pop %v803
      %v820 = vtanh.bf16.pop %v804
      %v821 = vtanh.bf16.pop %v805
      %v822 = vtanh.bf16.pop %v806
      %v823 = vtanh.bf16.pop %v807
      %v824 = vtanh.bf16.pop %v808
      %v825 = vadd.bf16 %v809, 1065369472
      %v826 = vadd.bf16 %v810, 1065369472
      %v827 = vadd.bf16 %v811, 1065369472
      %v828 = vadd.bf16 %v812, 1065369472
      %v829 = vadd.bf16 %v813, 1065369472
      %v830 = vadd.bf16 %v814, 1065369472
      %v831 = vadd.bf16 %v815, 1065369472
      %v832 = vadd.bf16 %v816, 1065369472
      %v833 = vadd.bf16 %v817, 1065369472
      %v834 = vadd.bf16 %v818, 1065369472
      %v835 = vadd.bf16 %v819, 1065369472
      %v836 = vadd.bf16 %v820, 1065369472
      %v837 = vadd.bf16 %v821, 1065369472
      %v838 = vadd.bf16 %v822, 1065369472
      %v839 = vadd.bf16 %v823, 1065369472
      %v840 = vadd.bf16 %v824, 1065369472
      %v841 = vmul.bf16 %v713, %v825
      %v842 = vmul.bf16 %v714, %v826
      %v843 = vmul.bf16 %v715, %v827
      %v844 = vmul.bf16 %v716, %v828
      %v845 = vmul.bf16 %v717, %v829
      %v846 = vmul.bf16 %v718, %v830
      %v847 = vmul.bf16 %v719, %v831
      %v848 = vmul.bf16 %v720, %v832
      %v849 = vmul.bf16 %v721, %v833
      %v850 = vmul.bf16 %v722, %v834
      %v851 = vmul.bf16 %v723, %v835
      %v852 = vmul.bf16 %v724, %v836
      %v853 = vmul.bf16 %v725, %v837
      %v854 = vmul.bf16 %v726, %v838
      %v855 = vmul.bf16 %v727, %v839
      %v856 = vmul.bf16 %v728, %v840
      %v857 = vld [vmem:[%s3] sm:$0x3]
      %v858 = vld [vmem:[%s4] sm:$0x7]
      %860 = vset.pattern.permute.xlu0 0
      %861 = vperm.xlu0 %860, %v858
      %v862 = vpop.permute.xlu0 %861
      %vm864 = vcmask 130048
      %v866 = vsel %vm864, %v857, 0
      %868 = vmatprep.subr.bf16.mxu0 0
      %869 = vmatpush1.bf16.msra.mxu0 0
      %870 = vmatprep.subr.bf16.mxu0 0
      %871 = vmatpush1.bf16.msra.mxu0 0
      %872 = vmatprep.subr.bf16.mxu0 0
      %873 = vmatpush1.bf16.msra.mxu0 0
      %874 = vmatprep.subr.bf16.mxu0 0
      %875 = vmatpush1.bf16.msra.mxu0 0
      %876 = vmatprep.subr.bf16.mxu0 0
      %877 = vmatpush1.bf16.msra.mxu0 0
      %878 = vmatprep.subr.bf16.mxu0 0
      %879 = vmatpush1.bf16.msra.mxu0 0
      %880 = vmatprep.subr.bf16.mxu0 0
      %881 = vmatpush1.bf16.msra.mxu0 0
      %882 = vmatprep.subr.bf16.mxu0 %v842
      %883 = vmatpush1.bf16.msra.mxu0 %v841
      %884 = vmatprep.subr.bf16.mxu0 0
      %885 = vmatpush2.bf16.msra.mxu0 0
      %886 = vmatprep.subr.bf16.mxu0 0
      %887 = vmatpush2.bf16.msra.mxu0 0
      %888 = vmatprep.subr.bf16.mxu0 0
      %889 = vmatpush2.bf16.msra.mxu0 0
      %890 = vmatprep.subr.bf16.mxu0 0
      %891 = vmatpush2.bf16.msra.mxu0 0
      %892 = vmatprep.subr.bf16.mxu0 0
      %893 = vmatpush2.bf16.msra.mxu0 0
      %894 = vmatprep.subr.bf16.mxu0 0
      %895 = vmatpush2.bf16.msra.mxu0 0
      %896 = vmatprep.subr.bf16.mxu0 0
      %897 = vmatpush2.bf16.msra.mxu0 0
      %898 = vmatprep.subr.bf16.mxu0 0
      %899 = vmatpush2.bf16.msra.mxu0 0
      %900 = vmatprep.mubr.bf16.mxu0 0
      %901 = vmatmul.mubr.bf16.gmra.mxu0 %v866
      %v902 = vpop.f32.mrf.mxu0
      %v903 = vadd.f32 %v862, %v902
      %v904 = vpop.f32.mrf.mxu0
      %v905 = vadd.f32 %v862, %v904
      %v906 = vpop.f32.mrf.mxu0
      %v907 = vpop.f32.mrf.mxu0
      %908 = vdwg.mxu0
      %909 = vmatprep.subr.bf16.mxu0 0
      %910 = vmatpush1.bf16.msra.mxu0 0
      %911 = vmatprep.subr.bf16.mxu0 0
      %912 = vmatpush1.bf16.msra.mxu0 0
      %913 = vmatprep.subr.bf16.mxu0 0
      %914 = vmatpush1.bf16.msra.mxu0 0
      %915 = vmatprep.subr.bf16.mxu0 0
      %916 = vmatpush1.bf16.msra.mxu0 0
      %917 = vmatprep.subr.bf16.mxu0 0
      %918 = vmatpush1.bf16.msra.mxu0 0
      %919 = vmatprep.subr.bf16.mxu0 0
      %920 = vmatpush1.bf16.msra.mxu0 0
      %921 = vmatprep.subr.bf16.mxu0 0
      %922 = vmatpush1.bf16.msra.mxu0 0
      %923 = vmatprep.subr.bf16.mxu0 %v844
      %924 = vmatpush1.bf16.msra.mxu0 %v843
      %925 = vmatprep.subr.bf16.mxu0 0
      %926 = vmatpush2.bf16.msra.mxu0 0
      %927 = vmatprep.subr.bf16.mxu0 0
      %928 = vmatpush2.bf16.msra.mxu0 0
      %929 = vmatprep.subr.bf16.mxu0 0
      %930 = vmatpush2.bf16.msra.mxu0 0
      %931 = vmatprep.subr.bf16.mxu0 0
      %932 = vmatpush2.bf16.msra.mxu0 0
      %933 = vmatprep.subr.bf16.mxu0 0
      %934 = vmatpush2.bf16.msra.mxu0 0
      %935 = vmatprep.subr.bf16.mxu0 0
      %936 = vmatpush2.bf16.msra.mxu0 0
      %937 = vmatprep.subr.bf16.mxu0 0
      %938 = vmatpush2.bf16.msra.mxu0 0
      %939 = vmatprep.subr.bf16.mxu0 0
      %940 = vmatpush2.bf16.msra.mxu0 0
      %941 = vmatprep.mubr.bf16.mxu0 0
      %942 = vmatmul.mubr.bf16.gmra.mxu0 %v866
      %v943 = vpop.f32.mrf.mxu0
      %v944 = vadd.f32 %v862, %v943
      %v945 = vpop.f32.mrf.mxu0
      %v946 = vadd.f32 %v862, %v945
      %v947 = vpop.f32.mrf.mxu0
      %v948 = vpop.f32.mrf.mxu0
      %949 = vdwg.mxu0
      %950 = vmatprep.subr.bf16.mxu0 0
      %951 = vmatpush1.bf16.msra.mxu0 0
      %952 = vmatprep.subr.bf16.mxu0 0
      %953 = vmatpush1.bf16.msra.mxu0 0
      %954 = vmatprep.subr.bf16.mxu0 0
      %955 = vmatpush1.bf16.msra.mxu0 0
      %956 = vmatprep.subr.bf16.mxu0 0
      %957 = vmatpush1.bf16.msra.mxu0 0
      %958 = vmatprep.subr.bf16.mxu0 0
      %959 = vmatpush1.bf16.msra.mxu0 0
      %960 = vmatprep.subr.bf16.mxu0 0
      %961 = vmatpush1.bf16.msra.mxu0 0
      %962 = vmatprep.subr.bf16.mxu0 0
      %963 = vmatpush1.bf16.msra.mxu0 0
      %964 = vmatprep.subr.bf16.mxu0 %v846
      %965 = vmatpush1.bf16.msra.mxu0 %v845
      %966 = vmatprep.subr.bf16.mxu0 0
      %967 = vmatpush2.bf16.msra.mxu0 0
      %968 = vmatprep.subr.bf16.mxu0 0
      %969 = vmatpush2.bf16.msra.mxu0 0
      %970 = vmatprep.subr.bf16.mxu0 0
      %971 = vmatpush2.bf16.msra.mxu0 0
      %972 = vmatprep.subr.bf16.mxu0 0
      %973 = vmatpush2.bf16.msra.mxu0 0
      %974 = vmatprep.subr.bf16.mxu0 0
      %975 = vmatpush2.bf16.msra.mxu0 0
      %976 = vmatprep.subr.bf16.mxu0 0
      %977 = vmatpush2.bf16.msra.mxu0 0
      %978 = vmatprep.subr.bf16.mxu0 0
      %979 = vmatpush2.bf16.msra.mxu0 0
      %980 = vmatprep.subr.bf16.mxu0 0
      %981 = vmatpush2.bf16.msra.mxu0 0
      %982 = vmatprep.mubr.bf16.mxu0 0
      %983 = vmatmul.mubr.bf16.gmra.mxu0 %v866
      %v984 = vpop.f32.mrf.mxu0
      %v985 = vadd.f32 %v862, %v984
      %v986 = vpop.f32.mrf.mxu0
      %v987 = vadd.f32 %v862, %v986
      %v988 = vpop.f32.mrf.mxu0
      %v989 = vpop.f32.mrf.mxu0
      %990 = vdwg.mxu0
      %991 = vmatprep.subr.bf16.mxu0 0
      %992 = vmatpush1.bf16.msra.mxu0 0
      %993 = vmatprep.subr.bf16.mxu0 0
      %994 = vmatpush1.bf16.msra.mxu0 0
      %995 = vmatprep.subr.bf16.mxu0 0
      %996 = vmatpush1.bf16.msra.mxu0 0
      %997 = vmatprep.subr.bf16.mxu0 0
      %998 = vmatpush1.bf16.msra.mxu0 0
      %999 = vmatprep.subr.bf16.mxu0 0
      %1000 = vmatpush1.bf16.msra.mxu0 0
      %1001 = vmatprep.subr.bf16.mxu0 0
      %1002 = vmatpush1.bf16.msra.mxu0 0
      %1003 = vmatprep.subr.bf16.mxu0 0
      %1004 = vmatpush1.bf16.msra.mxu0 0
      %1005 = vmatprep.subr.bf16.mxu0 %v848
      %1006 = vmatpush1.bf16.msra.mxu0 %v847
      %1007 = vmatprep.subr.bf16.mxu0 0
      %1008 = vmatpush2.bf16.msra.mxu0 0
      %1009 = vmatprep.subr.bf16.mxu0 0
      %1010 = vmatpush2.bf16.msra.mxu0 0
      %1011 = vmatprep.subr.bf16.mxu0 0
      %1012 = vmatpush2.bf16.msra.mxu0 0
      %1013 = vmatprep.subr.bf16.mxu0 0
      %1014 = vmatpush2.bf16.msra.mxu0 0
      %1015 = vmatprep.subr.bf16.mxu0 0
      %1016 = vmatpush2.bf16.msra.mxu0 0
      %1017 = vmatprep.subr.bf16.mxu0 0
      %1018 = vmatpush2.bf16.msra.mxu0 0
      %1019 = vmatprep.subr.bf16.mxu0 0
      %1020 = vmatpush2.bf16.msra.mxu0 0
      %1021 = vmatprep.subr.bf16.mxu0 0
      %1022 = vmatpush2.bf16.msra.mxu0 0
      %1023 = vmatprep.mubr.bf16.mxu0 0
      %1024 = vmatmul.mubr.bf16.gmra.mxu0 %v866
      %v1025 = vpop.f32.mrf.mxu0
      %v1026 = vadd.f32 %v862, %v1025
      %v1027 = vpop.f32.mrf.mxu0
      %v1028 = vadd.f32 %v862, %v1027
      %v1029 = vpop.f32.mrf.mxu0
      %v1030 = vpop.f32.mrf.mxu0
      %1031 = vdwg.mxu0
      %1032 = vmatprep.subr.bf16.mxu0 0
      %1033 = vmatpush1.bf16.msra.mxu0 0
      %1034 = vmatprep.subr.bf16.mxu0 0
      %1035 = vmatpush1.bf16.msra.mxu0 0
      %1036 = vmatprep.subr.bf16.mxu0 0
      %1037 = vmatpush1.bf16.msra.mxu0 0
      %1038 = vmatprep.subr.bf16.mxu0 0
      %1039 = vmatpush1.bf16.msra.mxu0 0
      %1040 = vmatprep.subr.bf16.mxu0 0
      %1041 = vmatpush1.bf16.msra.mxu0 0
      %1042 = vmatprep.subr.bf16.mxu0 0
      %1043 = vmatpush1.bf16.msra.mxu0 0
      %1044 = vmatprep.subr.bf16.mxu0 0
      %1045 = vmatpush1.bf16.msra.mxu0 0
      %1046 = vmatprep.subr.bf16.mxu0 %v850
      %1047 = vmatpush1.bf16.msra.mxu0 %v849
      %1048 = vmatprep.subr.bf16.mxu0 0
      %1049 = vmatpush2.bf16.msra.mxu0 0
      %1050 = vmatprep.subr.bf16.mxu0 0
      %1051 = vmatpush2.bf16.msra.mxu0 0
      %1052 = vmatprep.subr.bf16.mxu0 0
      %1053 = vmatpush2.bf16.msra.mxu0 0
      %1054 = vmatprep.subr.bf16.mxu0 0
      %1055 = vmatpush2.bf16.msra.mxu0 0
      %1056 = vmatprep.subr.bf16.mxu0 0
      %1057 = vmatpush2.bf16.msra.mxu0 0
      %1058 = vmatprep.subr.bf16.mxu0 0
      %1059 = vmatpush2.bf16.msra.mxu0 0
      %1060 = vmatprep.subr.bf16.mxu0 0
      %1061 = vmatpush2.bf16.msra.mxu0 0
      %1062 = vmatprep.subr.bf16.mxu0 0
      %1063 = vmatpush2.bf16.msra.mxu0 0
      %1064 = vmatprep.mubr.bf16.mxu0 0
      %1065 = vmatmul.mubr.bf16.gmra.mxu0 %v866
      %v1066 = vpop.f32.mrf.mxu0
      %v1067 = vadd.f32 %v862, %v1066
      %v1068 = vpop.f32.mrf.mxu0
      %v1069 = vadd.f32 %v862, %v1068
      %v1070 = vpop.f32.mrf.mxu0
      %v1071 = vpop.f32.mrf.mxu0
      %1072 = vdwg.mxu0
      %1073 = vmatprep.subr.bf16.mxu0 0
      %1074 = vmatpush1.bf16.msra.mxu0 0
      %1075 = vmatprep.subr.bf16.mxu0 0
      %1076 = vmatpush1.bf16.msra.mxu0 0
      %1077 = vmatprep.subr.bf16.mxu0 0
      %1078 = vmatpush1.bf16.msra.mxu0 0
      %1079 = vmatprep.subr.bf16.mxu0 0
      %1080 = vmatpush1.bf16.msra.mxu0 0
      %1081 = vmatprep.subr.bf16.mxu0 0
      %1082 = vmatpush1.bf16.msra.mxu0 0
      %1083 = vmatprep.subr.bf16.mxu0 0
      %1084 = vmatpush1.bf16.msra.mxu0 0
      %1085 = vmatprep.subr.bf16.mxu0 0
      %1086 = vmatpush1.bf16.msra.mxu0 0
      %1087 = vmatprep.subr.bf16.mxu0 %v852
      %1088 = vmatpush1.bf16.msra.mxu0 %v851
      %1089 = vmatprep.subr.bf16.mxu0 0
      %1090 = vmatpush2.bf16.msra.mxu0 0
      %1091 = vmatprep.subr.bf16.mxu0 0
      %1092 = vmatpush2.bf16.msra.mxu0 0
      %1093 = vmatprep.subr.bf16.mxu0 0
      %1094 = vmatpush2.bf16.msra.mxu0 0
      %1095 = vmatprep.subr.bf16.mxu0 0
      %1096 = vmatpush2.bf16.msra.mxu0 0
      %1097 = vmatprep.subr.bf16.mxu0 0
      %1098 = vmatpush2.bf16.msra.mxu0 0
      %1099 = vmatprep.subr.bf16.mxu0 0
      %1100 = vmatpush2.bf16.msra.mxu0 0
      %1101 = vmatprep.subr.bf16.mxu0 0
      %1102 = vmatpush2.bf16.msra.mxu0 0
      %1103 = vmatprep.subr.bf16.mxu0 0
      %1104 = vmatpush2.bf16.msra.mxu0 0
      %1105 = vmatprep.mubr.bf16.mxu0 0
      %1106 = vmatmul.mubr.bf16.gmra.mxu0 %v866
      %v1107 = vpop.f32.mrf.mxu0
      %v1108 = vadd.f32 %v862, %v1107
      %v1109 = vpop.f32.mrf.mxu0
      %v1110 = vadd.f32 %v862, %v1109
      %v1111 = vpop.f32.mrf.mxu0
      %v1112 = vpop.f32.mrf.mxu0
      %1113 = vdwg.mxu0
      %1114 = vmatprep.subr.bf16.mxu0 0
      %1115 = vmatpush1.bf16.msra.mxu0 0
      %1116 = vmatprep.subr.bf16.mxu0 0
      %1117 = vmatpush1.bf16.msra.mxu0 0
      %1118 = vmatprep.subr.bf16.mxu0 0
      %1119 = vmatpush1.bf16.msra.mxu0 0
      %1120 = vmatprep.subr.bf16.mxu0 0
      %1121 = vmatpush1.bf16.msra.mxu0 0
      %1122 = vmatprep.subr.bf16.mxu0 0
      %1123 = vmatpush1.bf16.msra.mxu0 0
      %1124 = vmatprep.subr.bf16.mxu0 0
      %1125 = vmatpush1.bf16.msra.mxu0 0
      %1126 = vmatprep.subr.bf16.mxu0 0
      %1127 = vmatpush1.bf16.msra.mxu0 0
      %1128 = vmatprep.subr.bf16.mxu0 %v854
      %1129 = vmatpush1.bf16.msra.mxu0 %v853
      %1130 = vmatprep.subr.bf16.mxu0 0
      %1131 = vmatpush2.bf16.msra.mxu0 0
      %1132 = vmatprep.subr.bf16.mxu0 0
      %1133 = vmatpush2.bf16.msra.mxu0 0
      %1134 = vmatprep.subr.bf16.mxu0 0
      %1135 = vmatpush2.bf16.msra.mxu0 0
      %1136 = vmatprep.subr.bf16.mxu0 0
      %1137 = vmatpush2.bf16.msra.mxu0 0
      %1138 = vmatprep.subr.bf16.mxu0 0
      %1139 = vmatpush2.bf16.msra.mxu0 0
      %1140 = vmatprep.subr.bf16.mxu0 0
      %1141 = vmatpush2.bf16.msra.mxu0 0
      %1142 = vmatprep.subr.bf16.mxu0 0
      %1143 = vmatpush2.bf16.msra.mxu0 0
      %1144 = vmatprep.subr.bf16.mxu0 0
      %1145 = vmatpush2.bf16.msra.mxu0 0
      %1146 = vmatprep.mubr.bf16.mxu0 0
      %1147 = vmatmul.mubr.bf16.gmra.mxu0 %v866
      %v1148 = vpop.f32.mrf.mxu0
      %v1149 = vadd.f32 %v862, %v1148
      %v1150 = vpop.f32.mrf.mxu0
      %v1151 = vadd.f32 %v862, %v1150
      %v1152 = vpop.f32.mrf.mxu0
      %v1153 = vpop.f32.mrf.mxu0
      %1154 = vdwg.mxu0
      %1155 = vmatprep.subr.bf16.mxu0 0
      %1156 = vmatpush1.bf16.msra.mxu0 0
      %1157 = vmatprep.subr.bf16.mxu0 0
      %1158 = vmatpush1.bf16.msra.mxu0 0
      %1159 = vmatprep.subr.bf16.mxu0 0
      %1160 = vmatpush1.bf16.msra.mxu0 0
      %1161 = vmatprep.subr.bf16.mxu0 0
      %1162 = vmatpush1.bf16.msra.mxu0 0
      %1163 = vmatprep.subr.bf16.mxu0 0
      %1164 = vmatpush1.bf16.msra.mxu0 0
      %1165 = vmatprep.subr.bf16.mxu0 0
      %1166 = vmatpush1.bf16.msra.mxu0 0
      %1167 = vmatprep.subr.bf16.mxu0 0
      %1168 = vmatpush1.bf16.msra.mxu0 0
      %1169 = vmatprep.subr.bf16.mxu0 %v856
      %1170 = vmatpush1.bf16.msra.mxu0 %v855
      %1171 = vmatprep.subr.bf16.mxu0 0
      %1172 = vmatpush2.bf16.msra.mxu0 0
      %1173 = vmatprep.subr.bf16.mxu0 0
      %1174 = vmatpush2.bf16.msra.mxu0 0
      %1175 = vmatprep.subr.bf16.mxu0 0
      %1176 = vmatpush2.bf16.msra.mxu0 0
      %1177 = vmatprep.subr.bf16.mxu0 0
      %1178 = vmatpush2.bf16.msra.mxu0 0
      %1179 = vmatprep.subr.bf16.mxu0 0
      %1180 = vmatpush2.bf16.msra.mxu0 0
      %1181 = vmatprep.subr.bf16.mxu0 0
      %1182 = vmatpush2.bf16.msra.mxu0 0
      %1183 = vmatprep.subr.bf16.mxu0 0
      %1184 = vmatpush2.bf16.msra.mxu0 0
      %1185 = vmatprep.subr.bf16.mxu0 0
      %1186 = vmatpush2.bf16.msra.mxu0 0
      %1187 = vmatprep.mubr.bf16.mxu0 0
      %1188 = vmatmul.mubr.bf16.gmra.mxu0 %v866
      %v1189 = vpop.f32.mrf.mxu0
      %v1190 = vadd.f32 %v862, %v1189
      %v1191 = vpop.f32.mrf.mxu0
      %v1192 = vadd.f32 %v862, %v1191
      %v1193 = vpop.f32.mrf.mxu0
      %v1194 = vpop.f32.mrf.mxu0
      %1195 = vdwg.mxu0
      %v1212 = vcombine.low %v903, %v905
      %v1213 = vcombine.low %v944, %v946
      %v1214 = vcombine.low %v985, %v987
      %v1215 = vcombine.low %v1026, %v1028
      %v1216 = vcombine.low %v1067, %v1069
      %v1217 = vcombine.low %v1108, %v1110
      %v1218 = vcombine.low %v1149, %v1151
      %v1219 = vcombine.low %v1190, %v1192
      %1228 = vst [vmem:[%s226] sm:$0x77] %v1212
      %1229 = vst [vmem:[%s226 + $0x8] sm:$0x77] %v1213
      %1230 = vst [vmem:[%s226 + $0x10] sm:$0x77] %v1214
      %1231 = vst [vmem:[%s226 + $0x18] sm:$0x77] %v1215
      %1232 = vst [vmem:[%s226 + $0x20] sm:$0x77] %v1216
      %1233 = vst [vmem:[%s226 + $0x28] sm:$0x77] %v1217
      %1234 = vst [vmem:[%s226 + $0x30] sm:$0x77] %v1218
      %1235 = vst [vmem:[%s226 + $0x38] sm:$0x77] %v1219
      %s1236 = smul.u32 16, %s16
      %p1237 = scmp.lt.s32.totalorder %s1236, 31
      %s1238 = scalar_select %p1237, %s1236, 31
      %s1239 = smul.addr %s1238, 4
      %s1240 = scalar_lea.vmem %s5, %s1239
      // Predicated region
      $region41: #{fno3d_forward.11} parent=39 // pred_check
        %p1241 = pneg %p144
      $region42: #{fno3d_forward.11} parent=39 // pred_check_branch
        %1243 = sbr.rel (%p1241) target = $region44
      $region43: #{fno3d_forward.11} parent=39 // pred_region
        %s1244 = smul.u32 16, %s16
      $region44: #{fno3d_forward.11} parent=39 // pred_fallthru
        _
    $region40: #{fno3d_forward.11} parent=5 // pred_fallthru
      _
    %p1245 = scmp.le.s32.totalorder 2, %s11
    // Predicated region
    $region45: #{fno3d_forward.11} parent=5 // pred_check
      %p1246 = pneg %p1245
    $region46: #{fno3d_forward.11} parent=5 // pred_check_branch
      %1248 = sbr.rel (%p1246) target = $region48
    $region47: #{fno3d_forward.11} parent=5 // pred_region
      %s1249 = ssub.s32 %s11, 2
      // Predicated region
      $region49: #{fno3d_forward.11} parent=47 // pred_check
        %p1250 = pneg %p150
      $region50: #{fno3d_forward.11} parent=47 // pred_check_branch
        %1252 = sbr.rel (%p1250) target = $region52
      $region51: #{fno3d_forward.11} parent=47 // pred_region
        %s1253 = smul.u32 16, %s17
        %p1254 = scmp.lt.s32.totalorder %s1253, 31
        %s1255 = scalar_select %p1254, %s1253, 31
        %s1256 = smul.addr %s1255, 4
        %s1257 = scalar_lea.vmem %s5, %s1256
      $region52: #{fno3d_forward.11} parent=47 // pred_fallthru
        _
    $region48: #{fno3d_forward.11} parent=5 // pred_fallthru
      _
  $region6: #{fno3d_forward.11} parent=0 // loop_footer
    %s15 = sadd.s32 1, %s11
  $region7: #{fno3d_forward.11} parent=0 // loop_footer_branch
    %10 = sbr.rel target = $region3
  $region8: #{fno3d_forward.11} parent=0 // loop_exit
    _

</llo_original>
